<compile_context>
chip_gen: v5e
topology: v5e:2x2
jax: 0.10.0
libtpu: 0.0.40
codegen_flags: <defaults>
</compile_context>

<pallas_src>
import functools
import math

import numpy as np
import jax
import jax.numpy as jnp
from jax.experimental import pallas as pl
from jax.experimental.pallas import tpu as pltpu


# ---------------------------------------------------------------------------
# Shared helpers (kernel + pure-JAX reference)
# ---------------------------------------------------------------------------
_GELU_C = math.sqrt(2.0 / math.pi)


def _gelu_tanh(x):
    # TODO(synk): PyTorch nn.GELU() defaults to the exact erf form; the tanh
    # approximation is used for guaranteed Mosaic lowering (~1e-3 max dev).
    return 0.5 * x * (1.0 + jnp.tanh(_GELU_C * (x + 0.044715 * x * x * x)))


def _layernorm(x, g, b, eps=1e-5):
    mu = jnp.mean(x, axis=-1, keepdims=True)
    xc = x - mu
    var = jnp.mean(xc * xc, axis=-1, keepdims=True)
    return xc * jax.lax.rsqrt(var + eps) * g + b


def get_window_size_jax(x_size, window_size, shift_size=None):
    use_ws = list(window_size)
    use_ss = list(shift_size) if shift_size is not None else None
    for i in range(len(x_size)):
        if x_size[i] <= window_size[i]:
            use_ws[i] = x_size[i]
            if shift_size is not None:
                use_ss[i] = 0
    if shift_size is None:
        return tuple(use_ws)
    return tuple(use_ws), tuple(use_ss)


def window_partition_jax(x, ws):
    b, d, h, w, c = x.shape
    x = x.reshape(b, d // ws[0], ws[0], h // ws[1], ws[1], w // ws[2], ws[2], c)
    x = jnp.transpose(x, (0, 1, 3, 5, 2, 4, 6, 7))
    return x.reshape(-1, ws[0] * ws[1] * ws[2], c)


def window_reverse_jax(windows, ws, dims):
    b, d, h, w = dims
    x = windows.reshape(b, d // ws[0], h // ws[1], w // ws[2],
                        ws[0], ws[1], ws[2], -1)
    x = jnp.transpose(x, (0, 1, 4, 2, 5, 3, 6, 7))
    return x.reshape(b, d, h, w, -1)


def build_rel_pos_bias(table, rel_pos_index, n, num_heads):
    idx = rel_pos_index[:n, :n].reshape(-1)
    bias = table[idx].reshape(n, n, num_heads)
    return jnp.transpose(bias, (2, 0, 1)).astype(jnp.float32)  # (H, n, n)


def build_block_bias_mask(table, num_heads, ws, rh_blk, w_full, neg=-1e9):
    """(H, R, R) rel-pos bias for one attention group of R = ws0*rh_blk*w_full
    rows in natural (dd, hh, ww) order; cross-window pairs get `neg` so that
    exp() underflows to 0 and attention is exactly block-diagonal per window."""
    ws0, ws1, ws2 = ws
    dd, hh, ww = np.meshgrid(np.arange(ws0), np.arange(rh_blk),
                             np.arange(w_full), indexing="ij")
    coords = np.stack([dd.ravel(), hh.ravel(), ww.ravel()], axis=-1)  # (R, 3)
    same = (((coords[:, 1] // ws1)[:, None] == (coords[:, 1] // ws1)[None, :]) &
            ((coords[:, 2] // ws2)[:, None] == (coords[:, 2] // ws2)[None, :]))
    ld = coords[:, 0]
    lh = coords[:, 1] % ws1
    lw = coords[:, 2] % ws2
    rel_d = ld[:, None] - ld[None, :] + (ws0 - 1)
    rel_h = lh[:, None] - lh[None, :] + (ws1 - 1)
    rel_w = lw[:, None] - lw[None, :] + (ws2 - 1)
    idx = (rel_d * (2 * ws1 - 1) * (2 * ws2 - 1)
           + rel_h * (2 * ws2 - 1) + rel_w)                           # (R, R)
    R = idx.shape[0]
    bias = table[idx.reshape(-1)].reshape(R, R, num_heads)
    bias = jnp.transpose(bias, (2, 0, 1)).astype(jnp.float32)          # (H,R,R)
    return jnp.where(jnp.asarray(same)[None, :, :], bias, jnp.float32(neg))


def _largest_div(n, cap):
    cap = max(1, min(n, cap))
    for k in range(cap, 0, -1):
        if n % k == 0:
            return k
    return 1


# ---------------------------------------------------------------------------
# Fused kernel: LN1 + windowed MSA + residual + LN2 + MLP + residual
# Block: (B_b, B_d*ws0, B_h*ws1, w, c)  ->  G = B_b*B_d attention groups of
# R = ws0*B_h*ws1*w rows each (window structure enforced by the bias/mask).
# ---------------------------------------------------------------------------
def _swin_block_kernel(x_ref, g1_ref, b1_ref, wqkv_ref, bqkv_ref, bias_ref,
                       wproj_ref, bproj_ref, g2_ref, b2_ref,
                       w1_ref, b1m_ref, w2_ref, b2m_ref,
                       o_ref, ctx_scratch, *, num_heads, groups, rows):
    c = x_ref.shape[-1]
    H = num_heads
    dh = c // H
    G, R = groups, rows
    M = G * R
    mm = wqkv_ref.dtype                                   # MXU operand dtype

    x0 = x_ref[...].astype(jnp.float32).reshape(M, c)     # pre-norm input rows

    # ---- LayerNorm1 (f32) ----
    mu = jnp.mean(x0, axis=-1, keepdims=True)
    xc = x0 - mu
    var = jnp.mean(xc * xc, axis=-1, keepdims=True)
    xn = xc * jax.lax.rsqrt(var + 1e-5) * g1_ref[...] + b1_ref[...]

    # ---- QKV projection: one (M, c) x (c, 3c) GEMM (q already scaled) ----
    qkv = jnp.dot(xn.astype(mm), wqkv_ref[...],
                  preferred_element_type=jnp.float32) + bqkv_ref[...]  # (M,3c)
    qkv = qkv.reshape(G, R, 3 * c)

    # ---- per-head attention over G groups; heads assembled in VMEM scratch
    #      so the output projection is a single K=c GEMM ----
    for h in range(H):                                     # static, H small
        q = qkv[:, :, h * dh:(h + 1) * dh].astype(mm)
        k = qkv[:, :, c + h * dh:c + (h + 1) * dh].astype(mm)
        v = qkv[:, :, 2 * c + h * dh:2 * c + (h + 1) * dh].astype(mm)

        s = jnp.einsum("gqd,gkd->gqk", q, k,
                       preferred_element_type=jnp.float32)  # (G, R, R)
        s = s + bias_ref[h]                  # rel-pos bias + window mask (-1e9)
        s = s - jnp.max(s, axis=-1, keepdims=True)
        p = jnp.exp(s)                       # masked entries underflow to 0.0
        p = p * pl.reciprocal(jnp.sum(p, axis=-1, keepdims=True), approx=True)

        ctx = jnp.einsum("gqk,gkd->gqd", p.astype(mm), v,
                         preferred_element_type=jnp.float32)  # (G, R, dh)
        ctx_scratch[:, h * dh:(h + 1) * dh] = ctx.reshape(M, dh)

    attn = jnp.dot(ctx_scratch[...].astype(mm), wproj_ref[...],
                   preferred_element_type=jnp.float32) + bproj_ref[...]
    x1 = x0 + attn                                           # first residual

    # ---- LayerNorm2 + MLP(GELU) + second residual (drop rates are 0.0) ----
    mu2 = jnp.mean(x1, axis=-1, keepdims=True)
    xc2 = x1 - mu2
    var2 = jnp.mean(xc2 * xc2, axis=-1, keepdims=True)
    xn2 = xc2 * jax.lax.rsqrt(var2 + 1e-5) * g2_ref[...] + b2_ref[...]

    h1 = jnp.dot(xn2.astype(mm), w1_ref[...],
                 preferred_element_type=jnp.float32) + b1m_ref[...]
    h1 = _gelu_tanh(h1)
    out = x1 + jnp.dot(h1.astype(mm), w2_ref[...],
                       preferred_element_type=jnp.float32) + b2m_ref[...]

    o_ref[...] = out.reshape(o_ref.shape).astype(o_ref.dtype)


# ---------------------------------------------------------------------------
# Host-side (one-time) prep + wrapper
# ---------------------------------------------------------------------------
def swin_block_prepare(p, x_shape, window_size, shift_size, *,
                       mm_dtype=jnp.bfloat16, target_rows=1024, r_cap=128):
    b, d, h, w, c = x_shape
    H = p["num_heads"]
    dh = c // H
    ws, ss = get_window_size_jax((d, h, w), window_size, shift_size)
    # TODO(synk): spatial padding for non-divisible sizes not implemented.
    assert d % ws[0] == 0 and h % ws[1] == 0 and w % ws[2] == 0

    nwd, nwh = d // ws[0], h // ws[1]
    r_unit = ws[0] * ws[1] * w                 # rows of one (d-row, h-row) group
    B_h = _largest_div(nwh, max(1, r_cap // r_unit))
    R = r_unit * B_h
    B_d = _largest_div(nwd, max(1, target_rows // R))
    B_b = _largest_div(b, max(1, target_rows // (R * B_d)))

    cfg = dict(
        ws=ws, ss=ss, H=H, c=c, m=int(p["w1"].shape[1]),
        G=B_b * B_d, R=R,
        blk=(B_b, B_d * ws[0], B_h * ws[1], w, c),
        grid=(b // B_b, d // (B_d * ws[0]), h // (B_h * ws[1])),
    )

    scale = dh ** -0.5
    tensors = dict(
        g1=p["g1"].reshape(1, c).astype(jnp.float32),
        b1=p["b1"].reshape(1, c).astype(jnp.float32),
        wqkv=p["w_qkv"].at[:, :c].multiply(scale).astype(mm_dtype),
        bqkv=p["b_qkv"].at[:c].multiply(scale).reshape(1, 3 * c).astype(jnp.float32),
        biasmask=build_block_bias_mask(p["rel_table"], H, ws, B_h * ws[1], w),
        wproj=p["w_proj"].astype(mm_dtype),
        bproj=p["b_proj"].reshape(1, c).astype(jnp.float32),
        g2=p["g2"].reshape(1, c).astype(jnp.float32),
        b2=p["b2"].reshape(1, c).astype(jnp.float32),
        w1=p["w1"].astype(mm_dtype),
        b1m=p["b1m"].reshape(1, -1).astype(jnp.float32),
        w2=p["w2"].astype(mm_dtype),
        b2m=p["b2m"].reshape(1, c).astype(jnp.float32),
    )
    return cfg, tensors


def swin_block_apply(x, cfg, t, *, core_parallel=False):
    b, d, h, w, c = x.shape
    ss = cfg["ss"]
    H, G, R, m = cfg["H"], cfg["G"], cfg["R"], cfg["m"]
    blk, grid = cfg["blk"], cfg["grid"]
    M = G * R

    x_in = x
    if any(s > 0 for s in ss):
        # TODO(synk): SW-MSA attention mask (mask_matrix) not implemented; the
        # roll alone allows cross-boundary attention for shifted windows.
        x_in = jnp.roll(x, shift=(-ss[0], -ss[1], -ss[2]), axis=(1, 2, 3))

    if core_parallel:   # v7x: shard leading grid axis across the 2 TensorCores
        sems = (pltpu.CORE_PARALLEL,) + (pltpu.ARBITRARY,) * 2
    else:
        sems = (pltpu.PARALLEL,) * 3

    data_map = lambda i, j, k: (i, j, k, 0, 0)
    cmap2 = lambda i, j, k: (0, 0)
    cmap3 = lambda i, j, k: (0, 0, 0)

    out = pl.pallas_call(
        functools.partial(_swin_block_kernel, num_heads=H, groups=G, rows=R),
        out_shape=jax.ShapeDtypeStruct(x.shape, x.dtype),
        grid_spec=pltpu.PrefetchScalarGridSpec(
            num_scalar_prefetch=0,
            grid=grid,
            in_specs=[
                pl.BlockSpec(blk, data_map),                 # x block
                pl.BlockSpec((1, c), cmap2),                 # gamma1
                pl.BlockSpec((1, c), cmap2),                 # beta1
                pl.BlockSpec((c, 3 * c), cmap2),             # W_qkv (scaled, mm)
                pl.BlockSpec((1, 3 * c), cmap2),             # b_qkv (scaled)
                pl.BlockSpec((H, R, R), cmap3),              # rel-pos bias+mask
                pl.BlockSpec((c, c), cmap2),                 # W_proj
                pl.BlockSpec((1, c), cmap2),                 # b_proj
                pl.BlockSpec((1, c), cmap2),                 # gamma2
                pl.BlockSpec((1, c), cmap2),                 # beta2
                pl.BlockSpec((c, m), cmap2),                 # W1
                pl.BlockSpec((1, m), cmap2),                 # b1
                pl.BlockSpec((m, c), cmap2),                 # W2
                pl.BlockSpec((1, c), cmap2),                 # b2
            ],
            out_specs=pl.BlockSpec(blk, data_map),
            scratch_shapes=[pltpu.VMEM((M, c), jnp.float32)],  # head-merge buf
        ),
        compiler_params=pltpu.CompilerParams(
            dimension_semantics=sems,
            vmem_limit_bytes=32 * 1024 * 1024,
        ),
    )(x_in, t["g1"], t["b1"], t["wqkv"], t["bqkv"], t["biasmask"],
      t["wproj"], t["bproj"], t["g2"], t["b2"],
      t["w1"], t["b1m"], t["w2"], t["b2m"])

    if any(s > 0 for s in ss):
        out = jnp.roll(out, shift=(ss[0], ss[1], ss[2]), axis=(1, 2, 3))
    return out


def swin_trans_block_pallas(x, p, window_size, shift_size, mask_matrix=None, *,
                            mm_dtype=jnp.bfloat16, target_rows=1024,
                            r_cap=128, core_parallel=False):
    assert mask_matrix is None  # TODO(synk): SW-MSA mask branch not implemented
    cfg, tensors = swin_block_prepare(p, x.shape, window_size, shift_size,
                                      mm_dtype=mm_dtype,
                                      target_rows=target_rows, r_cap=r_cap)
    return swin_block_apply(x, cfg, tensors, core_parallel=core_parallel)


# ---------------------------------------------------------------------------
# Deterministic parameters (mirrors SwinTrans_Block.__init__, qkv_bias=True,
# mlp_ratio=4.0; dropouts are 0.0)
# ---------------------------------------------------------------------------
def make_params(key, embed_dim, num_heads, window_size, mlp_ratio=4.0):
    c = embed_dim
    m = int(c * mlp_ratio)
    ks = jax.random.split(key, 13)

    ws = window_size
    coords = np.stack(np.meshgrid(np.arange(ws[0]), np.arange(ws[1]),
                                  np.arange(ws[2]), indexing="ij"))
    coords_flatten = coords.reshape(3, -1)
    rel = coords_flatten[:, :, None] - coords_flatten[:, None, :]
    rel = rel.transpose(1, 2, 0).astype(np.int64)
    rel[:, :, 0] += ws[0] - 1
    rel[:, :, 1] += ws[1] - 1
    rel[:, :, 2] += ws[2] - 1
    rel[:, :, 0] *= (2 * ws[1] - 1) * (2 * ws[2] - 1)
    rel[:, :, 1] *= 2 * ws[2] - 1
    rel_pos_index = rel.sum(-1)

    tbl_len = ((2 * ws[0] - 1) * (2 * ws[1] - 1) * (2 * ws[2] - 1))

    def lin(k, fan_in, shape):
        return jax.random.normal(k, shape, jnp.float32) / math.sqrt(fan_in)

    return dict(
        num_heads=num_heads,
        g1=1.0 + 0.1 * jax.random.normal(ks[0], (c,), jnp.float32),
        b1=0.05 * jax.random.normal(ks[1], (c,), jnp.float32),
        w_qkv=lin(ks[2], c, (c, 3 * c)),
        b_qkv=0.02 * jax.random.normal(ks[3], (3 * c,), jnp.float32),
        w_proj=lin(ks[4], c, (c, c)),
        b_proj=0.02 * jax.random.normal(ks[5], (c,), jnp.float32),
        g2=1.0 + 0.1 * jax.random.normal(ks[6], (c,), jnp.float32),
        b2=0.05 * jax.random.normal(ks[7], (c,), jnp.float32),
        w1=lin(ks[8], c, (c, m)),
        b1m=0.02 * jax.random.normal(ks[9], (m,), jnp.float32),
        w2=lin(ks[10], m, (m, c)),
        b2m=0.02 * jax.random.normal(ks[11], (c,), jnp.float32),
        rel_table=jnp.clip(
            0.02 * jax.random.normal(ks[12], (tbl_len, num_heads), jnp.float32),
            -2.0, 2.0),
        rel_index=jnp.asarray(rel_pos_index, dtype=jnp.int32),
    )


# ---------------------------------------------------------------------------
# Pure-JAX reference (same math as the PyTorch forward, mask_matrix=None)
# ---------------------------------------------------------------------------
def swin_trans_block_ref(x, p, window_size, shift_size):
    b, d, h, w, c = x.shape
    H = p["num_heads"]
    dh = c // H
    ws, ss = get_window_size_jax((d, h, w), window_size, shift_size)
    n = ws[0] * ws[1] * ws[2]

    xn = _layernorm(x, p["g1"], p["b1"])
    if any(s > 0 for s in ss):
        xn = jnp.roll(xn, shift=(-ss[0], -ss[1], -ss[2]), axis=(1, 2, 3))
    xw = window_partition_jax(xn, ws)                          # (nw, n, c)
    nw = xw.shape[0]
    scale = dh ** -0.5
    qkv = xw @ p["w_qkv"] + p["b_qkv"]
    qkv = qkv.reshape(nw, n, 3, H, dh).transpose(2, 0, 3, 1, 4)
    q, k, v = qkv[0] * scale, qkv[1], qkv[2]
    bias = build_rel_pos_bias(p["rel_table"], p["rel_index"], n, H)
    attn = jnp.einsum("bhqd,bhkd->bhqk", q, k) + bias[None]
    attn = jax.nn.softmax(attn, axis=-1)
    ctx = jnp.einsum("bhqk,bhkd->bhqd", attn, v)
    ctx = ctx.transpose(0, 2, 1, 3).reshape(nw, n, c)
    aw = ctx @ p["w_proj"] + p["b_proj"]
    shifted = window_reverse_jax(aw, ws, (b, d, h, w))
    if any(s > 0 for s in ss):
        shifted = jnp.roll(shifted, shift=(ss[0], ss[1], ss[2]), axis=(1, 2, 3))
    x1 = x + shifted

    x2 = _layernorm(x1, p["g2"], p["b2"])
    hmid = _gelu_tanh(x2 @ p["w1"] + p["b1m"])
    return x1 + (hmid @ p["w2"] + p["b2m"])


# ---------------------------------------------------------------------------
if __name__ == "__main__":
    embed_dim = 32
    num_heads = 4
    window_size = [2, 2, 2]          # n = 8 tokens per window
    shift_size = [0, 0, 0]
    batch, D, Hs, Ws = 2, 4, 8, 8    # 512 tokens, 64 windows

    key = jax.random.PRNGKey(0)
    kx, kp = jax.random.split(key)
    x = jax.random.normal(kx, (batch, D, Hs, Ws, embed_dim), jnp.float32)
    params = make_params(kp, embed_dim, num_heads, window_size)

    ref = swin_trans_block_ref(x, params, window_size, shift_size)

    # Default path: bf16 MXU operands, f32 LN/softmax/accumulation.
    out = swin_trans_block_pallas(x, params, window_size, shift_size)
    out = jax.block_until_ready(out)
    assert out.shape == x.shape
    assert bool(jnp.all(jnp.isfinite(out)))
    assert float(jnp.max(jnp.abs(out - ref))) < 0.25

    # f32 MXU-operand path: tight check (tolerance covers the approximate EUP
    # reciprocal in softmax and MXU accumulation-order differences).
    out_f32 = swin_trans_block_pallas(x, params, window_size, shift_size,
                                      mm_dtype=jnp.float32)
    out_f32 = jax.block_until_ready(out_f32)
    assert bool(jnp.allclose(out_f32, ref, atol=5e-3, rtol=5e-3))

    print("KERNEL_OK")
</pallas_src>

<mosaic_0001>
module attributes {stable_mosaic.version = 11 : i64} {
  func.func @_swin_block_kernel(%arg0: i32, %arg1: i32, %arg2: i32, %arg3: memref<2x4x8x8x32xf32, #tpu.memory_space<vmem>>, %arg4: memref<1x32xf32, #tpu.memory_space<vmem>>, %arg5: memref<1x32xf32, #tpu.memory_space<vmem>>, %arg6: memref<32x96xbf16, #tpu.memory_space<vmem>>, %arg7: memref<1x96xf32, #tpu.memory_space<vmem>>, %arg8: memref<4x128x128xf32, #tpu.memory_space<vmem>>, %arg9: memref<32x32xbf16, #tpu.memory_space<vmem>>, %arg10: memref<1x32xf32, #tpu.memory_space<vmem>>, %arg11: memref<1x32xf32, #tpu.memory_space<vmem>>, %arg12: memref<1x32xf32, #tpu.memory_space<vmem>>, %arg13: memref<32x128xbf16, #tpu.memory_space<vmem>>, %arg14: memref<1x128xf32, #tpu.memory_space<vmem>>, %arg15: memref<128x32xbf16, #tpu.memory_space<vmem>>, %arg16: memref<1x32xf32, #tpu.memory_space<vmem>>, %arg17: memref<2x4x8x8x32xf32, #tpu.memory_space<vmem>>, %arg18: memref<512x32xf32, #tpu.memory_space<vmem>>) attributes {dimension_semantics = [#tpu.dimension_semantics<parallel>, #tpu.dimension_semantics<parallel>, #tpu.dimension_semantics<parallel>], iteration_bounds = array<i64: 1, 1, 1>, scalar_prefetch = 0 : i64, scratch_operands = 1 : i64, tpu.core_type = #tpu.core_type<tc>, window_params = [{transform_indices = @transform_0, window_bounds = array<i64: 2, 4, 8, 8, 32>}, {pipeline_mode = #tpu.pipeline_mode<synchronous>, transform_indices = @transform_1, window_bounds = array<i64: 1, 32>}, {pipeline_mode = #tpu.pipeline_mode<synchronous>, transform_indices = @transform_2, window_bounds = array<i64: 1, 32>}, {pipeline_mode = #tpu.pipeline_mode<synchronous>, transform_indices = @transform_3, window_bounds = array<i64: 32, 96>}, {pipeline_mode = #tpu.pipeline_mode<synchronous>, transform_indices = @transform_4, window_bounds = array<i64: 1, 96>}, {pipeline_mode = #tpu.pipeline_mode<synchronous>, transform_indices = @transform_5, window_bounds = array<i64: 4, 128, 128>}, {pipeline_mode = #tpu.pipeline_mode<synchronous>, transform_indices = @transform_6, window_bounds = array<i64: 32, 32>}, {pipeline_mode = #tpu.pipeline_mode<synchronous>, transform_indices = @transform_7, window_bounds = array<i64: 1, 32>}, {pipeline_mode = #tpu.pipeline_mode<synchronous>, transform_indices = @transform_8, window_bounds = array<i64: 1, 32>}, {pipeline_mode = #tpu.pipeline_mode<synchronous>, transform_indices = @transform_9, window_bounds = array<i64: 1, 32>}, {pipeline_mode = #tpu.pipeline_mode<synchronous>, transform_indices = @transform_10, window_bounds = array<i64: 32, 128>}, {pipeline_mode = #tpu.pipeline_mode<synchronous>, transform_indices = @transform_11, window_bounds = array<i64: 1, 128>}, {pipeline_mode = #tpu.pipeline_mode<synchronous>, transform_indices = @transform_12, window_bounds = array<i64: 128, 32>}, {pipeline_mode = #tpu.pipeline_mode<synchronous>, transform_indices = @transform_13, window_bounds = array<i64: 1, 32>}, {transform_indices = @transform_14, window_bounds = array<i64: 2, 4, 8, 8, 32>}]} {
    %c0 = arith.constant 0 : index
    %c0_0 = arith.constant 0 : index
    %c0_1 = arith.constant 0 : index
    %c0_2 = arith.constant 0 : index
    %c0_3 = arith.constant 0 : index
    %0 = vector.load %arg3[%c0, %c0_0, %c0_1, %c0_2, %c0_3] : memref<2x4x8x8x32xf32, #tpu.memory_space<vmem>>, vector<2x4x8x8x32xf32>
    %1 = vector.shape_cast %0 : vector<2x4x8x8x32xf32> to vector<512x32xf32>
    %cst = arith.constant dense<0.000000e+00> : vector<512xf32>
    %2 = vector.multi_reduction <add>, %1, %cst [1] : vector<512x32xf32> to vector<512xf32>
    %3 = vector.shape_cast %2 : vector<512xf32> to vector<512x1xf32>
    %cst_4 = arith.constant 3.200000e+01 : f32
    %4 = vector.broadcast %cst_4 : f32 to vector<512x1xf32>
    %5 = arith.divf %3, %4 : vector<512x1xf32>
    %6 = vector.broadcast %5 : vector<512x1xf32> to vector<512x32xf32>
    %7 = arith.subf %1, %6 : vector<512x32xf32>
    %8 = arith.mulf %7, %7 : vector<512x32xf32>
    %cst_5 = arith.constant dense<0.000000e+00> : vector<512xf32>
    %9 = vector.multi_reduction <add>, %8, %cst_5 [1] : vector<512x32xf32> to vector<512xf32>
    %10 = vector.shape_cast %9 : vector<512xf32> to vector<512x1xf32>
    %cst_6 = arith.constant 3.200000e+01 : f32
    %11 = vector.broadcast %cst_6 : f32 to vector<512x1xf32>
    %12 = arith.divf %10, %11 : vector<512x1xf32>
    %cst_7 = arith.constant 9.99999974E-6 : f32
    %13 = vector.broadcast %cst_7 : f32 to vector<512x1xf32>
    %14 = arith.addf %12, %13 : vector<512x1xf32>
    %15 = math.rsqrt %14 : vector<512x1xf32>
    %16 = vector.broadcast %15 : vector<512x1xf32> to vector<512x32xf32>
    %17 = arith.mulf %7, %16 : vector<512x32xf32>
    %c0_8 = arith.constant 0 : index
    %c0_9 = arith.constant 0 : index
    %18 = vector.load %arg4[%c0_8, %c0_9] : memref<1x32xf32, #tpu.memory_space<vmem>>, vector<1x32xf32>
    %19 = vector.broadcast %18 : vector<1x32xf32> to vector<512x32xf32>
    %20 = arith.mulf %17, %19 : vector<512x32xf32>
    %c0_10 = arith.constant 0 : index
    %c0_11 = arith.constant 0 : index
    %21 = vector.load %arg5[%c0_10, %c0_11] : memref<1x32xf32, #tpu.memory_space<vmem>>, vector<1x32xf32>
    %22 = vector.broadcast %21 : vector<1x32xf32> to vector<512x32xf32>
    %23 = arith.addf %20, %22 : vector<512x32xf32>
    %24 = arith.truncf %23 : vector<512x32xf32> to vector<512x32xbf16>
    %c0_12 = arith.constant 0 : index
    %c0_13 = arith.constant 0 : index
    %25 = vector.load %arg6[%c0_12, %c0_13] : memref<32x96xbf16, #tpu.memory_space<vmem>>, vector<32x96xbf16>
    %cst_14 = arith.constant dense<0.000000e+00> : vector<512x96xf32>
    %26 = tpu.matmul %24, %25, %cst_14 {dimension_numbers = #tpu.dot_dimension_numbers<[1], [0], [0], [1], [0, 0, 1, 1], [], []>} : vector<512x32xbf16>, vector<32x96xbf16>, vector<512x96xf32> -> vector<512x96xf32>
    %c0_15 = arith.constant 0 : index
    %c0_16 = arith.constant 0 : index
    %27 = vector.load %arg7[%c0_15, %c0_16] : memref<1x96xf32, #tpu.memory_space<vmem>>, vector<1x96xf32>
    %28 = vector.broadcast %27 : vector<1x96xf32> to vector<512x96xf32>
    %29 = arith.addf %26, %28 : vector<512x96xf32>
    %30 = vector.shape_cast %29 : vector<512x96xf32> to vector<4x128x96xf32>
    %31 = vector.extract_strided_slice %30 {offsets = [0, 0, 0], sizes = [4, 128, 8], strides = [1, 1, 1]} : vector<4x128x96xf32> to vector<4x128x8xf32>
    %32 = arith.truncf %31 : vector<4x128x8xf32> to vector<4x128x8xbf16>
    %33 = vector.extract_strided_slice %30 {offsets = [0, 0, 32], sizes = [4, 128, 8], strides = [1, 1, 1]} : vector<4x128x96xf32> to vector<4x128x8xf32>
    %34 = arith.truncf %33 : vector<4x128x8xf32> to vector<4x128x8xbf16>
    %35 = vector.extract_strided_slice %30 {offsets = [0, 0, 64], sizes = [4, 128, 8], strides = [1, 1, 1]} : vector<4x128x96xf32> to vector<4x128x8xf32>
    %36 = arith.truncf %35 : vector<4x128x8xf32> to vector<4x128x8xbf16>
    "tpu.trace_start"() <{level = 10 : i32, message = "gqd,gkd->gqk"}> : () -> ()
    %cst_17 = arith.constant dense<0.000000e+00> : vector<4x128x128xf32>
    %37 = tpu.matmul %32, %34, %cst_17 {dimension_numbers = #tpu.dot_dimension_numbers<[2], [2], [1], [1], [0, 0, 0, 1, 1, 1], [0], [0]>} : vector<4x128x8xbf16>, vector<4x128x8xbf16>, vector<4x128x128xf32> -> vector<4x128x128xf32>
    "tpu.trace_stop"() : () -> ()
    %c0_18 = arith.constant 0 : index
    %c0_19 = arith.constant 0 : index
    %c0_20 = arith.constant 0 : index
    %38 = vector.load %arg8[%c0_18, %c0_19, %c0_20] : memref<4x128x128xf32, #tpu.memory_space<vmem>>, vector<1x128x128xf32>
    %39 = vector.shape_cast %38 : vector<1x128x128xf32> to vector<128x128xf32>
    %40 = vector.shape_cast %39 : vector<128x128xf32> to vector<1x128x128xf32>
    %41 = vector.broadcast %40 : vector<1x128x128xf32> to vector<4x128x128xf32>
    %42 = arith.addf %37, %41 : vector<4x128x128xf32>
    %cst_21 = arith.constant dense<0xFF800000> : vector<4x128xf32>
    %43 = vector.multi_reduction <maximumf>, %42, %cst_21 [2] : vector<4x128x128xf32> to vector<4x128xf32>
    %44 = vector.shape_cast %43 : vector<4x128xf32> to vector<4x128x1xf32>
    %45 = vector.broadcast %44 : vector<4x128x1xf32> to vector<4x128x128xf32>
    %46 = arith.subf %42, %45 : vector<4x128x128xf32>
    %47 = math.exp %46 : vector<4x128x128xf32>
    %cst_22 = arith.constant dense<0.000000e+00> : vector<4x128xf32>
    %48 = vector.multi_reduction <add>, %47, %cst_22 [2] : vector<4x128x128xf32> to vector<4x128xf32>
    %49 = vector.shape_cast %48 : vector<4x128xf32> to vector<4x128x1xf32>
    %50 = tpu.reciprocal %49 {approx = true} : vector<4x128x1xf32> -> vector<4x128x1xf32>
    %51 = vector.broadcast %50 : vector<4x128x1xf32> to vector<4x128x128xf32>
    %52 = arith.mulf %47, %51 : vector<4x128x128xf32>
    %53 = arith.truncf %52 : vector<4x128x128xf32> to vector<4x128x128xbf16>
    "tpu.trace_start"() <{level = 10 : i32, message = "gqk,gkd->gqd"}> : () -> ()
    %cst_23 = arith.constant dense<0.000000e+00> : vector<4x128x8xf32>
    %54 = tpu.matmul %53, %36, %cst_23 {dimension_numbers = #tpu.dot_dimension_numbers<[2], [1], [1], [2], [0, 0, 0, 1, 1, 2], [0], [0]>} : vector<4x128x128xbf16>, vector<4x128x8xbf16>, vector<4x128x8xf32> -> vector<4x128x8xf32>
    "tpu.trace_stop"() : () -> ()
    %55 = vector.shape_cast %54 : vector<4x128x8xf32> to vector<512x8xf32>
    %c0_24 = arith.constant 0 : index
    %c0_25 = arith.constant 0 : index
    %56 = vector.load %arg18[%c0_24, %c0_25] : memref<512x32xf32, #tpu.memory_space<vmem>>, vector<512x8xf32>
    tpu.vector_store %arg18[%c0_24, %c0_25], %55 {strides = array<i32>} : memref<512x32xf32, #tpu.memory_space<vmem>>, vector<512x8xf32>,
    %57 = vector.extract_strided_slice %30 {offsets = [0, 0, 8], sizes = [4, 128, 8], strides = [1, 1, 1]} : vector<4x128x96xf32> to vector<4x128x8xf32>
    %58 = arith.truncf %57 : vector<4x128x8xf32> to vector<4x128x8xbf16>
    %59 = vector.extract_strided_slice %30 {offsets = [0, 0, 40], sizes = [4, 128, 8], strides = [1, 1, 1]} : vector<4x128x96xf32> to vector<4x128x8xf32>
    %60 = arith.truncf %59 : vector<4x128x8xf32> to vector<4x128x8xbf16>
    %61 = vector.extract_strided_slice %30 {offsets = [0, 0, 72], sizes = [4, 128, 8], strides = [1, 1, 1]} : vector<4x128x96xf32> to vector<4x128x8xf32>
    %62 = arith.truncf %61 : vector<4x128x8xf32> to vector<4x128x8xbf16>
    "tpu.trace_start"() <{level = 10 : i32, message = "gqd,gkd->gqk"}> : () -> ()
    %cst_26 = arith.constant dense<0.000000e+00> : vector<4x128x128xf32>
    %63 = tpu.matmul %58, %60, %cst_26 {dimension_numbers = #tpu.dot_dimension_numbers<[2], [2], [1], [1], [0, 0, 0, 1, 1, 1], [0], [0]>} : vector<4x128x8xbf16>, vector<4x128x8xbf16>, vector<4x128x128xf32> -> vector<4x128x128xf32>
    "tpu.trace_stop"() : () -> ()
    %c1 = arith.constant 1 : index
    %c0_27 = arith.constant 0 : index
    %c0_28 = arith.constant 0 : index
    %64 = vector.load %arg8[%c1, %c0_27, %c0_28] : memref<4x128x128xf32, #tpu.memory_space<vmem>>, vector<1x128x128xf32>
    %65 = vector.shape_cast %64 : vector<1x128x128xf32> to vector<128x128xf32>
    %66 = vector.shape_cast %65 : vector<128x128xf32> to vector<1x128x128xf32>
    %67 = vector.broadcast %66 : vector<1x128x128xf32> to vector<4x128x128xf32>
    %68 = arith.addf %63, %67 : vector<4x128x128xf32>
    %cst_29 = arith.constant dense<0xFF800000> : vector<4x128xf32>
    %69 = vector.multi_reduction <maximumf>, %68, %cst_29 [2] : vector<4x128x128xf32> to vector<4x128xf32>
    %70 = vector.shape_cast %69 : vector<4x128xf32> to vector<4x128x1xf32>
    %71 = vector.broadcast %70 : vector<4x128x1xf32> to vector<4x128x128xf32>
    %72 = arith.subf %68, %71 : vector<4x128x128xf32>
    %73 = math.exp %72 : vector<4x128x128xf32>
    %cst_30 = arith.constant dense<0.000000e+00> : vector<4x128xf32>
    %74 = vector.multi_reduction <add>, %73, %cst_30 [2] : vector<4x128x128xf32> to vector<4x128xf32>
    %75 = vector.shape_cast %74 : vector<4x128xf32> to vector<4x128x1xf32>
    %76 = tpu.reciprocal %75 {approx = true} : vector<4x128x1xf32> -> vector<4x128x1xf32>
    %77 = vector.broadcast %76 : vector<4x128x1xf32> to vector<4x128x128xf32>
    %78 = arith.mulf %73, %77 : vector<4x128x128xf32>
    %79 = arith.truncf %78 : vector<4x128x128xf32> to vector<4x128x128xbf16>
    "tpu.trace_start"() <{level = 10 : i32, message = "gqk,gkd->gqd"}> : () -> ()
    %cst_31 = arith.constant dense<0.000000e+00> : vector<4x128x8xf32>
    %80 = tpu.matmul %79, %62, %cst_31 {dimension_numbers = #tpu.dot_dimension_numbers<[2], [1], [1], [2], [0, 0, 0, 1, 1, 2], [0], [0]>} : vector<4x128x128xbf16>, vector<4x128x8xbf16>, vector<4x128x8xf32> -> vector<4x128x8xf32>
    "tpu.trace_stop"() : () -> ()
    %81 = vector.shape_cast %80 : vector<4x128x8xf32> to vector<512x8xf32>
    %c0_32 = arith.constant 0 : index
    %c8 = arith.constant 8 : index
    %82 = vector.load %arg18[%c0_32, %c8] : memref<512x32xf32, #tpu.memory_space<vmem>>, vector<512x8xf32>
    tpu.vector_store %arg18[%c0_32, %c8], %81 {strides = array<i32>} : memref<512x32xf32, #tpu.memory_space<vmem>>, vector<512x8xf32>,
    %83 = vector.extract_strided_slice %30 {offsets = [0, 0, 16], sizes = [4, 128, 8], strides = [1, 1, 1]} : vector<4x128x96xf32> to vector<4x128x8xf32>
    %84 = arith.truncf %83 : vector<4x128x8xf32> to vector<4x128x8xbf16>
    %85 = vector.extract_strided_slice %30 {offsets = [0, 0, 48], sizes = [4, 128, 8], strides = [1, 1, 1]} : vector<4x128x96xf32> to vector<4x128x8xf32>
    %86 = arith.truncf %85 : vector<4x128x8xf32> to vector<4x128x8xbf16>
    %87 = vector.extract_strided_slice %30 {offsets = [0, 0, 80], sizes = [4, 128, 8], strides = [1, 1, 1]} : vector<4x128x96xf32> to vector<4x128x8xf32>
    %88 = arith.truncf %87 : vector<4x128x8xf32> to vector<4x128x8xbf16>
    "tpu.trace_start"() <{level = 10 : i32, message = "gqd,gkd->gqk"}> : () -> ()
    %cst_33 = arith.constant dense<0.000000e+00> : vector<4x128x128xf32>
    %89 = tpu.matmul %84, %86, %cst_33 {dimension_numbers = #tpu.dot_dimension_numbers<[2], [2], [1], [1], [0, 0, 0, 1, 1, 1], [0], [0]>} : vector<4x128x8xbf16>, vector<4x128x8xbf16>, vector<4x128x128xf32> -> vector<4x128x128xf32>
    "tpu.trace_stop"() : () -> ()
    %c2 = arith.constant 2 : index
    %c0_34 = arith.constant 0 : index
    %c0_35 = arith.constant 0 : index
    %90 = vector.load %arg8[%c2, %c0_34, %c0_35] : memref<4x128x128xf32, #tpu.memory_space<vmem>>, vector<1x128x128xf32>
    %91 = vector.shape_cast %90 : vector<1x128x128xf32> to vector<128x128xf32>
    %92 = vector.shape_cast %91 : vector<128x128xf32> to vector<1x128x128xf32>
    %93 = vector.broadcast %92 : vector<1x128x128xf32> to vector<4x128x128xf32>
    %94 = arith.addf %89, %93 : vector<4x128x128xf32>
    %cst_36 = arith.constant dense<0xFF800000> : vector<4x128xf32>
    %95 = vector.multi_reduction <maximumf>, %94, %cst_36 [2] : vector<4x128x128xf32> to vector<4x128xf32>
    %96 = vector.shape_cast %95 : vector<4x128xf32> to vector<4x128x1xf32>
    %97 = vector.broadcast %96 : vector<4x128x1xf32> to vector<4x128x128xf32>
    %98 = arith.subf %94, %97 : vector<4x128x128xf32>
    %99 = math.exp %98 : vector<4x128x128xf32>
    %cst_37 = arith.constant dense<0.000000e+00> : vector<4x128xf32>
    %100 = vector.multi_reduction <add>, %99, %cst_37 [2] : vector<4x128x128xf32> to vector<4x128xf32>
    %101 = vector.shape_cast %100 : vector<4x128xf32> to vector<4x128x1xf32>
    %102 = tpu.reciprocal %101 {approx = true} : vector<4x128x1xf32> -> vector<4x128x1xf32>
    %103 = vector.broadcast %102 : vector<4x128x1xf32> to vector<4x128x128xf32>
    %104 = arith.mulf %99, %103 : vector<4x128x128xf32>
    %105 = arith.truncf %104 : vector<4x128x128xf32> to vector<4x128x128xbf16>
    "tpu.trace_start"() <{level = 10 : i32, message = "gqk,gkd->gqd"}> : () -> ()
    %cst_38 = arith.constant dense<0.000000e+00> : vector<4x128x8xf32>
    %106 = tpu.matmul %105, %88, %cst_38 {dimension_numbers = #tpu.dot_dimension_numbers<[2], [1], [1], [2], [0, 0, 0, 1, 1, 2], [0], [0]>} : vector<4x128x128xbf16>, vector<4x128x8xbf16>, vector<4x128x8xf32> -> vector<4x128x8xf32>
    "tpu.trace_stop"() : () -> ()
    %107 = vector.shape_cast %106 : vector<4x128x8xf32> to vector<512x8xf32>
    %c0_39 = arith.constant 0 : index
    %c16 = arith.constant 16 : index
    %108 = vector.load %arg18[%c0_39, %c16] : memref<512x32xf32, #tpu.memory_space<vmem>>, vector<512x8xf32>
    tpu.vector_store %arg18[%c0_39, %c16], %107 {strides = array<i32>} : memref<512x32xf32, #tpu.memory_space<vmem>>, vector<512x8xf32>,
    %109 = vector.extract_strided_slice %30 {offsets = [0, 0, 24], sizes = [4, 128, 8], strides = [1, 1, 1]} : vector<4x128x96xf32> to vector<4x128x8xf32>
    %110 = arith.truncf %109 : vector<4x128x8xf32> to vector<4x128x8xbf16>
    %111 = vector.extract_strided_slice %30 {offsets = [0, 0, 56], sizes = [4, 128, 8], strides = [1, 1, 1]} : vector<4x128x96xf32> to vector<4x128x8xf32>
    %112 = arith.truncf %111 : vector<4x128x8xf32> to vector<4x128x8xbf16>
    %113 = vector.extract_strided_slice %30 {offsets = [0, 0, 88], sizes = [4, 128, 8], strides = [1, 1, 1]} : vector<4x128x96xf32> to vector<4x128x8xf32>
    %114 = arith.truncf %113 : vector<4x128x8xf32> to vector<4x128x8xbf16>
    "tpu.trace_start"() <{level = 10 : i32, message = "gqd,gkd->gqk"}> : () -> ()
    %cst_40 = arith.constant dense<0.000000e+00> : vector<4x128x128xf32>
    %115 = tpu.matmul %110, %112, %cst_40 {dimension_numbers = #tpu.dot_dimension_numbers<[2], [2], [1], [1], [0, 0, 0, 1, 1, 1], [0], [0]>} : vector<4x128x8xbf16>, vector<4x128x8xbf16>, vector<4x128x128xf32> -> vector<4x128x128xf32>
    "tpu.trace_stop"() : () -> ()
    %c3 = arith.constant 3 : index
    %c0_41 = arith.constant 0 : index
    %c0_42 = arith.constant 0 : index
    %116 = vector.load %arg8[%c3, %c0_41, %c0_42] : memref<4x128x128xf32, #tpu.memory_space<vmem>>, vector<1x128x128xf32>
    %117 = vector.shape_cast %116 : vector<1x128x128xf32> to vector<128x128xf32>
    %118 = vector.shape_cast %117 : vector<128x128xf32> to vector<1x128x128xf32>
    %119 = vector.broadcast %118 : vector<1x128x128xf32> to vector<4x128x128xf32>
    %120 = arith.addf %115, %119 : vector<4x128x128xf32>
    %cst_43 = arith.constant dense<0xFF800000> : vector<4x128xf32>
    %121 = vector.multi_reduction <maximumf>, %120, %cst_43 [2] : vector<4x128x128xf32> to vector<4x128xf32>
    %122 = vector.shape_cast %121 : vector<4x128xf32> to vector<4x128x1xf32>
    %123 = vector.broadcast %122 : vector<4x128x1xf32> to vector<4x128x128xf32>
    %124 = arith.subf %120, %123 : vector<4x128x128xf32>
    %125 = math.exp %124 : vector<4x128x128xf32>
    %cst_44 = arith.constant dense<0.000000e+00> : vector<4x128xf32>
    %126 = vector.multi_reduction <add>, %125, %cst_44 [2] : vector<4x128x128xf32> to vector<4x128xf32>
    %127 = vector.shape_cast %126 : vector<4x128xf32> to vector<4x128x1xf32>
    %128 = tpu.reciprocal %127 {approx = true} : vector<4x128x1xf32> -> vector<4x128x1xf32>
    %129 = vector.broadcast %128 : vector<4x128x1xf32> to vector<4x128x128xf32>
    %130 = arith.mulf %125, %129 : vector<4x128x128xf32>
    %131 = arith.truncf %130 : vector<4x128x128xf32> to vector<4x128x128xbf16>
    "tpu.trace_start"() <{level = 10 : i32, message = "gqk,gkd->gqd"}> : () -> ()
    %cst_45 = arith.constant dense<0.000000e+00> : vector<4x128x8xf32>
    %132 = tpu.matmul %131, %114, %cst_45 {dimension_numbers = #tpu.dot_dimension_numbers<[2], [1], [1], [2], [0, 0, 0, 1, 1, 2], [0], [0]>} : vector<4x128x128xbf16>, vector<4x128x8xbf16>, vector<4x128x8xf32> -> vector<4x128x8xf32>
    "tpu.trace_stop"() : () -> ()
    %133 = vector.shape_cast %132 : vector<4x128x8xf32> to vector<512x8xf32>
    %c0_46 = arith.constant 0 : index
    %c24 = arith.constant 24 : index
    %134 = vector.load %arg18[%c0_46, %c24] : memref<512x32xf32, #tpu.memory_space<vmem>>, vector<512x8xf32>
    tpu.vector_store %arg18[%c0_46, %c24], %133 {strides = array<i32>} : memref<512x32xf32, #tpu.memory_space<vmem>>, vector<512x8xf32>,
    %c0_47 = arith.constant 0 : index
    %c0_48 = arith.constant 0 : index
    %135 = vector.load %arg18[%c0_47, %c0_48] : memref<512x32xf32, #tpu.memory_space<vmem>>, vector<512x32xf32>
    %136 = arith.truncf %135 : vector<512x32xf32> to vector<512x32xbf16>
    %c0_49 = arith.constant 0 : index
    %c0_50 = arith.constant 0 : index
    %137 = vector.load %arg9[%c0_49, %c0_50] : memref<32x32xbf16, #tpu.memory_space<vmem>>, vector<32x32xbf16>
    %cst_51 = arith.constant dense<0.000000e+00> : vector<512x32xf32>
    %138 = tpu.matmul %136, %137, %cst_51 {dimension_numbers = #tpu.dot_dimension_numbers<[1], [0], [0], [1], [0, 0, 1, 1], [], []>} : vector<512x32xbf16>, vector<32x32xbf16>, vector<512x32xf32> -> vector<512x32xf32>
    %c0_52 = arith.constant 0 : index
    %c0_53 = arith.constant 0 : index
    %139 = vector.load %arg10[%c0_52, %c0_53] : memref<1x32xf32, #tpu.memory_space<vmem>>, vector<1x32xf32>
    %140 = vector.broadcast %139 : vector<1x32xf32> to vector<512x32xf32>
    %141 = arith.addf %138, %140 : vector<512x32xf32>
    %142 = arith.addf %1, %141 : vector<512x32xf32>
    %cst_54 = arith.constant dense<0.000000e+00> : vector<512xf32>
    %143 = vector.multi_reduction <add>, %142, %cst_54 [1] : vector<512x32xf32> to vector<512xf32>
    %144 = vector.shape_cast %143 : vector<512xf32> to vector<512x1xf32>
    %cst_55 = arith.constant 3.200000e+01 : f32
    %145 = vector.broadcast %cst_55 : f32 to vector<512x1xf32>
    %146 = arith.divf %144, %145 : vector<512x1xf32>
    %147 = vector.broadcast %146 : vector<512x1xf32> to vector<512x32xf32>
    %148 = arith.subf %142, %147 : vector<512x32xf32>
    %149 = arith.mulf %148, %148 : vector<512x32xf32>
    %cst_56 = arith.constant dense<0.000000e+00> : vector<512xf32>
    %150 = vector.multi_reduction <add>, %149, %cst_56 [1] : vector<512x32xf32> to vector<512xf32>
    %151 = vector.shape_cast %150 : vector<512xf32> to vector<512x1xf32>
    %cst_57 = arith.constant 3.200000e+01 : f32
    %152 = vector.broadcast %cst_57 : f32 to vector<512x1xf32>
    %153 = arith.divf %151, %152 : vector<512x1xf32>
    %cst_58 = arith.constant 9.99999974E-6 : f32
    %154 = vector.broadcast %cst_58 : f32 to vector<512x1xf32>
    %155 = arith.addf %153, %154 : vector<512x1xf32>
    %156 = math.rsqrt %155 : vector<512x1xf32>
    %157 = vector.broadcast %156 : vector<512x1xf32> to vector<512x32xf32>
    %158 = arith.mulf %148, %157 : vector<512x32xf32>
    %c0_59 = arith.constant 0 : index
    %c0_60 = arith.constant 0 : index
    %159 = vector.load %arg11[%c0_59, %c0_60] : memref<1x32xf32, #tpu.memory_space<vmem>>, vector<1x32xf32>
    %160 = vector.broadcast %159 : vector<1x32xf32> to vector<512x32xf32>
    %161 = arith.mulf %158, %160 : vector<512x32xf32>
    %c0_61 = arith.constant 0 : index
    %c0_62 = arith.constant 0 : index
    %162 = vector.load %arg12[%c0_61, %c0_62] : memref<1x32xf32, #tpu.memory_space<vmem>>, vector<1x32xf32>
    %163 = vector.broadcast %162 : vector<1x32xf32> to vector<512x32xf32>
    %164 = arith.addf %161, %163 : vector<512x32xf32>
    %165 = arith.truncf %164 : vector<512x32xf32> to vector<512x32xbf16>
    %c0_63 = arith.constant 0 : index
    %c0_64 = arith.constant 0 : index
    %166 = vector.load %arg13[%c0_63, %c0_64] : memref<32x128xbf16, #tpu.memory_space<vmem>>, vector<32x128xbf16>
    %cst_65 = arith.constant dense<0.000000e+00> : vector<512x128xf32>
    %167 = tpu.matmul %165, %166, %cst_65 {dimension_numbers = #tpu.dot_dimension_numbers<[1], [0], [0], [1], [0, 0, 1, 1], [], []>} : vector<512x32xbf16>, vector<32x128xbf16>, vector<512x128xf32> -> vector<512x128xf32>
    %c0_66 = arith.constant 0 : index
    %c0_67 = arith.constant 0 : index
    %168 = vector.load %arg14[%c0_66, %c0_67] : memref<1x128xf32, #tpu.memory_space<vmem>>, vector<1x128xf32>
    %169 = vector.broadcast %168 : vector<1x128xf32> to vector<512x128xf32>
    %170 = arith.addf %167, %169 : vector<512x128xf32>
    %cst_68 = arith.constant 5.000000e-01 : f32
    %171 = vector.broadcast %cst_68 : f32 to vector<512x128xf32>
    %172 = arith.mulf %171, %170 : vector<512x128xf32>
    %cst_69 = arith.constant 4.471500e-02 : f32
    %173 = vector.broadcast %cst_69 : f32 to vector<512x128xf32>
    %174 = arith.mulf %173, %170 : vector<512x128xf32>
    %175 = arith.mulf %174, %170 : vector<512x128xf32>
    %176 = arith.mulf %175, %170 : vector<512x128xf32>
    %177 = arith.addf %170, %176 : vector<512x128xf32>
    %cst_70 = arith.constant 0.797884583 : f32
    %178 = vector.broadcast %cst_70 : f32 to vector<512x128xf32>
    %179 = arith.mulf %178, %177 : vector<512x128xf32>
    %180 = math.tanh %179 : vector<512x128xf32>
    %cst_71 = arith.constant 1.000000e+00 : f32
    %181 = vector.broadcast %cst_71 : f32 to vector<512x128xf32>
    %182 = arith.addf %181, %180 : vector<512x128xf32>
    %183 = arith.mulf %172, %182 : vector<512x128xf32>
    %184 = arith.truncf %183 : vector<512x128xf32> to vector<512x128xbf16>
    %c0_72 = arith.constant 0 : index
    %c0_73 = arith.constant 0 : index
    %185 = vector.load %arg15[%c0_72, %c0_73] : memref<128x32xbf16, #tpu.memory_space<vmem>>, vector<128x32xbf16>
    %cst_74 = arith.constant dense<0.000000e+00> : vector<512x32xf32>
    %186 = tpu.matmul %184, %185, %cst_74 {dimension_numbers = #tpu.dot_dimension_numbers<[1], [0], [0], [1], [0, 0, 1, 1], [], []>} : vector<512x128xbf16>, vector<128x32xbf16>, vector<512x32xf32> -> vector<512x32xf32>
    %187 = arith.addf %142, %186 : vector<512x32xf32>
    %c0_75 = arith.constant 0 : index
    %c0_76 = arith.constant 0 : index
    %188 = vector.load %arg16[%c0_75, %c0_76] : memref<1x32xf32, #tpu.memory_space<vmem>>, vector<1x32xf32>
    %189 = vector.broadcast %188 : vector<1x32xf32> to vector<512x32xf32>
    %190 = arith.addf %187, %189 : vector<512x32xf32>
    %191 = vector.shape_cast %190 : vector<512x32xf32> to vector<2x4x8x8x32xf32>
    %c0_77 = arith.constant 0 : index
    %c0_78 = arith.constant 0 : index
    %c0_79 = arith.constant 0 : index
    %c0_80 = arith.constant 0 : index
    %c0_81 = arith.constant 0 : index
    %192 = vector.load %arg17[%c0_77, %c0_78, %c0_79, %c0_80, %c0_81] : memref<2x4x8x8x32xf32, #tpu.memory_space<vmem>>, vector<2x4x8x8x32xf32>
    tpu.vector_store %arg17[%c0_77, %c0_78, %c0_79, %c0_80, %c0_81], %191 {strides = array<i32>} : memref<2x4x8x8x32xf32, #tpu.memory_space<vmem>>, vector<2x4x8x8x32xf32>,
    return
  }
  func.func @transform_0(%arg0: i32, %arg1: i32, %arg2: i32) -> (i32, i32, i32, i32, i32) {
    %c0_i32 = arith.constant 0 : i32
    %c0_i32_0 = arith.constant 0 : i32
    %c0_i32_1 = arith.constant 0 : i32
    return %arg0, %arg1, %arg2, %c0_i32, %c0_i32_0 : i32, i32, i32, i32, i32
  }
  func.func @transform_1(%arg0: i32, %arg1: i32, %arg2: i32) -> (i32, i32) {
    %c0_i32 = arith.constant 0 : i32
    %c0_i32_0 = arith.constant 0 : i32
    %c0_i32_1 = arith.constant 0 : i32
    return %c0_i32, %c0_i32_0 : i32, i32
  }
  func.func @transform_2(%arg0: i32, %arg1: i32, %arg2: i32) -> (i32, i32) {
    %c0_i32 = arith.constant 0 : i32
    %c0_i32_0 = arith.constant 0 : i32
    %c0_i32_1 = arith.constant 0 : i32
    return %c0_i32, %c0_i32_0 : i32, i32
  }
  func.func @transform_3(%arg0: i32, %arg1: i32, %arg2: i32) -> (i32, i32) {
    %c0_i32 = arith.constant 0 : i32
    %c0_i32_0 = arith.constant 0 : i32
    %c0_i32_1 = arith.constant 0 : i32
    return %c0_i32, %c0_i32_0 : i32, i32
  }
  func.func @transform_4(%arg0: i32, %arg1: i32, %arg2: i32) -> (i32, i32) {
    %c0_i32 = arith.constant 0 : i32
    %c0_i32_0 = arith.constant 0 : i32
    %c0_i32_1 = arith.constant 0 : i32
    return %c0_i32, %c0_i32_0 : i32, i32
  }
  func.func @transform_5(%arg0: i32, %arg1: i32, %arg2: i32) -> (i32, i32, i32) {
    %c0_i32 = arith.constant 0 : i32
    %c0_i32_0 = arith.constant 0 : i32
    %c0_i32_1 = arith.constant 0 : i32
    %c0_i32_2 = arith.constant 0 : i32
    return %c0_i32, %c0_i32_0, %c0_i32_1 : i32, i32, i32
  }
  func.func @transform_6(%arg0: i32, %arg1: i32, %arg2: i32) -> (i32, i32) {
    %c0_i32 = arith.constant 0 : i32
    %c0_i32_0 = arith.constant 0 : i32
    %c0_i32_1 = arith.constant 0 : i32
    return %c0_i32, %c0_i32_0 : i32, i32
  }
  func.func @transform_7(%arg0: i32, %arg1: i32, %arg2: i32) -> (i32, i32) {
    %c0_i32 = arith.constant 0 : i32
    %c0_i32_0 = arith.constant 0 : i32
    %c0_i32_1 = arith.constant 0 : i32
    return %c0_i32, %c0_i32_0 : i32, i32
  }
  func.func @transform_8(%arg0: i32, %arg1: i32, %arg2: i32) -> (i32, i32) {
    %c0_i32 = arith.constant 0 : i32
    %c0_i32_0 = arith.constant 0 : i32
    %c0_i32_1 = arith.constant 0 : i32
    return %c0_i32, %c0_i32_0 : i32, i32
  }
  func.func @transform_9(%arg0: i32, %arg1: i32, %arg2: i32) -> (i32, i32) {
    %c0_i32 = arith.constant 0 : i32
    %c0_i32_0 = arith.constant 0 : i32
    %c0_i32_1 = arith.constant 0 : i32
    return %c0_i32, %c0_i32_0 : i32, i32
  }
  func.func @transform_10(%arg0: i32, %arg1: i32, %arg2: i32) -> (i32, i32) {
    %c0_i32 = arith.constant 0 : i32
    %c0_i32_0 = arith.constant 0 : i32
    %c0_i32_1 = arith.constant 0 : i32
    return %c0_i32, %c0_i32_0 : i32, i32
  }
  func.func @transform_11(%arg0: i32, %arg1: i32, %arg2: i32) -> (i32, i32) {
    %c0_i32 = arith.constant 0 : i32
    %c0_i32_0 = arith.constant 0 : i32
    %c0_i32_1 = arith.constant 0 : i32
    return %c0_i32, %c0_i32_0 : i32, i32
  }
  func.func @transform_12(%arg0: i32, %arg1: i32, %arg2: i32) -> (i32, i32) {
    %c0_i32 = arith.constant 0 : i32
    %c0_i32_0 = arith.constant 0 : i32
    %c0_i32_1 = arith.constant 0 : i32
    return %c0_i32, %c0_i32_0 : i32, i32
  }
  func.func @transform_13(%arg0: i32, %arg1: i32, %arg2: i32) -> (i32, i32) {
    %c0_i32 = arith.constant 0 : i32
    %c0_i32_0 = arith.constant 0 : i32
    %c0_i32_1 = arith.constant 0 : i32
    return %c0_i32, %c0_i32_0 : i32, i32
  }
  func.func @transform_14(%arg0: i32, %arg1: i32, %arg2: i32) -> (i32, i32, i32, i32, i32) {
    %c0_i32 = arith.constant 0 : i32
    %c0_i32_0 = arith.constant 0 : i32
    %c0_i32_1 = arith.constant 0 : i32
    return %arg0, %arg1, %arg2, %c0_i32, %c0_i32_0 : i32, i32, i32, i32, i32
  }
}

</mosaic_0001>

<llo_original>
// kernel: tpu_custom_call.1
$region0: #{tpu_custom_call.1}
  #allocation0 [shape = 'u32[]', space=smem, size = 0x4, offset = 0x4, fixed_abs, tag = 'smem constant byte address 0x4 - core index']
  #allocation1 [shape = 'u32[72,128]{1,0:T(1,128)}', space=vmem, size = 0x9000, scoped, tag = 'internal scratch']
  #allocation2 [shape = 'f32[512,32]{1,0:T(8,128)}', space=vmem, size = 0x40000, scoped, tag = 'scratch operand']
  %s0 = inlined_call_operand.hbm [shape: f32[2,4,8,8,32], index: 0, kind: input, shape index: {}]
  %s1 = inlined_call_operand.vmem [shape: f32[1,32], index: 1, kind: input, shape index: {}]
  %s2 = inlined_call_operand.vmem [shape: f32[1,32], index: 2, kind: input, shape index: {}]
  %s3 = inlined_call_operand.vmem [shape: bf16[32,96], index: 3, kind: input, shape index: {}]
  %s4 = inlined_call_operand.vmem [shape: f32[1,96], index: 4, kind: input, shape index: {}]
  %s5 = inlined_call_operand.hbm [shape: f32[4,128,128], index: 5, kind: input, shape index: {}]
  %s6 = inlined_call_operand.vmem [shape: bf16[32,32], index: 6, kind: input, shape index: {}]
  %s7 = inlined_call_operand.vmem [shape: f32[1,32], index: 7, kind: input, shape index: {}]
  %s8 = inlined_call_operand.vmem [shape: f32[1,32], index: 8, kind: input, shape index: {}]
  %s9 = inlined_call_operand.vmem [shape: f32[1,32], index: 9, kind: input, shape index: {}]
  %s10 = inlined_call_operand.vmem [shape: bf16[32,128], index: 10, kind: input, shape index: {}]
  %s11 = inlined_call_operand.vmem [shape: f32[1,128], index: 11, kind: input, shape index: {}]
  %s12 = inlined_call_operand.vmem [shape: bf16[128,32], index: 12, kind: input, shape index: {}]
  %s13 = inlined_call_operand.vmem [shape: f32[1,32], index: 13, kind: input, shape index: {}]
  %s14 = inlined_call_operand.hbm [shape: f32[2,4,8,8,32], index: 14, kind: output, shape index: {}]
  %s15 = sld [smem:[#allocation0]]
  $region74: #{tpu_custom_call.1} parent=0
    _
  %s17 = ssub.s32 1, %s15
  %s18 = scalar_select 0, %s17, %s15
  $region1: #{tpu_custom_call.1} parent=0
    #allocation3 [shape = 'u8[262144]{0}', space=vmem, size = 0x40000, scoped, tag = 'input window, operand 0, single buffered']
    #allocation4 [shape = 's32[1]{0}', space=sflag, size = 0x4, scoped, tag = 'scoped memory for tpu_custom_call.1']
    #allocation5 [shape = 's32[1]{0}', space=sflag, size = 0x4, scoped, tag = 'scoped memory for tpu_custom_call.1']
    #allocation6 [shape = 'u8[262144]{0}', space=vmem, size = 0x40000, scoped, tag = 'input window, operand 5, single buffered']
    #allocation7 [shape = 's32[1]{0}', space=sflag, size = 0x4, scoped, tag = 'scoped memory for tpu_custom_call.1']
    #allocation8 [shape = 'u8[262144]{0}', space=vmem, size = 0x40000, scoped, tag = 'output window, operand 0, single buffered']
    %19 = vsyncpa [#allocation4], 0
    %20 = vsyncpa [#allocation7], 0
    %21 = vsyncpa [#allocation5], 0
    // Predicated region
    $region2: #{tpu_custom_call.1} parent=1 // pred_check
      _
    $region3: #{tpu_custom_call.1} parent=1 // pred_check_branch
      %23 = sbr.rel (0) target = $region5
    $region4: #{tpu_custom_call.1} parent=1 // pred_region
      %25 = vsyncadd [#allocation4], 0
      %s26 = sshll.u32 %s0, 4
      %s27 = int_to_ptr.hbm [resolvable:$true] %s26
      %s28 = sshll.u32 [#allocation3], 4
      %s29 = int_to_ptr.vmem [resolvable:$true] %s28
      %34 = dma.hbm_to_vmem [thread:$0]  %s27, 8192, %s29, [#allocation4], 128, 128, 8
    $region5: #{tpu_custom_call.1} parent=1 // pred_fallthru
      _
    // Predicated region
    $region6: #{tpu_custom_call.1} parent=1 // pred_check
      _
    $region7: #{tpu_custom_call.1} parent=1 // pred_check_branch
      %36 = sbr.rel (0) target = $region9
    $region8: #{tpu_custom_call.1} parent=1 // pred_region
      _
    $region9: #{tpu_custom_call.1} parent=1 // pred_fallthru
      _
    // Predicated region
    $region10: #{tpu_custom_call.1} parent=1 // pred_check
      _
    $region11: #{tpu_custom_call.1} parent=1 // pred_check_branch
      %38 = sbr.rel (0) target = $region13
    $region12: #{tpu_custom_call.1} parent=1 // pred_region
      _
    $region13: #{tpu_custom_call.1} parent=1 // pred_fallthru
      _
    // Predicated region
    $region14: #{tpu_custom_call.1} parent=1 // pred_check
      _
    $region15: #{tpu_custom_call.1} parent=1 // pred_check_branch
      %40 = sbr.rel (0) target = $region17
    $region16: #{tpu_custom_call.1} parent=1 // pred_region
      _
    $region17: #{tpu_custom_call.1} parent=1 // pred_fallthru
      _
    // Predicated region
    $region18: #{tpu_custom_call.1} parent=1 // pred_check
      _
    $region19: #{tpu_custom_call.1} parent=1 // pred_check_branch
      %42 = sbr.rel (0) target = $region21
    $region20: #{tpu_custom_call.1} parent=1 // pred_region
      _
    $region21: #{tpu_custom_call.1} parent=1 // pred_fallthru
      _
    // Predicated region
    $region22: #{tpu_custom_call.1} parent=1 // pred_check
      _
    $region23: #{tpu_custom_call.1} parent=1 // pred_check_branch
      %44 = sbr.rel (0) target = $region25
    $region24: #{tpu_custom_call.1} parent=1 // pred_region
      %46 = vsyncadd [#allocation7], 0
      %s47 = sshll.u32 %s5, 4
      %s48 = int_to_ptr.hbm [resolvable:$true] %s47
      %s49 = sshll.u32 [#allocation6], 4
      %s50 = int_to_ptr.vmem [resolvable:$true] %s49
      %55 = dma.hbm_to_vmem [thread:$0]  %s48, 8192, %s50, [#allocation7], 128, 128, 8
    $region25: #{tpu_custom_call.1} parent=1 // pred_fallthru
      _
    // Predicated region
    $region26: #{tpu_custom_call.1} parent=1 // pred_check
      _
    $region27: #{tpu_custom_call.1} parent=1 // pred_check_branch
      %57 = sbr.rel (0) target = $region29
    $region28: #{tpu_custom_call.1} parent=1 // pred_region
      _
    $region29: #{tpu_custom_call.1} parent=1 // pred_fallthru
      _
    // Predicated region
    $region30: #{tpu_custom_call.1} parent=1 // pred_check
      _
    $region31: #{tpu_custom_call.1} parent=1 // pred_check_branch
      %59 = sbr.rel (0) target = $region33
    $region32: #{tpu_custom_call.1} parent=1 // pred_region
      _
    $region33: #{tpu_custom_call.1} parent=1 // pred_fallthru
      _
    // Predicated region
    $region34: #{tpu_custom_call.1} parent=1 // pred_check
      _
    $region35: #{tpu_custom_call.1} parent=1 // pred_check_branch
      %61 = sbr.rel (0) target = $region37
    $region36: #{tpu_custom_call.1} parent=1 // pred_region
      _
    $region37: #{tpu_custom_call.1} parent=1 // pred_fallthru
      _
    // Predicated region
    $region38: #{tpu_custom_call.1} parent=1 // pred_check
      _
    $region39: #{tpu_custom_call.1} parent=1 // pred_check_branch
      %63 = sbr.rel (0) target = $region41
    $region40: #{tpu_custom_call.1} parent=1 // pred_region
      _
    $region41: #{tpu_custom_call.1} parent=1 // pred_fallthru
      _
    // Predicated region
    $region42: #{tpu_custom_call.1} parent=1 // pred_check
      _
    $region43: #{tpu_custom_call.1} parent=1 // pred_check_branch
      %65 = sbr.rel (0) target = $region45
    $region44: #{tpu_custom_call.1} parent=1 // pred_region
      _
    $region45: #{tpu_custom_call.1} parent=1 // pred_fallthru
      _
    // Predicated region
    $region46: #{tpu_custom_call.1} parent=1 // pred_check
      _
    $region47: #{tpu_custom_call.1} parent=1 // pred_check_branch
      %67 = sbr.rel (0) target = $region49
    $region48: #{tpu_custom_call.1} parent=1 // pred_region
      _
    $region49: #{tpu_custom_call.1} parent=1 // pred_fallthru
      _
    // Predicated region
    $region50: #{tpu_custom_call.1} parent=1 // pred_check
      _
    $region51: #{tpu_custom_call.1} parent=1 // pred_check_branch
      %69 = sbr.rel (0) target = $region53
    $region52: #{tpu_custom_call.1} parent=1 // pred_region
      _
    $region53: #{tpu_custom_call.1} parent=1 // pred_fallthru
      _
    // Predicated region
    $region54: #{tpu_custom_call.1} parent=1 // pred_check
      _
    $region55: #{tpu_custom_call.1} parent=1 // pred_check_branch
      %71 = sbr.rel (0) target = $region57
    $region56: #{tpu_custom_call.1} parent=1 // pred_region
      _
    $region57: #{tpu_custom_call.1} parent=1 // pred_fallthru
      _
    // Predicated region
    $region58: #{tpu_custom_call.1} parent=1 // pred_check
      _
    $region59: #{tpu_custom_call.1} parent=1 // pred_check_branch
      %73 = sbr.rel (0) target = $region61
    $region60: #{tpu_custom_call.1} parent=1 // pred_region
      %75 = dma.done [#allocation4], 8192
    $region61: #{tpu_custom_call.1} parent=1 // pred_fallthru
      _
    // Predicated region
    $region62: #{tpu_custom_call.1} parent=1 // pred_check
      _
    $region63: #{tpu_custom_call.1} parent=1 // pred_check_branch
      %77 = sbr.rel (0) target = $region65
    $region64: #{tpu_custom_call.1} parent=1 // pred_region
      %79 = dma.done [#allocation7], 8192
    $region65: #{tpu_custom_call.1} parent=1 // pred_fallthru
      _
    %v81 = vld [vmem:[#allocation3] sm:$0xff]
    %v82 = vld [vmem:[#allocation3 + $0x8] sm:$0xff]
    %v83 = vld [vmem:[#allocation3 + $0x10] sm:$0xff]
    %v84 = vld [vmem:[#allocation3 + $0x18] sm:$0xff]
    %v85 = vld [vmem:[#allocation3 + $0x20] sm:$0xff]
    %v86 = vld [vmem:[#allocation3 + $0x28] sm:$0xff]
    %v87 = vld [vmem:[#allocation3 + $0x30] sm:$0xff]
    %v88 = vld [vmem:[#allocation3 + $0x38] sm:$0xff]
    %v89 = vld [vmem:[#allocation3 + $0x40] sm:$0xff]
    %v90 = vld [vmem:[#allocation3 + $0x48] sm:$0xff]
    %v91 = vld [vmem:[#allocation3 + $0x50] sm:$0xff]
    %v92 = vld [vmem:[#allocation3 + $0x58] sm:$0xff]
    %v93 = vld [vmem:[#allocation3 + $0x60] sm:$0xff]
    %v94 = vld [vmem:[#allocation3 + $0x68] sm:$0xff]
    %v95 = vld [vmem:[#allocation3 + $0x70] sm:$0xff]
    %v96 = vld [vmem:[#allocation3 + $0x78] sm:$0xff]
    %v97 = vld [vmem:[#allocation3 + $0x80] sm:$0xff]
    %v98 = vld [vmem:[#allocation3 + $0x88] sm:$0xff]
    %v99 = vld [vmem:[#allocation3 + $0x90] sm:$0xff]
    %v100 = vld [vmem:[#allocation3 + $0x98] sm:$0xff]
    %v101 = vld [vmem:[#allocation3 + $0xa0] sm:$0xff]
    %v102 = vld [vmem:[#allocation3 + $0xa8] sm:$0xff]
    %v103 = vld [vmem:[#allocation3 + $0xb0] sm:$0xff]
    %v104 = vld [vmem:[#allocation3 + $0xb8] sm:$0xff]
    %v105 = vld [vmem:[#allocation3 + $0xc0] sm:$0xff]
    %v106 = vld [vmem:[#allocation3 + $0xc8] sm:$0xff]
    %v107 = vld [vmem:[#allocation3 + $0xd0] sm:$0xff]
    %v108 = vld [vmem:[#allocation3 + $0xd8] sm:$0xff]
    %v109 = vld [vmem:[#allocation3 + $0xe0] sm:$0xff]
    %v110 = vld [vmem:[#allocation3 + $0xe8] sm:$0xff]
    %v111 = vld [vmem:[#allocation3 + $0xf0] sm:$0xff]
    %v112 = vld [vmem:[#allocation3 + $0xf8] sm:$0xff]
    %v113 = vld [vmem:[#allocation3 + $0x100] sm:$0xff]
    %v114 = vld [vmem:[#allocation3 + $0x108] sm:$0xff]
    %v115 = vld [vmem:[#allocation3 + $0x110] sm:$0xff]
    %v116 = vld [vmem:[#allocation3 + $0x118] sm:$0xff]
    %v117 = vld [vmem:[#allocation3 + $0x120] sm:$0xff]
    %v118 = vld [vmem:[#allocation3 + $0x128] sm:$0xff]
    %v119 = vld [vmem:[#allocation3 + $0x130] sm:$0xff]
    %v120 = vld [vmem:[#allocation3 + $0x138] sm:$0xff]
    %v121 = vld [vmem:[#allocation3 + $0x140] sm:$0xff]
    %v122 = vld [vmem:[#allocation3 + $0x148] sm:$0xff]
    %v123 = vld [vmem:[#allocation3 + $0x150] sm:$0xff]
    %v124 = vld [vmem:[#allocation3 + $0x158] sm:$0xff]
    %v125 = vld [vmem:[#allocation3 + $0x160] sm:$0xff]
    %v126 = vld [vmem:[#allocation3 + $0x168] sm:$0xff]
    %v127 = vld [vmem:[#allocation3 + $0x170] sm:$0xff]
    %v128 = vld [vmem:[#allocation3 + $0x178] sm:$0xff]
    %v129 = vld [vmem:[#allocation3 + $0x180] sm:$0xff]
    %v130 = vld [vmem:[#allocation3 + $0x188] sm:$0xff]
    %v131 = vld [vmem:[#allocation3 + $0x190] sm:$0xff]
    %v132 = vld [vmem:[#allocation3 + $0x198] sm:$0xff]
    %v133 = vld [vmem:[#allocation3 + $0x1a0] sm:$0xff]
    %v134 = vld [vmem:[#allocation3 + $0x1a8] sm:$0xff]
    %v135 = vld [vmem:[#allocation3 + $0x1b0] sm:$0xff]
    %v136 = vld [vmem:[#allocation3 + $0x1b8] sm:$0xff]
    %v137 = vld [vmem:[#allocation3 + $0x1c0] sm:$0xff]
    %v138 = vld [vmem:[#allocation3 + $0x1c8] sm:$0xff]
    %v139 = vld [vmem:[#allocation3 + $0x1d0] sm:$0xff]
    %v140 = vld [vmem:[#allocation3 + $0x1d8] sm:$0xff]
    %v141 = vld [vmem:[#allocation3 + $0x1e0] sm:$0xff]
    %v142 = vld [vmem:[#allocation3 + $0x1e8] sm:$0xff]
    %v143 = vld [vmem:[#allocation3 + $0x1f0] sm:$0xff]
    %v144 = vld [vmem:[#allocation3 + $0x1f8] sm:$0xff]
    %vm145 = vcmask 261120
    %v146 = vsel %vm145, %v81, 0.0
    %147 = vadd.xlane.f32.xlu0 %v146
    %v148 = vpop.xlane.xlu0 %147
    %v149 = vsel %vm145, %v82, 0.0
    %150 = vadd.xlane.f32.xlu0 %v149
    %v151 = vpop.xlane.xlu0 %150
    %v152 = vsel %vm145, %v83, 0.0
    %153 = vadd.xlane.f32.xlu0 %v152
    %v154 = vpop.xlane.xlu0 %153
    %v155 = vsel %vm145, %v84, 0.0
    %156 = vadd.xlane.f32.xlu0 %v155
    %v157 = vpop.xlane.xlu0 %156
    %v158 = vsel %vm145, %v85, 0.0
    %159 = vadd.xlane.f32.xlu0 %v158
    %v160 = vpop.xlane.xlu0 %159
    %v161 = vsel %vm145, %v86, 0.0
    %162 = vadd.xlane.f32.xlu0 %v161
    %v163 = vpop.xlane.xlu0 %162
    %v164 = vsel %vm145, %v87, 0.0
    %165 = vadd.xlane.f32.xlu0 %v164
    %v166 = vpop.xlane.xlu0 %165
    %v167 = vsel %vm145, %v88, 0.0
    %168 = vadd.xlane.f32.xlu0 %v167
    %v169 = vpop.xlane.xlu0 %168
    %v170 = vsel %vm145, %v89, 0.0
    %171 = vadd.xlane.f32.xlu0 %v170
    %v172 = vpop.xlane.xlu0 %171
    %v173 = vsel %vm145, %v90, 0.0
    %174 = vadd.xlane.f32.xlu0 %v173
    %v175 = vpop.xlane.xlu0 %174
    %v176 = vsel %vm145, %v91, 0.0
    %177 = vadd.xlane.f32.xlu0 %v176
    %v178 = vpop.xlane.xlu0 %177
    %v179 = vsel %vm145, %v92, 0.0
    %180 = vadd.xlane.f32.xlu0 %v179
    %v181 = vpop.xlane.xlu0 %180
    %v182 = vsel %vm145, %v93, 0.0
    %183 = vadd.xlane.f32.xlu0 %v182
    %v184 = vpop.xlane.xlu0 %183
    %v185 = vsel %vm145, %v94, 0.0
    %186 = vadd.xlane.f32.xlu0 %v185
    %v187 = vpop.xlane.xlu0 %186
    %v188 = vsel %vm145, %v95, 0.0
    %189 = vadd.xlane.f32.xlu0 %v188
    %v190 = vpop.xlane.xlu0 %189
    %v191 = vsel %vm145, %v96, 0.0
    %192 = vadd.xlane.f32.xlu0 %v191
    %v193 = vpop.xlane.xlu0 %192
    %v194 = vsel %vm145, %v97, 0.0
    %195 = vadd.xlane.f32.xlu0 %v194
    %v196 = vpop.xlane.xlu0 %195
    %v197 = vsel %vm145, %v98, 0.0
    %198 = vadd.xlane.f32.xlu0 %v197
    %v199 = vpop.xlane.xlu0 %198
    %v200 = vsel %vm145, %v99, 0.0
    %201 = vadd.xlane.f32.xlu0 %v200
    %v202 = vpop.xlane.xlu0 %201
    %v203 = vsel %vm145, %v100, 0.0
    %204 = vadd.xlane.f32.xlu0 %v203
    %v205 = vpop.xlane.xlu0 %204
    %v206 = vsel %vm145, %v101, 0.0
    %207 = vadd.xlane.f32.xlu0 %v206
    %v208 = vpop.xlane.xlu0 %207
    %v209 = vsel %vm145, %v102, 0.0
    %210 = vadd.xlane.f32.xlu0 %v209
    %v211 = vpop.xlane.xlu0 %210
    %v212 = vsel %vm145, %v103, 0.0
    %213 = vadd.xlane.f32.xlu0 %v212
    %v214 = vpop.xlane.xlu0 %213
    %v215 = vsel %vm145, %v104, 0.0
    %216 = vadd.xlane.f32.xlu0 %v215
    %v217 = vpop.xlane.xlu0 %216
    %v218 = vsel %vm145, %v105, 0.0
    %219 = vadd.xlane.f32.xlu0 %v218
    %v220 = vpop.xlane.xlu0 %219
    %v221 = vsel %vm145, %v106, 0.0
    %222 = vadd.xlane.f32.xlu0 %v221
    %v223 = vpop.xlane.xlu0 %222
    %v224 = vsel %vm145, %v107, 0.0
    %225 = vadd.xlane.f32.xlu0 %v224
    %v226 = vpop.xlane.xlu0 %225
    %v227 = vsel %vm145, %v108, 0.0
    %228 = vadd.xlane.f32.xlu0 %v227
    %v229 = vpop.xlane.xlu0 %228
    %v230 = vsel %vm145, %v109, 0.0
    %231 = vadd.xlane.f32.xlu0 %v230
    %v232 = vpop.xlane.xlu0 %231
    %v233 = vsel %vm145, %v110, 0.0
    %234 = vadd.xlane.f32.xlu0 %v233
    %v235 = vpop.xlane.xlu0 %234
    %v236 = vsel %vm145, %v111, 0.0
    %237 = vadd.xlane.f32.xlu0 %v236
    %v238 = vpop.xlane.xlu0 %237
    %v239 = vsel %vm145, %v112, 0.0
    %240 = vadd.xlane.f32.xlu0 %v239
    %v241 = vpop.xlane.xlu0 %240
    %v242 = vsel %vm145, %v113, 0.0
    %243 = vadd.xlane.f32.xlu0 %v242
    %v244 = vpop.xlane.xlu0 %243
    %v245 = vsel %vm145, %v114, 0.0
    %246 = vadd.xlane.f32.xlu0 %v245
    %v247 = vpop.xlane.xlu0 %246
    %v248 = vsel %vm145, %v115, 0.0
    %249 = vadd.xlane.f32.xlu0 %v248
    %v250 = vpop.xlane.xlu0 %249
    %v251 = vsel %vm145, %v116, 0.0
    %252 = vadd.xlane.f32.xlu0 %v251
    %v253 = vpop.xlane.xlu0 %252
    %v254 = vsel %vm145, %v117, 0.0
    %255 = vadd.xlane.f32.xlu0 %v254
    %v256 = vpop.xlane.xlu0 %255
    %v257 = vsel %vm145, %v118, 0.0
    %258 = vadd.xlane.f32.xlu0 %v257
    %v259 = vpop.xlane.xlu0 %258
    %v260 = vsel %vm145, %v119, 0.0
    %261 = vadd.xlane.f32.xlu0 %v260
    %v262 = vpop.xlane.xlu0 %261
    %v263 = vsel %vm145, %v120, 0.0
    %264 = vadd.xlane.f32.xlu0 %v263
    %v265 = vpop.xlane.xlu0 %264
    %v266 = vsel %vm145, %v121, 0.0
    %267 = vadd.xlane.f32.xlu0 %v266
    %v268 = vpop.xlane.xlu0 %267
    %v269 = vsel %vm145, %v122, 0.0
    %270 = vadd.xlane.f32.xlu0 %v269
    %v271 = vpop.xlane.xlu0 %270
    %v272 = vsel %vm145, %v123, 0.0
    %273 = vadd.xlane.f32.xlu0 %v272
    %v274 = vpop.xlane.xlu0 %273
    %v275 = vsel %vm145, %v124, 0.0
    %276 = vadd.xlane.f32.xlu0 %v275
    %v277 = vpop.xlane.xlu0 %276
    %v278 = vsel %vm145, %v125, 0.0
    %279 = vadd.xlane.f32.xlu0 %v278
    %v280 = vpop.xlane.xlu0 %279
    %v281 = vsel %vm145, %v126, 0.0
    %282 = vadd.xlane.f32.xlu0 %v281
    %v283 = vpop.xlane.xlu0 %282
    %v284 = vsel %vm145, %v127, 0.0
    %285 = vadd.xlane.f32.xlu0 %v284
    %v286 = vpop.xlane.xlu0 %285
    %v287 = vsel %vm145, %v128, 0.0
    %288 = vadd.xlane.f32.xlu0 %v287
    %v289 = vpop.xlane.xlu0 %288
    %v290 = vsel %vm145, %v129, 0.0
    %291 = vadd.xlane.f32.xlu0 %v290
    %v292 = vpop.xlane.xlu0 %291
    %v293 = vsel %vm145, %v130, 0.0
    %294 = vadd.xlane.f32.xlu0 %v293
    %v295 = vpop.xlane.xlu0 %294
    %v296 = vsel %vm145, %v131, 0.0
    %297 = vadd.xlane.f32.xlu0 %v296
    %v298 = vpop.xlane.xlu0 %297
    %v299 = vsel %vm145, %v132, 0.0
    %300 = vadd.xlane.f32.xlu0 %v299
    %v301 = vpop.xlane.xlu0 %300
    %v302 = vsel %vm145, %v133, 0.0
    %303 = vadd.xlane.f32.xlu0 %v302
    %v304 = vpop.xlane.xlu0 %303
    %v305 = vsel %vm145, %v134, 0.0
    %306 = vadd.xlane.f32.xlu0 %v305
    %v307 = vpop.xlane.xlu0 %306
    %v308 = vsel %vm145, %v135, 0.0
    %309 = vadd.xlane.f32.xlu0 %v308
    %v310 = vpop.xlane.xlu0 %309
    %v311 = vsel %vm145, %v136, 0.0
    %312 = vadd.xlane.f32.xlu0 %v311
    %v313 = vpop.xlane.xlu0 %312
    %v314 = vsel %vm145, %v137, 0.0
    %315 = vadd.xlane.f32.xlu0 %v314
    %v316 = vpop.xlane.xlu0 %315
    %v317 = vsel %vm145, %v138, 0.0
    %318 = vadd.xlane.f32.xlu0 %v317
    %v319 = vpop.xlane.xlu0 %318
    %v320 = vsel %vm145, %v139, 0.0
    %321 = vadd.xlane.f32.xlu0 %v320
    %v322 = vpop.xlane.xlu0 %321
    %v323 = vsel %vm145, %v140, 0.0
    %324 = vadd.xlane.f32.xlu0 %v323
    %v325 = vpop.xlane.xlu0 %324
    %v326 = vsel %vm145, %v141, 0.0
    %327 = vadd.xlane.f32.xlu0 %v326
    %v328 = vpop.xlane.xlu0 %327
    %v329 = vsel %vm145, %v142, 0.0
    %330 = vadd.xlane.f32.xlu0 %v329
    %v331 = vpop.xlane.xlu0 %330
    %v332 = vsel %vm145, %v143, 0.0
    %333 = vadd.xlane.f32.xlu0 %v332
    %v334 = vpop.xlane.xlu0 %333
    %v335 = vsel %vm145, %v144, 0.0
    %336 = vadd.xlane.f32.xlu0 %v335
    %v337 = vpop.xlane.xlu0 %336
    %v338 = vrcp.pop 32.0
    %v339 = vmul.f32 32.0, %v338
    %v340 = vsub.f32 1.0, %v339
    %v341 = vmul.f32 %v338, %v340
    %v342 = vadd.f32 %v338, %v341
    %vm343 = vweird.f32 %v338
    %v344 = vsel %vm343, %v338, %v342
    %v345 = vmul.f32 %v148, %v344
    %v346 = vmul.f32 %v151, %v344
    %v347 = vmul.f32 %v154, %v344
    %v348 = vmul.f32 %v157, %v344
    %v349 = vmul.f32 %v160, %v344
    %v350 = vmul.f32 %v163, %v344
    %v351 = vmul.f32 %v166, %v344
    %v352 = vmul.f32 %v169, %v344
    %v353 = vmul.f32 %v172, %v344
    %v354 = vmul.f32 %v175, %v344
    %v355 = vmul.f32 %v178, %v344
    %v356 = vmul.f32 %v181, %v344
    %v357 = vmul.f32 %v184, %v344
    %v358 = vmul.f32 %v187, %v344
    %v359 = vmul.f32 %v190, %v344
    %v360 = vmul.f32 %v193, %v344
    %v361 = vmul.f32 %v196, %v344
    %v362 = vmul.f32 %v199, %v344
    %v363 = vmul.f32 %v202, %v344
    %v364 = vmul.f32 %v205, %v344
    %v365 = vmul.f32 %v208, %v344
    %v366 = vmul.f32 %v211, %v344
    %v367 = vmul.f32 %v214, %v344
    %v368 = vmul.f32 %v217, %v344
    %v369 = vmul.f32 %v220, %v344
    %v370 = vmul.f32 %v223, %v344
    %v371 = vmul.f32 %v226, %v344
    %v372 = vmul.f32 %v229, %v344
    %v373 = vmul.f32 %v232, %v344
    %v374 = vmul.f32 %v235, %v344
    %v375 = vmul.f32 %v238, %v344
    %v376 = vmul.f32 %v241, %v344
    %v377 = vmul.f32 %v244, %v344
    %v378 = vmul.f32 %v247, %v344
    %v379 = vmul.f32 %v250, %v344
    %v380 = vmul.f32 %v253, %v344
    %v381 = vmul.f32 %v256, %v344
    %v382 = vmul.f32 %v259, %v344
    %v383 = vmul.f32 %v262, %v344
    %v384 = vmul.f32 %v265, %v344
    %v385 = vmul.f32 %v268, %v344
    %v386 = vmul.f32 %v271, %v344
    %v387 = vmul.f32 %v274, %v344
    %v388 = vmul.f32 %v277, %v344
    %v389 = vmul.f32 %v280, %v344
    %v390 = vmul.f32 %v283, %v344
    %v391 = vmul.f32 %v286, %v344
    %v392 = vmul.f32 %v289, %v344
    %v393 = vmul.f32 %v292, %v344
    %v394 = vmul.f32 %v295, %v344
    %v395 = vmul.f32 %v298, %v344
    %v396 = vmul.f32 %v301, %v344
    %v397 = vmul.f32 %v304, %v344
    %v398 = vmul.f32 %v307, %v344
    %v399 = vmul.f32 %v310, %v344
    %v400 = vmul.f32 %v313, %v344
    %v401 = vmul.f32 %v316, %v344
    %v402 = vmul.f32 %v319, %v344
    %v403 = vmul.f32 %v322, %v344
    %v404 = vmul.f32 %v325, %v344
    %v405 = vmul.f32 %v328, %v344
    %v406 = vmul.f32 %v331, %v344
    %v407 = vmul.f32 %v334, %v344
    %v408 = vmul.f32 %v337, %v344
    %v409 = vsub.f32 %v81, %v345
    %v410 = vsub.f32 %v82, %v346
    %v411 = vsub.f32 %v83, %v347
    %v412 = vsub.f32 %v84, %v348
    %v413 = vsub.f32 %v85, %v349
    %v414 = vsub.f32 %v86, %v350
    %v415 = vsub.f32 %v87, %v351
    %v416 = vsub.f32 %v88, %v352
    %v417 = vsub.f32 %v89, %v353
    %v418 = vsub.f32 %v90, %v354
    %v419 = vsub.f32 %v91, %v355
    %v420 = vsub.f32 %v92, %v356
    %v421 = vsub.f32 %v93, %v357
    %v422 = vsub.f32 %v94, %v358
    %v423 = vsub.f32 %v95, %v359
    %v424 = vsub.f32 %v96, %v360
    %v425 = vsub.f32 %v97, %v361
    %v426 = vsub.f32 %v98, %v362
    %v427 = vsub.f32 %v99, %v363
    %v428 = vsub.f32 %v100, %v364
    %v429 = vsub.f32 %v101, %v365
    %v430 = vsub.f32 %v102, %v366
    %v431 = vsub.f32 %v103, %v367
    %v432 = vsub.f32 %v104, %v368
    %v433 = vsub.f32 %v105, %v369
    %v434 = vsub.f32 %v106, %v370
    %v435 = vsub.f32 %v107, %v371
    %v436 = vsub.f32 %v108, %v372
    %v437 = vsub.f32 %v109, %v373
    %v438 = vsub.f32 %v110, %v374
    %v439 = vsub.f32 %v111, %v375
    %v440 = vsub.f32 %v112, %v376
    %v441 = vsub.f32 %v113, %v377
    %v442 = vsub.f32 %v114, %v378
    %v443 = vsub.f32 %v115, %v379
    %v444 = vsub.f32 %v116, %v380
    %v445 = vsub.f32 %v117, %v381
    %v446 = vsub.f32 %v118, %v382
    %v447 = vsub.f32 %v119, %v383
    %v448 = vsub.f32 %v120, %v384
    %v449 = vsub.f32 %v121, %v385
    %v450 = vsub.f32 %v122, %v386
    %v451 = vsub.f32 %v123, %v387
    %v452 = vsub.f32 %v124, %v388
    %v453 = vsub.f32 %v125, %v389
    %v454 = vsub.f32 %v126, %v390
    %v455 = vsub.f32 %v127, %v391
    %v456 = vsub.f32 %v128, %v392
    %v457 = vsub.f32 %v129, %v393
    %v458 = vsub.f32 %v130, %v394
    %v459 = vsub.f32 %v131, %v395
    %v460 = vsub.f32 %v132, %v396
    %v461 = vsub.f32 %v133, %v397
    %v462 = vsub.f32 %v134, %v398
    %v463 = vsub.f32 %v135, %v399
    %v464 = vsub.f32 %v136, %v400
    %v465 = vsub.f32 %v137, %v401
    %v466 = vsub.f32 %v138, %v402
    %v467 = vsub.f32 %v139, %v403
    %v468 = vsub.f32 %v140, %v404
    %v469 = vsub.f32 %v141, %v405
    %v470 = vsub.f32 %v142, %v406
    %v471 = vsub.f32 %v143, %v407
    %v472 = vsub.f32 %v144, %v408
    %v473 = vmul.f32 %v409, %v409
    %v474 = vmul.f32 %v410, %v410
    %v475 = vmul.f32 %v411, %v411
    %v476 = vmul.f32 %v412, %v412
    %v477 = vmul.f32 %v413, %v413
    %v478 = vmul.f32 %v414, %v414
    %v479 = vmul.f32 %v415, %v415
    %v480 = vmul.f32 %v416, %v416
    %v481 = vmul.f32 %v417, %v417
    %v482 = vmul.f32 %v418, %v418
    %v483 = vmul.f32 %v419, %v419
    %v484 = vmul.f32 %v420, %v420
    %v485 = vmul.f32 %v421, %v421
    %v486 = vmul.f32 %v422, %v422
    %v487 = vmul.f32 %v423, %v423
    %v488 = vmul.f32 %v424, %v424
    %v489 = vmul.f32 %v425, %v425
    %v490 = vmul.f32 %v426, %v426
    %v491 = vmul.f32 %v427, %v427
    %v492 = vmul.f32 %v428, %v428
    %v493 = vmul.f32 %v429, %v429
    %v494 = vmul.f32 %v430, %v430
    %v495 = vmul.f32 %v431, %v431
    %v496 = vmul.f32 %v432, %v432
    %v497 = vmul.f32 %v433, %v433
    %v498 = vmul.f32 %v434, %v434
    %v499 = vmul.f32 %v435, %v435
    %v500 = vmul.f32 %v436, %v436
    %v501 = vmul.f32 %v437, %v437
    %v502 = vmul.f32 %v438, %v438
    %v503 = vmul.f32 %v439, %v439
    %v504 = vmul.f32 %v440, %v440
    %v505 = vmul.f32 %v441, %v441
    %v506 = vmul.f32 %v442, %v442
    %v507 = vmul.f32 %v443, %v443
    %v508 = vmul.f32 %v444, %v444
    %v509 = vmul.f32 %v445, %v445
    %v510 = vmul.f32 %v446, %v446
    %v511 = vmul.f32 %v447, %v447
    %v512 = vmul.f32 %v448, %v448
    %v513 = vmul.f32 %v449, %v449
    %v514 = vmul.f32 %v450, %v450
    %v515 = vmul.f32 %v451, %v451
    %v516 = vmul.f32 %v452, %v452
    %v517 = vmul.f32 %v453, %v453
    %v518 = vmul.f32 %v454, %v454
    %v519 = vmul.f32 %v455, %v455
    %v520 = vmul.f32 %v456, %v456
    %v521 = vmul.f32 %v457, %v457
    %v522 = vmul.f32 %v458, %v458
    %v523 = vmul.f32 %v459, %v459
    %v524 = vmul.f32 %v460, %v460
    %v525 = vmul.f32 %v461, %v461
    %v526 = vmul.f32 %v462, %v462
    %v527 = vmul.f32 %v463, %v463
    %v528 = vmul.f32 %v464, %v464
    %v529 = vmul.f32 %v465, %v465
    %v530 = vmul.f32 %v466, %v466
    %v531 = vmul.f32 %v467, %v467
    %v532 = vmul.f32 %v468, %v468
    %v533 = vmul.f32 %v469, %v469
    %v534 = vmul.f32 %v470, %v470
    %v535 = vmul.f32 %v471, %v471
    %v536 = vmul.f32 %v472, %v472
    %v537 = vsel %vm145, %v473, 0.0
    %538 = vadd.xlane.f32.xlu0 %v537
    %v539 = vpop.xlane.xlu0 %538
    %v540 = vsel %vm145, %v474, 0.0
    %541 = vadd.xlane.f32.xlu0 %v540
    %v542 = vpop.xlane.xlu0 %541
    %v543 = vsel %vm145, %v475, 0.0
    %544 = vadd.xlane.f32.xlu0 %v543
    %v545 = vpop.xlane.xlu0 %544
    %v546 = vsel %vm145, %v476, 0.0
    %547 = vadd.xlane.f32.xlu0 %v546
    %v548 = vpop.xlane.xlu0 %547
    %v549 = vsel %vm145, %v477, 0.0
    %550 = vadd.xlane.f32.xlu0 %v549
    %v551 = vpop.xlane.xlu0 %550
    %v552 = vsel %vm145, %v478, 0.0
    %553 = vadd.xlane.f32.xlu0 %v552
    %v554 = vpop.xlane.xlu0 %553
    %v555 = vsel %vm145, %v479, 0.0
    %556 = vadd.xlane.f32.xlu0 %v555
    %v557 = vpop.xlane.xlu0 %556
    %v558 = vsel %vm145, %v480, 0.0
    %559 = vadd.xlane.f32.xlu0 %v558
    %v560 = vpop.xlane.xlu0 %559
    %v561 = vsel %vm145, %v481, 0.0
    %562 = vadd.xlane.f32.xlu0 %v561
    %v563 = vpop.xlane.xlu0 %562
    %v564 = vsel %vm145, %v482, 0.0
    %565 = vadd.xlane.f32.xlu0 %v564
    %v566 = vpop.xlane.xlu0 %565
    %v567 = vsel %vm145, %v483, 0.0
    %568 = vadd.xlane.f32.xlu0 %v567
    %v569 = vpop.xlane.xlu0 %568
    %v570 = vsel %vm145, %v484, 0.0
    %571 = vadd.xlane.f32.xlu0 %v570
    %v572 = vpop.xlane.xlu0 %571
    %v573 = vsel %vm145, %v485, 0.0
    %574 = vadd.xlane.f32.xlu0 %v573
    %v575 = vpop.xlane.xlu0 %574
    %v576 = vsel %vm145, %v486, 0.0
    %577 = vadd.xlane.f32.xlu0 %v576
    %v578 = vpop.xlane.xlu0 %577
    %v579 = vsel %vm145, %v487, 0.0
    %580 = vadd.xlane.f32.xlu0 %v579
    %v581 = vpop.xlane.xlu0 %580
    %v582 = vsel %vm145, %v488, 0.0
    %583 = vadd.xlane.f32.xlu0 %v582
    %v584 = vpop.xlane.xlu0 %583
    %v585 = vsel %vm145, %v489, 0.0
    %586 = vadd.xlane.f32.xlu0 %v585
    %v587 = vpop.xlane.xlu0 %586
    %v588 = vsel %vm145, %v490, 0.0
    %589 = vadd.xlane.f32.xlu0 %v588
    %v590 = vpop.xlane.xlu0 %589
    %v591 = vsel %vm145, %v491, 0.0
    %592 = vadd.xlane.f32.xlu0 %v591
    %v593 = vpop.xlane.xlu0 %592
    %v594 = vsel %vm145, %v492, 0.0
    %595 = vadd.xlane.f32.xlu0 %v594
    %v596 = vpop.xlane.xlu0 %595
    %v597 = vsel %vm145, %v493, 0.0
    %598 = vadd.xlane.f32.xlu0 %v597
    %v599 = vpop.xlane.xlu0 %598
    %v600 = vsel %vm145, %v494, 0.0
    %601 = vadd.xlane.f32.xlu0 %v600
    %v602 = vpop.xlane.xlu0 %601
    %v603 = vsel %vm145, %v495, 0.0
    %604 = vadd.xlane.f32.xlu0 %v603
    %v605 = vpop.xlane.xlu0 %604
    %v606 = vsel %vm145, %v496, 0.0
    %607 = vadd.xlane.f32.xlu0 %v606
    %v608 = vpop.xlane.xlu0 %607
    %v609 = vsel %vm145, %v497, 0.0
    %610 = vadd.xlane.f32.xlu0 %v609
    %v611 = vpop.xlane.xlu0 %610
    %v612 = vsel %vm145, %v498, 0.0
    %613 = vadd.xlane.f32.xlu0 %v612
    %v614 = vpop.xlane.xlu0 %613
    %v615 = vsel %vm145, %v499, 0.0
    %616 = vadd.xlane.f32.xlu0 %v615
    %v617 = vpop.xlane.xlu0 %616
    %v618 = vsel %vm145, %v500, 0.0
    %619 = vadd.xlane.f32.xlu0 %v618
    %v620 = vpop.xlane.xlu0 %619
    %v621 = vsel %vm145, %v501, 0.0
    %622 = vadd.xlane.f32.xlu0 %v621
    %v623 = vpop.xlane.xlu0 %622
    %v624 = vsel %vm145, %v502, 0.0
    %625 = vadd.xlane.f32.xlu0 %v624
    %v626 = vpop.xlane.xlu0 %625
    %v627 = vsel %vm145, %v503, 0.0
    %628 = vadd.xlane.f32.xlu0 %v627
    %v629 = vpop.xlane.xlu0 %628
    %v630 = vsel %vm145, %v504, 0.0
    %631 = vadd.xlane.f32.xlu0 %v630
    %v632 = vpop.xlane.xlu0 %631
    %v633 = vsel %vm145, %v505, 0.0
    %634 = vadd.xlane.f32.xlu0 %v633
    %v635 = vpop.xlane.xlu0 %634
    %v636 = vsel %vm145, %v506, 0.0
    %637 = vadd.xlane.f32.xlu0 %v636
    %v638 = vpop.xlane.xlu0 %637
    %v639 = vsel %vm145, %v507, 0.0
    %640 = vadd.xlane.f32.xlu0 %v639
    %v641 = vpop.xlane.xlu0 %640
    %v642 = vsel %vm145, %v508, 0.0
    %643 = vadd.xlane.f32.xlu0 %v642
    %v644 = vpop.xlane.xlu0 %643
    %v645 = vsel %vm145, %v509, 0.0
    %646 = vadd.xlane.f32.xlu0 %v645
    %v647 = vpop.xlane.xlu0 %646
    %v648 = vsel %vm145, %v510, 0.0
    %649 = vadd.xlane.f32.xlu0 %v648
    %v650 = vpop.xlane.xlu0 %649
    %v651 = vsel %vm145, %v511, 0.0
    %652 = vadd.xlane.f32.xlu0 %v651
    %v653 = vpop.xlane.xlu0 %652
    %v654 = vsel %vm145, %v512, 0.0
    %655 = vadd.xlane.f32.xlu0 %v654
    %v656 = vpop.xlane.xlu0 %655
    %v657 = vsel %vm145, %v513, 0.0
    %658 = vadd.xlane.f32.xlu0 %v657
    %v659 = vpop.xlane.xlu0 %658
    %v660 = vsel %vm145, %v514, 0.0
    %661 = vadd.xlane.f32.xlu0 %v660
    %v662 = vpop.xlane.xlu0 %661
    %v663 = vsel %vm145, %v515, 0.0
    %664 = vadd.xlane.f32.xlu0 %v663
    %v665 = vpop.xlane.xlu0 %664
    %v666 = vsel %vm145, %v516, 0.0
    %667 = vadd.xlane.f32.xlu0 %v666
    %v668 = vpop.xlane.xlu0 %667
    %v669 = vsel %vm145, %v517, 0.0
    %670 = vadd.xlane.f32.xlu0 %v669
    %v671 = vpop.xlane.xlu0 %670
    %v672 = vsel %vm145, %v518, 0.0
    %673 = vadd.xlane.f32.xlu0 %v672
    %v674 = vpop.xlane.xlu0 %673
    %v675 = vsel %vm145, %v519, 0.0
    %676 = vadd.xlane.f32.xlu0 %v675
    %v677 = vpop.xlane.xlu0 %676
    %v678 = vsel %vm145, %v520, 0.0
    %679 = vadd.xlane.f32.xlu0 %v678
    %v680 = vpop.xlane.xlu0 %679
    %v681 = vsel %vm145, %v521, 0.0
    %682 = vadd.xlane.f32.xlu0 %v681
    %v683 = vpop.xlane.xlu0 %682
    %v684 = vsel %vm145, %v522, 0.0
    %685 = vadd.xlane.f32.xlu0 %v684
    %v686 = vpop.xlane.xlu0 %685
    %v687 = vsel %vm145, %v523, 0.0
    %688 = vadd.xlane.f32.xlu0 %v687
    %v689 = vpop.xlane.xlu0 %688
    %v690 = vsel %vm145, %v524, 0.0
    %691 = vadd.xlane.f32.xlu0 %v690
    %v692 = vpop.xlane.xlu0 %691
    %v693 = vsel %vm145, %v525, 0.0
    %694 = vadd.xlane.f32.xlu0 %v693
    %v695 = vpop.xlane.xlu0 %694
    %v696 = vsel %vm145, %v526, 0.0
    %697 = vadd.xlane.f32.xlu0 %v696
    %v698 = vpop.xlane.xlu0 %697
    %v699 = vsel %vm145, %v527, 0.0
    %700 = vadd.xlane.f32.xlu0 %v699
    %v701 = vpop.xlane.xlu0 %700
    %v702 = vsel %vm145, %v528, 0.0
    %703 = vadd.xlane.f32.xlu0 %v702
    %v704 = vpop.xlane.xlu0 %703
    %v705 = vsel %vm145, %v529, 0.0
    %706 = vadd.xlane.f32.xlu0 %v705
    %v707 = vpop.xlane.xlu0 %706
    %v708 = vsel %vm145, %v530, 0.0
    %709 = vadd.xlane.f32.xlu0 %v708
    %v710 = vpop.xlane.xlu0 %709
    %v711 = vsel %vm145, %v531, 0.0
    %712 = vadd.xlane.f32.xlu0 %v711
    %v713 = vpop.xlane.xlu0 %712
    %v714 = vsel %vm145, %v532, 0.0
    %715 = vadd.xlane.f32.xlu0 %v714
    %v716 = vpop.xlane.xlu0 %715
    %v717 = vsel %vm145, %v533, 0.0
    %718 = vadd.xlane.f32.xlu0 %v717
    %v719 = vpop.xlane.xlu0 %718
    %v720 = vsel %vm145, %v534, 0.0
    %721 = vadd.xlane.f32.xlu0 %v720
    %v722 = vpop.xlane.xlu0 %721
    %v723 = vsel %vm145, %v535, 0.0
    %724 = vadd.xlane.f32.xlu0 %v723
    %v725 = vpop.xlane.xlu0 %724
    %v726 = vsel %vm145, %v536, 0.0
    %727 = vadd.xlane.f32.xlu0 %v726
    %v728 = vpop.xlane.xlu0 %727
    %v729 = vmul.f32 %v539, %v344
    %v730 = vmul.f32 %v542, %v344
    %v731 = vmul.f32 %v545, %v344
    %v732 = vmul.f32 %v548, %v344
    %v733 = vmul.f32 %v551, %v344
    %v734 = vmul.f32 %v554, %v344
    %v735 = vmul.f32 %v557, %v344
    %v736 = vmul.f32 %v560, %v344
    %v737 = vmul.f32 %v563, %v344
    %v738 = vmul.f32 %v566, %v344
    %v739 = vmul.f32 %v569, %v344
    %v740 = vmul.f32 %v572, %v344
    %v741 = vmul.f32 %v575, %v344
    %v742 = vmul.f32 %v578, %v344
    %v743 = vmul.f32 %v581, %v344
    %v744 = vmul.f32 %v584, %v344
    %v745 = vmul.f32 %v587, %v344
    %v746 = vmul.f32 %v590, %v344
    %v747 = vmul.f32 %v593, %v344
    %v748 = vmul.f32 %v596, %v344
    %v749 = vmul.f32 %v599, %v344
    %v750 = vmul.f32 %v602, %v344
    %v751 = vmul.f32 %v605, %v344
    %v752 = vmul.f32 %v608, %v344
    %v753 = vmul.f32 %v611, %v344
    %v754 = vmul.f32 %v614, %v344
    %v755 = vmul.f32 %v617, %v344
    %v756 = vmul.f32 %v620, %v344
    %v757 = vmul.f32 %v623, %v344
    %v758 = vmul.f32 %v626, %v344
    %v759 = vmul.f32 %v629, %v344
    %v760 = vmul.f32 %v632, %v344
    %v761 = vmul.f32 %v635, %v344
    %v762 = vmul.f32 %v638, %v344
    %v763 = vmul.f32 %v641, %v344
    %v764 = vmul.f32 %v644, %v344
    %v765 = vmul.f32 %v647, %v344
    %v766 = vmul.f32 %v650, %v344
    %v767 = vmul.f32 %v653, %v344
    %v768 = vmul.f32 %v656, %v344
    %v769 = vmul.f32 %v659, %v344
    %v770 = vmul.f32 %v662, %v344
    %v771 = vmul.f32 %v665, %v344
    %v772 = vmul.f32 %v668, %v344
    %v773 = vmul.f32 %v671, %v344
    %v774 = vmul.f32 %v674, %v344
    %v775 = vmul.f32 %v677, %v344
    %v776 = vmul.f32 %v680, %v344
    %v777 = vmul.f32 %v683, %v344
    %v778 = vmul.f32 %v686, %v344
    %v779 = vmul.f32 %v689, %v344
    %v780 = vmul.f32 %v692, %v344
    %v781 = vmul.f32 %v695, %v344
    %v782 = vmul.f32 %v698, %v344
    %v783 = vmul.f32 %v701, %v344
    %v784 = vmul.f32 %v704, %v344
    %v785 = vmul.f32 %v707, %v344
    %v786 = vmul.f32 %v710, %v344
    %v787 = vmul.f32 %v713, %v344
    %v788 = vmul.f32 %v716, %v344
    %v789 = vmul.f32 %v719, %v344
    %v790 = vmul.f32 %v722, %v344
    %v791 = vmul.f32 %v725, %v344
    %v792 = vmul.f32 %v728, %v344
    %v793 = vadd.f32 %v729, 1e-05
    %v794 = vadd.f32 %v730, 1e-05
    %v795 = vadd.f32 %v731, 1e-05
    %v796 = vadd.f32 %v732, 1e-05
    %v797 = vadd.f32 %v733, 1e-05
    %v798 = vadd.f32 %v734, 1e-05
    %v799 = vadd.f32 %v735, 1e-05
    %v800 = vadd.f32 %v736, 1e-05
    %v801 = vadd.f32 %v737, 1e-05
    %v802 = vadd.f32 %v738, 1e-05
    %v803 = vadd.f32 %v739, 1e-05
    %v804 = vadd.f32 %v740, 1e-05
    %v805 = vadd.f32 %v741, 1e-05
    %v806 = vadd.f32 %v742, 1e-05
    %v807 = vadd.f32 %v743, 1e-05
    %v808 = vadd.f32 %v744, 1e-05
    %v809 = vadd.f32 %v745, 1e-05
    %v810 = vadd.f32 %v746, 1e-05
    %v811 = vadd.f32 %v747, 1e-05
    %v812 = vadd.f32 %v748, 1e-05
    %v813 = vadd.f32 %v749, 1e-05
    %v814 = vadd.f32 %v750, 1e-05
    %v815 = vadd.f32 %v751, 1e-05
    %v816 = vadd.f32 %v752, 1e-05
    %v817 = vadd.f32 %v753, 1e-05
    %v818 = vadd.f32 %v754, 1e-05
    %v819 = vadd.f32 %v755, 1e-05
    %v820 = vadd.f32 %v756, 1e-05
    %v821 = vadd.f32 %v757, 1e-05
    %v822 = vadd.f32 %v758, 1e-05
    %v823 = vadd.f32 %v759, 1e-05
    %v824 = vadd.f32 %v760, 1e-05
    %v825 = vadd.f32 %v761, 1e-05
    %v826 = vadd.f32 %v762, 1e-05
    %v827 = vadd.f32 %v763, 1e-05
    %v828 = vadd.f32 %v764, 1e-05
    %v829 = vadd.f32 %v765, 1e-05
    %v830 = vadd.f32 %v766, 1e-05
    %v831 = vadd.f32 %v767, 1e-05
    %v832 = vadd.f32 %v768, 1e-05
    %v833 = vadd.f32 %v769, 1e-05
    %v834 = vadd.f32 %v770, 1e-05
    %v835 = vadd.f32 %v771, 1e-05
    %v836 = vadd.f32 %v772, 1e-05
    %v837 = vadd.f32 %v773, 1e-05
    %v838 = vadd.f32 %v774, 1e-05
    %v839 = vadd.f32 %v775, 1e-05
    %v840 = vadd.f32 %v776, 1e-05
    %v841 = vadd.f32 %v777, 1e-05
    %v842 = vadd.f32 %v778, 1e-05
    %v843 = vadd.f32 %v779, 1e-05
    %v844 = vadd.f32 %v780, 1e-05
    %v845 = vadd.f32 %v781, 1e-05
    %v846 = vadd.f32 %v782, 1e-05
    %v847 = vadd.f32 %v783, 1e-05
    %v848 = vadd.f32 %v784, 1e-05
    %v849 = vadd.f32 %v785, 1e-05
    %v850 = vadd.f32 %v786, 1e-05
    %v851 = vadd.f32 %v787, 1e-05
    %v852 = vadd.f32 %v788, 1e-05
    %v853 = vadd.f32 %v789, 1e-05
    %v854 = vadd.f32 %v790, 1e-05
    %v855 = vadd.f32 %v791, 1e-05
    %v856 = vadd.f32 %v792, 1e-05
    %v857 = vrsqrt.pop %v793
    %v858 = vmul.f32 %v857, %v793
    %v859 = vmul.f32 %v858, %v857
    %v860 = vmul.f32 0.5, %v859
    %v861 = vsub.f32 1.5, %v860
    %v862 = vmul.f32 %v857, %v861
    %vm863 = vweird.f32 %v793
    %vm864 = vweird.f32 %v857
    %vm865 = vmor %vm863, %vm864
    %v866 = vsel %vm865, %v857, %v862
    %v867 = vrsqrt.pop %v794
    %v868 = vmul.f32 %v867, %v794
    %v869 = vmul.f32 %v868, %v867
    %v870 = vmul.f32 0.5, %v869
    %v871 = vsub.f32 1.5, %v870
    %v872 = vmul.f32 %v867, %v871
    %vm873 = vweird.f32 %v794
    %vm874 = vweird.f32 %v867
    %vm875 = vmor %vm873, %vm874
    %v876 = vsel %vm875, %v867, %v872
    %v877 = vrsqrt.pop %v795
    %v878 = vmul.f32 %v877, %v795
    %v879 = vmul.f32 %v878, %v877
    %v880 = vmul.f32 0.5, %v879
    %v881 = vsub.f32 1.5, %v880
    %v882 = vmul.f32 %v877, %v881
    %vm883 = vweird.f32 %v795
    %vm884 = vweird.f32 %v877
    %vm885 = vmor %vm883, %vm884
    %v886 = vsel %vm885, %v877, %v882
    %v887 = vrsqrt.pop %v796
    %v888 = vmul.f32 %v887, %v796
    %v889 = vmul.f32 %v888, %v887
    %v890 = vmul.f32 0.5, %v889
    %v891 = vsub.f32 1.5, %v890
    %v892 = vmul.f32 %v887, %v891
    %vm893 = vweird.f32 %v796
    %vm894 = vweird.f32 %v887
    %vm895 = vmor %vm893, %vm894
    %v896 = vsel %vm895, %v887, %v892
    %v897 = vrsqrt.pop %v797
    %v898 = vmul.f32 %v897, %v797
    %v899 = vmul.f32 %v898, %v897
    %v900 = vmul.f32 0.5, %v899
    %v901 = vsub.f32 1.5, %v900
    %v902 = vmul.f32 %v897, %v901
    %vm903 = vweird.f32 %v797
    %vm904 = vweird.f32 %v897
    %vm905 = vmor %vm903, %vm904
    %v906 = vsel %vm905, %v897, %v902
    %v907 = vrsqrt.pop %v798
    %v908 = vmul.f32 %v907, %v798
    %v909 = vmul.f32 %v908, %v907
    %v910 = vmul.f32 0.5, %v909
    %v911 = vsub.f32 1.5, %v910
    %v912 = vmul.f32 %v907, %v911
    %vm913 = vweird.f32 %v798
    %vm914 = vweird.f32 %v907
    %vm915 = vmor %vm913, %vm914
    %v916 = vsel %vm915, %v907, %v912
    %v917 = vrsqrt.pop %v799
    %v918 = vmul.f32 %v917, %v799
    %v919 = vmul.f32 %v918, %v917
    %v920 = vmul.f32 0.5, %v919
    %v921 = vsub.f32 1.5, %v920
    %v922 = vmul.f32 %v917, %v921
    %vm923 = vweird.f32 %v799
    %vm924 = vweird.f32 %v917
    %vm925 = vmor %vm923, %vm924
    %v926 = vsel %vm925, %v917, %v922
    %v927 = vrsqrt.pop %v800
    %v928 = vmul.f32 %v927, %v800
    %v929 = vmul.f32 %v928, %v927
    %v930 = vmul.f32 0.5, %v929
    %v931 = vsub.f32 1.5, %v930
    %v932 = vmul.f32 %v927, %v931
    %vm933 = vweird.f32 %v800
    %vm934 = vweird.f32 %v927
    %vm935 = vmor %vm933, %vm934
    %v936 = vsel %vm935, %v927, %v932
    %v937 = vrsqrt.pop %v801
    %v938 = vmul.f32 %v937, %v801
    %v939 = vmul.f32 %v938, %v937
    %v940 = vmul.f32 0.5, %v939
    %v941 = vsub.f32 1.5, %v940
    %v942 = vmul.f32 %v937, %v941
    %vm943 = vweird.f32 %v801
    %vm944 = vweird.f32 %v937
    %vm945 = vmor %vm943, %vm944
    %v946 = vsel %vm945, %v937, %v942
    %v947 = vrsqrt.pop %v802
    %v948 = vmul.f32 %v947, %v802
    %v949 = vmul.f32 %v948, %v947
    %v950 = vmul.f32 0.5, %v949
    %v951 = vsub.f32 1.5, %v950
    %v952 = vmul.f32 %v947, %v951
    %vm953 = vweird.f32 %v802
    %vm954 = vweird.f32 %v947
    %vm955 = vmor %vm953, %vm954
    %v956 = vsel %vm955, %v947, %v952
    %v957 = vrsqrt.pop %v803
    %v958 = vmul.f32 %v957, %v803
    %v959 = vmul.f32 %v958, %v957
    %v960 = vmul.f32 0.5, %v959
    %v961 = vsub.f32 1.5, %v960
    %v962 = vmul.f32 %v957, %v961
    %vm963 = vweird.f32 %v803
    %vm964 = vweird.f32 %v957
    %vm965 = vmor %vm963, %vm964
    %v966 = vsel %vm965, %v957, %v962
    %v967 = vrsqrt.pop %v804
    %v968 = vmul.f32 %v967, %v804
    %v969 = vmul.f32 %v968, %v967
    %v970 = vmul.f32 0.5, %v969
    %v971 = vsub.f32 1.5, %v970
    %v972 = vmul.f32 %v967, %v971
    %vm973 = vweird.f32 %v804
    %vm974 = vweird.f32 %v967
    %vm975 = vmor %vm973, %vm974
    %v976 = vsel %vm975, %v967, %v972
    %v977 = vrsqrt.pop %v805
    %v978 = vmul.f32 %v977, %v805
    %v979 = vmul.f32 %v978, %v977
    %v980 = vmul.f32 0.5, %v979
    %v981 = vsub.f32 1.5, %v980
    %v982 = vmul.f32 %v977, %v981
    %vm983 = vweird.f32 %v805
    %vm984 = vweird.f32 %v977
    %vm985 = vmor %vm983, %vm984
    %v986 = vsel %vm985, %v977, %v982
    %v987 = vrsqrt.pop %v806
    %v988 = vmul.f32 %v987, %v806
    %v989 = vmul.f32 %v988, %v987
    %v990 = vmul.f32 0.5, %v989
    %v991 = vsub.f32 1.5, %v990
    %v992 = vmul.f32 %v987, %v991
    %vm993 = vweird.f32 %v806
    %vm994 = vweird.f32 %v987
    %vm995 = vmor %vm993, %vm994
    %v996 = vsel %vm995, %v987, %v992
    %v997 = vrsqrt.pop %v807
    %v998 = vmul.f32 %v997, %v807
    %v999 = vmul.f32 %v998, %v997
    %v1000 = vmul.f32 0.5, %v999
    %v1001 = vsub.f32 1.5, %v1000
    %v1002 = vmul.f32 %v997, %v1001
    %vm1003 = vweird.f32 %v807
    %vm1004 = vweird.f32 %v997
    %vm1005 = vmor %vm1003, %vm1004
    %v1006 = vsel %vm1005, %v997, %v1002
    %v1007 = vrsqrt.pop %v808
    %v1008 = vmul.f32 %v1007, %v808
    %v1009 = vmul.f32 %v1008, %v1007
    %v1010 = vmul.f32 0.5, %v1009
    %v1011 = vsub.f32 1.5, %v1010
    %v1012 = vmul.f32 %v1007, %v1011
    %vm1013 = vweird.f32 %v808
    %vm1014 = vweird.f32 %v1007
    %vm1015 = vmor %vm1013, %vm1014
    %v1016 = vsel %vm1015, %v1007, %v1012
    %v1017 = vrsqrt.pop %v809
    %v1018 = vmul.f32 %v1017, %v809
    %v1019 = vmul.f32 %v1018, %v1017
    %v1020 = vmul.f32 0.5, %v1019
    %v1021 = vsub.f32 1.5, %v1020
    %v1022 = vmul.f32 %v1017, %v1021
    %vm1023 = vweird.f32 %v809
    %vm1024 = vweird.f32 %v1017
    %vm1025 = vmor %vm1023, %vm1024
    %v1026 = vsel %vm1025, %v1017, %v1022
    %v1027 = vrsqrt.pop %v810
    %v1028 = vmul.f32 %v1027, %v810
    %v1029 = vmul.f32 %v1028, %v1027
    %v1030 = vmul.f32 0.5, %v1029
    %v1031 = vsub.f32 1.5, %v1030
    %v1032 = vmul.f32 %v1027, %v1031
    %vm1033 = vweird.f32 %v810
    %vm1034 = vweird.f32 %v1027
    %vm1035 = vmor %vm1033, %vm1034
    %v1036 = vsel %vm1035, %v1027, %v1032
    %v1037 = vrsqrt.pop %v811
    %v1038 = vmul.f32 %v1037, %v811
    %v1039 = vmul.f32 %v1038, %v1037
    %v1040 = vmul.f32 0.5, %v1039
    %v1041 = vsub.f32 1.5, %v1040
    %v1042 = vmul.f32 %v1037, %v1041
    %vm1043 = vweird.f32 %v811
    %vm1044 = vweird.f32 %v1037
    %vm1045 = vmor %vm1043, %vm1044
    %v1046 = vsel %vm1045, %v1037, %v1042
    %v1047 = vrsqrt.pop %v812
    %v1048 = vmul.f32 %v1047, %v812
    %v1049 = vmul.f32 %v1048, %v1047
    %v1050 = vmul.f32 0.5, %v1049
    %v1051 = vsub.f32 1.5, %v1050
    %v1052 = vmul.f32 %v1047, %v1051
    %vm1053 = vweird.f32 %v812
    %vm1054 = vweird.f32 %v1047
    %vm1055 = vmor %vm1053, %vm1054
    %v1056 = vsel %vm1055, %v1047, %v1052
    %v1057 = vrsqrt.pop %v813
    %v1058 = vmul.f32 %v1057, %v813
    %v1059 = vmul.f32 %v1058, %v1057
    %v1060 = vmul.f32 0.5, %v1059
    %v1061 = vsub.f32 1.5, %v1060
    %v1062 = vmul.f32 %v1057, %v1061
    %vm1063 = vweird.f32 %v813
    %vm1064 = vweird.f32 %v1057
    %vm1065 = vmor %vm1063, %vm1064
    %v1066 = vsel %vm1065, %v1057, %v1062
    %v1067 = vrsqrt.pop %v814
    %v1068 = vmul.f32 %v1067, %v814
    %v1069 = vmul.f32 %v1068, %v1067
    %v1070 = vmul.f32 0.5, %v1069
    %v1071 = vsub.f32 1.5, %v1070
    %v1072 = vmul.f32 %v1067, %v1071
    %vm1073 = vweird.f32 %v814
    %vm1074 = vweird.f32 %v1067
    %vm1075 = vmor %vm1073, %vm1074
    %v1076 = vsel %vm1075, %v1067, %v1072
    %v1077 = vrsqrt.pop %v815
    %v1078 = vmul.f32 %v1077, %v815
    %v1079 = vmul.f32 %v1078, %v1077
    %v1080 = vmul.f32 0.5, %v1079
    %v1081 = vsub.f32 1.5, %v1080
    %v1082 = vmul.f32 %v1077, %v1081
    %vm1083 = vweird.f32 %v815
    %vm1084 = vweird.f32 %v1077
    %vm1085 = vmor %vm1083, %vm1084
    %v1086 = vsel %vm1085, %v1077, %v1082
    %v1087 = vrsqrt.pop %v816
    %v1088 = vmul.f32 %v1087, %v816
    %v1089 = vmul.f32 %v1088, %v1087
    %v1090 = vmul.f32 0.5, %v1089
    %v1091 = vsub.f32 1.5, %v1090
    %v1092 = vmul.f32 %v1087, %v1091
    %vm1093 = vweird.f32 %v816
    %vm1094 = vweird.f32 %v1087
    %vm1095 = vmor %vm1093, %vm1094
    %v1096 = vsel %vm1095, %v1087, %v1092
    %v1097 = vrsqrt.pop %v817
    %v1098 = vmul.f32 %v1097, %v817
    %v1099 = vmul.f32 %v1098, %v1097
    %v1100 = vmul.f32 0.5, %v1099
    %v1101 = vsub.f32 1.5, %v1100
    %v1102 = vmul.f32 %v1097, %v1101
    %vm1103 = vweird.f32 %v817
    %vm1104 = vweird.f32 %v1097
    %vm1105 = vmor %vm1103, %vm1104
    %v1106 = vsel %vm1105, %v1097, %v1102
    %v1107 = vrsqrt.pop %v818
    %v1108 = vmul.f32 %v1107, %v818
    %v1109 = vmul.f32 %v1108, %v1107
    %v1110 = vmul.f32 0.5, %v1109
    %v1111 = vsub.f32 1.5, %v1110
    %v1112 = vmul.f32 %v1107, %v1111
    %vm1113 = vweird.f32 %v818
    %vm1114 = vweird.f32 %v1107
    %vm1115 = vmor %vm1113, %vm1114
    %v1116 = vsel %vm1115, %v1107, %v1112
    %v1117 = vrsqrt.pop %v819
    %v1118 = vmul.f32 %v1117, %v819
    %v1119 = vmul.f32 %v1118, %v1117
    %v1120 = vmul.f32 0.5, %v1119
    %v1121 = vsub.f32 1.5, %v1120
    %v1122 = vmul.f32 %v1117, %v1121
    %vm1123 = vweird.f32 %v819
    %vm1124 = vweird.f32 %v1117
    %vm1125 = vmor %vm1123, %vm1124
    %v1126 = vsel %vm1125, %v1117, %v1122
    %v1127 = vrsqrt.pop %v820
    %v1128 = vmul.f32 %v1127, %v820
    %v1129 = vmul.f32 %v1128, %v1127
    %v1130 = vmul.f32 0.5, %v1129
    %v1131 = vsub.f32 1.5, %v1130
    %v1132 = vmul.f32 %v1127, %v1131
    %vm1133 = vweird.f32 %v820
    %vm1134 = vweird.f32 %v1127
    %vm1135 = vmor %vm1133, %vm1134
    %v1136 = vsel %vm1135, %v1127, %v1132
    %v1137 = vrsqrt.pop %v821
    %v1138 = vmul.f32 %v1137, %v821
    %v1139 = vmul.f32 %v1138, %v1137
    %v1140 = vmul.f32 0.5, %v1139
    %v1141 = vsub.f32 1.5, %v1140
    %v1142 = vmul.f32 %v1137, %v1141
    %vm1143 = vweird.f32 %v821
    %vm1144 = vweird.f32 %v1137
    %vm1145 = vmor %vm1143, %vm1144
    %v1146 = vsel %vm1145, %v1137, %v1142
    %v1147 = vrsqrt.pop %v822
    %v1148 = vmul.f32 %v1147, %v822
    %v1149 = vmul.f32 %v1148, %v1147
    %v1150 = vmul.f32 0.5, %v1149
    %v1151 = vsub.f32 1.5, %v1150
    %v1152 = vmul.f32 %v1147, %v1151
    %vm1153 = vweird.f32 %v822
    %vm1154 = vweird.f32 %v1147
    %vm1155 = vmor %vm1153, %vm1154
    %v1156 = vsel %vm1155, %v1147, %v1152
    %v1157 = vrsqrt.pop %v823
    %v1158 = vmul.f32 %v1157, %v823
    %v1159 = vmul.f32 %v1158, %v1157
    %v1160 = vmul.f32 0.5, %v1159
    %v1161 = vsub.f32 1.5, %v1160
    %v1162 = vmul.f32 %v1157, %v1161
    %vm1163 = vweird.f32 %v823
    %vm1164 = vweird.f32 %v1157
    %vm1165 = vmor %vm1163, %vm1164
    %v1166 = vsel %vm1165, %v1157, %v1162
    %v1167 = vrsqrt.pop %v824
    %v1168 = vmul.f32 %v1167, %v824
    %v1169 = vmul.f32 %v1168, %v1167
    %v1170 = vmul.f32 0.5, %v1169
    %v1171 = vsub.f32 1.5, %v1170
    %v1172 = vmul.f32 %v1167, %v1171
    %vm1173 = vweird.f32 %v824
    %vm1174 = vweird.f32 %v1167
    %vm1175 = vmor %vm1173, %vm1174
    %v1176 = vsel %vm1175, %v1167, %v1172
    %v1177 = vrsqrt.pop %v825
    %v1178 = vmul.f32 %v1177, %v825
    %v1179 = vmul.f32 %v1178, %v1177
    %v1180 = vmul.f32 0.5, %v1179
    %v1181 = vsub.f32 1.5, %v1180
    %v1182 = vmul.f32 %v1177, %v1181
    %vm1183 = vweird.f32 %v825
    %vm1184 = vweird.f32 %v1177
    %vm1185 = vmor %vm1183, %vm1184
    %v1186 = vsel %vm1185, %v1177, %v1182
    %v1187 = vrsqrt.pop %v826
    %v1188 = vmul.f32 %v1187, %v826
    %v1189 = vmul.f32 %v1188, %v1187
    %v1190 = vmul.f32 0.5, %v1189
    %v1191 = vsub.f32 1.5, %v1190
    %v1192 = vmul.f32 %v1187, %v1191
    %vm1193 = vweird.f32 %v826
    %vm1194 = vweird.f32 %v1187
    %vm1195 = vmor %vm1193, %vm1194
    %v1196 = vsel %vm1195, %v1187, %v1192
    %v1197 = vrsqrt.pop %v827
    %v1198 = vmul.f32 %v1197, %v827
    %v1199 = vmul.f32 %v1198, %v1197
    %v1200 = vmul.f32 0.5, %v1199
    %v1201 = vsub.f32 1.5, %v1200
    %v1202 = vmul.f32 %v1197, %v1201
    %vm1203 = vweird.f32 %v827
    %vm1204 = vweird.f32 %v1197
    %vm1205 = vmor %vm1203, %vm1204
    %v1206 = vsel %vm1205, %v1197, %v1202
    %v1207 = vrsqrt.pop %v828
    %v1208 = vmul.f32 %v1207, %v828
    %v1209 = vmul.f32 %v1208, %v1207
    %v1210 = vmul.f32 0.5, %v1209
    %v1211 = vsub.f32 1.5, %v1210
    %v1212 = vmul.f32 %v1207, %v1211
    %vm1213 = vweird.f32 %v828
    %vm1214 = vweird.f32 %v1207
    %vm1215 = vmor %vm1213, %vm1214
    %v1216 = vsel %vm1215, %v1207, %v1212
    %v1217 = vrsqrt.pop %v829
    %v1218 = vmul.f32 %v1217, %v829
    %v1219 = vmul.f32 %v1218, %v1217
    %v1220 = vmul.f32 0.5, %v1219
    %v1221 = vsub.f32 1.5, %v1220
    %v1222 = vmul.f32 %v1217, %v1221
    %vm1223 = vweird.f32 %v829
    %vm1224 = vweird.f32 %v1217
    %vm1225 = vmor %vm1223, %vm1224
    %v1226 = vsel %vm1225, %v1217, %v1222
    %v1227 = vrsqrt.pop %v830
    %v1228 = vmul.f32 %v1227, %v830
    %v1229 = vmul.f32 %v1228, %v1227
    %v1230 = vmul.f32 0.5, %v1229
    %v1231 = vsub.f32 1.5, %v1230
    %v1232 = vmul.f32 %v1227, %v1231
    %vm1233 = vweird.f32 %v830
    %vm1234 = vweird.f32 %v1227
    %vm1235 = vmor %vm1233, %vm1234
    %v1236 = vsel %vm1235, %v1227, %v1232
    %v1237 = vrsqrt.pop %v831
    %v1238 = vmul.f32 %v1237, %v831
    %v1239 = vmul.f32 %v1238, %v1237
    %v1240 = vmul.f32 0.5, %v1239
    %v1241 = vsub.f32 1.5, %v1240
    %v1242 = vmul.f32 %v1237, %v1241
    %vm1243 = vweird.f32 %v831
    %vm1244 = vweird.f32 %v1237
    %vm1245 = vmor %vm1243, %vm1244
    %v1246 = vsel %vm1245, %v1237, %v1242
    %v1247 = vrsqrt.pop %v832
    %v1248 = vmul.f32 %v1247, %v832
    %v1249 = vmul.f32 %v1248, %v1247
    %v1250 = vmul.f32 0.5, %v1249
    %v1251 = vsub.f32 1.5, %v1250
    %v1252 = vmul.f32 %v1247, %v1251
    %vm1253 = vweird.f32 %v832
    %vm1254 = vweird.f32 %v1247
    %vm1255 = vmor %vm1253, %vm1254
    %v1256 = vsel %vm1255, %v1247, %v1252
    %v1257 = vrsqrt.pop %v833
    %v1258 = vmul.f32 %v1257, %v833
    %v1259 = vmul.f32 %v1258, %v1257
    %v1260 = vmul.f32 0.5, %v1259
    %v1261 = vsub.f32 1.5, %v1260
    %v1262 = vmul.f32 %v1257, %v1261
    %vm1263 = vweird.f32 %v833
    %vm1264 = vweird.f32 %v1257
    %vm1265 = vmor %vm1263, %vm1264
    %v1266 = vsel %vm1265, %v1257, %v1262
    %v1267 = vrsqrt.pop %v834
    %v1268 = vmul.f32 %v1267, %v834
    %v1269 = vmul.f32 %v1268, %v1267
    %v1270 = vmul.f32 0.5, %v1269
    %v1271 = vsub.f32 1.5, %v1270
    %v1272 = vmul.f32 %v1267, %v1271
    %vm1273 = vweird.f32 %v834
    %vm1274 = vweird.f32 %v1267
    %vm1275 = vmor %vm1273, %vm1274
    %v1276 = vsel %vm1275, %v1267, %v1272
    %v1277 = vrsqrt.pop %v835
    %v1278 = vmul.f32 %v1277, %v835
    %v1279 = vmul.f32 %v1278, %v1277
    %v1280 = vmul.f32 0.5, %v1279
    %v1281 = vsub.f32 1.5, %v1280
    %v1282 = vmul.f32 %v1277, %v1281
    %vm1283 = vweird.f32 %v835
    %vm1284 = vweird.f32 %v1277
    %vm1285 = vmor %vm1283, %vm1284
    %v1286 = vsel %vm1285, %v1277, %v1282
    %v1287 = vrsqrt.pop %v836
    %v1288 = vmul.f32 %v1287, %v836
    %v1289 = vmul.f32 %v1288, %v1287
    %v1290 = vmul.f32 0.5, %v1289
    %v1291 = vsub.f32 1.5, %v1290
    %v1292 = vmul.f32 %v1287, %v1291
    %vm1293 = vweird.f32 %v836
    %vm1294 = vweird.f32 %v1287
    %vm1295 = vmor %vm1293, %vm1294
    %v1296 = vsel %vm1295, %v1287, %v1292
    %v1297 = vrsqrt.pop %v837
    %v1298 = vmul.f32 %v1297, %v837
    %v1299 = vmul.f32 %v1298, %v1297
    %v1300 = vmul.f32 0.5, %v1299
    %v1301 = vsub.f32 1.5, %v1300
    %v1302 = vmul.f32 %v1297, %v1301
    %vm1303 = vweird.f32 %v837
    %vm1304 = vweird.f32 %v1297
    %vm1305 = vmor %vm1303, %vm1304
    %v1306 = vsel %vm1305, %v1297, %v1302
    %v1307 = vrsqrt.pop %v838
    %v1308 = vmul.f32 %v1307, %v838
    %v1309 = vmul.f32 %v1308, %v1307
    %v1310 = vmul.f32 0.5, %v1309
    %v1311 = vsub.f32 1.5, %v1310
    %v1312 = vmul.f32 %v1307, %v1311
    %vm1313 = vweird.f32 %v838
    %vm1314 = vweird.f32 %v1307
    %vm1315 = vmor %vm1313, %vm1314
    %v1316 = vsel %vm1315, %v1307, %v1312
    %v1317 = vrsqrt.pop %v839
    %v1318 = vmul.f32 %v1317, %v839
    %v1319 = vmul.f32 %v1318, %v1317
    %v1320 = vmul.f32 0.5, %v1319
    %v1321 = vsub.f32 1.5, %v1320
    %v1322 = vmul.f32 %v1317, %v1321
    %vm1323 = vweird.f32 %v839
    %vm1324 = vweird.f32 %v1317
    %vm1325 = vmor %vm1323, %vm1324
    %v1326 = vsel %vm1325, %v1317, %v1322
    %v1327 = vrsqrt.pop %v840
    %v1328 = vmul.f32 %v1327, %v840
    %v1329 = vmul.f32 %v1328, %v1327
    %v1330 = vmul.f32 0.5, %v1329
    %v1331 = vsub.f32 1.5, %v1330
    %v1332 = vmul.f32 %v1327, %v1331
    %vm1333 = vweird.f32 %v840
    %vm1334 = vweird.f32 %v1327
    %vm1335 = vmor %vm1333, %vm1334
    %v1336 = vsel %vm1335, %v1327, %v1332
    %v1337 = vrsqrt.pop %v841
    %v1338 = vmul.f32 %v1337, %v841
    %v1339 = vmul.f32 %v1338, %v1337
    %v1340 = vmul.f32 0.5, %v1339
    %v1341 = vsub.f32 1.5, %v1340
    %v1342 = vmul.f32 %v1337, %v1341
    %vm1343 = vweird.f32 %v841
    %vm1344 = vweird.f32 %v1337
    %vm1345 = vmor %vm1343, %vm1344
    %v1346 = vsel %vm1345, %v1337, %v1342
    %v1347 = vrsqrt.pop %v842
    %v1348 = vmul.f32 %v1347, %v842
    %v1349 = vmul.f32 %v1348, %v1347
    %v1350 = vmul.f32 0.5, %v1349
    %v1351 = vsub.f32 1.5, %v1350
    %v1352 = vmul.f32 %v1347, %v1351
    %vm1353 = vweird.f32 %v842
    %vm1354 = vweird.f32 %v1347
    %vm1355 = vmor %vm1353, %vm1354
    %v1356 = vsel %vm1355, %v1347, %v1352
    %v1357 = vrsqrt.pop %v843
    %v1358 = vmul.f32 %v1357, %v843
    %v1359 = vmul.f32 %v1358, %v1357
    %v1360 = vmul.f32 0.5, %v1359
    %v1361 = vsub.f32 1.5, %v1360
    %v1362 = vmul.f32 %v1357, %v1361
    %vm1363 = vweird.f32 %v843
    %vm1364 = vweird.f32 %v1357
    %vm1365 = vmor %vm1363, %vm1364
    %v1366 = vsel %vm1365, %v1357, %v1362
    %v1367 = vrsqrt.pop %v844
    %v1368 = vmul.f32 %v1367, %v844
    %v1369 = vmul.f32 %v1368, %v1367
    %v1370 = vmul.f32 0.5, %v1369
    %v1371 = vsub.f32 1.5, %v1370
    %v1372 = vmul.f32 %v1367, %v1371
    %vm1373 = vweird.f32 %v844
    %vm1374 = vweird.f32 %v1367
    %vm1375 = vmor %vm1373, %vm1374
    %v1376 = vsel %vm1375, %v1367, %v1372
    %v1377 = vrsqrt.pop %v845
    %v1378 = vmul.f32 %v1377, %v845
    %v1379 = vmul.f32 %v1378, %v1377
    %v1380 = vmul.f32 0.5, %v1379
    %v1381 = vsub.f32 1.5, %v1380
    %v1382 = vmul.f32 %v1377, %v1381
    %vm1383 = vweird.f32 %v845
    %vm1384 = vweird.f32 %v1377
    %vm1385 = vmor %vm1383, %vm1384
    %v1386 = vsel %vm1385, %v1377, %v1382
    %v1387 = vrsqrt.pop %v846
    %v1388 = vmul.f32 %v1387, %v846
    %v1389 = vmul.f32 %v1388, %v1387
    %v1390 = vmul.f32 0.5, %v1389
    %v1391 = vsub.f32 1.5, %v1390
    %v1392 = vmul.f32 %v1387, %v1391
    %vm1393 = vweird.f32 %v846
    %vm1394 = vweird.f32 %v1387
    %vm1395 = vmor %vm1393, %vm1394
    %v1396 = vsel %vm1395, %v1387, %v1392
    %v1397 = vrsqrt.pop %v847
    %v1398 = vmul.f32 %v1397, %v847
    %v1399 = vmul.f32 %v1398, %v1397
    %v1400 = vmul.f32 0.5, %v1399
    %v1401 = vsub.f32 1.5, %v1400
    %v1402 = vmul.f32 %v1397, %v1401
    %vm1403 = vweird.f32 %v847
    %vm1404 = vweird.f32 %v1397
    %vm1405 = vmor %vm1403, %vm1404
    %v1406 = vsel %vm1405, %v1397, %v1402
    %v1407 = vrsqrt.pop %v848
    %v1408 = vmul.f32 %v1407, %v848
    %v1409 = vmul.f32 %v1408, %v1407
    %v1410 = vmul.f32 0.5, %v1409
    %v1411 = vsub.f32 1.5, %v1410
    %v1412 = vmul.f32 %v1407, %v1411
    %vm1413 = vweird.f32 %v848
    %vm1414 = vweird.f32 %v1407
    %vm1415 = vmor %vm1413, %vm1414
    %v1416 = vsel %vm1415, %v1407, %v1412
    %v1417 = vrsqrt.pop %v849
    %v1418 = vmul.f32 %v1417, %v849
    %v1419 = vmul.f32 %v1418, %v1417
    %v1420 = vmul.f32 0.5, %v1419
    %v1421 = vsub.f32 1.5, %v1420
    %v1422 = vmul.f32 %v1417, %v1421
    %vm1423 = vweird.f32 %v849
    %vm1424 = vweird.f32 %v1417
    %vm1425 = vmor %vm1423, %vm1424
    %v1426 = vsel %vm1425, %v1417, %v1422
    %v1427 = vrsqrt.pop %v850
    %v1428 = vmul.f32 %v1427, %v850
    %v1429 = vmul.f32 %v1428, %v1427
    %v1430 = vmul.f32 0.5, %v1429
    %v1431 = vsub.f32 1.5, %v1430
    %v1432 = vmul.f32 %v1427, %v1431
    %vm1433 = vweird.f32 %v850
    %vm1434 = vweird.f32 %v1427
    %vm1435 = vmor %vm1433, %vm1434
    %v1436 = vsel %vm1435, %v1427, %v1432
    %v1437 = vrsqrt.pop %v851
    %v1438 = vmul.f32 %v1437, %v851
    %v1439 = vmul.f32 %v1438, %v1437
    %v1440 = vmul.f32 0.5, %v1439
    %v1441 = vsub.f32 1.5, %v1440
    %v1442 = vmul.f32 %v1437, %v1441
    %vm1443 = vweird.f32 %v851
    %vm1444 = vweird.f32 %v1437
    %vm1445 = vmor %vm1443, %vm1444
    %v1446 = vsel %vm1445, %v1437, %v1442
    %v1447 = vrsqrt.pop %v852
    %v1448 = vmul.f32 %v1447, %v852
    %v1449 = vmul.f32 %v1448, %v1447
    %v1450 = vmul.f32 0.5, %v1449
    %v1451 = vsub.f32 1.5, %v1450
    %v1452 = vmul.f32 %v1447, %v1451
    %vm1453 = vweird.f32 %v852
    %vm1454 = vweird.f32 %v1447
    %vm1455 = vmor %vm1453, %vm1454
    %v1456 = vsel %vm1455, %v1447, %v1452
    %v1457 = vrsqrt.pop %v853
    %v1458 = vmul.f32 %v1457, %v853
    %v1459 = vmul.f32 %v1458, %v1457
    %v1460 = vmul.f32 0.5, %v1459
    %v1461 = vsub.f32 1.5, %v1460
    %v1462 = vmul.f32 %v1457, %v1461
    %vm1463 = vweird.f32 %v853
    %vm1464 = vweird.f32 %v1457
    %vm1465 = vmor %vm1463, %vm1464
    %v1466 = vsel %vm1465, %v1457, %v1462
    %v1467 = vrsqrt.pop %v854
    %v1468 = vmul.f32 %v1467, %v854
    %v1469 = vmul.f32 %v1468, %v1467
    %v1470 = vmul.f32 0.5, %v1469
    %v1471 = vsub.f32 1.5, %v1470
    %v1472 = vmul.f32 %v1467, %v1471
    %vm1473 = vweird.f32 %v854
    %vm1474 = vweird.f32 %v1467
    %vm1475 = vmor %vm1473, %vm1474
    %v1476 = vsel %vm1475, %v1467, %v1472
    %v1477 = vrsqrt.pop %v855
    %v1478 = vmul.f32 %v1477, %v855
    %v1479 = vmul.f32 %v1478, %v1477
    %v1480 = vmul.f32 0.5, %v1479
    %v1481 = vsub.f32 1.5, %v1480
    %v1482 = vmul.f32 %v1477, %v1481
    %vm1483 = vweird.f32 %v855
    %vm1484 = vweird.f32 %v1477
    %vm1485 = vmor %vm1483, %vm1484
    %v1486 = vsel %vm1485, %v1477, %v1482
    %v1487 = vrsqrt.pop %v856
    %v1488 = vmul.f32 %v1487, %v856
    %v1489 = vmul.f32 %v1488, %v1487
    %v1490 = vmul.f32 0.5, %v1489
    %v1491 = vsub.f32 1.5, %v1490
    %v1492 = vmul.f32 %v1487, %v1491
    %vm1493 = vweird.f32 %v856
    %vm1494 = vweird.f32 %v1487
    %vm1495 = vmor %vm1493, %vm1494
    %v1496 = vsel %vm1495, %v1487, %v1492
    %v1497 = vmul.f32 %v409, %v866
    %v1498 = vmul.f32 %v410, %v876
    %v1499 = vmul.f32 %v411, %v886
    %v1500 = vmul.f32 %v412, %v896
    %v1501 = vmul.f32 %v413, %v906
    %v1502 = vmul.f32 %v414, %v916
    %v1503 = vmul.f32 %v415, %v926
    %v1504 = vmul.f32 %v416, %v936
    %v1505 = vmul.f32 %v417, %v946
    %v1506 = vmul.f32 %v418, %v956
    %v1507 = vmul.f32 %v419, %v966
    %v1508 = vmul.f32 %v420, %v976
    %v1509 = vmul.f32 %v421, %v986
    %v1510 = vmul.f32 %v422, %v996
    %v1511 = vmul.f32 %v423, %v1006
    %v1512 = vmul.f32 %v424, %v1016
    %v1513 = vmul.f32 %v425, %v1026
    %v1514 = vmul.f32 %v426, %v1036
    %v1515 = vmul.f32 %v427, %v1046
    %v1516 = vmul.f32 %v428, %v1056
    %v1517 = vmul.f32 %v429, %v1066
    %v1518 = vmul.f32 %v430, %v1076
    %v1519 = vmul.f32 %v431, %v1086
    %v1520 = vmul.f32 %v432, %v1096
    %v1521 = vmul.f32 %v433, %v1106
    %v1522 = vmul.f32 %v434, %v1116
    %v1523 = vmul.f32 %v435, %v1126
    %v1524 = vmul.f32 %v436, %v1136
    %v1525 = vmul.f32 %v437, %v1146
    %v1526 = vmul.f32 %v438, %v1156
    %v1527 = vmul.f32 %v439, %v1166
    %v1528 = vmul.f32 %v440, %v1176
    %v1529 = vmul.f32 %v441, %v1186
    %v1530 = vmul.f32 %v442, %v1196
    %v1531 = vmul.f32 %v443, %v1206
    %v1532 = vmul.f32 %v444, %v1216
    %v1533 = vmul.f32 %v445, %v1226
    %v1534 = vmul.f32 %v446, %v1236
    %v1535 = vmul.f32 %v447, %v1246
    %v1536 = vmul.f32 %v448, %v1256
    %v1537 = vmul.f32 %v449, %v1266
    %v1538 = vmul.f32 %v450, %v1276
    %v1539 = vmul.f32 %v451, %v1286
    %v1540 = vmul.f32 %v452, %v1296
    %v1541 = vmul.f32 %v453, %v1306
    %v1542 = vmul.f32 %v454, %v1316
    %v1543 = vmul.f32 %v455, %v1326
    %v1544 = vmul.f32 %v456, %v1336
    %v1545 = vmul.f32 %v457, %v1346
    %v1546 = vmul.f32 %v458, %v1356
    %v1547 = vmul.f32 %v459, %v1366
    %v1548 = vmul.f32 %v460, %v1376
    %v1549 = vmul.f32 %v461, %v1386
    %v1550 = vmul.f32 %v462, %v1396
    %v1551 = vmul.f32 %v463, %v1406
    %v1552 = vmul.f32 %v464, %v1416
    %v1553 = vmul.f32 %v465, %v1426
    %v1554 = vmul.f32 %v466, %v1436
    %v1555 = vmul.f32 %v467, %v1446
    %v1556 = vmul.f32 %v468, %v1456
    %v1557 = vmul.f32 %v469, %v1466
    %v1558 = vmul.f32 %v470, %v1476
    %v1559 = vmul.f32 %v471, %v1486
    %v1560 = vmul.f32 %v472, %v1496
    %v1561 = vld [vmem:[%s1] sm:$0x1]
    %v1563 = vperm.slane %v1561, 0
    %v1565 = vmul.f32 %v1497, %v1563
    %v1566 = vmul.f32 %v1498, %v1563
    %v1567 = vmul.f32 %v1499, %v1563
    %v1568 = vmul.f32 %v1500, %v1563
    %v1569 = vmul.f32 %v1501, %v1563
    %v1570 = vmul.f32 %v1502, %v1563
    %v1571 = vmul.f32 %v1503, %v1563
    %v1572 = vmul.f32 %v1504, %v1563
    %v1573 = vmul.f32 %v1505, %v1563
    %v1574 = vmul.f32 %v1506, %v1563
    %v1575 = vmul.f32 %v1507, %v1563
    %v1576 = vmul.f32 %v1508, %v1563
    %v1577 = vmul.f32 %v1509, %v1563
    %v1578 = vmul.f32 %v1510, %v1563
    %v1579 = vmul.f32 %v1511, %v1563
    %v1580 = vmul.f32 %v1512, %v1563
    %v1581 = vmul.f32 %v1513, %v1563
    %v1582 = vmul.f32 %v1514, %v1563
    %v1583 = vmul.f32 %v1515, %v1563
    %v1584 = vmul.f32 %v1516, %v1563
    %v1585 = vmul.f32 %v1517, %v1563
    %v1586 = vmul.f32 %v1518, %v1563
    %v1587 = vmul.f32 %v1519, %v1563
    %v1588 = vmul.f32 %v1520, %v1563
    %v1589 = vmul.f32 %v1521, %v1563
    %v1590 = vmul.f32 %v1522, %v1563
    %v1591 = vmul.f32 %v1523, %v1563
    %v1592 = vmul.f32 %v1524, %v1563
    %v1593 = vmul.f32 %v1525, %v1563
    %v1594 = vmul.f32 %v1526, %v1563
    %v1595 = vmul.f32 %v1527, %v1563
    %v1596 = vmul.f32 %v1528, %v1563
    %v1597 = vmul.f32 %v1529, %v1563
    %v1598 = vmul.f32 %v1530, %v1563
    %v1599 = vmul.f32 %v1531, %v1563
    %v1600 = vmul.f32 %v1532, %v1563
    %v1601 = vmul.f32 %v1533, %v1563
    %v1602 = vmul.f32 %v1534, %v1563
    %v1603 = vmul.f32 %v1535, %v1563
    %v1604 = vmul.f32 %v1536, %v1563
    %v1605 = vmul.f32 %v1537, %v1563
    %v1606 = vmul.f32 %v1538, %v1563
    %v1607 = vmul.f32 %v1539, %v1563
    %v1608 = vmul.f32 %v1540, %v1563
    %v1609 = vmul.f32 %v1541, %v1563
    %v1610 = vmul.f32 %v1542, %v1563
    %v1611 = vmul.f32 %v1543, %v1563
    %v1612 = vmul.f32 %v1544, %v1563
    %v1613 = vmul.f32 %v1545, %v1563
    %v1614 = vmul.f32 %v1546, %v1563
    %v1615 = vmul.f32 %v1547, %v1563
    %v1616 = vmul.f32 %v1548, %v1563
    %v1617 = vmul.f32 %v1549, %v1563
    %v1618 = vmul.f32 %v1550, %v1563
    %v1619 = vmul.f32 %v1551, %v1563
    %v1620 = vmul.f32 %v1552, %v1563
    %v1621 = vmul.f32 %v1553, %v1563
    %v1622 = vmul.f32 %v1554, %v1563
    %v1623 = vmul.f32 %v1555, %v1563
    %v1624 = vmul.f32 %v1556, %v1563
    %v1625 = vmul.f32 %v1557, %v1563
    %v1626 = vmul.f32 %v1558, %v1563
    %v1627 = vmul.f32 %v1559, %v1563
    %v1628 = vmul.f32 %v1560, %v1563
    %v1629 = vld [vmem:[%s2] sm:$0x1]
    %v1631 = vperm.slane %v1629, 0
    %v1633 = vadd.f32 %v1565, %v1631
    %v1634 = vadd.f32 %v1566, %v1631
    %v1635 = vadd.f32 %v1567, %v1631
    %v1636 = vadd.f32 %v1568, %v1631
    %v1637 = vadd.f32 %v1569, %v1631
    %v1638 = vadd.f32 %v1570, %v1631
    %v1639 = vadd.f32 %v1571, %v1631
    %v1640 = vadd.f32 %v1572, %v1631
    %v1641 = vadd.f32 %v1573, %v1631
    %v1642 = vadd.f32 %v1574, %v1631
    %v1643 = vadd.f32 %v1575, %v1631
    %v1644 = vadd.f32 %v1576, %v1631
    %v1645 = vadd.f32 %v1577, %v1631
    %v1646 = vadd.f32 %v1578, %v1631
    %v1647 = vadd.f32 %v1579, %v1631
    %v1648 = vadd.f32 %v1580, %v1631
    %v1649 = vadd.f32 %v1581, %v1631
    %v1650 = vadd.f32 %v1582, %v1631
    %v1651 = vadd.f32 %v1583, %v1631
    %v1652 = vadd.f32 %v1584, %v1631
    %v1653 = vadd.f32 %v1585, %v1631
    %v1654 = vadd.f32 %v1586, %v1631
    %v1655 = vadd.f32 %v1587, %v1631
    %v1656 = vadd.f32 %v1588, %v1631
    %v1657 = vadd.f32 %v1589, %v1631
    %v1658 = vadd.f32 %v1590, %v1631
    %v1659 = vadd.f32 %v1591, %v1631
    %v1660 = vadd.f32 %v1592, %v1631
    %v1661 = vadd.f32 %v1593, %v1631
    %v1662 = vadd.f32 %v1594, %v1631
    %v1663 = vadd.f32 %v1595, %v1631
    %v1664 = vadd.f32 %v1596, %v1631
    %v1665 = vadd.f32 %v1597, %v1631
    %v1666 = vadd.f32 %v1598, %v1631
    %v1667 = vadd.f32 %v1599, %v1631
    %v1668 = vadd.f32 %v1600, %v1631
    %v1669 = vadd.f32 %v1601, %v1631
    %v1670 = vadd.f32 %v1602, %v1631
    %v1671 = vadd.f32 %v1603, %v1631
    %v1672 = vadd.f32 %v1604, %v1631
    %v1673 = vadd.f32 %v1605, %v1631
    %v1674 = vadd.f32 %v1606, %v1631
    %v1675 = vadd.f32 %v1607, %v1631
    %v1676 = vadd.f32 %v1608, %v1631
    %v1677 = vadd.f32 %v1609, %v1631
    %v1678 = vadd.f32 %v1610, %v1631
    %v1679 = vadd.f32 %v1611, %v1631
    %v1680 = vadd.f32 %v1612, %v1631
    %v1681 = vadd.f32 %v1613, %v1631
    %v1682 = vadd.f32 %v1614, %v1631
    %v1683 = vadd.f32 %v1615, %v1631
    %v1684 = vadd.f32 %v1616, %v1631
    %v1685 = vadd.f32 %v1617, %v1631
    %v1686 = vadd.f32 %v1618, %v1631
    %v1687 = vadd.f32 %v1619, %v1631
    %v1688 = vadd.f32 %v1620, %v1631
    %v1689 = vadd.f32 %v1621, %v1631
    %v1690 = vadd.f32 %v1622, %v1631
    %v1691 = vadd.f32 %v1623, %v1631
    %v1692 = vadd.f32 %v1624, %v1631
    %v1693 = vadd.f32 %v1625, %v1631
    %v1694 = vadd.f32 %v1626, %v1631
    %v1695 = vadd.f32 %v1627, %v1631
    %v1696 = vadd.f32 %v1628, %v1631
    %v1697 = vpack.c.bf16 %v1634, %v1633
    %v1698 = vpack.c.bf16 %v1636, %v1635
    %v1699 = vpack.c.bf16 %v1638, %v1637
    %v1700 = vpack.c.bf16 %v1640, %v1639
    %v1701 = vpack.c.bf16 %v1642, %v1641
    %v1702 = vpack.c.bf16 %v1644, %v1643
    %v1703 = vpack.c.bf16 %v1646, %v1645
    %v1704 = vpack.c.bf16 %v1648, %v1647
    %v1705 = vpack.c.bf16 %v1650, %v1649
    %v1706 = vpack.c.bf16 %v1652, %v1651
    %v1707 = vpack.c.bf16 %v1654, %v1653
    %v1708 = vpack.c.bf16 %v1656, %v1655
    %v1709 = vpack.c.bf16 %v1658, %v1657
    %v1710 = vpack.c.bf16 %v1660, %v1659
    %v1711 = vpack.c.bf16 %v1662, %v1661
    %v1712 = vpack.c.bf16 %v1664, %v1663
    %v1713 = vpack.c.bf16 %v1666, %v1665
    %v1714 = vpack.c.bf16 %v1668, %v1667
    %v1715 = vpack.c.bf16 %v1670, %v1669
    %v1716 = vpack.c.bf16 %v1672, %v1671
    %v1717 = vpack.c.bf16 %v1674, %v1673
    %v1718 = vpack.c.bf16 %v1676, %v1675
    %v1719 = vpack.c.bf16 %v1678, %v1677
    %v1720 = vpack.c.bf16 %v1680, %v1679
    %v1721 = vpack.c.bf16 %v1682, %v1681
    %v1722 = vpack.c.bf16 %v1684, %v1683
    %v1723 = vpack.c.bf16 %v1686, %v1685
    %v1724 = vpack.c.bf16 %v1688, %v1687
    %v1725 = vpack.c.bf16 %v1690, %v1689
    %v1726 = vpack.c.bf16 %v1692, %v1691
    %v1727 = vpack.c.bf16 %v1694, %v1693
    %v1728 = vpack.c.bf16 %v1696, %v1695
    %v1729 = vld [vmem:[%s3] sm:$0xf]
    %v1730 = vld [vmem:[%s3 + $0x4] sm:$0xf]
    %v1731 = vld [vmem:[%s3 + $0x8] sm:$0xf]
    %v1732 = vld [vmem:[%s3 + $0xc] sm:$0xf]
    %v1733 = vld [vmem:[%s4] sm:$0x1]
    %v1735 = vperm.slane %v1733, 0
    %v1741 = vunpack.c.l.b16 %v1729
    %v1742 = vunpack.c.l.b16 %v1730
    %v1743 = vunpack.c.l.b16 %v1731
    %v1744 = vunpack.c.l.b16 %v1732
    %v1745 = vpack.c.b16 %v1742, %v1741
    %v1746 = vpack.c.b16 %v1744, %v1743
    %v1750 = vsel %vm145, %v1697, 0
    %v1753 = vsel %vm145, %v1698, 0
    %v1756 = vsel %vm145, %v1699, 0
    %v1759 = vsel %vm145, %v1700, 0
    %v1762 = vsel %vm145, %v1701, 0
    %v1765 = vsel %vm145, %v1702, 0
    %v1768 = vsel %vm145, %v1703, 0
    %v1771 = vsel %vm145, %v1704, 0
    %v1774 = vsel %vm145, %v1705, 0
    %v1777 = vsel %vm145, %v1706, 0
    %v1780 = vsel %vm145, %v1707, 0
    %v1783 = vsel %vm145, %v1708, 0
    %v1786 = vsel %vm145, %v1709, 0
    %v1789 = vsel %vm145, %v1710, 0
    %v1792 = vsel %vm145, %v1711, 0
    %v1795 = vsel %vm145, %v1712, 0
    %v1798 = vsel %vm145, %v1713, 0
    %v1801 = vsel %vm145, %v1714, 0
    %v1804 = vsel %vm145, %v1715, 0
    %v1807 = vsel %vm145, %v1716, 0
    %v1810 = vsel %vm145, %v1717, 0
    %v1813 = vsel %vm145, %v1718, 0
    %v1816 = vsel %vm145, %v1719, 0
    %v1819 = vsel %vm145, %v1720, 0
    %v1822 = vsel %vm145, %v1721, 0
    %v1825 = vsel %vm145, %v1722, 0
    %v1828 = vsel %vm145, %v1723, 0
    %v1831 = vsel %vm145, %v1724, 0
    %v1834 = vsel %vm145, %v1725, 0
    %v1837 = vsel %vm145, %v1726, 0
    %v1840 = vsel %vm145, %v1727, 0
    %v1843 = vsel %vm145, %v1728, 0
    %1845 = vmatpush.bf16.msra.mxu0 0
    %1846 = vmatpush.bf16.msra.mxu0 0
    %1847 = vmatpush.bf16.msra.mxu0 0
    %1848 = vmatpush.bf16.msra.mxu0 0
    %1849 = vmatpush.bf16.msra.mxu0 0
    %1850 = vmatpush.bf16.msra.mxu0 0
    %1851 = vmatpush.bf16.msra.mxu0 %v1746
    %1852 = vmatpush.bf16.msra.mxu0 %v1745
    %1853 = vmatmul.bf16.gmra.mxu0 %v1750
    %v1854 = vpop.f32.mrf.mxu0
    %v1855 = vadd.f32 %v1735, %v1854
    %v1856 = vpop.f32.mrf.mxu0
    %v1857 = vadd.f32 %v1735, %v1856
    %1858 = vmatmul.bf16.gmra.mxu0 %v1753
    %v1859 = vpop.f32.mrf.mxu0
    %v1860 = vadd.f32 %v1735, %v1859
    %v1861 = vpop.f32.mrf.mxu0
    %v1862 = vadd.f32 %v1735, %v1861
    %1863 = vmatmul.bf16.gmra.mxu0 %v1756
    %v1864 = vpop.f32.mrf.mxu0
    %v1865 = vadd.f32 %v1735, %v1864
    %v1866 = vpop.f32.mrf.mxu0
    %v1867 = vadd.f32 %v1735, %v1866
    %1868 = vmatmul.bf16.gmra.mxu0 %v1759
    %v1869 = vpop.f32.mrf.mxu0
    %v1870 = vadd.f32 %v1735, %v1869
    %v1871 = vpop.f32.mrf.mxu0
    %v1872 = vadd.f32 %v1735, %v1871
    %1873 = vmatmul.bf16.gmra.mxu0 %v1762
    %v1874 = vpop.f32.mrf.mxu0
    %v1875 = vadd.f32 %v1735, %v1874
    %v1876 = vpop.f32.mrf.mxu0
    %v1877 = vadd.f32 %v1735, %v1876
    %1878 = vmatmul.bf16.gmra.mxu0 %v1765
    %v1879 = vpop.f32.mrf.mxu0
    %v1880 = vadd.f32 %v1735, %v1879
    %v1881 = vpop.f32.mrf.mxu0
    %v1882 = vadd.f32 %v1735, %v1881
    %1883 = vmatmul.bf16.gmra.mxu0 %v1768
    %v1884 = vpop.f32.mrf.mxu0
    %v1885 = vadd.f32 %v1735, %v1884
    %v1886 = vpop.f32.mrf.mxu0
    %v1887 = vadd.f32 %v1735, %v1886
    %1888 = vmatmul.bf16.gmra.mxu0 %v1771
    %v1889 = vpop.f32.mrf.mxu0
    %v1890 = vadd.f32 %v1735, %v1889
    %v1891 = vpop.f32.mrf.mxu0
    %v1892 = vadd.f32 %v1735, %v1891
    %1893 = vmatmul.bf16.gmra.mxu0 %v1774
    %v1894 = vpop.f32.mrf.mxu0
    %v1895 = vadd.f32 %v1735, %v1894
    %v1896 = vpop.f32.mrf.mxu0
    %v1897 = vadd.f32 %v1735, %v1896
    %1898 = vmatmul.bf16.gmra.mxu0 %v1777
    %v1899 = vpop.f32.mrf.mxu0
    %v1900 = vadd.f32 %v1735, %v1899
    %v1901 = vpop.f32.mrf.mxu0
    %v1902 = vadd.f32 %v1735, %v1901
    %1903 = vmatmul.bf16.gmra.mxu0 %v1780
    %v1904 = vpop.f32.mrf.mxu0
    %v1905 = vadd.f32 %v1735, %v1904
    %v1906 = vpop.f32.mrf.mxu0
    %v1907 = vadd.f32 %v1735, %v1906
    %1908 = vmatmul.bf16.gmra.mxu0 %v1783
    %v1909 = vpop.f32.mrf.mxu0
    %v1910 = vadd.f32 %v1735, %v1909
    %v1911 = vpop.f32.mrf.mxu0
    %v1912 = vadd.f32 %v1735, %v1911
    %1913 = vmatmul.bf16.gmra.mxu0 %v1786
    %v1914 = vpop.f32.mrf.mxu0
    %v1915 = vadd.f32 %v1735, %v1914
    %v1916 = vpop.f32.mrf.mxu0
    %v1917 = vadd.f32 %v1735, %v1916
    %1918 = vmatmul.bf16.gmra.mxu0 %v1789
    %v1919 = vpop.f32.mrf.mxu0
    %v1920 = vadd.f32 %v1735, %v1919
    %v1921 = vpop.f32.mrf.mxu0
    %v1922 = vadd.f32 %v1735, %v1921
    %1923 = vmatmul.bf16.gmra.mxu0 %v1792
    %v1924 = vpop.f32.mrf.mxu0
    %v1925 = vadd.f32 %v1735, %v1924
    %v1926 = vpop.f32.mrf.mxu0
    %v1927 = vadd.f32 %v1735, %v1926
    %1928 = vmatmul.bf16.gmra.mxu0 %v1795
    %v1929 = vpop.f32.mrf.mxu0
    %v1930 = vadd.f32 %v1735, %v1929
    %v1931 = vpop.f32.mrf.mxu0
    %v1932 = vadd.f32 %v1735, %v1931
    %1933 = vmatmul.bf16.gmra.mxu0 %v1798
    %v1934 = vpop.f32.mrf.mxu0
    %v1935 = vadd.f32 %v1735, %v1934
    %v1936 = vpop.f32.mrf.mxu0
    %v1937 = vadd.f32 %v1735, %v1936
    %1938 = vmatmul.bf16.gmra.mxu0 %v1801
    %v1939 = vpop.f32.mrf.mxu0
    %v1940 = vadd.f32 %v1735, %v1939
    %v1941 = vpop.f32.mrf.mxu0
    %v1942 = vadd.f32 %v1735, %v1941
    %1943 = vmatmul.bf16.gmra.mxu0 %v1804
    %v1944 = vpop.f32.mrf.mxu0
    %v1945 = vadd.f32 %v1735, %v1944
    %v1946 = vpop.f32.mrf.mxu0
    %v1947 = vadd.f32 %v1735, %v1946
    %1948 = vmatmul.bf16.gmra.mxu0 %v1807
    %v1949 = vpop.f32.mrf.mxu0
    %v1950 = vadd.f32 %v1735, %v1949
    %v1951 = vpop.f32.mrf.mxu0
    %v1952 = vadd.f32 %v1735, %v1951
    %1953 = vmatmul.bf16.gmra.mxu0 %v1810
    %v1954 = vpop.f32.mrf.mxu0
    %v1955 = vadd.f32 %v1735, %v1954
    %v1956 = vpop.f32.mrf.mxu0
    %v1957 = vadd.f32 %v1735, %v1956
    %1958 = vmatmul.bf16.gmra.mxu0 %v1813
    %v1959 = vpop.f32.mrf.mxu0
    %v1960 = vadd.f32 %v1735, %v1959
    %v1961 = vpop.f32.mrf.mxu0
    %v1962 = vadd.f32 %v1735, %v1961
    %1963 = vmatmul.bf16.gmra.mxu0 %v1816
    %v1964 = vpop.f32.mrf.mxu0
    %v1965 = vadd.f32 %v1735, %v1964
    %v1966 = vpop.f32.mrf.mxu0
    %v1967 = vadd.f32 %v1735, %v1966
    %1968 = vmatmul.bf16.gmra.mxu0 %v1819
    %v1969 = vpop.f32.mrf.mxu0
    %v1970 = vadd.f32 %v1735, %v1969
    %v1971 = vpop.f32.mrf.mxu0
    %v1972 = vadd.f32 %v1735, %v1971
    %1973 = vmatmul.bf16.gmra.mxu0 %v1822
    %v1974 = vpop.f32.mrf.mxu0
    %v1975 = vadd.f32 %v1735, %v1974
    %v1976 = vpop.f32.mrf.mxu0
    %v1977 = vadd.f32 %v1735, %v1976
    %1978 = vmatmul.bf16.gmra.mxu0 %v1825
    %v1979 = vpop.f32.mrf.mxu0
    %v1980 = vadd.f32 %v1735, %v1979
    %v1981 = vpop.f32.mrf.mxu0
    %v1982 = vadd.f32 %v1735, %v1981
    %1983 = vmatmul.bf16.gmra.mxu0 %v1828
    %v1984 = vpop.f32.mrf.mxu0
    %v1985 = vadd.f32 %v1735, %v1984
    %v1986 = vpop.f32.mrf.mxu0
    %v1987 = vadd.f32 %v1735, %v1986
    %1988 = vmatmul.bf16.gmra.mxu0 %v1831
    %v1989 = vpop.f32.mrf.mxu0
    %v1990 = vadd.f32 %v1735, %v1989
    %v1991 = vpop.f32.mrf.mxu0
    %v1992 = vadd.f32 %v1735, %v1991
    %1993 = vmatmul.bf16.gmra.mxu0 %v1834
    %v1994 = vpop.f32.mrf.mxu0
    %v1995 = vadd.f32 %v1735, %v1994
    %v1996 = vpop.f32.mrf.mxu0
    %v1997 = vadd.f32 %v1735, %v1996
    %1998 = vmatmul.bf16.gmra.mxu0 %v1837
    %v1999 = vpop.f32.mrf.mxu0
    %v2000 = vadd.f32 %v1735, %v1999
    %v2001 = vpop.f32.mrf.mxu0
    %v2002 = vadd.f32 %v1735, %v2001
    %2003 = vmatmul.bf16.gmra.mxu0 %v1840
    %v2004 = vpop.f32.mrf.mxu0
    %v2005 = vadd.f32 %v1735, %v2004
    %v2006 = vpop.f32.mrf.mxu0
    %v2007 = vadd.f32 %v1735, %v2006
    %2008 = vmatmul.bf16.gmra.mxu0 %v1843
    %v2009 = vpop.f32.mrf.mxu0
    %v2010 = vadd.f32 %v1735, %v2009
    %v2011 = vpop.f32.mrf.mxu0
    %v2012 = vadd.f32 %v1735, %v2011
    %2013 = vdwg.mxu0
    %v2014 = vpack.c.bf16 %v1855, %v1855
    %v2015 = vpack.c.bf16 %v1857, %v1857
    %v2016 = vpack.c.bf16 %v1860, %v1860
    %v2017 = vpack.c.bf16 %v1862, %v1862
    %v2018 = vpack.c.bf16 %v1865, %v1865
    %v2019 = vpack.c.bf16 %v1867, %v1867
    %v2020 = vpack.c.bf16 %v1870, %v1870
    %v2021 = vpack.c.bf16 %v1872, %v1872
    %v2022 = vpack.c.bf16 %v1875, %v1875
    %v2023 = vpack.c.bf16 %v1877, %v1877
    %v2024 = vpack.c.bf16 %v1880, %v1880
    %v2025 = vpack.c.bf16 %v1882, %v1882
    %v2026 = vpack.c.bf16 %v1885, %v1885
    %v2027 = vpack.c.bf16 %v1887, %v1887
    %v2028 = vpack.c.bf16 %v1890, %v1890
    %v2029 = vpack.c.bf16 %v1892, %v1892
    %v2030 = vpack.c.bf16 %v1895, %v1895
    %v2031 = vpack.c.bf16 %v1897, %v1897
    %v2032 = vpack.c.bf16 %v1900, %v1900
    %v2033 = vpack.c.bf16 %v1902, %v1902
    %v2034 = vpack.c.bf16 %v1905, %v1905
    %v2035 = vpack.c.bf16 %v1907, %v1907
    %v2036 = vpack.c.bf16 %v1910, %v1910
    %v2037 = vpack.c.bf16 %v1912, %v1912
    %v2038 = vpack.c.bf16 %v1915, %v1915
    %v2039 = vpack.c.bf16 %v1917, %v1917
    %v2040 = vpack.c.bf16 %v1920, %v1920
    %v2041 = vpack.c.bf16 %v1922, %v1922
    %v2042 = vpack.c.bf16 %v1925, %v1925
    %v2043 = vpack.c.bf16 %v1927, %v1927
    %v2044 = vpack.c.bf16 %v1930, %v1930
    %v2045 = vpack.c.bf16 %v1932, %v1932
    %v2046 = vpack.c.bf16 %v1935, %v1935
    %v2047 = vpack.c.bf16 %v1937, %v1937
    %v2048 = vpack.c.bf16 %v1940, %v1940
    %v2049 = vpack.c.bf16 %v1942, %v1942
    %v2050 = vpack.c.bf16 %v1945, %v1945
    %v2051 = vpack.c.bf16 %v1947, %v1947
    %v2052 = vpack.c.bf16 %v1950, %v1950
    %v2053 = vpack.c.bf16 %v1952, %v1952
    %v2054 = vpack.c.bf16 %v1955, %v1955
    %v2055 = vpack.c.bf16 %v1957, %v1957
    %v2056 = vpack.c.bf16 %v1960, %v1960
    %v2057 = vpack.c.bf16 %v1962, %v1962
    %v2058 = vpack.c.bf16 %v1965, %v1965
    %v2059 = vpack.c.bf16 %v1967, %v1967
    %v2060 = vpack.c.bf16 %v1970, %v1970
    %v2061 = vpack.c.bf16 %v1972, %v1972
    %v2062 = vpack.c.bf16 %v1975, %v1975
    %v2063 = vpack.c.bf16 %v1977, %v1977
    %v2064 = vpack.c.bf16 %v1980, %v1980
    %v2065 = vpack.c.bf16 %v1982, %v1982
    %v2066 = vpack.c.bf16 %v1985, %v1985
    %v2067 = vpack.c.bf16 %v1987, %v1987
    %v2068 = vpack.c.bf16 %v1990, %v1990
    %v2069 = vpack.c.bf16 %v1992, %v1992
    %v2070 = vpack.c.bf16 %v1995, %v1995
    %v2071 = vpack.c.bf16 %v1997, %v1997
    %v2072 = vpack.c.bf16 %v2000, %v2000
    %v2073 = vpack.c.bf16 %v2002, %v2002
    %v2074 = vpack.c.bf16 %v2005, %v2005
    %v2075 = vpack.c.bf16 %v2007, %v2007
    %v2076 = vpack.c.bf16 %v2010, %v2010
    %v2077 = vpack.c.bf16 %v2012, %v2012
    %v2078 = vld [vmem:[#allocation6] sm:$0xff]
    %v2079 = vld [vmem:[#allocation6 + $0x8] sm:$0xff]
    %v2080 = vld [vmem:[#allocation6 + $0x10] sm:$0xff]
    %v2081 = vld [vmem:[#allocation6 + $0x18] sm:$0xff]
    %v2082 = vld [vmem:[#allocation6 + $0x20] sm:$0xff]
    %v2083 = vld [vmem:[#allocation6 + $0x28] sm:$0xff]
    %v2084 = vld [vmem:[#allocation6 + $0x30] sm:$0xff]
    %v2085 = vld [vmem:[#allocation6 + $0x38] sm:$0xff]
    %v2086 = vld [vmem:[#allocation6 + $0x40] sm:$0xff]
    %v2087 = vld [vmem:[#allocation6 + $0x48] sm:$0xff]
    %v2088 = vld [vmem:[#allocation6 + $0x50] sm:$0xff]
    %v2089 = vld [vmem:[#allocation6 + $0x58] sm:$0xff]
    %v2090 = vld [vmem:[#allocation6 + $0x60] sm:$0xff]
    %v2091 = vld [vmem:[#allocation6 + $0x68] sm:$0xff]
    %v2092 = vld [vmem:[#allocation6 + $0x70] sm:$0xff]
    %v2093 = vld [vmem:[#allocation6 + $0x78] sm:$0xff]
    %v2110 = vunpack.c.l.b16 %v2014
    %v2111 = vunpack.c.l.b16 %v2015
    %v2112 = vunpack.c.l.b16 %v2016
    %v2113 = vunpack.c.l.b16 %v2017
    %v2114 = vunpack.c.l.b16 %v2018
    %v2115 = vunpack.c.l.b16 %v2019
    %v2116 = vunpack.c.l.b16 %v2020
    %v2117 = vunpack.c.l.b16 %v2021
    %v2118 = vunpack.c.l.b16 %v2022
    %v2119 = vunpack.c.l.b16 %v2023
    %v2120 = vunpack.c.l.b16 %v2024
    %v2121 = vunpack.c.l.b16 %v2025
    %v2122 = vunpack.c.l.b16 %v2026
    %v2123 = vunpack.c.l.b16 %v2027
    %v2124 = vunpack.c.l.b16 %v2028
    %v2125 = vunpack.c.l.b16 %v2029
    %v2126 = vpack.c.b16 %v2111, %v2110
    %v2127 = vpack.c.b16 %v2113, %v2112
    %v2128 = vpack.c.b16 %v2115, %v2114
    %v2129 = vpack.c.b16 %v2117, %v2116
    %v2130 = vpack.c.b16 %v2119, %v2118
    %v2131 = vpack.c.b16 %v2121, %v2120
    %v2132 = vpack.c.b16 %v2123, %v2122
    %v2133 = vpack.c.b16 %v2125, %v2124
    %2134 = vrot.lane.b32.xlu0 %v2126, 96
    %v2135 = vpop.permute.xlu0 %2134
    %2136 = vrot.lane.b32.xlu0 %v2127, 96
    %v2137 = vpop.permute.xlu0 %2136
    %2138 = vrot.lane.b32.xlu0 %v2128, 96
    %v2139 = vpop.permute.xlu0 %2138
    %2140 = vrot.lane.b32.xlu0 %v2129, 96
    %v2141 = vpop.permute.xlu0 %2140
    %2142 = vrot.lane.b32.xlu0 %v2130, 96
    %v2143 = vpop.permute.xlu0 %2142
    %2144 = vrot.lane.b32.xlu0 %v2131, 96
    %v2145 = vpop.permute.xlu0 %2144
    %2146 = vrot.lane.b32.xlu0 %v2132, 96
    %v2147 = vpop.permute.xlu0 %2146
    %2148 = vrot.lane.b32.xlu0 %v2133, 96
    %v2149 = vpop.permute.xlu0 %2148
    %vm2150 = vcmask 64512
    %v2152 = vsel %vm2150, %v2126, 0
    %v2155 = vsel %vm2150, %v2127, 0
    %v2158 = vsel %vm2150, %v2128, 0
    %v2161 = vsel %vm2150, %v2129, 0
    %v2164 = vsel %vm2150, %v2130, 0
    %v2167 = vsel %vm2150, %v2131, 0
    %v2170 = vsel %vm2150, %v2132, 0
    %v2173 = vsel %vm2150, %v2133, 0
    %v2176 = vsel %vm2150, %v2135, 0
    %v2179 = vsel %vm2150, %v2137, 0
    %v2182 = vsel %vm2150, %v2139, 0
    %v2185 = vsel %vm2150, %v2141, 0
    %v2188 = vsel %vm2150, %v2143, 0
    %v2191 = vsel %vm2150, %v2145, 0
    %v2194 = vsel %vm2150, %v2147, 0
    %v2197 = vsel %vm2150, %v2149, 0
    %2199 = vmatpush.bf16.xpose.msra.mxu0 %v2197
    %2200 = vmatpush.bf16.xpose.msra.mxu0 %v2194
    %2201 = vmatpush.bf16.xpose.msra.mxu0 %v2191
    %2202 = vmatpush.bf16.xpose.msra.mxu0 %v2188
    %2203 = vmatpush.bf16.xpose.msra.mxu0 %v2185
    %2204 = vmatpush.bf16.xpose.msra.mxu0 %v2182
    %2205 = vmatpush.bf16.xpose.msra.mxu0 %v2179
    %2206 = vmatpush.bf16.xpose.msra.mxu0 %v2176
    %2207 = vmatmul.bf16.gmra.mxu0 %v2152
    %v2208 = vpop.f32.mrf.mxu0
    %v2209 = vadd.f32 %v2078, %v2208
    %v2210 = vpop.f32.mrf.mxu0
    %v2211 = vadd.f32 %v2079, %v2210
    %2212 = vmatmul.bf16.gmra.mxu0 %v2155
    %v2213 = vpop.f32.mrf.mxu0
    %v2214 = vadd.f32 %v2080, %v2213
    %v2215 = vpop.f32.mrf.mxu0
    %v2216 = vadd.f32 %v2081, %v2215
    %2217 = vmatmul.bf16.gmra.mxu0 %v2158
    %v2218 = vpop.f32.mrf.mxu0
    %v2219 = vadd.f32 %v2082, %v2218
    %v2220 = vpop.f32.mrf.mxu0
    %v2221 = vadd.f32 %v2083, %v2220
    %2222 = vmatmul.bf16.gmra.mxu0 %v2161
    %v2223 = vpop.f32.mrf.mxu0
    %v2224 = vadd.f32 %v2084, %v2223
    %v2225 = vpop.f32.mrf.mxu0
    %v2226 = vadd.f32 %v2085, %v2225
    %2227 = vmatmul.bf16.gmra.mxu0 %v2164
    %v2228 = vpop.f32.mrf.mxu0
    %v2229 = vadd.f32 %v2086, %v2228
    %v2230 = vpop.f32.mrf.mxu0
    %v2231 = vadd.f32 %v2087, %v2230
    %2232 = vmatmul.bf16.gmra.mxu0 %v2167
    %v2233 = vpop.f32.mrf.mxu0
    %v2234 = vadd.f32 %v2088, %v2233
    %v2235 = vpop.f32.mrf.mxu0
    %v2236 = vadd.f32 %v2089, %v2235
    %2237 = vmatmul.bf16.gmra.mxu0 %v2170
    %v2238 = vpop.f32.mrf.mxu0
    %v2239 = vadd.f32 %v2090, %v2238
    %v2240 = vpop.f32.mrf.mxu0
    %v2241 = vadd.f32 %v2091, %v2240
    %2242 = vmatmul.bf16.gmra.mxu0 %v2173
    %v2243 = vpop.f32.mrf.mxu0
    %v2244 = vadd.f32 %v2092, %v2243
    %v2245 = vpop.f32.mrf.mxu0
    %v2246 = vadd.f32 %v2093, %v2245
    %2247 = vdwg.mxu0
    %v2264 = vunpack.c.l.b16 %v2030
    %v2265 = vunpack.c.l.b16 %v2031
    %v2266 = vunpack.c.l.b16 %v2032
    %v2267 = vunpack.c.l.b16 %v2033
    %v2268 = vunpack.c.l.b16 %v2034
    %v2269 = vunpack.c.l.b16 %v2035
    %v2270 = vunpack.c.l.b16 %v2036
    %v2271 = vunpack.c.l.b16 %v2037
    %v2272 = vunpack.c.l.b16 %v2038
    %v2273 = vunpack.c.l.b16 %v2039
    %v2274 = vunpack.c.l.b16 %v2040
    %v2275 = vunpack.c.l.b16 %v2041
    %v2276 = vunpack.c.l.b16 %v2042
    %v2277 = vunpack.c.l.b16 %v2043
    %v2278 = vunpack.c.l.b16 %v2044
    %v2279 = vunpack.c.l.b16 %v2045
    %v2280 = vpack.c.b16 %v2265, %v2264
    %v2281 = vpack.c.b16 %v2267, %v2266
    %v2282 = vpack.c.b16 %v2269, %v2268
    %v2283 = vpack.c.b16 %v2271, %v2270
    %v2284 = vpack.c.b16 %v2273, %v2272
    %v2285 = vpack.c.b16 %v2275, %v2274
    %v2286 = vpack.c.b16 %v2277, %v2276
    %v2287 = vpack.c.b16 %v2279, %v2278
    %2288 = vrot.lane.b32.xlu0 %v2280, 96
    %v2289 = vpop.permute.xlu0 %2288
    %2290 = vrot.lane.b32.xlu0 %v2281, 96
    %v2291 = vpop.permute.xlu0 %2290
    %2292 = vrot.lane.b32.xlu0 %v2282, 96
    %v2293 = vpop.permute.xlu0 %2292
    %2294 = vrot.lane.b32.xlu0 %v2283, 96
    %v2295 = vpop.permute.xlu0 %2294
    %2296 = vrot.lane.b32.xlu0 %v2284, 96
    %v2297 = vpop.permute.xlu0 %2296
    %2298 = vrot.lane.b32.xlu0 %v2285, 96
    %v2299 = vpop.permute.xlu0 %2298
    %2300 = vrot.lane.b32.xlu0 %v2286, 96
    %v2301 = vpop.permute.xlu0 %2300
    %2302 = vrot.lane.b32.xlu0 %v2287, 96
    %v2303 = vpop.permute.xlu0 %2302
    %v2305 = vsel %vm2150, %v2280, 0
    %v2308 = vsel %vm2150, %v2281, 0
    %v2311 = vsel %vm2150, %v2282, 0
    %v2314 = vsel %vm2150, %v2283, 0
    %v2317 = vsel %vm2150, %v2284, 0
    %v2320 = vsel %vm2150, %v2285, 0
    %v2323 = vsel %vm2150, %v2286, 0
    %v2326 = vsel %vm2150, %v2287, 0
    %v2329 = vsel %vm2150, %v2289, 0
    %v2332 = vsel %vm2150, %v2291, 0
    %v2335 = vsel %vm2150, %v2293, 0
    %v2338 = vsel %vm2150, %v2295, 0
    %v2341 = vsel %vm2150, %v2297, 0
    %v2344 = vsel %vm2150, %v2299, 0
    %v2347 = vsel %vm2150, %v2301, 0
    %v2350 = vsel %vm2150, %v2303, 0
    %2352 = vmatpush.bf16.xpose.msra.mxu0 %v2350
    %2353 = vmatpush.bf16.xpose.msra.mxu0 %v2347
    %2354 = vmatpush.bf16.xpose.msra.mxu0 %v2344
    %2355 = vmatpush.bf16.xpose.msra.mxu0 %v2341
    %2356 = vmatpush.bf16.xpose.msra.mxu0 %v2338
    %2357 = vmatpush.bf16.xpose.msra.mxu0 %v2335
    %2358 = vmatpush.bf16.xpose.msra.mxu0 %v2332
    %2359 = vmatpush.bf16.xpose.msra.mxu0 %v2329
    %2360 = vmatmul.bf16.gmra.mxu0 %v2305
    %v2361 = vpop.f32.mrf.mxu0
    %v2362 = vadd.f32 %v2078, %v2361
    %v2363 = vpop.f32.mrf.mxu0
    %v2364 = vadd.f32 %v2079, %v2363
    %2365 = vmatmul.bf16.gmra.mxu0 %v2308
    %v2366 = vpop.f32.mrf.mxu0
    %v2367 = vadd.f32 %v2080, %v2366
    %v2368 = vpop.f32.mrf.mxu0
    %v2369 = vadd.f32 %v2081, %v2368
    %2370 = vmatmul.bf16.gmra.mxu0 %v2311
    %v2371 = vpop.f32.mrf.mxu0
    %v2372 = vadd.f32 %v2082, %v2371
    %v2373 = vpop.f32.mrf.mxu0
    %v2374 = vadd.f32 %v2083, %v2373
    %2375 = vmatmul.bf16.gmra.mxu0 %v2314
    %v2376 = vpop.f32.mrf.mxu0
    %v2377 = vadd.f32 %v2084, %v2376
    %v2378 = vpop.f32.mrf.mxu0
    %v2379 = vadd.f32 %v2085, %v2378
    %2380 = vmatmul.bf16.gmra.mxu0 %v2317
    %v2381 = vpop.f32.mrf.mxu0
    %v2382 = vadd.f32 %v2086, %v2381
    %v2383 = vpop.f32.mrf.mxu0
    %v2384 = vadd.f32 %v2087, %v2383
    %2385 = vmatmul.bf16.gmra.mxu0 %v2320
    %v2386 = vpop.f32.mrf.mxu0
    %v2387 = vadd.f32 %v2088, %v2386
    %v2388 = vpop.f32.mrf.mxu0
    %v2389 = vadd.f32 %v2089, %v2388
    %2390 = vmatmul.bf16.gmra.mxu0 %v2323
    %v2391 = vpop.f32.mrf.mxu0
    %v2392 = vadd.f32 %v2090, %v2391
    %v2393 = vpop.f32.mrf.mxu0
    %v2394 = vadd.f32 %v2091, %v2393
    %2395 = vmatmul.bf16.gmra.mxu0 %v2326
    %v2396 = vpop.f32.mrf.mxu0
    %v2397 = vadd.f32 %v2092, %v2396
    %v2398 = vpop.f32.mrf.mxu0
    %v2399 = vadd.f32 %v2093, %v2398
    %2400 = vdwg.mxu0
    %v2417 = vunpack.c.l.b16 %v2046
    %v2418 = vunpack.c.l.b16 %v2047
    %v2419 = vunpack.c.l.b16 %v2048
    %v2420 = vunpack.c.l.b16 %v2049
    %v2421 = vunpack.c.l.b16 %v2050
    %v2422 = vunpack.c.l.b16 %v2051
    %v2423 = vunpack.c.l.b16 %v2052
    %v2424 = vunpack.c.l.b16 %v2053
    %v2425 = vunpack.c.l.b16 %v2054
    %v2426 = vunpack.c.l.b16 %v2055
    %v2427 = vunpack.c.l.b16 %v2056
    %v2428 = vunpack.c.l.b16 %v2057
    %v2429 = vunpack.c.l.b16 %v2058
    %v2430 = vunpack.c.l.b16 %v2059
    %v2431 = vunpack.c.l.b16 %v2060
    %v2432 = vunpack.c.l.b16 %v2061
    %v2433 = vpack.c.b16 %v2418, %v2417
    %v2434 = vpack.c.b16 %v2420, %v2419
    %v2435 = vpack.c.b16 %v2422, %v2421
    %v2436 = vpack.c.b16 %v2424, %v2423
    %v2437 = vpack.c.b16 %v2426, %v2425
    %v2438 = vpack.c.b16 %v2428, %v2427
    %v2439 = vpack.c.b16 %v2430, %v2429
    %v2440 = vpack.c.b16 %v2432, %v2431
    %2441 = vrot.lane.b32.xlu0 %v2433, 96
    %v2442 = vpop.permute.xlu0 %2441
    %2443 = vrot.lane.b32.xlu0 %v2434, 96
    %v2444 = vpop.permute.xlu0 %2443
    %2445 = vrot.lane.b32.xlu0 %v2435, 96
    %v2446 = vpop.permute.xlu0 %2445
    %2447 = vrot.lane.b32.xlu0 %v2436, 96
    %v2448 = vpop.permute.xlu0 %2447
    %2449 = vrot.lane.b32.xlu0 %v2437, 96
    %v2450 = vpop.permute.xlu0 %2449
    %2451 = vrot.lane.b32.xlu0 %v2438, 96
    %v2452 = vpop.permute.xlu0 %2451
    %2453 = vrot.lane.b32.xlu0 %v2439, 96
    %v2454 = vpop.permute.xlu0 %2453
    %2455 = vrot.lane.b32.xlu0 %v2440, 96
    %v2456 = vpop.permute.xlu0 %2455
    %v2458 = vsel %vm2150, %v2433, 0
    %v2461 = vsel %vm2150, %v2434, 0
    %v2464 = vsel %vm2150, %v2435, 0
    %v2467 = vsel %vm2150, %v2436, 0
    %v2470 = vsel %vm2150, %v2437, 0
    %v2473 = vsel %vm2150, %v2438, 0
    %v2476 = vsel %vm2150, %v2439, 0
    %v2479 = vsel %vm2150, %v2440, 0
    %v2482 = vsel %vm2150, %v2442, 0
    %v2485 = vsel %vm2150, %v2444, 0
    %v2488 = vsel %vm2150, %v2446, 0
    %v2491 = vsel %vm2150, %v2448, 0
    %v2494 = vsel %vm2150, %v2450, 0
    %v2497 = vsel %vm2150, %v2452, 0
    %v2500 = vsel %vm2150, %v2454, 0
    %v2503 = vsel %vm2150, %v2456, 0
    %2505 = vmatpush.bf16.xpose.msra.mxu0 %v2503
    %2506 = vmatpush.bf16.xpose.msra.mxu0 %v2500
    %2507 = vmatpush.bf16.xpose.msra.mxu0 %v2497
    %2508 = vmatpush.bf16.xpose.msra.mxu0 %v2494
    %2509 = vmatpush.bf16.xpose.msra.mxu0 %v2491
    %2510 = vmatpush.bf16.xpose.msra.mxu0 %v2488
    %2511 = vmatpush.bf16.xpose.msra.mxu0 %v2485
    %2512 = vmatpush.bf16.xpose.msra.mxu0 %v2482
    %2513 = vmatmul.bf16.gmra.mxu0 %v2458
    %v2514 = vpop.f32.mrf.mxu0
    %v2515 = vadd.f32 %v2078, %v2514
    %v2516 = vpop.f32.mrf.mxu0
    %v2517 = vadd.f32 %v2079, %v2516
    %2518 = vmatmul.bf16.gmra.mxu0 %v2461
    %v2519 = vpop.f32.mrf.mxu0
    %v2520 = vadd.f32 %v2080, %v2519
    %v2521 = vpop.f32.mrf.mxu0
    %v2522 = vadd.f32 %v2081, %v2521
    %2523 = vmatmul.bf16.gmra.mxu0 %v2464
    %v2524 = vpop.f32.mrf.mxu0
    %v2525 = vadd.f32 %v2082, %v2524
    %v2526 = vpop.f32.mrf.mxu0
    %v2527 = vadd.f32 %v2083, %v2526
    %2528 = vmatmul.bf16.gmra.mxu0 %v2467
    %v2529 = vpop.f32.mrf.mxu0
    %v2530 = vadd.f32 %v2084, %v2529
    %v2531 = vpop.f32.mrf.mxu0
    %v2532 = vadd.f32 %v2085, %v2531
    %2533 = vmatmul.bf16.gmra.mxu0 %v2470
    %v2534 = vpop.f32.mrf.mxu0
    %v2535 = vadd.f32 %v2086, %v2534
    %v2536 = vpop.f32.mrf.mxu0
    %v2537 = vadd.f32 %v2087, %v2536
    %2538 = vmatmul.bf16.gmra.mxu0 %v2473
    %v2539 = vpop.f32.mrf.mxu0
    %v2540 = vadd.f32 %v2088, %v2539
    %v2541 = vpop.f32.mrf.mxu0
    %v2542 = vadd.f32 %v2089, %v2541
    %2543 = vmatmul.bf16.gmra.mxu0 %v2476
    %v2544 = vpop.f32.mrf.mxu0
    %v2545 = vadd.f32 %v2090, %v2544
    %v2546 = vpop.f32.mrf.mxu0
    %v2547 = vadd.f32 %v2091, %v2546
    %2548 = vmatmul.bf16.gmra.mxu0 %v2479
    %v2549 = vpop.f32.mrf.mxu0
    %v2550 = vadd.f32 %v2092, %v2549
    %v2551 = vpop.f32.mrf.mxu0
    %v2552 = vadd.f32 %v2093, %v2551
    %2553 = vdwg.mxu0
    %v2570 = vunpack.c.l.b16 %v2062
    %v2571 = vunpack.c.l.b16 %v2063
    %v2572 = vunpack.c.l.b16 %v2064
    %v2573 = vunpack.c.l.b16 %v2065
    %v2574 = vunpack.c.l.b16 %v2066
    %v2575 = vunpack.c.l.b16 %v2067
    %v2576 = vunpack.c.l.b16 %v2068
    %v2577 = vunpack.c.l.b16 %v2069
    %v2578 = vunpack.c.l.b16 %v2070
    %v2579 = vunpack.c.l.b16 %v2071
    %v2580 = vunpack.c.l.b16 %v2072
    %v2581 = vunpack.c.l.b16 %v2073
    %v2582 = vunpack.c.l.b16 %v2074
    %v2583 = vunpack.c.l.b16 %v2075
    %v2584 = vunpack.c.l.b16 %v2076
    %v2585 = vunpack.c.l.b16 %v2077
    %v2586 = vpack.c.b16 %v2571, %v2570
    %v2587 = vpack.c.b16 %v2573, %v2572
    %v2588 = vpack.c.b16 %v2575, %v2574
    %v2589 = vpack.c.b16 %v2577, %v2576
    %v2590 = vpack.c.b16 %v2579, %v2578
    %v2591 = vpack.c.b16 %v2581, %v2580
    %v2592 = vpack.c.b16 %v2583, %v2582
    %v2593 = vpack.c.b16 %v2585, %v2584
    %2594 = vrot.lane.b32.xlu0 %v2586, 96
    %v2595 = vpop.permute.xlu0 %2594
    %2596 = vrot.lane.b32.xlu0 %v2587, 96
    %v2597 = vpop.permute.xlu0 %2596
    %2598 = vrot.lane.b32.xlu0 %v2588, 96
    %v2599 = vpop.permute.xlu0 %2598
    %2600 = vrot.lane.b32.xlu0 %v2589, 96
    %v2601 = vpop.permute.xlu0 %2600
    %2602 = vrot.lane.b32.xlu0 %v2590, 96
    %v2603 = vpop.permute.xlu0 %2602
    %2604 = vrot.lane.b32.xlu0 %v2591, 96
    %v2605 = vpop.permute.xlu0 %2604
    %2606 = vrot.lane.b32.xlu0 %v2592, 96
    %v2607 = vpop.permute.xlu0 %2606
    %2608 = vrot.lane.b32.xlu0 %v2593, 96
    %v2609 = vpop.permute.xlu0 %2608
    %v2611 = vsel %vm2150, %v2586, 0
    %v2614 = vsel %vm2150, %v2587, 0
    %v2617 = vsel %vm2150, %v2588, 0
    %v2620 = vsel %vm2150, %v2589, 0
    %v2623 = vsel %vm2150, %v2590, 0
    %v2626 = vsel %vm2150, %v2591, 0
    %v2629 = vsel %vm2150, %v2592, 0
    %v2632 = vsel %vm2150, %v2593, 0
    %v2635 = vsel %vm2150, %v2595, 0
    %v2638 = vsel %vm2150, %v2597, 0
    %v2641 = vsel %vm2150, %v2599, 0
    %v2644 = vsel %vm2150, %v2601, 0
    %v2647 = vsel %vm2150, %v2603, 0
    %v2650 = vsel %vm2150, %v2605, 0
    %v2653 = vsel %vm2150, %v2607, 0
    %v2656 = vsel %vm2150, %v2609, 0
    %2658 = vmatpush.bf16.xpose.msra.mxu0 %v2656
    %2659 = vmatpush.bf16.xpose.msra.mxu0 %v2653
    %2660 = vmatpush.bf16.xpose.msra.mxu0 %v2650
    %2661 = vmatpush.bf16.xpose.msra.mxu0 %v2647
    %2662 = vmatpush.bf16.xpose.msra.mxu0 %v2644
    %2663 = vmatpush.bf16.xpose.msra.mxu0 %v2641
    %2664 = vmatpush.bf16.xpose.msra.mxu0 %v2638
    %2665 = vmatpush.bf16.xpose.msra.mxu0 %v2635
    %2666 = vmatmul.bf16.gmra.mxu0 %v2611
    %v2667 = vpop.f32.mrf.mxu0
    %v2668 = vadd.f32 %v2078, %v2667
    %v2669 = vpop.f32.mrf.mxu0
    %v2670 = vadd.f32 %v2079, %v2669
    %2671 = vmatmul.bf16.gmra.mxu0 %v2614
    %v2672 = vpop.f32.mrf.mxu0
    %v2673 = vadd.f32 %v2080, %v2672
    %v2674 = vpop.f32.mrf.mxu0
    %v2675 = vadd.f32 %v2081, %v2674
    %2676 = vmatmul.bf16.gmra.mxu0 %v2617
    %v2677 = vpop.f32.mrf.mxu0
    %v2678 = vadd.f32 %v2082, %v2677
    %v2679 = vpop.f32.mrf.mxu0
    %v2680 = vadd.f32 %v2083, %v2679
    %2681 = vmatmul.bf16.gmra.mxu0 %v2620
    %v2682 = vpop.f32.mrf.mxu0
    %v2683 = vadd.f32 %v2084, %v2682
    %v2684 = vpop.f32.mrf.mxu0
    %v2685 = vadd.f32 %v2085, %v2684
    %2686 = vmatmul.bf16.gmra.mxu0 %v2623
    %v2687 = vpop.f32.mrf.mxu0
    %v2688 = vadd.f32 %v2086, %v2687
    %v2689 = vpop.f32.mrf.mxu0
    %v2690 = vadd.f32 %v2087, %v2689
    %2691 = vmatmul.bf16.gmra.mxu0 %v2626
    %v2692 = vpop.f32.mrf.mxu0
    %v2693 = vadd.f32 %v2088, %v2692
    %v2694 = vpop.f32.mrf.mxu0
    %v2695 = vadd.f32 %v2089, %v2694
    %2696 = vmatmul.bf16.gmra.mxu0 %v2629
    %v2697 = vpop.f32.mrf.mxu0
    %v2698 = vadd.f32 %v2090, %v2697
    %v2699 = vpop.f32.mrf.mxu0
    %v2700 = vadd.f32 %v2091, %v2699
    %2701 = vmatmul.bf16.gmra.mxu0 %v2632
    %v2702 = vpop.f32.mrf.mxu0
    %v2703 = vadd.f32 %v2092, %v2702
    %v2704 = vpop.f32.mrf.mxu0
    %v2705 = vadd.f32 %v2093, %v2704
    %2706 = vdwg.mxu0
    %2707 = vmax.xlane.f32.xlu0 %v2209
    %v2708 = vpop.xlane.xlu0 %2707
    %2709 = vmax.xlane.f32.xlu0 %v2211
    %v2710 = vpop.xlane.xlu0 %2709
    %2711 = vmax.xlane.f32.xlu0 %v2214
    %v2712 = vpop.xlane.xlu0 %2711
    %2713 = vmax.xlane.f32.xlu0 %v2216
    %v2714 = vpop.xlane.xlu0 %2713
    %2715 = vmax.xlane.f32.xlu0 %v2219
    %v2716 = vpop.xlane.xlu0 %2715
    %2717 = vmax.xlane.f32.xlu0 %v2221
    %v2718 = vpop.xlane.xlu0 %2717
    %2719 = vmax.xlane.f32.xlu0 %v2224
    %v2720 = vpop.xlane.xlu0 %2719
    %2721 = vmax.xlane.f32.xlu0 %v2226
    %v2722 = vpop.xlane.xlu0 %2721
    %2723 = vmax.xlane.f32.xlu0 %v2229
    %v2724 = vpop.xlane.xlu0 %2723
    %2725 = vmax.xlane.f32.xlu0 %v2231
    %v2726 = vpop.xlane.xlu0 %2725
    %2727 = vmax.xlane.f32.xlu0 %v2234
    %v2728 = vpop.xlane.xlu0 %2727
    %2729 = vmax.xlane.f32.xlu0 %v2236
    %v2730 = vpop.xlane.xlu0 %2729
    %2731 = vmax.xlane.f32.xlu0 %v2239
    %v2732 = vpop.xlane.xlu0 %2731
    %2733 = vmax.xlane.f32.xlu0 %v2241
    %v2734 = vpop.xlane.xlu0 %2733
    %2735 = vmax.xlane.f32.xlu0 %v2244
    %v2736 = vpop.xlane.xlu0 %2735
    %2737 = vmax.xlane.f32.xlu0 %v2246
    %v2738 = vpop.xlane.xlu0 %2737
    %2739 = vmax.xlane.f32.xlu0 %v2362
    %v2740 = vpop.xlane.xlu0 %2739
    %2741 = vmax.xlane.f32.xlu0 %v2364
    %v2742 = vpop.xlane.xlu0 %2741
    %2743 = vmax.xlane.f32.xlu0 %v2367
    %v2744 = vpop.xlane.xlu0 %2743
    %2745 = vmax.xlane.f32.xlu0 %v2369
    %v2746 = vpop.xlane.xlu0 %2745
    %2747 = vmax.xlane.f32.xlu0 %v2372
    %v2748 = vpop.xlane.xlu0 %2747
    %2749 = vmax.xlane.f32.xlu0 %v2374
    %v2750 = vpop.xlane.xlu0 %2749
    %2751 = vmax.xlane.f32.xlu0 %v2377
    %v2752 = vpop.xlane.xlu0 %2751
    %2753 = vmax.xlane.f32.xlu0 %v2379
    %v2754 = vpop.xlane.xlu0 %2753
    %2755 = vmax.xlane.f32.xlu0 %v2382
    %v2756 = vpop.xlane.xlu0 %2755
    %2757 = vmax.xlane.f32.xlu0 %v2384
    %v2758 = vpop.xlane.xlu0 %2757
    %2759 = vmax.xlane.f32.xlu0 %v2387
    %v2760 = vpop.xlane.xlu0 %2759
    %2761 = vmax.xlane.f32.xlu0 %v2389
    %v2762 = vpop.xlane.xlu0 %2761
    %2763 = vmax.xlane.f32.xlu0 %v2392
    %v2764 = vpop.xlane.xlu0 %2763
    %2765 = vmax.xlane.f32.xlu0 %v2394
    %v2766 = vpop.xlane.xlu0 %2765
    %2767 = vmax.xlane.f32.xlu0 %v2397
    %v2768 = vpop.xlane.xlu0 %2767
    %2769 = vmax.xlane.f32.xlu0 %v2399
    %v2770 = vpop.xlane.xlu0 %2769
    %2771 = vmax.xlane.f32.xlu0 %v2515
    %v2772 = vpop.xlane.xlu0 %2771
    %2773 = vmax.xlane.f32.xlu0 %v2517
    %v2774 = vpop.xlane.xlu0 %2773
    %2775 = vmax.xlane.f32.xlu0 %v2520
    %v2776 = vpop.xlane.xlu0 %2775
    %2777 = vmax.xlane.f32.xlu0 %v2522
    %v2778 = vpop.xlane.xlu0 %2777
    %2779 = vmax.xlane.f32.xlu0 %v2525
    %v2780 = vpop.xlane.xlu0 %2779
    %2781 = vmax.xlane.f32.xlu0 %v2527
    %v2782 = vpop.xlane.xlu0 %2781
    %2783 = vmax.xlane.f32.xlu0 %v2530
    %v2784 = vpop.xlane.xlu0 %2783
    %2785 = vmax.xlane.f32.xlu0 %v2532
    %v2786 = vpop.xlane.xlu0 %2785
    %2787 = vmax.xlane.f32.xlu0 %v2535
    %v2788 = vpop.xlane.xlu0 %2787
    %2789 = vmax.xlane.f32.xlu0 %v2537
    %v2790 = vpop.xlane.xlu0 %2789
    %2791 = vmax.xlane.f32.xlu0 %v2540
    %v2792 = vpop.xlane.xlu0 %2791
    %2793 = vmax.xlane.f32.xlu0 %v2542
    %v2794 = vpop.xlane.xlu0 %2793
    %2795 = vmax.xlane.f32.xlu0 %v2545
    %v2796 = vpop.xlane.xlu0 %2795
    %2797 = vmax.xlane.f32.xlu0 %v2547
    %v2798 = vpop.xlane.xlu0 %2797
    %2799 = vmax.xlane.f32.xlu0 %v2550
    %v2800 = vpop.xlane.xlu0 %2799
    %2801 = vmax.xlane.f32.xlu0 %v2552
    %v2802 = vpop.xlane.xlu0 %2801
    %2803 = vmax.xlane.f32.xlu0 %v2668
    %v2804 = vpop.xlane.xlu0 %2803
    %2805 = vmax.xlane.f32.xlu0 %v2670
    %v2806 = vpop.xlane.xlu0 %2805
    %2807 = vmax.xlane.f32.xlu0 %v2673
    %v2808 = vpop.xlane.xlu0 %2807
    %2809 = vmax.xlane.f32.xlu0 %v2675
    %v2810 = vpop.xlane.xlu0 %2809
    %2811 = vmax.xlane.f32.xlu0 %v2678
    %v2812 = vpop.xlane.xlu0 %2811
    %2813 = vmax.xlane.f32.xlu0 %v2680
    %v2814 = vpop.xlane.xlu0 %2813
    %2815 = vmax.xlane.f32.xlu0 %v2683
    %v2816 = vpop.xlane.xlu0 %2815
    %2817 = vmax.xlane.f32.xlu0 %v2685
    %v2818 = vpop.xlane.xlu0 %2817
    %2819 = vmax.xlane.f32.xlu0 %v2688
    %v2820 = vpop.xlane.xlu0 %2819
    %2821 = vmax.xlane.f32.xlu0 %v2690
    %v2822 = vpop.xlane.xlu0 %2821
    %2823 = vmax.xlane.f32.xlu0 %v2693
    %v2824 = vpop.xlane.xlu0 %2823
    %2825 = vmax.xlane.f32.xlu0 %v2695
    %v2826 = vpop.xlane.xlu0 %2825
    %2827 = vmax.xlane.f32.xlu0 %v2698
    %v2828 = vpop.xlane.xlu0 %2827
    %2829 = vmax.xlane.f32.xlu0 %v2700
    %v2830 = vpop.xlane.xlu0 %2829
    %2831 = vmax.xlane.f32.xlu0 %v2703
    %v2832 = vpop.xlane.xlu0 %2831
    %2833 = vmax.xlane.f32.xlu0 %v2705
    %v2834 = vpop.xlane.xlu0 %2833
    %v2835 = vsub.f32 %v2209, %v2708
    %v2836 = vsub.f32 %v2211, %v2710
    %v2837 = vsub.f32 %v2214, %v2712
    %v2838 = vsub.f32 %v2216, %v2714
    %v2839 = vsub.f32 %v2219, %v2716
    %v2840 = vsub.f32 %v2221, %v2718
    %v2841 = vsub.f32 %v2224, %v2720
    %v2842 = vsub.f32 %v2226, %v2722
    %v2843 = vsub.f32 %v2229, %v2724
    %v2844 = vsub.f32 %v2231, %v2726
    %v2845 = vsub.f32 %v2234, %v2728
    %v2846 = vsub.f32 %v2236, %v2730
    %v2847 = vsub.f32 %v2239, %v2732
    %v2848 = vsub.f32 %v2241, %v2734
    %v2849 = vsub.f32 %v2244, %v2736
    %v2850 = vsub.f32 %v2246, %v2738
    %v2851 = vsub.f32 %v2362, %v2740
    %v2852 = vsub.f32 %v2364, %v2742
    %v2853 = vsub.f32 %v2367, %v2744
    %v2854 = vsub.f32 %v2369, %v2746
    %v2855 = vsub.f32 %v2372, %v2748
    %v2856 = vsub.f32 %v2374, %v2750
    %v2857 = vsub.f32 %v2377, %v2752
    %v2858 = vsub.f32 %v2379, %v2754
    %v2859 = vsub.f32 %v2382, %v2756
    %v2860 = vsub.f32 %v2384, %v2758
    %v2861 = vsub.f32 %v2387, %v2760
    %v2862 = vsub.f32 %v2389, %v2762
    %v2863 = vsub.f32 %v2392, %v2764
    %v2864 = vsub.f32 %v2394, %v2766
    %v2865 = vsub.f32 %v2397, %v2768
    %v2866 = vsub.f32 %v2399, %v2770
    %v2867 = vsub.f32 %v2515, %v2772
    %v2868 = vsub.f32 %v2517, %v2774
    %v2869 = vsub.f32 %v2520, %v2776
    %v2870 = vsub.f32 %v2522, %v2778
    %v2871 = vsub.f32 %v2525, %v2780
    %v2872 = vsub.f32 %v2527, %v2782
    %v2873 = vsub.f32 %v2530, %v2784
    %v2874 = vsub.f32 %v2532, %v2786
    %v2875 = vsub.f32 %v2535, %v2788
    %v2876 = vsub.f32 %v2537, %v2790
    %v2877 = vsub.f32 %v2540, %v2792
    %v2878 = vsub.f32 %v2542, %v2794
    %v2879 = vsub.f32 %v2545, %v2796
    %v2880 = vsub.f32 %v2547, %v2798
    %v2881 = vsub.f32 %v2550, %v2800
    %v2882 = vsub.f32 %v2552, %v2802
    %v2883 = vsub.f32 %v2668, %v2804
    %v2884 = vsub.f32 %v2670, %v2806
    %v2885 = vsub.f32 %v2673, %v2808
    %v2886 = vsub.f32 %v2675, %v2810
    %v2887 = vsub.f32 %v2678, %v2812
    %v2888 = vsub.f32 %v2680, %v2814
    %v2889 = vsub.f32 %v2683, %v2816
    %v2890 = vsub.f32 %v2685, %v2818
    %v2891 = vsub.f32 %v2688, %v2820
    %v2892 = vsub.f32 %v2690, %v2822
    %v2893 = vsub.f32 %v2693, %v2824
    %v2894 = vsub.f32 %v2695, %v2826
    %v2895 = vsub.f32 %v2698, %v2828
    %v2896 = vsub.f32 %v2700, %v2830
    %v2897 = vsub.f32 %v2703, %v2832
    %v2898 = vsub.f32 %v2705, %v2834
    %v2899 = vmul.f32 %v2835, 1.442695
    %v2900 = vpow.pop %v2899
    %v2901 = vmul.f32 %v2836, 1.442695
    %v2902 = vpow.pop %v2901
    %v2903 = vmul.f32 %v2837, 1.442695
    %v2904 = vpow.pop %v2903
    %v2905 = vmul.f32 %v2838, 1.442695
    %v2906 = vpow.pop %v2905
    %v2907 = vmul.f32 %v2839, 1.442695
    %v2908 = vpow.pop %v2907
    %v2909 = vmul.f32 %v2840, 1.442695
    %v2910 = vpow.pop %v2909
    %v2911 = vmul.f32 %v2841, 1.442695
    %v2912 = vpow.pop %v2911
    %v2913 = vmul.f32 %v2842, 1.442695
    %v2914 = vpow.pop %v2913
    %v2915 = vmul.f32 %v2843, 1.442695
    %v2916 = vpow.pop %v2915
    %v2917 = vmul.f32 %v2844, 1.442695
    %v2918 = vpow.pop %v2917
    %v2919 = vmul.f32 %v2845, 1.442695
    %v2920 = vpow.pop %v2919
    %v2921 = vmul.f32 %v2846, 1.442695
    %v2922 = vpow.pop %v2921
    %v2923 = vmul.f32 %v2847, 1.442695
    %v2924 = vpow.pop %v2923
    %v2925 = vmul.f32 %v2848, 1.442695
    %v2926 = vpow.pop %v2925
    %v2927 = vmul.f32 %v2849, 1.442695
    %v2928 = vpow.pop %v2927
    %v2929 = vmul.f32 %v2850, 1.442695
    %v2930 = vpow.pop %v2929
    %v2931 = vmul.f32 %v2851, 1.442695
    %v2932 = vpow.pop %v2931
    %v2933 = vmul.f32 %v2852, 1.442695
    %v2934 = vpow.pop %v2933
    %v2935 = vmul.f32 %v2853, 1.442695
    %v2936 = vpow.pop %v2935
    %v2937 = vmul.f32 %v2854, 1.442695
    %v2938 = vpow.pop %v2937
    %v2939 = vmul.f32 %v2855, 1.442695
    %v2940 = vpow.pop %v2939
    %v2941 = vmul.f32 %v2856, 1.442695
    %v2942 = vpow.pop %v2941
    %v2943 = vmul.f32 %v2857, 1.442695
    %v2944 = vpow.pop %v2943
    %v2945 = vmul.f32 %v2858, 1.442695
    %v2946 = vpow.pop %v2945
    %v2947 = vmul.f32 %v2859, 1.442695
    %v2948 = vpow.pop %v2947
    %v2949 = vmul.f32 %v2860, 1.442695
    %v2950 = vpow.pop %v2949
    %v2951 = vmul.f32 %v2861, 1.442695
    %v2952 = vpow.pop %v2951
    %v2953 = vmul.f32 %v2862, 1.442695
    %v2954 = vpow.pop %v2953
    %v2955 = vmul.f32 %v2863, 1.442695
    %v2956 = vpow.pop %v2955
    %v2957 = vmul.f32 %v2864, 1.442695
    %v2958 = vpow.pop %v2957
    %v2959 = vmul.f32 %v2865, 1.442695
    %v2960 = vpow.pop %v2959
    %v2961 = vmul.f32 %v2866, 1.442695
    %v2962 = vpow.pop %v2961
    %v2963 = vmul.f32 %v2867, 1.442695
    %v2964 = vpow.pop %v2963
    %v2965 = vmul.f32 %v2868, 1.442695
    %v2966 = vpow.pop %v2965
    %v2967 = vmul.f32 %v2869, 1.442695
    %v2968 = vpow.pop %v2967
    %v2969 = vmul.f32 %v2870, 1.442695
    %v2970 = vpow.pop %v2969
    %v2971 = vmul.f32 %v2871, 1.442695
    %v2972 = vpow.pop %v2971
    %v2973 = vmul.f32 %v2872, 1.442695
    %v2974 = vpow.pop %v2973
    %v2975 = vmul.f32 %v2873, 1.442695
    %v2976 = vpow.pop %v2975
    %v2977 = vmul.f32 %v2874, 1.442695
    %v2978 = vpow.pop %v2977
    %v2979 = vmul.f32 %v2875, 1.442695
    %v2980 = vpow.pop %v2979
    %v2981 = vmul.f32 %v2876, 1.442695
    %v2982 = vpow.pop %v2981
    %v2983 = vmul.f32 %v2877, 1.442695
    %v2984 = vpow.pop %v2983
    %v2985 = vmul.f32 %v2878, 1.442695
    %v2986 = vpow.pop %v2985
    %v2987 = vmul.f32 %v2879, 1.442695
    %v2988 = vpow.pop %v2987
    %v2989 = vmul.f32 %v2880, 1.442695
    %v2990 = vpow.pop %v2989
    %v2991 = vmul.f32 %v2881, 1.442695
    %v2992 = vpow.pop %v2991
    %v2993 = vmul.f32 %v2882, 1.442695
    %v2994 = vpow.pop %v2993
    %v2995 = vmul.f32 %v2883, 1.442695
    %v2996 = vpow.pop %v2995
    %v2997 = vmul.f32 %v2884, 1.442695
    %v2998 = vpow.pop %v2997
    %v2999 = vmul.f32 %v2885, 1.442695
    %v3000 = vpow.pop %v2999
    %v3001 = vmul.f32 %v2886, 1.442695
    %v3002 = vpow.pop %v3001
    %v3003 = vmul.f32 %v2887, 1.442695
    %v3004 = vpow.pop %v3003
    %v3005 = vmul.f32 %v2888, 1.442695
    %v3006 = vpow.pop %v3005
    %v3007 = vmul.f32 %v2889, 1.442695
    %v3008 = vpow.pop %v3007
    %v3009 = vmul.f32 %v2890, 1.442695
    %v3010 = vpow.pop %v3009
    %v3011 = vmul.f32 %v2891, 1.442695
    %v3012 = vpow.pop %v3011
    %v3013 = vmul.f32 %v2892, 1.442695
    %v3014 = vpow.pop %v3013
    %v3015 = vmul.f32 %v2893, 1.442695
    %v3016 = vpow.pop %v3015
    %v3017 = vmul.f32 %v2894, 1.442695
    %v3018 = vpow.pop %v3017
    %v3019 = vmul.f32 %v2895, 1.442695
    %v3020 = vpow.pop %v3019
    %v3021 = vmul.f32 %v2896, 1.442695
    %v3022 = vpow.pop %v3021
    %v3023 = vmul.f32 %v2897, 1.442695
    %v3024 = vpow.pop %v3023
    %v3025 = vmul.f32 %v2898, 1.442695
    %v3026 = vpow.pop %v3025
    %3027 = vadd.xlane.f32.xlu0 %v2900
    %v3028 = vpop.xlane.xlu0 %3027
    %3029 = vadd.xlane.f32.xlu0 %v2902
    %v3030 = vpop.xlane.xlu0 %3029
    %3031 = vadd.xlane.f32.xlu0 %v2904
    %v3032 = vpop.xlane.xlu0 %3031
    %3033 = vadd.xlane.f32.xlu0 %v2906
    %v3034 = vpop.xlane.xlu0 %3033
    %3035 = vadd.xlane.f32.xlu0 %v2908
    %v3036 = vpop.xlane.xlu0 %3035
    %3037 = vadd.xlane.f32.xlu0 %v2910
    %v3038 = vpop.xlane.xlu0 %3037
    %3039 = vadd.xlane.f32.xlu0 %v2912
    %v3040 = vpop.xlane.xlu0 %3039
    %3041 = vadd.xlane.f32.xlu0 %v2914
    %v3042 = vpop.xlane.xlu0 %3041
    %3043 = vadd.xlane.f32.xlu0 %v2916
    %v3044 = vpop.xlane.xlu0 %3043
    %3045 = vadd.xlane.f32.xlu0 %v2918
    %v3046 = vpop.xlane.xlu0 %3045
    %3047 = vadd.xlane.f32.xlu0 %v2920
    %v3048 = vpop.xlane.xlu0 %3047
    %3049 = vadd.xlane.f32.xlu0 %v2922
    %v3050 = vpop.xlane.xlu0 %3049
    %3051 = vadd.xlane.f32.xlu0 %v2924
    %v3052 = vpop.xlane.xlu0 %3051
    %3053 = vadd.xlane.f32.xlu0 %v2926
    %v3054 = vpop.xlane.xlu0 %3053
    %3055 = vadd.xlane.f32.xlu0 %v2928
    %v3056 = vpop.xlane.xlu0 %3055
    %3057 = vadd.xlane.f32.xlu0 %v2930
    %v3058 = vpop.xlane.xlu0 %3057
    %3059 = vadd.xlane.f32.xlu0 %v2932
    %v3060 = vpop.xlane.xlu0 %3059
    %3061 = vadd.xlane.f32.xlu0 %v2934
    %v3062 = vpop.xlane.xlu0 %3061
    %3063 = vadd.xlane.f32.xlu0 %v2936
    %v3064 = vpop.xlane.xlu0 %3063
    %3065 = vadd.xlane.f32.xlu0 %v2938
    %v3066 = vpop.xlane.xlu0 %3065
    %3067 = vadd.xlane.f32.xlu0 %v2940
    %v3068 = vpop.xlane.xlu0 %3067
    %3069 = vadd.xlane.f32.xlu0 %v2942
    %v3070 = vpop.xlane.xlu0 %3069
    %3071 = vadd.xlane.f32.xlu0 %v2944
    %v3072 = vpop.xlane.xlu0 %3071
    %3073 = vadd.xlane.f32.xlu0 %v2946
    %v3074 = vpop.xlane.xlu0 %3073
    %3075 = vadd.xlane.f32.xlu0 %v2948
    %v3076 = vpop.xlane.xlu0 %3075
    %3077 = vadd.xlane.f32.xlu0 %v2950
    %v3078 = vpop.xlane.xlu0 %3077
    %3079 = vadd.xlane.f32.xlu0 %v2952
    %v3080 = vpop.xlane.xlu0 %3079
    %3081 = vadd.xlane.f32.xlu0 %v2954
    %v3082 = vpop.xlane.xlu0 %3081
    %3083 = vadd.xlane.f32.xlu0 %v2956
    %v3084 = vpop.xlane.xlu0 %3083
    %3085 = vadd.xlane.f32.xlu0 %v2958
    %v3086 = vpop.xlane.xlu0 %3085
    %3087 = vadd.xlane.f32.xlu0 %v2960
    %v3088 = vpop.xlane.xlu0 %3087
    %3089 = vadd.xlane.f32.xlu0 %v2962
    %v3090 = vpop.xlane.xlu0 %3089
    %3091 = vadd.xlane.f32.xlu0 %v2964
    %v3092 = vpop.xlane.xlu0 %3091
    %3093 = vadd.xlane.f32.xlu0 %v2966
    %v3094 = vpop.xlane.xlu0 %3093
    %3095 = vadd.xlane.f32.xlu0 %v2968
    %v3096 = vpop.xlane.xlu0 %3095
    %3097 = vadd.xlane.f32.xlu0 %v2970
    %v3098 = vpop.xlane.xlu0 %3097
    %3099 = vadd.xlane.f32.xlu0 %v2972
    %v3100 = vpop.xlane.xlu0 %3099
    %3101 = vadd.xlane.f32.xlu0 %v2974
    %v3102 = vpop.xlane.xlu0 %3101
    %3103 = vadd.xlane.f32.xlu0 %v2976
    %v3104 = vpop.xlane.xlu0 %3103
    %3105 = vadd.xlane.f32.xlu0 %v2978
    %v3106 = vpop.xlane.xlu0 %3105
    %3107 = vadd.xlane.f32.xlu0 %v2980
    %v3108 = vpop.xlane.xlu0 %3107
    %3109 = vadd.xlane.f32.xlu0 %v2982
    %v3110 = vpop.xlane.xlu0 %3109
    %3111 = vadd.xlane.f32.xlu0 %v2984
    %v3112 = vpop.xlane.xlu0 %3111
    %3113 = vadd.xlane.f32.xlu0 %v2986
    %v3114 = vpop.xlane.xlu0 %3113
    %3115 = vadd.xlane.f32.xlu0 %v2988
    %v3116 = vpop.xlane.xlu0 %3115
    %3117 = vadd.xlane.f32.xlu0 %v2990
    %v3118 = vpop.xlane.xlu0 %3117
    %3119 = vadd.xlane.f32.xlu0 %v2992
    %v3120 = vpop.xlane.xlu0 %3119
    %3121 = vadd.xlane.f32.xlu0 %v2994
    %v3122 = vpop.xlane.xlu0 %3121
    %3123 = vadd.xlane.f32.xlu0 %v2996
    %v3124 = vpop.xlane.xlu0 %3123
    %3125 = vadd.xlane.f32.xlu0 %v2998
    %v3126 = vpop.xlane.xlu0 %3125
    %3127 = vadd.xlane.f32.xlu0 %v3000
    %v3128 = vpop.xlane.xlu0 %3127
    %3129 = vadd.xlane.f32.xlu0 %v3002
    %v3130 = vpop.xlane.xlu0 %3129
    %3131 = vadd.xlane.f32.xlu0 %v3004
    %v3132 = vpop.xlane.xlu0 %3131
    %3133 = vadd.xlane.f32.xlu0 %v3006
    %v3134 = vpop.xlane.xlu0 %3133
    %3135 = vadd.xlane.f32.xlu0 %v3008
    %v3136 = vpop.xlane.xlu0 %3135
    %3137 = vadd.xlane.f32.xlu0 %v3010
    %v3138 = vpop.xlane.xlu0 %3137
    %3139 = vadd.xlane.f32.xlu0 %v3012
    %v3140 = vpop.xlane.xlu0 %3139
    %3141 = vadd.xlane.f32.xlu0 %v3014
    %v3142 = vpop.xlane.xlu0 %3141
    %3143 = vadd.xlane.f32.xlu0 %v3016
    %v3144 = vpop.xlane.xlu0 %3143
    %3145 = vadd.xlane.f32.xlu0 %v3018
    %v3146 = vpop.xlane.xlu0 %3145
    %3147 = vadd.xlane.f32.xlu0 %v3020
    %v3148 = vpop.xlane.xlu0 %3147
    %3149 = vadd.xlane.f32.xlu0 %v3022
    %v3150 = vpop.xlane.xlu0 %3149
    %3151 = vadd.xlane.f32.xlu0 %v3024
    %v3152 = vpop.xlane.xlu0 %3151
    %3153 = vadd.xlane.f32.xlu0 %v3026
    %v3154 = vpop.xlane.xlu0 %3153
    %v3155 = vrcp.pop %v3028
    %v3156 = vrcp.pop %v3030
    %v3157 = vrcp.pop %v3032
    %v3158 = vrcp.pop %v3034
    %v3159 = vrcp.pop %v3036
    %v3160 = vrcp.pop %v3038
    %v3161 = vrcp.pop %v3040
    %v3162 = vrcp.pop %v3042
    %v3163 = vrcp.pop %v3044
    %v3164 = vrcp.pop %v3046
    %v3165 = vrcp.pop %v3048
    %v3166 = vrcp.pop %v3050
    %v3167 = vrcp.pop %v3052
    %v3168 = vrcp.pop %v3054
    %v3169 = vrcp.pop %v3056
    %v3170 = vrcp.pop %v3058
    %v3171 = vrcp.pop %v3060
    %v3172 = vrcp.pop %v3062
    %v3173 = vrcp.pop %v3064
    %v3174 = vrcp.pop %v3066
    %v3175 = vrcp.pop %v3068
    %v3176 = vrcp.pop %v3070
    %v3177 = vrcp.pop %v3072
    %v3178 = vrcp.pop %v3074
    %v3179 = vrcp.pop %v3076
    %v3180 = vrcp.pop %v3078
    %v3181 = vrcp.pop %v3080
    %v3182 = vrcp.pop %v3082
    %v3183 = vrcp.pop %v3084
    %v3184 = vrcp.pop %v3086
    %v3185 = vrcp.pop %v3088
    %v3186 = vrcp.pop %v3090
    %v3187 = vrcp.pop %v3092
    %v3188 = vrcp.pop %v3094
    %v3189 = vrcp.pop %v3096
    %v3190 = vrcp.pop %v3098
    %v3191 = vrcp.pop %v3100
    %v3192 = vrcp.pop %v3102
    %v3193 = vrcp.pop %v3104
    %v3194 = vrcp.pop %v3106
    %v3195 = vrcp.pop %v3108
    %v3196 = vrcp.pop %v3110
    %v3197 = vrcp.pop %v3112
    %v3198 = vrcp.pop %v3114
    %v3199 = vrcp.pop %v3116
    %v3200 = vrcp.pop %v3118
    %v3201 = vrcp.pop %v3120
    %v3202 = vrcp.pop %v3122
    %v3203 = vrcp.pop %v3124
    %v3204 = vrcp.pop %v3126
    %v3205 = vrcp.pop %v3128
    %v3206 = vrcp.pop %v3130
    %v3207 = vrcp.pop %v3132
    %v3208 = vrcp.pop %v3134
    %v3209 = vrcp.pop %v3136
    %v3210 = vrcp.pop %v3138
    %v3211 = vrcp.pop %v3140
    %v3212 = vrcp.pop %v3142
    %v3213 = vrcp.pop %v3144
    %v3214 = vrcp.pop %v3146
    %v3215 = vrcp.pop %v3148
    %v3216 = vrcp.pop %v3150
    %v3217 = vrcp.pop %v3152
    %v3218 = vrcp.pop %v3154
    %v3219 = vmul.f32 %v2900, %v3155
    %v3220 = vmul.f32 %v2902, %v3156
    %v3221 = vmul.f32 %v2904, %v3157
    %v3222 = vmul.f32 %v2906, %v3158
    %v3223 = vmul.f32 %v2908, %v3159
    %v3224 = vmul.f32 %v2910, %v3160
    %v3225 = vmul.f32 %v2912, %v3161
    %v3226 = vmul.f32 %v2914, %v3162
    %v3227 = vmul.f32 %v2916, %v3163
    %v3228 = vmul.f32 %v2918, %v3164
    %v3229 = vmul.f32 %v2920, %v3165
    %v3230 = vmul.f32 %v2922, %v3166
    %v3231 = vmul.f32 %v2924, %v3167
    %v3232 = vmul.f32 %v2926, %v3168
    %v3233 = vmul.f32 %v2928, %v3169
    %v3234 = vmul.f32 %v2930, %v3170
    %v3235 = vmul.f32 %v2932, %v3171
    %v3236 = vmul.f32 %v2934, %v3172
    %v3237 = vmul.f32 %v2936, %v3173
    %v3238 = vmul.f32 %v2938, %v3174
    %v3239 = vmul.f32 %v2940, %v3175
    %v3240 = vmul.f32 %v2942, %v3176
    %v3241 = vmul.f32 %v2944, %v3177
    %v3242 = vmul.f32 %v2946, %v3178
    %v3243 = vmul.f32 %v2948, %v3179
    %v3244 = vmul.f32 %v2950, %v3180
    %v3245 = vmul.f32 %v2952, %v3181
    %v3246 = vmul.f32 %v2954, %v3182
    %v3247 = vmul.f32 %v2956, %v3183
    %v3248 = vmul.f32 %v2958, %v3184
    %v3249 = vmul.f32 %v2960, %v3185
    %v3250 = vmul.f32 %v2962, %v3186
    %v3251 = vmul.f32 %v2964, %v3187
    %v3252 = vmul.f32 %v2966, %v3188
    %v3253 = vmul.f32 %v2968, %v3189
    %v3254 = vmul.f32 %v2970, %v3190
    %v3255 = vmul.f32 %v2972, %v3191
    %v3256 = vmul.f32 %v2974, %v3192
    %v3257 = vmul.f32 %v2976, %v3193
    %v3258 = vmul.f32 %v2978, %v3194
    %v3259 = vmul.f32 %v2980, %v3195
    %v3260 = vmul.f32 %v2982, %v3196
    %v3261 = vmul.f32 %v2984, %v3197
    %v3262 = vmul.f32 %v2986, %v3198
    %v3263 = vmul.f32 %v2988, %v3199
    %v3264 = vmul.f32 %v2990, %v3200
    %v3265 = vmul.f32 %v2992, %v3201
    %v3266 = vmul.f32 %v2994, %v3202
    %v3267 = vmul.f32 %v2996, %v3203
    %v3268 = vmul.f32 %v2998, %v3204
    %v3269 = vmul.f32 %v3000, %v3205
    %v3270 = vmul.f32 %v3002, %v3206
    %v3271 = vmul.f32 %v3004, %v3207
    %v3272 = vmul.f32 %v3006, %v3208
    %v3273 = vmul.f32 %v3008, %v3209
    %v3274 = vmul.f32 %v3010, %v3210
    %v3275 = vmul.f32 %v3012, %v3211
    %v3276 = vmul.f32 %v3014, %v3212
    %v3277 = vmul.f32 %v3016, %v3213
    %v3278 = vmul.f32 %v3018, %v3214
    %v3279 = vmul.f32 %v3020, %v3215
    %v3280 = vmul.f32 %v3022, %v3216
    %v3281 = vmul.f32 %v3024, %v3217
    %v3282 = vmul.f32 %v3026, %v3218
    %v3283 = vpack.c.bf16 %v3219, %v3219
    %v3284 = vpack.c.bf16 %v3220, %v3220
    %v3285 = vpack.c.bf16 %v3221, %v3221
    %v3286 = vpack.c.bf16 %v3222, %v3222
    %v3287 = vpack.c.bf16 %v3223, %v3223
    %v3288 = vpack.c.bf16 %v3224, %v3224
    %v3289 = vpack.c.bf16 %v3225, %v3225
    %v3290 = vpack.c.bf16 %v3226, %v3226
    %v3291 = vpack.c.bf16 %v3227, %v3227
    %v3292 = vpack.c.bf16 %v3228, %v3228
    %v3293 = vpack.c.bf16 %v3229, %v3229
    %v3294 = vpack.c.bf16 %v3230, %v3230
    %v3295 = vpack.c.bf16 %v3231, %v3231
    %v3296 = vpack.c.bf16 %v3232, %v3232
    %v3297 = vpack.c.bf16 %v3233, %v3233
    %v3298 = vpack.c.bf16 %v3234, %v3234
    %v3299 = vpack.c.bf16 %v3235, %v3235
    %v3300 = vpack.c.bf16 %v3236, %v3236
    %v3301 = vpack.c.bf16 %v3237, %v3237
    %v3302 = vpack.c.bf16 %v3238, %v3238
    %v3303 = vpack.c.bf16 %v3239, %v3239
    %v3304 = vpack.c.bf16 %v3240, %v3240
    %v3305 = vpack.c.bf16 %v3241, %v3241
    %v3306 = vpack.c.bf16 %v3242, %v3242
    %v3307 = vpack.c.bf16 %v3243, %v3243
    %v3308 = vpack.c.bf16 %v3244, %v3244
    %v3309 = vpack.c.bf16 %v3245, %v3245
    %v3310 = vpack.c.bf16 %v3246, %v3246
    %v3311 = vpack.c.bf16 %v3247, %v3247
    %v3312 = vpack.c.bf16 %v3248, %v3248
    %v3313 = vpack.c.bf16 %v3249, %v3249
    %v3314 = vpack.c.bf16 %v3250, %v3250
    %v3315 = vpack.c.bf16 %v3251, %v3251
    %v3316 = vpack.c.bf16 %v3252, %v3252
    %v3317 = vpack.c.bf16 %v3253, %v3253
    %v3318 = vpack.c.bf16 %v3254, %v3254
    %v3319 = vpack.c.bf16 %v3255, %v3255
    %v3320 = vpack.c.bf16 %v3256, %v3256
    %v3321 = vpack.c.bf16 %v3257, %v3257
    %v3322 = vpack.c.bf16 %v3258, %v3258
    %v3323 = vpack.c.bf16 %v3259, %v3259
    %v3324 = vpack.c.bf16 %v3260, %v3260
    %v3325 = vpack.c.bf16 %v3261, %v3261
    %v3326 = vpack.c.bf16 %v3262, %v3262
    %v3327 = vpack.c.bf16 %v3263, %v3263
    %v3328 = vpack.c.bf16 %v3264, %v3264
    %v3329 = vpack.c.bf16 %v3265, %v3265
    %v3330 = vpack.c.bf16 %v3266, %v3266
    %v3331 = vpack.c.bf16 %v3267, %v3267
    %v3332 = vpack.c.bf16 %v3268, %v3268
    %v3333 = vpack.c.bf16 %v3269, %v3269
    %v3334 = vpack.c.bf16 %v3270, %v3270
    %v3335 = vpack.c.bf16 %v3271, %v3271
    %v3336 = vpack.c.bf16 %v3272, %v3272
    %v3337 = vpack.c.bf16 %v3273, %v3273
    %v3338 = vpack.c.bf16 %v3274, %v3274
    %v3339 = vpack.c.bf16 %v3275, %v3275
    %v3340 = vpack.c.bf16 %v3276, %v3276
    %v3341 = vpack.c.bf16 %v3277, %v3277
    %v3342 = vpack.c.bf16 %v3278, %v3278
    %v3343 = vpack.c.bf16 %v3279, %v3279
    %v3344 = vpack.c.bf16 %v3280, %v3280
    %v3345 = vpack.c.bf16 %v3281, %v3281
    %v3346 = vpack.c.bf16 %v3282, %v3282
    %v3363 = vunpack.c.l.b16 %v3283
    %v3364 = vunpack.c.l.b16 %v3284
    %v3365 = vunpack.c.l.b16 %v3285
    %v3366 = vunpack.c.l.b16 %v3286
    %v3367 = vunpack.c.l.b16 %v3287
    %v3368 = vunpack.c.l.b16 %v3288
    %v3369 = vunpack.c.l.b16 %v3289
    %v3370 = vunpack.c.l.b16 %v3290
    %v3371 = vunpack.c.l.b16 %v3291
    %v3372 = vunpack.c.l.b16 %v3292
    %v3373 = vunpack.c.l.b16 %v3293
    %v3374 = vunpack.c.l.b16 %v3294
    %v3375 = vunpack.c.l.b16 %v3295
    %v3376 = vunpack.c.l.b16 %v3296
    %v3377 = vunpack.c.l.b16 %v3297
    %v3378 = vunpack.c.l.b16 %v3298
    %v3379 = vpack.c.b16 %v3364, %v3363
    %v3380 = vpack.c.b16 %v3366, %v3365
    %v3381 = vpack.c.b16 %v3368, %v3367
    %v3382 = vpack.c.b16 %v3370, %v3369
    %v3383 = vpack.c.b16 %v3372, %v3371
    %v3384 = vpack.c.b16 %v3374, %v3373
    %v3385 = vpack.c.b16 %v3376, %v3375
    %v3386 = vpack.c.b16 %v3378, %v3377
    %3395 = vrot.lane.b32.xlu0 %v2126, 64
    %v3396 = vpop.permute.xlu0 %3395
    %3397 = vrot.lane.b32.xlu0 %v2127, 64
    %v3398 = vpop.permute.xlu0 %3397
    %3399 = vrot.lane.b32.xlu0 %v2128, 64
    %v3400 = vpop.permute.xlu0 %3399
    %3401 = vrot.lane.b32.xlu0 %v2129, 64
    %v3402 = vpop.permute.xlu0 %3401
    %3403 = vrot.lane.b32.xlu0 %v2130, 64
    %v3404 = vpop.permute.xlu0 %3403
    %3405 = vrot.lane.b32.xlu0 %v2131, 64
    %v3406 = vpop.permute.xlu0 %3405
    %3407 = vrot.lane.b32.xlu0 %v2132, 64
    %v3408 = vpop.permute.xlu0 %3407
    %3409 = vrot.lane.b32.xlu0 %v2133, 64
    %v3410 = vpop.permute.xlu0 %3409
    %3419 = vmatpush.bf16.msra.mxu0 %v3410
    %3420 = vmatpush.bf16.msra.mxu0 %v3408
    %3421 = vmatpush.bf16.msra.mxu0 %v3406
    %3422 = vmatpush.bf16.msra.mxu0 %v3404
    %3423 = vmatpush.bf16.msra.mxu0 %v3402
    %3424 = vmatpush.bf16.msra.mxu0 %v3400
    %3425 = vmatpush.bf16.msra.mxu0 %v3398
    %3426 = vmatpush.bf16.msra.mxu0 %v3396
    %3427 = vmatmul.bf16.gmra.mxu0 %v3379
    %v3428 = vpop.f32.mrf.mxu0
    %v3429 = vadd.f32 0.0, %v3428
    %v3430 = vpop.f32.mrf.mxu0
    %v3431 = vadd.f32 0.0, %v3430
    %3432 = vmatmul.bf16.gmra.mxu0 %v3380
    %v3433 = vpop.f32.mrf.mxu0
    %v3434 = vadd.f32 0.0, %v3433
    %v3435 = vpop.f32.mrf.mxu0
    %v3436 = vadd.f32 0.0, %v3435
    %3437 = vmatmul.bf16.gmra.mxu0 %v3381
    %v3438 = vpop.f32.mrf.mxu0
    %v3439 = vadd.f32 0.0, %v3438
    %v3440 = vpop.f32.mrf.mxu0
    %v3441 = vadd.f32 0.0, %v3440
    %3442 = vmatmul.bf16.gmra.mxu0 %v3382
    %v3443 = vpop.f32.mrf.mxu0
    %v3444 = vadd.f32 0.0, %v3443
    %v3445 = vpop.f32.mrf.mxu0
    %v3446 = vadd.f32 0.0, %v3445
    %3447 = vmatmul.bf16.gmra.mxu0 %v3383
    %v3448 = vpop.f32.mrf.mxu0
    %v3449 = vadd.f32 0.0, %v3448
    %v3450 = vpop.f32.mrf.mxu0
    %v3451 = vadd.f32 0.0, %v3450
    %3452 = vmatmul.bf16.gmra.mxu0 %v3384
    %v3453 = vpop.f32.mrf.mxu0
    %v3454 = vadd.f32 0.0, %v3453
    %v3455 = vpop.f32.mrf.mxu0
    %v3456 = vadd.f32 0.0, %v3455
    %3457 = vmatmul.bf16.gmra.mxu0 %v3385
    %v3458 = vpop.f32.mrf.mxu0
    %v3459 = vadd.f32 0.0, %v3458
    %v3460 = vpop.f32.mrf.mxu0
    %v3461 = vadd.f32 0.0, %v3460
    %3462 = vmatmul.bf16.gmra.mxu0 %v3386
    %v3463 = vpop.f32.mrf.mxu0
    %v3464 = vadd.f32 0.0, %v3463
    %v3465 = vpop.f32.mrf.mxu0
    %v3466 = vadd.f32 0.0, %v3465
    %3467 = vdwg.mxu0
    %v3484 = vunpack.c.l.b16 %v3299
    %v3485 = vunpack.c.l.b16 %v3300
    %v3486 = vunpack.c.l.b16 %v3301
    %v3487 = vunpack.c.l.b16 %v3302
    %v3488 = vunpack.c.l.b16 %v3303
    %v3489 = vunpack.c.l.b16 %v3304
    %v3490 = vunpack.c.l.b16 %v3305
    %v3491 = vunpack.c.l.b16 %v3306
    %v3492 = vunpack.c.l.b16 %v3307
    %v3493 = vunpack.c.l.b16 %v3308
    %v3494 = vunpack.c.l.b16 %v3309
    %v3495 = vunpack.c.l.b16 %v3310
    %v3496 = vunpack.c.l.b16 %v3311
    %v3497 = vunpack.c.l.b16 %v3312
    %v3498 = vunpack.c.l.b16 %v3313
    %v3499 = vunpack.c.l.b16 %v3314
    %v3500 = vpack.c.b16 %v3485, %v3484
    %v3501 = vpack.c.b16 %v3487, %v3486
    %v3502 = vpack.c.b16 %v3489, %v3488
    %v3503 = vpack.c.b16 %v3491, %v3490
    %v3504 = vpack.c.b16 %v3493, %v3492
    %v3505 = vpack.c.b16 %v3495, %v3494
    %v3506 = vpack.c.b16 %v3497, %v3496
    %v3507 = vpack.c.b16 %v3499, %v3498
    %3516 = vrot.lane.b32.xlu0 %v2280, 64
    %v3517 = vpop.permute.xlu0 %3516
    %3518 = vrot.lane.b32.xlu0 %v2281, 64
    %v3519 = vpop.permute.xlu0 %3518
    %3520 = vrot.lane.b32.xlu0 %v2282, 64
    %v3521 = vpop.permute.xlu0 %3520
    %3522 = vrot.lane.b32.xlu0 %v2283, 64
    %v3523 = vpop.permute.xlu0 %3522
    %3524 = vrot.lane.b32.xlu0 %v2284, 64
    %v3525 = vpop.permute.xlu0 %3524
    %3526 = vrot.lane.b32.xlu0 %v2285, 64
    %v3527 = vpop.permute.xlu0 %3526
    %3528 = vrot.lane.b32.xlu0 %v2286, 64
    %v3529 = vpop.permute.xlu0 %3528
    %3530 = vrot.lane.b32.xlu0 %v2287, 64
    %v3531 = vpop.permute.xlu0 %3530
    %3540 = vmatpush.bf16.msra.mxu0 %v3531
    %3541 = vmatpush.bf16.msra.mxu0 %v3529
    %3542 = vmatpush.bf16.msra.mxu0 %v3527
    %3543 = vmatpush.bf16.msra.mxu0 %v3525
    %3544 = vmatpush.bf16.msra.mxu0 %v3523
    %3545 = vmatpush.bf16.msra.mxu0 %v3521
    %3546 = vmatpush.bf16.msra.mxu0 %v3519
    %3547 = vmatpush.bf16.msra.mxu0 %v3517
    %3548 = vmatmul.bf16.gmra.mxu0 %v3500
    %v3549 = vpop.f32.mrf.mxu0
    %v3550 = vadd.f32 0.0, %v3549
    %v3551 = vpop.f32.mrf.mxu0
    %v3552 = vadd.f32 0.0, %v3551
    %3553 = vmatmul.bf16.gmra.mxu0 %v3501
    %v3554 = vpop.f32.mrf.mxu0
    %v3555 = vadd.f32 0.0, %v3554
    %v3556 = vpop.f32.mrf.mxu0
    %v3557 = vadd.f32 0.0, %v3556
    %3558 = vmatmul.bf16.gmra.mxu0 %v3502
    %v3559 = vpop.f32.mrf.mxu0
    %v3560 = vadd.f32 0.0, %v3559
    %v3561 = vpop.f32.mrf.mxu0
    %v3562 = vadd.f32 0.0, %v3561
    %3563 = vmatmul.bf16.gmra.mxu0 %v3503
    %v3564 = vpop.f32.mrf.mxu0
    %v3565 = vadd.f32 0.0, %v3564
    %v3566 = vpop.f32.mrf.mxu0
    %v3567 = vadd.f32 0.0, %v3566
    %3568 = vmatmul.bf16.gmra.mxu0 %v3504
    %v3569 = vpop.f32.mrf.mxu0
    %v3570 = vadd.f32 0.0, %v3569
    %v3571 = vpop.f32.mrf.mxu0
    %v3572 = vadd.f32 0.0, %v3571
    %3573 = vmatmul.bf16.gmra.mxu0 %v3505
    %v3574 = vpop.f32.mrf.mxu0
    %v3575 = vadd.f32 0.0, %v3574
    %v3576 = vpop.f32.mrf.mxu0
    %v3577 = vadd.f32 0.0, %v3576
    %3578 = vmatmul.bf16.gmra.mxu0 %v3506
    %v3579 = vpop.f32.mrf.mxu0
    %v3580 = vadd.f32 0.0, %v3579
    %v3581 = vpop.f32.mrf.mxu0
    %v3582 = vadd.f32 0.0, %v3581
    %3583 = vmatmul.bf16.gmra.mxu0 %v3507
    %v3584 = vpop.f32.mrf.mxu0
    %v3585 = vadd.f32 0.0, %v3584
    %v3586 = vpop.f32.mrf.mxu0
    %v3587 = vadd.f32 0.0, %v3586
    %3588 = vdwg.mxu0
    %v3605 = vunpack.c.l.b16 %v3315
    %v3606 = vunpack.c.l.b16 %v3316
    %v3607 = vunpack.c.l.b16 %v3317
    %v3608 = vunpack.c.l.b16 %v3318
    %v3609 = vunpack.c.l.b16 %v3319
    %v3610 = vunpack.c.l.b16 %v3320
    %v3611 = vunpack.c.l.b16 %v3321
    %v3612 = vunpack.c.l.b16 %v3322
    %v3613 = vunpack.c.l.b16 %v3323
    %v3614 = vunpack.c.l.b16 %v3324
    %v3615 = vunpack.c.l.b16 %v3325
    %v3616 = vunpack.c.l.b16 %v3326
    %v3617 = vunpack.c.l.b16 %v3327
    %v3618 = vunpack.c.l.b16 %v3328
    %v3619 = vunpack.c.l.b16 %v3329
    %v3620 = vunpack.c.l.b16 %v3330
    %v3621 = vpack.c.b16 %v3606, %v3605
    %v3622 = vpack.c.b16 %v3608, %v3607
    %v3623 = vpack.c.b16 %v3610, %v3609
    %v3624 = vpack.c.b16 %v3612, %v3611
    %v3625 = vpack.c.b16 %v3614, %v3613
    %v3626 = vpack.c.b16 %v3616, %v3615
    %v3627 = vpack.c.b16 %v3618, %v3617
    %v3628 = vpack.c.b16 %v3620, %v3619
    %3637 = vrot.lane.b32.xlu0 %v2433, 64
    %v3638 = vpop.permute.xlu0 %3637
    %3639 = vrot.lane.b32.xlu0 %v2434, 64
    %v3640 = vpop.permute.xlu0 %3639
    %3641 = vrot.lane.b32.xlu0 %v2435, 64
    %v3642 = vpop.permute.xlu0 %3641
    %3643 = vrot.lane.b32.xlu0 %v2436, 64
    %v3644 = vpop.permute.xlu0 %3643
    %3645 = vrot.lane.b32.xlu0 %v2437, 64
    %v3646 = vpop.permute.xlu0 %3645
    %3647 = vrot.lane.b32.xlu0 %v2438, 64
    %v3648 = vpop.permute.xlu0 %3647
    %3649 = vrot.lane.b32.xlu0 %v2439, 64
    %v3650 = vpop.permute.xlu0 %3649
    %3651 = vrot.lane.b32.xlu0 %v2440, 64
    %v3652 = vpop.permute.xlu0 %3651
    %3661 = vmatpush.bf16.msra.mxu0 %v3652
    %3662 = vmatpush.bf16.msra.mxu0 %v3650
    %3663 = vmatpush.bf16.msra.mxu0 %v3648
    %3664 = vmatpush.bf16.msra.mxu0 %v3646
    %3665 = vmatpush.bf16.msra.mxu0 %v3644
    %3666 = vmatpush.bf16.msra.mxu0 %v3642
    %3667 = vmatpush.bf16.msra.mxu0 %v3640
    %3668 = vmatpush.bf16.msra.mxu0 %v3638
    %3669 = vmatmul.bf16.gmra.mxu0 %v3621
    %v3670 = vpop.f32.mrf.mxu0
    %v3671 = vadd.f32 0.0, %v3670
    %v3672 = vpop.f32.mrf.mxu0
    %v3673 = vadd.f32 0.0, %v3672
    %3674 = vmatmul.bf16.gmra.mxu0 %v3622
    %v3675 = vpop.f32.mrf.mxu0
    %v3676 = vadd.f32 0.0, %v3675
    %v3677 = vpop.f32.mrf.mxu0
    %v3678 = vadd.f32 0.0, %v3677
    %3679 = vmatmul.bf16.gmra.mxu0 %v3623
    %v3680 = vpop.f32.mrf.mxu0
    %v3681 = vadd.f32 0.0, %v3680
    %v3682 = vpop.f32.mrf.mxu0
    %v3683 = vadd.f32 0.0, %v3682
    %3684 = vmatmul.bf16.gmra.mxu0 %v3624
    %v3685 = vpop.f32.mrf.mxu0
    %v3686 = vadd.f32 0.0, %v3685
    %v3687 = vpop.f32.mrf.mxu0
    %v3688 = vadd.f32 0.0, %v3687
    %3689 = vmatmul.bf16.gmra.mxu0 %v3625
    %v3690 = vpop.f32.mrf.mxu0
    %v3691 = vadd.f32 0.0, %v3690
    %v3692 = vpop.f32.mrf.mxu0
    %v3693 = vadd.f32 0.0, %v3692
    %3694 = vmatmul.bf16.gmra.mxu0 %v3626
    %v3695 = vpop.f32.mrf.mxu0
    %v3696 = vadd.f32 0.0, %v3695
    %v3697 = vpop.f32.mrf.mxu0
    %v3698 = vadd.f32 0.0, %v3697
    %3699 = vmatmul.bf16.gmra.mxu0 %v3627
    %v3700 = vpop.f32.mrf.mxu0
    %v3701 = vadd.f32 0.0, %v3700
    %v3702 = vpop.f32.mrf.mxu0
    %v3703 = vadd.f32 0.0, %v3702
    %3704 = vmatmul.bf16.gmra.mxu0 %v3628
    %v3705 = vpop.f32.mrf.mxu0
    %v3706 = vadd.f32 0.0, %v3705
    %v3707 = vpop.f32.mrf.mxu0
    %v3708 = vadd.f32 0.0, %v3707
    %3709 = vdwg.mxu0
    %v3726 = vunpack.c.l.b16 %v3331
    %v3727 = vunpack.c.l.b16 %v3332
    %v3728 = vunpack.c.l.b16 %v3333
    %v3729 = vunpack.c.l.b16 %v3334
    %v3730 = vunpack.c.l.b16 %v3335
    %v3731 = vunpack.c.l.b16 %v3336
    %v3732 = vunpack.c.l.b16 %v3337
    %v3733 = vunpack.c.l.b16 %v3338
    %v3734 = vunpack.c.l.b16 %v3339
    %v3735 = vunpack.c.l.b16 %v3340
    %v3736 = vunpack.c.l.b16 %v3341
    %v3737 = vunpack.c.l.b16 %v3342
    %v3738 = vunpack.c.l.b16 %v3343
    %v3739 = vunpack.c.l.b16 %v3344
    %v3740 = vunpack.c.l.b16 %v3345
    %v3741 = vunpack.c.l.b16 %v3346
    %v3742 = vpack.c.b16 %v3727, %v3726
    %v3743 = vpack.c.b16 %v3729, %v3728
    %v3744 = vpack.c.b16 %v3731, %v3730
    %v3745 = vpack.c.b16 %v3733, %v3732
    %v3746 = vpack.c.b16 %v3735, %v3734
    %v3747 = vpack.c.b16 %v3737, %v3736
    %v3748 = vpack.c.b16 %v3739, %v3738
    %v3749 = vpack.c.b16 %v3741, %v3740
    %3758 = vrot.lane.b32.xlu0 %v2586, 64
    %v3759 = vpop.permute.xlu0 %3758
    %3760 = vrot.lane.b32.xlu0 %v2587, 64
    %v3761 = vpop.permute.xlu0 %3760
    %3762 = vrot.lane.b32.xlu0 %v2588, 64
    %v3763 = vpop.permute.xlu0 %3762
    %3764 = vrot.lane.b32.xlu0 %v2589, 64
    %v3765 = vpop.permute.xlu0 %3764
    %3766 = vrot.lane.b32.xlu0 %v2590, 64
    %v3767 = vpop.permute.xlu0 %3766
    %3768 = vrot.lane.b32.xlu0 %v2591, 64
    %v3769 = vpop.permute.xlu0 %3768
    %3770 = vrot.lane.b32.xlu0 %v2592, 64
    %v3771 = vpop.permute.xlu0 %3770
    %3772 = vrot.lane.b32.xlu0 %v2593, 64
    %v3773 = vpop.permute.xlu0 %3772
    %3782 = vmatpush.bf16.msra.mxu0 %v3773
    %3783 = vmatpush.bf16.msra.mxu0 %v3771
    %3784 = vmatpush.bf16.msra.mxu0 %v3769
    %3785 = vmatpush.bf16.msra.mxu0 %v3767
    %3786 = vmatpush.bf16.msra.mxu0 %v3765
    %3787 = vmatpush.bf16.msra.mxu0 %v3763
    %3788 = vmatpush.bf16.msra.mxu0 %v3761
    %3789 = vmatpush.bf16.msra.mxu0 %v3759
    %3790 = vmatmul.bf16.gmra.mxu0 %v3742
    %v3791 = vpop.f32.mrf.mxu0
    %v3792 = vadd.f32 0.0, %v3791
    %v3793 = vpop.f32.mrf.mxu0
    %v3794 = vadd.f32 0.0, %v3793
    %3795 = vmatmul.bf16.gmra.mxu0 %v3743
    %v3796 = vpop.f32.mrf.mxu0
    %v3797 = vadd.f32 0.0, %v3796
    %v3798 = vpop.f32.mrf.mxu0
    %v3799 = vadd.f32 0.0, %v3798
    %3800 = vmatmul.bf16.gmra.mxu0 %v3744
    %v3801 = vpop.f32.mrf.mxu0
    %v3802 = vadd.f32 0.0, %v3801
    %v3803 = vpop.f32.mrf.mxu0
    %v3804 = vadd.f32 0.0, %v3803
    %3805 = vmatmul.bf16.gmra.mxu0 %v3745
    %v3806 = vpop.f32.mrf.mxu0
    %v3807 = vadd.f32 0.0, %v3806
    %v3808 = vpop.f32.mrf.mxu0
    %v3809 = vadd.f32 0.0, %v3808
    %3810 = vmatmul.bf16.gmra.mxu0 %v3746
    %v3811 = vpop.f32.mrf.mxu0
    %v3812 = vadd.f32 0.0, %v3811
    %v3813 = vpop.f32.mrf.mxu0
    %v3814 = vadd.f32 0.0, %v3813
    %3815 = vmatmul.bf16.gmra.mxu0 %v3747
    %v3816 = vpop.f32.mrf.mxu0
    %v3817 = vadd.f32 0.0, %v3816
    %v3818 = vpop.f32.mrf.mxu0
    %v3819 = vadd.f32 0.0, %v3818
    %3820 = vmatmul.bf16.gmra.mxu0 %v3748
    %v3821 = vpop.f32.mrf.mxu0
    %v3822 = vadd.f32 0.0, %v3821
    %v3823 = vpop.f32.mrf.mxu0
    %v3824 = vadd.f32 0.0, %v3823
    %3825 = vmatmul.bf16.gmra.mxu0 %v3749
    %v3826 = vpop.f32.mrf.mxu0
    %v3827 = vadd.f32 0.0, %v3826
    %v3828 = vpop.f32.mrf.mxu0
    %v3829 = vadd.f32 0.0, %v3828
    %3830 = vdwg.mxu0
    %3831 = vst.msk [vmem:[#allocation2] sm:$0xff] %vm2150, %v3429
    %3832 = vst.msk [vmem:[#allocation2 + $0x8] sm:$0xff] %vm2150, %v3431
    %3833 = vst.msk [vmem:[#allocation2 + $0x10] sm:$0xff] %vm2150, %v3434
    %3834 = vst.msk [vmem:[#allocation2 + $0x18] sm:$0xff] %vm2150, %v3436
    %3835 = vst.msk [vmem:[#allocation2 + $0x20] sm:$0xff] %vm2150, %v3439
    %3836 = vst.msk [vmem:[#allocation2 + $0x28] sm:$0xff] %vm2150, %v3441
    %3837 = vst.msk [vmem:[#allocation2 + $0x30] sm:$0xff] %vm2150, %v3444
    %3838 = vst.msk [vmem:[#allocation2 + $0x38] sm:$0xff] %vm2150, %v3446
    %3839 = vst.msk [vmem:[#allocation2 + $0x40] sm:$0xff] %vm2150, %v3449
    %3840 = vst.msk [vmem:[#allocation2 + $0x48] sm:$0xff] %vm2150, %v3451
    %3841 = vst.msk [vmem:[#allocation2 + $0x50] sm:$0xff] %vm2150, %v3454
    %3842 = vst.msk [vmem:[#allocation2 + $0x58] sm:$0xff] %vm2150, %v3456
    %3843 = vst.msk [vmem:[#allocation2 + $0x60] sm:$0xff] %vm2150, %v3459
    %3844 = vst.msk [vmem:[#allocation2 + $0x68] sm:$0xff] %vm2150, %v3461
    %3845 = vst.msk [vmem:[#allocation2 + $0x70] sm:$0xff] %vm2150, %v3464
    %3846 = vst.msk [vmem:[#allocation2 + $0x78] sm:$0xff] %vm2150, %v3466
    %3847 = vst.msk [vmem:[#allocation2 + $0x80] sm:$0xff] %vm2150, %v3550
    %3848 = vst.msk [vmem:[#allocation2 + $0x88] sm:$0xff] %vm2150, %v3552
    %3849 = vst.msk [vmem:[#allocation2 + $0x90] sm:$0xff] %vm2150, %v3555
    %3850 = vst.msk [vmem:[#allocation2 + $0x98] sm:$0xff] %vm2150, %v3557
    %3851 = vst.msk [vmem:[#allocation2 + $0xa0] sm:$0xff] %vm2150, %v3560
    %3852 = vst.msk [vmem:[#allocation2 + $0xa8] sm:$0xff] %vm2150, %v3562
    %3853 = vst.msk [vmem:[#allocation2 + $0xb0] sm:$0xff] %vm2150, %v3565
    %3854 = vst.msk [vmem:[#allocation2 + $0xb8] sm:$0xff] %vm2150, %v3567
    %3855 = vst.msk [vmem:[#allocation2 + $0xc0] sm:$0xff] %vm2150, %v3570
    %3856 = vst.msk [vmem:[#allocation2 + $0xc8] sm:$0xff] %vm2150, %v3572
    %3857 = vst.msk [vmem:[#allocation2 + $0xd0] sm:$0xff] %vm2150, %v3575
    %3858 = vst.msk [vmem:[#allocation2 + $0xd8] sm:$0xff] %vm2150, %v3577
    %3859 = vst.msk [vmem:[#allocation2 + $0xe0] sm:$0xff] %vm2150, %v3580
    %3860 = vst.msk [vmem:[#allocation2 + $0xe8] sm:$0xff] %vm2150, %v3582
    %3861 = vst.msk [vmem:[#allocation2 + $0xf0] sm:$0xff] %vm2150, %v3585
    %3862 = vst.msk [vmem:[#allocation2 + $0xf8] sm:$0xff] %vm2150, %v3587
    %3863 = vst.msk [vmem:[#allocation2 + $0x100] sm:$0xff] %vm2150, %v3671
    %3864 = vst.msk [vmem:[#allocation2 + $0x108] sm:$0xff] %vm2150, %v3673
    %3865 = vst.msk [vmem:[#allocation2 + $0x110] sm:$0xff] %vm2150, %v3676
    %3866 = vst.msk [vmem:[#allocation2 + $0x118] sm:$0xff] %vm2150, %v3678
    %3867 = vst.msk [vmem:[#allocation2 + $0x120] sm:$0xff] %vm2150, %v3681
    %3868 = vst.msk [vmem:[#allocation2 + $0x128] sm:$0xff] %vm2150, %v3683
    %3869 = vst.msk [vmem:[#allocation2 + $0x130] sm:$0xff] %vm2150, %v3686
    %3870 = vst.msk [vmem:[#allocation2 + $0x138] sm:$0xff] %vm2150, %v3688
    %3871 = vst.msk [vmem:[#allocation2 + $0x140] sm:$0xff] %vm2150, %v3691
    %3872 = vst.msk [vmem:[#allocation2 + $0x148] sm:$0xff] %vm2150, %v3693
    %3873 = vst.msk [vmem:[#allocation2 + $0x150] sm:$0xff] %vm2150, %v3696
    %3874 = vst.msk [vmem:[#allocation2 + $0x158] sm:$0xff] %vm2150, %v3698
    %3875 = vst.msk [vmem:[#allocation2 + $0x160] sm:$0xff] %vm2150, %v3701
    %3876 = vst.msk [vmem:[#allocation2 + $0x168] sm:$0xff] %vm2150, %v3703
    %3877 = vst.msk [vmem:[#allocation2 + $0x170] sm:$0xff] %vm2150, %v3706
    %3878 = vst.msk [vmem:[#allocation2 + $0x178] sm:$0xff] %vm2150, %v3708
    %3879 = vst.msk [vmem:[#allocation2 + $0x180] sm:$0xff] %vm2150, %v3792
    %3880 = vst.msk [vmem:[#allocation2 + $0x188] sm:$0xff] %vm2150, %v3794
    %3881 = vst.msk [vmem:[#allocation2 + $0x190] sm:$0xff] %vm2150, %v3797
    %3882 = vst.msk [vmem:[#allocation2 + $0x198] sm:$0xff] %vm2150, %v3799
    %3883 = vst.msk [vmem:[#allocation2 + $0x1a0] sm:$0xff] %vm2150, %v3802
    %3884 = vst.msk [vmem:[#allocation2 + $0x1a8] sm:$0xff] %vm2150, %v3804
    %3885 = vst.msk [vmem:[#allocation2 + $0x1b0] sm:$0xff] %vm2150, %v3807
    %3886 = vst.msk [vmem:[#allocation2 + $0x1b8] sm:$0xff] %vm2150, %v3809
    %3887 = vst.msk [vmem:[#allocation2 + $0x1c0] sm:$0xff] %vm2150, %v3812
    %3888 = vst.msk [vmem:[#allocation2 + $0x1c8] sm:$0xff] %vm2150, %v3814
    %3889 = vst.msk [vmem:[#allocation2 + $0x1d0] sm:$0xff] %vm2150, %v3817
    %3890 = vst.msk [vmem:[#allocation2 + $0x1d8] sm:$0xff] %vm2150, %v3819
    %3891 = vst.msk [vmem:[#allocation2 + $0x1e0] sm:$0xff] %vm2150, %v3822
    %3892 = vst.msk [vmem:[#allocation2 + $0x1e8] sm:$0xff] %vm2150, %v3824
    %3893 = vst.msk [vmem:[#allocation2 + $0x1f0] sm:$0xff] %vm2150, %v3827
    %3894 = vst.msk [vmem:[#allocation2 + $0x1f8] sm:$0xff] %vm2150, %v3829
    %s3895 = scalar_lea.vmem [#allocation6], 128
    %v3896 = vld [vmem:[%s3895] sm:$0xff]
    %v3897 = vld [vmem:[%s3895 + $0x8] sm:$0xff]
    %v3898 = vld [vmem:[%s3895 + $0x10] sm:$0xff]
    %v3899 = vld [vmem:[%s3895 + $0x18] sm:$0xff]
    %v3900 = vld [vmem:[%s3895 + $0x20] sm:$0xff]
    %v3901 = vld [vmem:[%s3895 + $0x28] sm:$0xff]
    %v3902 = vld [vmem:[%s3895 + $0x30] sm:$0xff]
    %v3903 = vld [vmem:[%s3895 + $0x38] sm:$0xff]
    %v3904 = vld [vmem:[%s3895 + $0x40] sm:$0xff]
    %v3905 = vld [vmem:[%s3895 + $0x48] sm:$0xff]
    %v3906 = vld [vmem:[%s3895 + $0x50] sm:$0xff]
    %v3907 = vld [vmem:[%s3895 + $0x58] sm:$0xff]
    %v3908 = vld [vmem:[%s3895 + $0x60] sm:$0xff]
    %v3909 = vld [vmem:[%s3895 + $0x68] sm:$0xff]
    %v3910 = vld [vmem:[%s3895 + $0x70] sm:$0xff]
    %v3911 = vld [vmem:[%s3895 + $0x78] sm:$0xff]
    %3912 = vrot.lane.b32.xlu0 %v2126, 120
    %v3913 = vpop.permute.xlu0 %3912
    %3914 = vrot.lane.b32.xlu0 %v2127, 120
    %v3915 = vpop.permute.xlu0 %3914
    %3916 = vrot.lane.b32.xlu0 %v2128, 120
    %v3917 = vpop.permute.xlu0 %3916
    %3918 = vrot.lane.b32.xlu0 %v2129, 120
    %v3919 = vpop.permute.xlu0 %3918
    %3920 = vrot.lane.b32.xlu0 %v2130, 120
    %v3921 = vpop.permute.xlu0 %3920
    %3922 = vrot.lane.b32.xlu0 %v2131, 120
    %v3923 = vpop.permute.xlu0 %3922
    %3924 = vrot.lane.b32.xlu0 %v2132, 120
    %v3925 = vpop.permute.xlu0 %3924
    %3926 = vrot.lane.b32.xlu0 %v2133, 120
    %v3927 = vpop.permute.xlu0 %3926
    %3928 = vrot.lane.b32.xlu0 %v2126, 88
    %v3929 = vpop.permute.xlu0 %3928
    %3930 = vrot.lane.b32.xlu0 %v2127, 88
    %v3931 = vpop.permute.xlu0 %3930
    %3932 = vrot.lane.b32.xlu0 %v2128, 88
    %v3933 = vpop.permute.xlu0 %3932
    %3934 = vrot.lane.b32.xlu0 %v2129, 88
    %v3935 = vpop.permute.xlu0 %3934
    %3936 = vrot.lane.b32.xlu0 %v2130, 88
    %v3937 = vpop.permute.xlu0 %3936
    %3938 = vrot.lane.b32.xlu0 %v2131, 88
    %v3939 = vpop.permute.xlu0 %3938
    %3940 = vrot.lane.b32.xlu0 %v2132, 88
    %v3941 = vpop.permute.xlu0 %3940
    %3942 = vrot.lane.b32.xlu0 %v2133, 88
    %v3943 = vpop.permute.xlu0 %3942
    %v3945 = vsel %vm2150, %v3913, 0
    %v3948 = vsel %vm2150, %v3915, 0
    %v3951 = vsel %vm2150, %v3917, 0
    %v3954 = vsel %vm2150, %v3919, 0
    %v3957 = vsel %vm2150, %v3921, 0
    %v3960 = vsel %vm2150, %v3923, 0
    %v3963 = vsel %vm2150, %v3925, 0
    %v3966 = vsel %vm2150, %v3927, 0
    %v3969 = vsel %vm2150, %v3929, 0
    %v3972 = vsel %vm2150, %v3931, 0
    %v3975 = vsel %vm2150, %v3933, 0
    %v3978 = vsel %vm2150, %v3935, 0
    %v3981 = vsel %vm2150, %v3937, 0
    %v3984 = vsel %vm2150, %v3939, 0
    %v3987 = vsel %vm2150, %v3941, 0
    %v3990 = vsel %vm2150, %v3943, 0
    %3992 = vmatpush.bf16.xpose.msra.mxu0 %v3990
    %3993 = vmatpush.bf16.xpose.msra.mxu0 %v3987
    %3994 = vmatpush.bf16.xpose.msra.mxu0 %v3984
    %3995 = vmatpush.bf16.xpose.msra.mxu0 %v3981
    %3996 = vmatpush.bf16.xpose.msra.mxu0 %v3978
    %3997 = vmatpush.bf16.xpose.msra.mxu0 %v3975
    %3998 = vmatpush.bf16.xpose.msra.mxu0 %v3972
    %3999 = vmatpush.bf16.xpose.msra.mxu0 %v3969
    %4000 = vmatmul.bf16.gmra.mxu0 %v3945
    %v4001 = vpop.f32.mrf.mxu0
    %v4002 = vadd.f32 %v3896, %v4001
    %v4003 = vpop.f32.mrf.mxu0
    %v4004 = vadd.f32 %v3897, %v4003
    %4005 = vmatmul.bf16.gmra.mxu0 %v3948
    %v4006 = vpop.f32.mrf.mxu0
    %v4007 = vadd.f32 %v3898, %v4006
    %v4008 = vpop.f32.mrf.mxu0
    %v4009 = vadd.f32 %v3899, %v4008
    %4010 = vmatmul.bf16.gmra.mxu0 %v3951
    %v4011 = vpop.f32.mrf.mxu0
    %v4012 = vadd.f32 %v3900, %v4011
    %v4013 = vpop.f32.mrf.mxu0
    %v4014 = vadd.f32 %v3901, %v4013
    %4015 = vmatmul.bf16.gmra.mxu0 %v3954
    %v4016 = vpop.f32.mrf.mxu0
    %v4017 = vadd.f32 %v3902, %v4016
    %v4018 = vpop.f32.mrf.mxu0
    %v4019 = vadd.f32 %v3903, %v4018
    %4020 = vmatmul.bf16.gmra.mxu0 %v3957
    %v4021 = vpop.f32.mrf.mxu0
    %v4022 = vadd.f32 %v3904, %v4021
    %v4023 = vpop.f32.mrf.mxu0
    %v4024 = vadd.f32 %v3905, %v4023
    %4025 = vmatmul.bf16.gmra.mxu0 %v3960
    %v4026 = vpop.f32.mrf.mxu0
    %v4027 = vadd.f32 %v3906, %v4026
    %v4028 = vpop.f32.mrf.mxu0
    %v4029 = vadd.f32 %v3907, %v4028
    %4030 = vmatmul.bf16.gmra.mxu0 %v3963
    %v4031 = vpop.f32.mrf.mxu0
    %v4032 = vadd.f32 %v3908, %v4031
    %v4033 = vpop.f32.mrf.mxu0
    %v4034 = vadd.f32 %v3909, %v4033
    %4035 = vmatmul.bf16.gmra.mxu0 %v3966
    %v4036 = vpop.f32.mrf.mxu0
    %v4037 = vadd.f32 %v3910, %v4036
    %v4038 = vpop.f32.mrf.mxu0
    %v4039 = vadd.f32 %v3911, %v4038
    %4040 = vdwg.mxu0
    %4041 = vrot.lane.b32.xlu0 %v2280, 120
    %v4042 = vpop.permute.xlu0 %4041
    %4043 = vrot.lane.b32.xlu0 %v2281, 120
    %v4044 = vpop.permute.xlu0 %4043
    %4045 = vrot.lane.b32.xlu0 %v2282, 120
    %v4046 = vpop.permute.xlu0 %4045
    %4047 = vrot.lane.b32.xlu0 %v2283, 120
    %v4048 = vpop.permute.xlu0 %4047
    %4049 = vrot.lane.b32.xlu0 %v2284, 120
    %v4050 = vpop.permute.xlu0 %4049
    %4051 = vrot.lane.b32.xlu0 %v2285, 120
    %v4052 = vpop.permute.xlu0 %4051
    %4053 = vrot.lane.b32.xlu0 %v2286, 120
    %v4054 = vpop.permute.xlu0 %4053
    %4055 = vrot.lane.b32.xlu0 %v2287, 120
    %v4056 = vpop.permute.xlu0 %4055
    %4057 = vrot.lane.b32.xlu0 %v2280, 88
    %v4058 = vpop.permute.xlu0 %4057
    %4059 = vrot.lane.b32.xlu0 %v2281, 88
    %v4060 = vpop.permute.xlu0 %4059
    %4061 = vrot.lane.b32.xlu0 %v2282, 88
    %v4062 = vpop.permute.xlu0 %4061
    %4063 = vrot.lane.b32.xlu0 %v2283, 88
    %v4064 = vpop.permute.xlu0 %4063
    %4065 = vrot.lane.b32.xlu0 %v2284, 88
    %v4066 = vpop.permute.xlu0 %4065
    %4067 = vrot.lane.b32.xlu0 %v2285, 88
    %v4068 = vpop.permute.xlu0 %4067
    %4069 = vrot.lane.b32.xlu0 %v2286, 88
    %v4070 = vpop.permute.xlu0 %4069
    %4071 = vrot.lane.b32.xlu0 %v2287, 88
    %v4072 = vpop.permute.xlu0 %4071
    %v4074 = vsel %vm2150, %v4042, 0
    %v4077 = vsel %vm2150, %v4044, 0
    %v4080 = vsel %vm2150, %v4046, 0
    %v4083 = vsel %vm2150, %v4048, 0
    %v4086 = vsel %vm2150, %v4050, 0
    %v4089 = vsel %vm2150, %v4052, 0
    %v4092 = vsel %vm2150, %v4054, 0
    %v4095 = vsel %vm2150, %v4056, 0
    %v4098 = vsel %vm2150, %v4058, 0
    %v4101 = vsel %vm2150, %v4060, 0
    %v4104 = vsel %vm2150, %v4062, 0
    %v4107 = vsel %vm2150, %v4064, 0
    %v4110 = vsel %vm2150, %v4066, 0
    %v4113 = vsel %vm2150, %v4068, 0
    %v4116 = vsel %vm2150, %v4070, 0
    %v4119 = vsel %vm2150, %v4072, 0
    %4121 = vmatpush.bf16.xpose.msra.mxu0 %v4119
    %4122 = vmatpush.bf16.xpose.msra.mxu0 %v4116
    %4123 = vmatpush.bf16.xpose.msra.mxu0 %v4113
    %4124 = vmatpush.bf16.xpose.msra.mxu0 %v4110
    %4125 = vmatpush.bf16.xpose.msra.mxu0 %v4107
    %4126 = vmatpush.bf16.xpose.msra.mxu0 %v4104
    %4127 = vmatpush.bf16.xpose.msra.mxu0 %v4101
    %4128 = vmatpush.bf16.xpose.msra.mxu0 %v4098
    %4129 = vmatmul.bf16.gmra.mxu0 %v4074
    %v4130 = vpop.f32.mrf.mxu0
    %v4131 = vadd.f32 %v3896, %v4130
    %v4132 = vpop.f32.mrf.mxu0
    %v4133 = vadd.f32 %v3897, %v4132
    %4134 = vmatmul.bf16.gmra.mxu0 %v4077
    %v4135 = vpop.f32.mrf.mxu0
    %v4136 = vadd.f32 %v3898, %v4135
    %v4137 = vpop.f32.mrf.mxu0
    %v4138 = vadd.f32 %v3899, %v4137
    %4139 = vmatmul.bf16.gmra.mxu0 %v4080
    %v4140 = vpop.f32.mrf.mxu0
    %v4141 = vadd.f32 %v3900, %v4140
    %v4142 = vpop.f32.mrf.mxu0
    %v4143 = vadd.f32 %v3901, %v4142
    %4144 = vmatmul.bf16.gmra.mxu0 %v4083
    %v4145 = vpop.f32.mrf.mxu0
    %v4146 = vadd.f32 %v3902, %v4145
    %v4147 = vpop.f32.mrf.mxu0
    %v4148 = vadd.f32 %v3903, %v4147
    %4149 = vmatmul.bf16.gmra.mxu0 %v4086
    %v4150 = vpop.f32.mrf.mxu0
    %v4151 = vadd.f32 %v3904, %v4150
    %v4152 = vpop.f32.mrf.mxu0
    %v4153 = vadd.f32 %v3905, %v4152
    %4154 = vmatmul.bf16.gmra.mxu0 %v4089
    %v4155 = vpop.f32.mrf.mxu0
    %v4156 = vadd.f32 %v3906, %v4155
    %v4157 = vpop.f32.mrf.mxu0
    %v4158 = vadd.f32 %v3907, %v4157
    %4159 = vmatmul.bf16.gmra.mxu0 %v4092
    %v4160 = vpop.f32.mrf.mxu0
    %v4161 = vadd.f32 %v3908, %v4160
    %v4162 = vpop.f32.mrf.mxu0
    %v4163 = vadd.f32 %v3909, %v4162
    %4164 = vmatmul.bf16.gmra.mxu0 %v4095
    %v4165 = vpop.f32.mrf.mxu0
    %v4166 = vadd.f32 %v3910, %v4165
    %v4167 = vpop.f32.mrf.mxu0
    %v4168 = vadd.f32 %v3911, %v4167
    %4169 = vdwg.mxu0
    %4170 = vrot.lane.b32.xlu0 %v2433, 120
    %v4171 = vpop.permute.xlu0 %4170
    %4172 = vrot.lane.b32.xlu0 %v2434, 120
    %v4173 = vpop.permute.xlu0 %4172
    %4174 = vrot.lane.b32.xlu0 %v2435, 120
    %v4175 = vpop.permute.xlu0 %4174
    %4176 = vrot.lane.b32.xlu0 %v2436, 120
    %v4177 = vpop.permute.xlu0 %4176
    %4178 = vrot.lane.b32.xlu0 %v2437, 120
    %v4179 = vpop.permute.xlu0 %4178
    %4180 = vrot.lane.b32.xlu0 %v2438, 120
    %v4181 = vpop.permute.xlu0 %4180
    %4182 = vrot.lane.b32.xlu0 %v2439, 120
    %v4183 = vpop.permute.xlu0 %4182
    %4184 = vrot.lane.b32.xlu0 %v2440, 120
    %v4185 = vpop.permute.xlu0 %4184
    %4186 = vrot.lane.b32.xlu0 %v2433, 88
    %v4187 = vpop.permute.xlu0 %4186
    %4188 = vrot.lane.b32.xlu0 %v2434, 88
    %v4189 = vpop.permute.xlu0 %4188
    %4190 = vrot.lane.b32.xlu0 %v2435, 88
    %v4191 = vpop.permute.xlu0 %4190
    %4192 = vrot.lane.b32.xlu0 %v2436, 88
    %v4193 = vpop.permute.xlu0 %4192
    %4194 = vrot.lane.b32.xlu0 %v2437, 88
    %v4195 = vpop.permute.xlu0 %4194
    %4196 = vrot.lane.b32.xlu0 %v2438, 88
    %v4197 = vpop.permute.xlu0 %4196
    %4198 = vrot.lane.b32.xlu0 %v2439, 88
    %v4199 = vpop.permute.xlu0 %4198
    %4200 = vrot.lane.b32.xlu0 %v2440, 88
    %v4201 = vpop.permute.xlu0 %4200
    %v4203 = vsel %vm2150, %v4171, 0
    %v4206 = vsel %vm2150, %v4173, 0
    %v4209 = vsel %vm2150, %v4175, 0
    %v4212 = vsel %vm2150, %v4177, 0
    %v4215 = vsel %vm2150, %v4179, 0
    %v4218 = vsel %vm2150, %v4181, 0
    %v4221 = vsel %vm2150, %v4183, 0
    %v4224 = vsel %vm2150, %v4185, 0
    %v4227 = vsel %vm2150, %v4187, 0
    %v4230 = vsel %vm2150, %v4189, 0
    %v4233 = vsel %vm2150, %v4191, 0
    %v4236 = vsel %vm2150, %v4193, 0
    %v4239 = vsel %vm2150, %v4195, 0
    %v4242 = vsel %vm2150, %v4197, 0
    %v4245 = vsel %vm2150, %v4199, 0
    %v4248 = vsel %vm2150, %v4201, 0
    %4250 = vmatpush.bf16.xpose.msra.mxu0 %v4248
    %4251 = vmatpush.bf16.xpose.msra.mxu0 %v4245
    %4252 = vmatpush.bf16.xpose.msra.mxu0 %v4242
    %4253 = vmatpush.bf16.xpose.msra.mxu0 %v4239
    %4254 = vmatpush.bf16.xpose.msra.mxu0 %v4236
    %4255 = vmatpush.bf16.xpose.msra.mxu0 %v4233
    %4256 = vmatpush.bf16.xpose.msra.mxu0 %v4230
    %4257 = vmatpush.bf16.xpose.msra.mxu0 %v4227
    %4258 = vmatmul.bf16.gmra.mxu0 %v4203
    %v4259 = vpop.f32.mrf.mxu0
    %v4260 = vadd.f32 %v3896, %v4259
    %v4261 = vpop.f32.mrf.mxu0
    %v4262 = vadd.f32 %v3897, %v4261
    %4263 = vmatmul.bf16.gmra.mxu0 %v4206
    %v4264 = vpop.f32.mrf.mxu0
    %v4265 = vadd.f32 %v3898, %v4264
    %v4266 = vpop.f32.mrf.mxu0
    %v4267 = vadd.f32 %v3899, %v4266
    %4268 = vmatmul.bf16.gmra.mxu0 %v4209
    %v4269 = vpop.f32.mrf.mxu0
    %v4270 = vadd.f32 %v3900, %v4269
    %v4271 = vpop.f32.mrf.mxu0
    %v4272 = vadd.f32 %v3901, %v4271
    %4273 = vmatmul.bf16.gmra.mxu0 %v4212
    %v4274 = vpop.f32.mrf.mxu0
    %v4275 = vadd.f32 %v3902, %v4274
    %v4276 = vpop.f32.mrf.mxu0
    %v4277 = vadd.f32 %v3903, %v4276
    %4278 = vmatmul.bf16.gmra.mxu0 %v4215
    %v4279 = vpop.f32.mrf.mxu0
    %v4280 = vadd.f32 %v3904, %v4279
    %v4281 = vpop.f32.mrf.mxu0
    %v4282 = vadd.f32 %v3905, %v4281
    %4283 = vmatmul.bf16.gmra.mxu0 %v4218
    %v4284 = vpop.f32.mrf.mxu0
    %v4285 = vadd.f32 %v3906, %v4284
    %v4286 = vpop.f32.mrf.mxu0
    %v4287 = vadd.f32 %v3907, %v4286
    %4288 = vmatmul.bf16.gmra.mxu0 %v4221
    %v4289 = vpop.f32.mrf.mxu0
    %v4290 = vadd.f32 %v3908, %v4289
    %v4291 = vpop.f32.mrf.mxu0
    %v4292 = vadd.f32 %v3909, %v4291
    %4293 = vmatmul.bf16.gmra.mxu0 %v4224
    %v4294 = vpop.f32.mrf.mxu0
    %v4295 = vadd.f32 %v3910, %v4294
    %v4296 = vpop.f32.mrf.mxu0
    %v4297 = vadd.f32 %v3911, %v4296
    %4298 = vdwg.mxu0
    %4299 = vrot.lane.b32.xlu0 %v2586, 120
    %v4300 = vpop.permute.xlu0 %4299
    %4301 = vrot.lane.b32.xlu0 %v2587, 120
    %v4302 = vpop.permute.xlu0 %4301
    %4303 = vrot.lane.b32.xlu0 %v2588, 120
    %v4304 = vpop.permute.xlu0 %4303
    %4305 = vrot.lane.b32.xlu0 %v2589, 120
    %v4306 = vpop.permute.xlu0 %4305
    %4307 = vrot.lane.b32.xlu0 %v2590, 120
    %v4308 = vpop.permute.xlu0 %4307
    %4309 = vrot.lane.b32.xlu0 %v2591, 120
    %v4310 = vpop.permute.xlu0 %4309
    %4311 = vrot.lane.b32.xlu0 %v2592, 120
    %v4312 = vpop.permute.xlu0 %4311
    %4313 = vrot.lane.b32.xlu0 %v2593, 120
    %v4314 = vpop.permute.xlu0 %4313
    %4315 = vrot.lane.b32.xlu0 %v2586, 88
    %v4316 = vpop.permute.xlu0 %4315
    %4317 = vrot.lane.b32.xlu0 %v2587, 88
    %v4318 = vpop.permute.xlu0 %4317
    %4319 = vrot.lane.b32.xlu0 %v2588, 88
    %v4320 = vpop.permute.xlu0 %4319
    %4321 = vrot.lane.b32.xlu0 %v2589, 88
    %v4322 = vpop.permute.xlu0 %4321
    %4323 = vrot.lane.b32.xlu0 %v2590, 88
    %v4324 = vpop.permute.xlu0 %4323
    %4325 = vrot.lane.b32.xlu0 %v2591, 88
    %v4326 = vpop.permute.xlu0 %4325
    %4327 = vrot.lane.b32.xlu0 %v2592, 88
    %v4328 = vpop.permute.xlu0 %4327
    %4329 = vrot.lane.b32.xlu0 %v2593, 88
    %v4330 = vpop.permute.xlu0 %4329
    %v4332 = vsel %vm2150, %v4300, 0
    %v4335 = vsel %vm2150, %v4302, 0
    %v4338 = vsel %vm2150, %v4304, 0
    %v4341 = vsel %vm2150, %v4306, 0
    %v4344 = vsel %vm2150, %v4308, 0
    %v4347 = vsel %vm2150, %v4310, 0
    %v4350 = vsel %vm2150, %v4312, 0
    %v4353 = vsel %vm2150, %v4314, 0
    %v4356 = vsel %vm2150, %v4316, 0
    %v4359 = vsel %vm2150, %v4318, 0
    %v4362 = vsel %vm2150, %v4320, 0
    %v4365 = vsel %vm2150, %v4322, 0
    %v4368 = vsel %vm2150, %v4324, 0
    %v4371 = vsel %vm2150, %v4326, 0
    %v4374 = vsel %vm2150, %v4328, 0
    %v4377 = vsel %vm2150, %v4330, 0
    %4379 = vmatpush.bf16.xpose.msra.mxu0 %v4377
    %4380 = vmatpush.bf16.xpose.msra.mxu0 %v4374
    %4381 = vmatpush.bf16.xpose.msra.mxu0 %v4371
    %4382 = vmatpush.bf16.xpose.msra.mxu0 %v4368
    %4383 = vmatpush.bf16.xpose.msra.mxu0 %v4365
    %4384 = vmatpush.bf16.xpose.msra.mxu0 %v4362
    %4385 = vmatpush.bf16.xpose.msra.mxu0 %v4359
    %4386 = vmatpush.bf16.xpose.msra.mxu0 %v4356
    %4387 = vmatmul.bf16.gmra.mxu0 %v4332
    %v4388 = vpop.f32.mrf.mxu0
    %v4389 = vadd.f32 %v3896, %v4388
    %v4390 = vpop.f32.mrf.mxu0
    %v4391 = vadd.f32 %v3897, %v4390
    %4392 = vmatmul.bf16.gmra.mxu0 %v4335
    %v4393 = vpop.f32.mrf.mxu0
    %v4394 = vadd.f32 %v3898, %v4393
    %v4395 = vpop.f32.mrf.mxu0
    %v4396 = vadd.f32 %v3899, %v4395
    %4397 = vmatmul.bf16.gmra.mxu0 %v4338
    %v4398 = vpop.f32.mrf.mxu0
    %v4399 = vadd.f32 %v3900, %v4398
    %v4400 = vpop.f32.mrf.mxu0
    %v4401 = vadd.f32 %v3901, %v4400
    %4402 = vmatmul.bf16.gmra.mxu0 %v4341
    %v4403 = vpop.f32.mrf.mxu0
    %v4404 = vadd.f32 %v3902, %v4403
    %v4405 = vpop.f32.mrf.mxu0
    %v4406 = vadd.f32 %v3903, %v4405
    %4407 = vmatmul.bf16.gmra.mxu0 %v4344
    %v4408 = vpop.f32.mrf.mxu0
    %v4409 = vadd.f32 %v3904, %v4408
    %v4410 = vpop.f32.mrf.mxu0
    %v4411 = vadd.f32 %v3905, %v4410
    %4412 = vmatmul.bf16.gmra.mxu0 %v4347
    %v4413 = vpop.f32.mrf.mxu0
    %v4414 = vadd.f32 %v3906, %v4413
    %v4415 = vpop.f32.mrf.mxu0
    %v4416 = vadd.f32 %v3907, %v4415
    %4417 = vmatmul.bf16.gmra.mxu0 %v4350
    %v4418 = vpop.f32.mrf.mxu0
    %v4419 = vadd.f32 %v3908, %v4418
    %v4420 = vpop.f32.mrf.mxu0
    %v4421 = vadd.f32 %v3909, %v4420
    %4422 = vmatmul.bf16.gmra.mxu0 %v4353
    %v4423 = vpop.f32.mrf.mxu0
    %v4424 = vadd.f32 %v3910, %v4423
    %v4425 = vpop.f32.mrf.mxu0
    %v4426 = vadd.f32 %v3911, %v4425
    %4427 = vdwg.mxu0
    %4428 = vmax.xlane.f32.xlu0 %v4002
    %v4429 = vpop.xlane.xlu0 %4428
    %4430 = vmax.xlane.f32.xlu0 %v4004
    %v4431 = vpop.xlane.xlu0 %4430
    %4432 = vmax.xlane.f32.xlu0 %v4007
    %v4433 = vpop.xlane.xlu0 %4432
    %4434 = vmax.xlane.f32.xlu0 %v4009
    %v4435 = vpop.xlane.xlu0 %4434
    %4436 = vmax.xlane.f32.xlu0 %v4012
    %v4437 = vpop.xlane.xlu0 %4436
    %4438 = vmax.xlane.f32.xlu0 %v4014
    %v4439 = vpop.xlane.xlu0 %4438
    %4440 = vmax.xlane.f32.xlu0 %v4017
    %v4441 = vpop.xlane.xlu0 %4440
    %4442 = vmax.xlane.f32.xlu0 %v4019
    %v4443 = vpop.xlane.xlu0 %4442
    %4444 = vmax.xlane.f32.xlu0 %v4022
    %v4445 = vpop.xlane.xlu0 %4444
    %4446 = vmax.xlane.f32.xlu0 %v4024
    %v4447 = vpop.xlane.xlu0 %4446
    %4448 = vmax.xlane.f32.xlu0 %v4027
    %v4449 = vpop.xlane.xlu0 %4448
    %4450 = vmax.xlane.f32.xlu0 %v4029
    %v4451 = vpop.xlane.xlu0 %4450
    %4452 = vmax.xlane.f32.xlu0 %v4032
    %v4453 = vpop.xlane.xlu0 %4452
    %4454 = vmax.xlane.f32.xlu0 %v4034
    %v4455 = vpop.xlane.xlu0 %4454
    %4456 = vmax.xlane.f32.xlu0 %v4037
    %v4457 = vpop.xlane.xlu0 %4456
    %4458 = vmax.xlane.f32.xlu0 %v4039
    %v4459 = vpop.xlane.xlu0 %4458
    %4460 = vmax.xlane.f32.xlu0 %v4131
    %v4461 = vpop.xlane.xlu0 %4460
    %4462 = vmax.xlane.f32.xlu0 %v4133
    %v4463 = vpop.xlane.xlu0 %4462
    %4464 = vmax.xlane.f32.xlu0 %v4136
    %v4465 = vpop.xlane.xlu0 %4464
    %4466 = vmax.xlane.f32.xlu0 %v4138
    %v4467 = vpop.xlane.xlu0 %4466
    %4468 = vmax.xlane.f32.xlu0 %v4141
    %v4469 = vpop.xlane.xlu0 %4468
    %4470 = vmax.xlane.f32.xlu0 %v4143
    %v4471 = vpop.xlane.xlu0 %4470
    %4472 = vmax.xlane.f32.xlu0 %v4146
    %v4473 = vpop.xlane.xlu0 %4472
    %4474 = vmax.xlane.f32.xlu0 %v4148
    %v4475 = vpop.xlane.xlu0 %4474
    %4476 = vmax.xlane.f32.xlu0 %v4151
    %v4477 = vpop.xlane.xlu0 %4476
    %4478 = vmax.xlane.f32.xlu0 %v4153
    %v4479 = vpop.xlane.xlu0 %4478
    %4480 = vmax.xlane.f32.xlu0 %v4156
    %v4481 = vpop.xlane.xlu0 %4480
    %4482 = vmax.xlane.f32.xlu0 %v4158
    %v4483 = vpop.xlane.xlu0 %4482
    %4484 = vmax.xlane.f32.xlu0 %v4161
    %v4485 = vpop.xlane.xlu0 %4484
    %4486 = vmax.xlane.f32.xlu0 %v4163
    %v4487 = vpop.xlane.xlu0 %4486
    %4488 = vmax.xlane.f32.xlu0 %v4166
    %v4489 = vpop.xlane.xlu0 %4488
    %4490 = vmax.xlane.f32.xlu0 %v4168
    %v4491 = vpop.xlane.xlu0 %4490
    %4492 = vmax.xlane.f32.xlu0 %v4260
    %v4493 = vpop.xlane.xlu0 %4492
    %4494 = vmax.xlane.f32.xlu0 %v4262
    %v4495 = vpop.xlane.xlu0 %4494
    %4496 = vmax.xlane.f32.xlu0 %v4265
    %v4497 = vpop.xlane.xlu0 %4496
    %4498 = vmax.xlane.f32.xlu0 %v4267
    %v4499 = vpop.xlane.xlu0 %4498
    %4500 = vmax.xlane.f32.xlu0 %v4270
    %v4501 = vpop.xlane.xlu0 %4500
    %4502 = vmax.xlane.f32.xlu0 %v4272
    %v4503 = vpop.xlane.xlu0 %4502
    %4504 = vmax.xlane.f32.xlu0 %v4275
    %v4505 = vpop.xlane.xlu0 %4504
    %4506 = vmax.xlane.f32.xlu0 %v4277
    %v4507 = vpop.xlane.xlu0 %4506
    %4508 = vmax.xlane.f32.xlu0 %v4280
    %v4509 = vpop.xlane.xlu0 %4508
    %4510 = vmax.xlane.f32.xlu0 %v4282
    %v4511 = vpop.xlane.xlu0 %4510
    %4512 = vmax.xlane.f32.xlu0 %v4285
    %v4513 = vpop.xlane.xlu0 %4512
    %4514 = vmax.xlane.f32.xlu0 %v4287
    %v4515 = vpop.xlane.xlu0 %4514
    %4516 = vmax.xlane.f32.xlu0 %v4290
    %v4517 = vpop.xlane.xlu0 %4516
    %4518 = vmax.xlane.f32.xlu0 %v4292
    %v4519 = vpop.xlane.xlu0 %4518
    %4520 = vmax.xlane.f32.xlu0 %v4295
    %v4521 = vpop.xlane.xlu0 %4520
    %4522 = vmax.xlane.f32.xlu0 %v4297
    %v4523 = vpop.xlane.xlu0 %4522
    %4524 = vmax.xlane.f32.xlu0 %v4389
    %v4525 = vpop.xlane.xlu0 %4524
    %4526 = vmax.xlane.f32.xlu0 %v4391
    %v4527 = vpop.xlane.xlu0 %4526
    %4528 = vmax.xlane.f32.xlu0 %v4394
    %v4529 = vpop.xlane.xlu0 %4528
    %4530 = vmax.xlane.f32.xlu0 %v4396
    %v4531 = vpop.xlane.xlu0 %4530
    %4532 = vmax.xlane.f32.xlu0 %v4399
    %v4533 = vpop.xlane.xlu0 %4532
    %4534 = vmax.xlane.f32.xlu0 %v4401
    %v4535 = vpop.xlane.xlu0 %4534
    %4536 = vmax.xlane.f32.xlu0 %v4404
    %v4537 = vpop.xlane.xlu0 %4536
    %4538 = vmax.xlane.f32.xlu0 %v4406
    %v4539 = vpop.xlane.xlu0 %4538
    %4540 = vmax.xlane.f32.xlu0 %v4409
    %v4541 = vpop.xlane.xlu0 %4540
    %4542 = vmax.xlane.f32.xlu0 %v4411
    %v4543 = vpop.xlane.xlu0 %4542
    %4544 = vmax.xlane.f32.xlu0 %v4414
    %v4545 = vpop.xlane.xlu0 %4544
    %4546 = vmax.xlane.f32.xlu0 %v4416
    %v4547 = vpop.xlane.xlu0 %4546
    %4548 = vmax.xlane.f32.xlu0 %v4419
    %v4549 = vpop.xlane.xlu0 %4548
    %4550 = vmax.xlane.f32.xlu0 %v4421
    %v4551 = vpop.xlane.xlu0 %4550
    %4552 = vmax.xlane.f32.xlu0 %v4424
    %v4553 = vpop.xlane.xlu0 %4552
    %4554 = vmax.xlane.f32.xlu0 %v4426
    %v4555 = vpop.xlane.xlu0 %4554
    %v4556 = vsub.f32 %v4002, %v4429
    %v4557 = vsub.f32 %v4004, %v4431
    %v4558 = vsub.f32 %v4007, %v4433
    %v4559 = vsub.f32 %v4009, %v4435
    %v4560 = vsub.f32 %v4012, %v4437
    %v4561 = vsub.f32 %v4014, %v4439
    %v4562 = vsub.f32 %v4017, %v4441
    %v4563 = vsub.f32 %v4019, %v4443
    %v4564 = vsub.f32 %v4022, %v4445
    %v4565 = vsub.f32 %v4024, %v4447
    %v4566 = vsub.f32 %v4027, %v4449
    %v4567 = vsub.f32 %v4029, %v4451
    %v4568 = vsub.f32 %v4032, %v4453
    %v4569 = vsub.f32 %v4034, %v4455
    %v4570 = vsub.f32 %v4037, %v4457
    %v4571 = vsub.f32 %v4039, %v4459
    %v4572 = vsub.f32 %v4131, %v4461
    %v4573 = vsub.f32 %v4133, %v4463
    %v4574 = vsub.f32 %v4136, %v4465
    %v4575 = vsub.f32 %v4138, %v4467
    %v4576 = vsub.f32 %v4141, %v4469
    %v4577 = vsub.f32 %v4143, %v4471
    %v4578 = vsub.f32 %v4146, %v4473
    %v4579 = vsub.f32 %v4148, %v4475
    %v4580 = vsub.f32 %v4151, %v4477
    %v4581 = vsub.f32 %v4153, %v4479
    %v4582 = vsub.f32 %v4156, %v4481
    %v4583 = vsub.f32 %v4158, %v4483
    %v4584 = vsub.f32 %v4161, %v4485
    %v4585 = vsub.f32 %v4163, %v4487
    %v4586 = vsub.f32 %v4166, %v4489
    %v4587 = vsub.f32 %v4168, %v4491
    %v4588 = vsub.f32 %v4260, %v4493
    %v4589 = vsub.f32 %v4262, %v4495
    %v4590 = vsub.f32 %v4265, %v4497
    %v4591 = vsub.f32 %v4267, %v4499
    %v4592 = vsub.f32 %v4270, %v4501
    %v4593 = vsub.f32 %v4272, %v4503
    %v4594 = vsub.f32 %v4275, %v4505
    %v4595 = vsub.f32 %v4277, %v4507
    %v4596 = vsub.f32 %v4280, %v4509
    %v4597 = vsub.f32 %v4282, %v4511
    %v4598 = vsub.f32 %v4285, %v4513
    %v4599 = vsub.f32 %v4287, %v4515
    %v4600 = vsub.f32 %v4290, %v4517
    %v4601 = vsub.f32 %v4292, %v4519
    %v4602 = vsub.f32 %v4295, %v4521
    %v4603 = vsub.f32 %v4297, %v4523
    %v4604 = vsub.f32 %v4389, %v4525
    %v4605 = vsub.f32 %v4391, %v4527
    %v4606 = vsub.f32 %v4394, %v4529
    %v4607 = vsub.f32 %v4396, %v4531
    %v4608 = vsub.f32 %v4399, %v4533
    %v4609 = vsub.f32 %v4401, %v4535
    %v4610 = vsub.f32 %v4404, %v4537
    %v4611 = vsub.f32 %v4406, %v4539
    %v4612 = vsub.f32 %v4409, %v4541
    %v4613 = vsub.f32 %v4411, %v4543
    %v4614 = vsub.f32 %v4414, %v4545
    %v4615 = vsub.f32 %v4416, %v4547
    %v4616 = vsub.f32 %v4419, %v4549
    %v4617 = vsub.f32 %v4421, %v4551
    %v4618 = vsub.f32 %v4424, %v4553
    %v4619 = vsub.f32 %v4426, %v4555
    %v4620 = vmul.f32 %v4556, 1.442695
    %v4621 = vpow.pop %v4620
    %v4622 = vmul.f32 %v4557, 1.442695
    %v4623 = vpow.pop %v4622
    %v4624 = vmul.f32 %v4558, 1.442695
    %v4625 = vpow.pop %v4624
    %v4626 = vmul.f32 %v4559, 1.442695
    %v4627 = vpow.pop %v4626
    %v4628 = vmul.f32 %v4560, 1.442695
    %v4629 = vpow.pop %v4628
    %v4630 = vmul.f32 %v4561, 1.442695
    %v4631 = vpow.pop %v4630
    %v4632 = vmul.f32 %v4562, 1.442695
    %v4633 = vpow.pop %v4632
    %v4634 = vmul.f32 %v4563, 1.442695
    %v4635 = vpow.pop %v4634
    %v4636 = vmul.f32 %v4564, 1.442695
    %v4637 = vpow.pop %v4636
    %v4638 = vmul.f32 %v4565, 1.442695
    %v4639 = vpow.pop %v4638
    %v4640 = vmul.f32 %v4566, 1.442695
    %v4641 = vpow.pop %v4640
    %v4642 = vmul.f32 %v4567, 1.442695
    %v4643 = vpow.pop %v4642
    %v4644 = vmul.f32 %v4568, 1.442695
    %v4645 = vpow.pop %v4644
    %v4646 = vmul.f32 %v4569, 1.442695
    %v4647 = vpow.pop %v4646
    %v4648 = vmul.f32 %v4570, 1.442695
    %v4649 = vpow.pop %v4648
    %v4650 = vmul.f32 %v4571, 1.442695
    %v4651 = vpow.pop %v4650
    %v4652 = vmul.f32 %v4572, 1.442695
    %v4653 = vpow.pop %v4652
    %v4654 = vmul.f32 %v4573, 1.442695
    %v4655 = vpow.pop %v4654
    %v4656 = vmul.f32 %v4574, 1.442695
    %v4657 = vpow.pop %v4656
    %v4658 = vmul.f32 %v4575, 1.442695
    %v4659 = vpow.pop %v4658
    %v4660 = vmul.f32 %v4576, 1.442695
    %v4661 = vpow.pop %v4660
    %v4662 = vmul.f32 %v4577, 1.442695
    %v4663 = vpow.pop %v4662
    %v4664 = vmul.f32 %v4578, 1.442695
    %v4665 = vpow.pop %v4664
    %v4666 = vmul.f32 %v4579, 1.442695
    %v4667 = vpow.pop %v4666
    %v4668 = vmul.f32 %v4580, 1.442695
    %v4669 = vpow.pop %v4668
    %v4670 = vmul.f32 %v4581, 1.442695
    %v4671 = vpow.pop %v4670
    %v4672 = vmul.f32 %v4582, 1.442695
    %v4673 = vpow.pop %v4672
    %v4674 = vmul.f32 %v4583, 1.442695
    %v4675 = vpow.pop %v4674
    %v4676 = vmul.f32 %v4584, 1.442695
    %v4677 = vpow.pop %v4676
    %v4678 = vmul.f32 %v4585, 1.442695
    %v4679 = vpow.pop %v4678
    %v4680 = vmul.f32 %v4586, 1.442695
    %v4681 = vpow.pop %v4680
    %v4682 = vmul.f32 %v4587, 1.442695
    %v4683 = vpow.pop %v4682
    %v4684 = vmul.f32 %v4588, 1.442695
    %v4685 = vpow.pop %v4684
    %v4686 = vmul.f32 %v4589, 1.442695
    %v4687 = vpow.pop %v4686
    %v4688 = vmul.f32 %v4590, 1.442695
    %v4689 = vpow.pop %v4688
    %v4690 = vmul.f32 %v4591, 1.442695
    %v4691 = vpow.pop %v4690
    %v4692 = vmul.f32 %v4592, 1.442695
    %v4693 = vpow.pop %v4692
    %v4694 = vmul.f32 %v4593, 1.442695
    %v4695 = vpow.pop %v4694
    %v4696 = vmul.f32 %v4594, 1.442695
    %v4697 = vpow.pop %v4696
    %v4698 = vmul.f32 %v4595, 1.442695
    %v4699 = vpow.pop %v4698
    %v4700 = vmul.f32 %v4596, 1.442695
    %v4701 = vpow.pop %v4700
    %v4702 = vmul.f32 %v4597, 1.442695
    %v4703 = vpow.pop %v4702
    %v4704 = vmul.f32 %v4598, 1.442695
    %v4705 = vpow.pop %v4704
    %v4706 = vmul.f32 %v4599, 1.442695
    %v4707 = vpow.pop %v4706
    %v4708 = vmul.f32 %v4600, 1.442695
    %v4709 = vpow.pop %v4708
    %v4710 = vmul.f32 %v4601, 1.442695
    %v4711 = vpow.pop %v4710
    %v4712 = vmul.f32 %v4602, 1.442695
    %v4713 = vpow.pop %v4712
    %v4714 = vmul.f32 %v4603, 1.442695
    %v4715 = vpow.pop %v4714
    %v4716 = vmul.f32 %v4604, 1.442695
    %v4717 = vpow.pop %v4716
    %v4718 = vmul.f32 %v4605, 1.442695
    %v4719 = vpow.pop %v4718
    %v4720 = vmul.f32 %v4606, 1.442695
    %v4721 = vpow.pop %v4720
    %v4722 = vmul.f32 %v4607, 1.442695
    %v4723 = vpow.pop %v4722
    %v4724 = vmul.f32 %v4608, 1.442695
    %v4725 = vpow.pop %v4724
    %v4726 = vmul.f32 %v4609, 1.442695
    %v4727 = vpow.pop %v4726
    %v4728 = vmul.f32 %v4610, 1.442695
    %v4729 = vpow.pop %v4728
    %v4730 = vmul.f32 %v4611, 1.442695
    %v4731 = vpow.pop %v4730
    %v4732 = vmul.f32 %v4612, 1.442695
    %v4733 = vpow.pop %v4732
    %v4734 = vmul.f32 %v4613, 1.442695
    %v4735 = vpow.pop %v4734
    %v4736 = vmul.f32 %v4614, 1.442695
    %v4737 = vpow.pop %v4736
    %v4738 = vmul.f32 %v4615, 1.442695
    %v4739 = vpow.pop %v4738
    %v4740 = vmul.f32 %v4616, 1.442695
    %v4741 = vpow.pop %v4740
    %v4742 = vmul.f32 %v4617, 1.442695
    %v4743 = vpow.pop %v4742
    %v4744 = vmul.f32 %v4618, 1.442695
    %v4745 = vpow.pop %v4744
    %v4746 = vmul.f32 %v4619, 1.442695
    %v4747 = vpow.pop %v4746
    %4748 = vadd.xlane.f32.xlu0 %v4621
    %v4749 = vpop.xlane.xlu0 %4748
    %4750 = vadd.xlane.f32.xlu0 %v4623
    %v4751 = vpop.xlane.xlu0 %4750
    %4752 = vadd.xlane.f32.xlu0 %v4625
    %v4753 = vpop.xlane.xlu0 %4752
    %4754 = vadd.xlane.f32.xlu0 %v4627
    %v4755 = vpop.xlane.xlu0 %4754
    %4756 = vadd.xlane.f32.xlu0 %v4629
    %v4757 = vpop.xlane.xlu0 %4756
    %4758 = vadd.xlane.f32.xlu0 %v4631
    %v4759 = vpop.xlane.xlu0 %4758
    %4760 = vadd.xlane.f32.xlu0 %v4633
    %v4761 = vpop.xlane.xlu0 %4760
    %4762 = vadd.xlane.f32.xlu0 %v4635
    %v4763 = vpop.xlane.xlu0 %4762
    %4764 = vadd.xlane.f32.xlu0 %v4637
    %v4765 = vpop.xlane.xlu0 %4764
    %4766 = vadd.xlane.f32.xlu0 %v4639
    %v4767 = vpop.xlane.xlu0 %4766
    %4768 = vadd.xlane.f32.xlu0 %v4641
    %v4769 = vpop.xlane.xlu0 %4768
    %4770 = vadd.xlane.f32.xlu0 %v4643
    %v4771 = vpop.xlane.xlu0 %4770
    %4772 = vadd.xlane.f32.xlu0 %v4645
    %v4773 = vpop.xlane.xlu0 %4772
    %4774 = vadd.xlane.f32.xlu0 %v4647
    %v4775 = vpop.xlane.xlu0 %4774
    %4776 = vadd.xlane.f32.xlu0 %v4649
    %v4777 = vpop.xlane.xlu0 %4776
    %4778 = vadd.xlane.f32.xlu0 %v4651
    %v4779 = vpop.xlane.xlu0 %4778
    %4780 = vadd.xlane.f32.xlu0 %v4653
    %v4781 = vpop.xlane.xlu0 %4780
    %4782 = vadd.xlane.f32.xlu0 %v4655
    %v4783 = vpop.xlane.xlu0 %4782
    %4784 = vadd.xlane.f32.xlu0 %v4657
    %v4785 = vpop.xlane.xlu0 %4784
    %4786 = vadd.xlane.f32.xlu0 %v4659
    %v4787 = vpop.xlane.xlu0 %4786
    %4788 = vadd.xlane.f32.xlu0 %v4661
    %v4789 = vpop.xlane.xlu0 %4788
    %4790 = vadd.xlane.f32.xlu0 %v4663
    %v4791 = vpop.xlane.xlu0 %4790
    %4792 = vadd.xlane.f32.xlu0 %v4665
    %v4793 = vpop.xlane.xlu0 %4792
    %4794 = vadd.xlane.f32.xlu0 %v4667
    %v4795 = vpop.xlane.xlu0 %4794
    %4796 = vadd.xlane.f32.xlu0 %v4669
    %v4797 = vpop.xlane.xlu0 %4796
    %4798 = vadd.xlane.f32.xlu0 %v4671
    %v4799 = vpop.xlane.xlu0 %4798
    %4800 = vadd.xlane.f32.xlu0 %v4673
    %v4801 = vpop.xlane.xlu0 %4800
    %4802 = vadd.xlane.f32.xlu0 %v4675
    %v4803 = vpop.xlane.xlu0 %4802
    %4804 = vadd.xlane.f32.xlu0 %v4677
    %v4805 = vpop.xlane.xlu0 %4804
    %4806 = vadd.xlane.f32.xlu0 %v4679
    %v4807 = vpop.xlane.xlu0 %4806
    %4808 = vadd.xlane.f32.xlu0 %v4681
    %v4809 = vpop.xlane.xlu0 %4808
    %4810 = vadd.xlane.f32.xlu0 %v4683
    %v4811 = vpop.xlane.xlu0 %4810
    %4812 = vadd.xlane.f32.xlu0 %v4685
    %v4813 = vpop.xlane.xlu0 %4812
    %4814 = vadd.xlane.f32.xlu0 %v4687
    %v4815 = vpop.xlane.xlu0 %4814
    %4816 = vadd.xlane.f32.xlu0 %v4689
    %v4817 = vpop.xlane.xlu0 %4816
    %4818 = vadd.xlane.f32.xlu0 %v4691
    %v4819 = vpop.xlane.xlu0 %4818
    %4820 = vadd.xlane.f32.xlu0 %v4693
    %v4821 = vpop.xlane.xlu0 %4820
    %4822 = vadd.xlane.f32.xlu0 %v4695
    %v4823 = vpop.xlane.xlu0 %4822
    %4824 = vadd.xlane.f32.xlu0 %v4697
    %v4825 = vpop.xlane.xlu0 %4824
    %4826 = vadd.xlane.f32.xlu0 %v4699
    %v4827 = vpop.xlane.xlu0 %4826
    %4828 = vadd.xlane.f32.xlu0 %v4701
    %v4829 = vpop.xlane.xlu0 %4828
    %4830 = vadd.xlane.f32.xlu0 %v4703
    %v4831 = vpop.xlane.xlu0 %4830
    %4832 = vadd.xlane.f32.xlu0 %v4705
    %v4833 = vpop.xlane.xlu0 %4832
    %4834 = vadd.xlane.f32.xlu0 %v4707
    %v4835 = vpop.xlane.xlu0 %4834
    %4836 = vadd.xlane.f32.xlu0 %v4709
    %v4837 = vpop.xlane.xlu0 %4836
    %4838 = vadd.xlane.f32.xlu0 %v4711
    %v4839 = vpop.xlane.xlu0 %4838
    %4840 = vadd.xlane.f32.xlu0 %v4713
    %v4841 = vpop.xlane.xlu0 %4840
    %4842 = vadd.xlane.f32.xlu0 %v4715
    %v4843 = vpop.xlane.xlu0 %4842
    %4844 = vadd.xlane.f32.xlu0 %v4717
    %v4845 = vpop.xlane.xlu0 %4844
    %4846 = vadd.xlane.f32.xlu0 %v4719
    %v4847 = vpop.xlane.xlu0 %4846
    %4848 = vadd.xlane.f32.xlu0 %v4721
    %v4849 = vpop.xlane.xlu0 %4848
    %4850 = vadd.xlane.f32.xlu0 %v4723
    %v4851 = vpop.xlane.xlu0 %4850
    %4852 = vadd.xlane.f32.xlu0 %v4725
    %v4853 = vpop.xlane.xlu0 %4852
    %4854 = vadd.xlane.f32.xlu0 %v4727
    %v4855 = vpop.xlane.xlu0 %4854
    %4856 = vadd.xlane.f32.xlu0 %v4729
    %v4857 = vpop.xlane.xlu0 %4856
    %4858 = vadd.xlane.f32.xlu0 %v4731
    %v4859 = vpop.xlane.xlu0 %4858
    %4860 = vadd.xlane.f32.xlu0 %v4733
    %v4861 = vpop.xlane.xlu0 %4860
    %4862 = vadd.xlane.f32.xlu0 %v4735
    %v4863 = vpop.xlane.xlu0 %4862
    %4864 = vadd.xlane.f32.xlu0 %v4737
    %v4865 = vpop.xlane.xlu0 %4864
    %4866 = vadd.xlane.f32.xlu0 %v4739
    %v4867 = vpop.xlane.xlu0 %4866
    %4868 = vadd.xlane.f32.xlu0 %v4741
    %v4869 = vpop.xlane.xlu0 %4868
    %4870 = vadd.xlane.f32.xlu0 %v4743
    %v4871 = vpop.xlane.xlu0 %4870
    %4872 = vadd.xlane.f32.xlu0 %v4745
    %v4873 = vpop.xlane.xlu0 %4872
    %4874 = vadd.xlane.f32.xlu0 %v4747
    %v4875 = vpop.xlane.xlu0 %4874
    %v4876 = vrcp.pop %v4749
    %v4877 = vrcp.pop %v4751
    %v4878 = vrcp.pop %v4753
    %v4879 = vrcp.pop %v4755
    %v4880 = vrcp.pop %v4757
    %v4881 = vrcp.pop %v4759
    %v4882 = vrcp.pop %v4761
    %v4883 = vrcp.pop %v4763
    %v4884 = vrcp.pop %v4765
    %v4885 = vrcp.pop %v4767
    %v4886 = vrcp.pop %v4769
    %v4887 = vrcp.pop %v4771
    %v4888 = vrcp.pop %v4773
    %v4889 = vrcp.pop %v4775
    %v4890 = vrcp.pop %v4777
    %v4891 = vrcp.pop %v4779
    %v4892 = vrcp.pop %v4781
    %v4893 = vrcp.pop %v4783
    %v4894 = vrcp.pop %v4785
    %v4895 = vrcp.pop %v4787
    %v4896 = vrcp.pop %v4789
    %v4897 = vrcp.pop %v4791
    %v4898 = vrcp.pop %v4793
    %v4899 = vrcp.pop %v4795
    %v4900 = vrcp.pop %v4797
    %v4901 = vrcp.pop %v4799
    %v4902 = vrcp.pop %v4801
    %v4903 = vrcp.pop %v4803
    %v4904 = vrcp.pop %v4805
    %v4905 = vrcp.pop %v4807
    %v4906 = vrcp.pop %v4809
    %v4907 = vrcp.pop %v4811
    %v4908 = vrcp.pop %v4813
    %v4909 = vrcp.pop %v4815
    %v4910 = vrcp.pop %v4817
    %v4911 = vrcp.pop %v4819
    %v4912 = vrcp.pop %v4821
    %v4913 = vrcp.pop %v4823
    %v4914 = vrcp.pop %v4825
    %v4915 = vrcp.pop %v4827
    %v4916 = vrcp.pop %v4829
    %v4917 = vrcp.pop %v4831
    %v4918 = vrcp.pop %v4833
    %v4919 = vrcp.pop %v4835
    %v4920 = vrcp.pop %v4837
    %v4921 = vrcp.pop %v4839
    %v4922 = vrcp.pop %v4841
    %v4923 = vrcp.pop %v4843
    %v4924 = vrcp.pop %v4845
    %v4925 = vrcp.pop %v4847
    %v4926 = vrcp.pop %v4849
    %v4927 = vrcp.pop %v4851
    %v4928 = vrcp.pop %v4853
    %v4929 = vrcp.pop %v4855
    %v4930 = vrcp.pop %v4857
    %v4931 = vrcp.pop %v4859
    %v4932 = vrcp.pop %v4861
    %v4933 = vrcp.pop %v4863
    %v4934 = vrcp.pop %v4865
    %v4935 = vrcp.pop %v4867
    %v4936 = vrcp.pop %v4869
    %v4937 = vrcp.pop %v4871
    %v4938 = vrcp.pop %v4873
    %v4939 = vrcp.pop %v4875
    %v4940 = vmul.f32 %v4621, %v4876
    %v4941 = vmul.f32 %v4623, %v4877
    %v4942 = vmul.f32 %v4625, %v4878
    %v4943 = vmul.f32 %v4627, %v4879
    %v4944 = vmul.f32 %v4629, %v4880
    %v4945 = vmul.f32 %v4631, %v4881
    %v4946 = vmul.f32 %v4633, %v4882
    %v4947 = vmul.f32 %v4635, %v4883
    %v4948 = vmul.f32 %v4637, %v4884
    %v4949 = vmul.f32 %v4639, %v4885
    %v4950 = vmul.f32 %v4641, %v4886
    %v4951 = vmul.f32 %v4643, %v4887
    %v4952 = vmul.f32 %v4645, %v4888
    %v4953 = vmul.f32 %v4647, %v4889
    %v4954 = vmul.f32 %v4649, %v4890
    %v4955 = vmul.f32 %v4651, %v4891
    %v4956 = vmul.f32 %v4653, %v4892
    %v4957 = vmul.f32 %v4655, %v4893
    %v4958 = vmul.f32 %v4657, %v4894
    %v4959 = vmul.f32 %v4659, %v4895
    %v4960 = vmul.f32 %v4661, %v4896
    %v4961 = vmul.f32 %v4663, %v4897
    %v4962 = vmul.f32 %v4665, %v4898
    %v4963 = vmul.f32 %v4667, %v4899
    %v4964 = vmul.f32 %v4669, %v4900
    %v4965 = vmul.f32 %v4671, %v4901
    %v4966 = vmul.f32 %v4673, %v4902
    %v4967 = vmul.f32 %v4675, %v4903
    %v4968 = vmul.f32 %v4677, %v4904
    %v4969 = vmul.f32 %v4679, %v4905
    %v4970 = vmul.f32 %v4681, %v4906
    %v4971 = vmul.f32 %v4683, %v4907
    %v4972 = vmul.f32 %v4685, %v4908
    %v4973 = vmul.f32 %v4687, %v4909
    %v4974 = vmul.f32 %v4689, %v4910
    %v4975 = vmul.f32 %v4691, %v4911
    %v4976 = vmul.f32 %v4693, %v4912
    %v4977 = vmul.f32 %v4695, %v4913
    %v4978 = vmul.f32 %v4697, %v4914
    %v4979 = vmul.f32 %v4699, %v4915
    %v4980 = vmul.f32 %v4701, %v4916
    %v4981 = vmul.f32 %v4703, %v4917
    %v4982 = vmul.f32 %v4705, %v4918
    %v4983 = vmul.f32 %v4707, %v4919
    %v4984 = vmul.f32 %v4709, %v4920
    %v4985 = vmul.f32 %v4711, %v4921
    %v4986 = vmul.f32 %v4713, %v4922
    %v4987 = vmul.f32 %v4715, %v4923
    %v4988 = vmul.f32 %v4717, %v4924
    %v4989 = vmul.f32 %v4719, %v4925
    %v4990 = vmul.f32 %v4721, %v4926
    %v4991 = vmul.f32 %v4723, %v4927
    %v4992 = vmul.f32 %v4725, %v4928
    %v4993 = vmul.f32 %v4727, %v4929
    %v4994 = vmul.f32 %v4729, %v4930
    %v4995 = vmul.f32 %v4731, %v4931
    %v4996 = vmul.f32 %v4733, %v4932
    %v4997 = vmul.f32 %v4735, %v4933
    %v4998 = vmul.f32 %v4737, %v4934
    %v4999 = vmul.f32 %v4739, %v4935
    %v5000 = vmul.f32 %v4741, %v4936
    %v5001 = vmul.f32 %v4743, %v4937
    %v5002 = vmul.f32 %v4745, %v4938
    %v5003 = vmul.f32 %v4747, %v4939
    %v5004 = vpack.c.bf16 %v4940, %v4940
    %v5005 = vpack.c.bf16 %v4941, %v4941
    %v5006 = vpack.c.bf16 %v4942, %v4942
    %v5007 = vpack.c.bf16 %v4943, %v4943
    %v5008 = vpack.c.bf16 %v4944, %v4944
    %v5009 = vpack.c.bf16 %v4945, %v4945
    %v5010 = vpack.c.bf16 %v4946, %v4946
    %v5011 = vpack.c.bf16 %v4947, %v4947
    %v5012 = vpack.c.bf16 %v4948, %v4948
    %v5013 = vpack.c.bf16 %v4949, %v4949
    %v5014 = vpack.c.bf16 %v4950, %v4950
    %v5015 = vpack.c.bf16 %v4951, %v4951
    %v5016 = vpack.c.bf16 %v4952, %v4952
    %v5017 = vpack.c.bf16 %v4953, %v4953
    %v5018 = vpack.c.bf16 %v4954, %v4954
    %v5019 = vpack.c.bf16 %v4955, %v4955
    %v5020 = vpack.c.bf16 %v4956, %v4956
    %v5021 = vpack.c.bf16 %v4957, %v4957
    %v5022 = vpack.c.bf16 %v4958, %v4958
    %v5023 = vpack.c.bf16 %v4959, %v4959
    %v5024 = vpack.c.bf16 %v4960, %v4960
    %v5025 = vpack.c.bf16 %v4961, %v4961
    %v5026 = vpack.c.bf16 %v4962, %v4962
    %v5027 = vpack.c.bf16 %v4963, %v4963
    %v5028 = vpack.c.bf16 %v4964, %v4964
    %v5029 = vpack.c.bf16 %v4965, %v4965
    %v5030 = vpack.c.bf16 %v4966, %v4966
    %v5031 = vpack.c.bf16 %v4967, %v4967
    %v5032 = vpack.c.bf16 %v4968, %v4968
    %v5033 = vpack.c.bf16 %v4969, %v4969
    %v5034 = vpack.c.bf16 %v4970, %v4970
    %v5035 = vpack.c.bf16 %v4971, %v4971
    %v5036 = vpack.c.bf16 %v4972, %v4972
    %v5037 = vpack.c.bf16 %v4973, %v4973
    %v5038 = vpack.c.bf16 %v4974, %v4974
    %v5039 = vpack.c.bf16 %v4975, %v4975
    %v5040 = vpack.c.bf16 %v4976, %v4976
    %v5041 = vpack.c.bf16 %v4977, %v4977
    %v5042 = vpack.c.bf16 %v4978, %v4978
    %v5043 = vpack.c.bf16 %v4979, %v4979
    %v5044 = vpack.c.bf16 %v4980, %v4980
    %v5045 = vpack.c.bf16 %v4981, %v4981
    %v5046 = vpack.c.bf16 %v4982, %v4982
    %v5047 = vpack.c.bf16 %v4983, %v4983
    %v5048 = vpack.c.bf16 %v4984, %v4984
    %v5049 = vpack.c.bf16 %v4985, %v4985
    %v5050 = vpack.c.bf16 %v4986, %v4986
    %v5051 = vpack.c.bf16 %v4987, %v4987
    %v5052 = vpack.c.bf16 %v4988, %v4988
    %v5053 = vpack.c.bf16 %v4989, %v4989
    %v5054 = vpack.c.bf16 %v4990, %v4990
    %v5055 = vpack.c.bf16 %v4991, %v4991
    %v5056 = vpack.c.bf16 %v4992, %v4992
    %v5057 = vpack.c.bf16 %v4993, %v4993
    %v5058 = vpack.c.bf16 %v4994, %v4994
    %v5059 = vpack.c.bf16 %v4995, %v4995
    %v5060 = vpack.c.bf16 %v4996, %v4996
    %v5061 = vpack.c.bf16 %v4997, %v4997
    %v5062 = vpack.c.bf16 %v4998, %v4998
    %v5063 = vpack.c.bf16 %v4999, %v4999
    %v5064 = vpack.c.bf16 %v5000, %v5000
    %v5065 = vpack.c.bf16 %v5001, %v5001
    %v5066 = vpack.c.bf16 %v5002, %v5002
    %v5067 = vpack.c.bf16 %v5003, %v5003
    %v5084 = vunpack.c.l.b16 %v5004
    %v5085 = vunpack.c.l.b16 %v5005
    %v5086 = vunpack.c.l.b16 %v5006
    %v5087 = vunpack.c.l.b16 %v5007
    %v5088 = vunpack.c.l.b16 %v5008
    %v5089 = vunpack.c.l.b16 %v5009
    %v5090 = vunpack.c.l.b16 %v5010
    %v5091 = vunpack.c.l.b16 %v5011
    %v5092 = vunpack.c.l.b16 %v5012
    %v5093 = vunpack.c.l.b16 %v5013
    %v5094 = vunpack.c.l.b16 %v5014
    %v5095 = vunpack.c.l.b16 %v5015
    %v5096 = vunpack.c.l.b16 %v5016
    %v5097 = vunpack.c.l.b16 %v5017
    %v5098 = vunpack.c.l.b16 %v5018
    %v5099 = vunpack.c.l.b16 %v5019
    %v5100 = vpack.c.b16 %v5085, %v5084
    %v5101 = vpack.c.b16 %v5087, %v5086
    %v5102 = vpack.c.b16 %v5089, %v5088
    %v5103 = vpack.c.b16 %v5091, %v5090
    %v5104 = vpack.c.b16 %v5093, %v5092
    %v5105 = vpack.c.b16 %v5095, %v5094
    %v5106 = vpack.c.b16 %v5097, %v5096
    %v5107 = vpack.c.b16 %v5099, %v5098
    %5116 = vrot.lane.b32.xlu0 %v2126, 56
    %v5117 = vpop.permute.xlu0 %5116
    %5118 = vrot.lane.b32.xlu0 %v2127, 56
    %v5119 = vpop.permute.xlu0 %5118
    %5120 = vrot.lane.b32.xlu0 %v2128, 56
    %v5121 = vpop.permute.xlu0 %5120
    %5122 = vrot.lane.b32.xlu0 %v2129, 56
    %v5123 = vpop.permute.xlu0 %5122
    %5124 = vrot.lane.b32.xlu0 %v2130, 56
    %v5125 = vpop.permute.xlu0 %5124
    %5126 = vrot.lane.b32.xlu0 %v2131, 56
    %v5127 = vpop.permute.xlu0 %5126
    %5128 = vrot.lane.b32.xlu0 %v2132, 56
    %v5129 = vpop.permute.xlu0 %5128
    %5130 = vrot.lane.b32.xlu0 %v2133, 56
    %v5131 = vpop.permute.xlu0 %5130
    %5140 = vmatpush.bf16.msra.mxu0 %v5131
    %5141 = vmatpush.bf16.msra.mxu0 %v5129
    %5142 = vmatpush.bf16.msra.mxu0 %v5127
    %5143 = vmatpush.bf16.msra.mxu0 %v5125
    %5144 = vmatpush.bf16.msra.mxu0 %v5123
    %5145 = vmatpush.bf16.msra.mxu0 %v5121
    %5146 = vmatpush.bf16.msra.mxu0 %v5119
    %5147 = vmatpush.bf16.msra.mxu0 %v5117
    %5148 = vmatmul.bf16.gmra.mxu0 %v5100
    %v5149 = vpop.f32.mrf.mxu0
    %v5150 = vadd.f32 0.0, %v5149
    %v5151 = vpop.f32.mrf.mxu0
    %v5152 = vadd.f32 0.0, %v5151
    %5153 = vmatmul.bf16.gmra.mxu0 %v5101
    %v5154 = vpop.f32.mrf.mxu0
    %v5155 = vadd.f32 0.0, %v5154
    %v5156 = vpop.f32.mrf.mxu0
    %v5157 = vadd.f32 0.0, %v5156
    %5158 = vmatmul.bf16.gmra.mxu0 %v5102
    %v5159 = vpop.f32.mrf.mxu0
    %v5160 = vadd.f32 0.0, %v5159
    %v5161 = vpop.f32.mrf.mxu0
    %v5162 = vadd.f32 0.0, %v5161
    %5163 = vmatmul.bf16.gmra.mxu0 %v5103
    %v5164 = vpop.f32.mrf.mxu0
    %v5165 = vadd.f32 0.0, %v5164
    %v5166 = vpop.f32.mrf.mxu0
    %v5167 = vadd.f32 0.0, %v5166
    %5168 = vmatmul.bf16.gmra.mxu0 %v5104
    %v5169 = vpop.f32.mrf.mxu0
    %v5170 = vadd.f32 0.0, %v5169
    %v5171 = vpop.f32.mrf.mxu0
    %v5172 = vadd.f32 0.0, %v5171
    %5173 = vmatmul.bf16.gmra.mxu0 %v5105
    %v5174 = vpop.f32.mrf.mxu0
    %v5175 = vadd.f32 0.0, %v5174
    %v5176 = vpop.f32.mrf.mxu0
    %v5177 = vadd.f32 0.0, %v5176
    %5178 = vmatmul.bf16.gmra.mxu0 %v5106
    %v5179 = vpop.f32.mrf.mxu0
    %v5180 = vadd.f32 0.0, %v5179
    %v5181 = vpop.f32.mrf.mxu0
    %v5182 = vadd.f32 0.0, %v5181
    %5183 = vmatmul.bf16.gmra.mxu0 %v5107
    %v5184 = vpop.f32.mrf.mxu0
    %v5185 = vadd.f32 0.0, %v5184
    %v5186 = vpop.f32.mrf.mxu0
    %v5187 = vadd.f32 0.0, %v5186
    %5188 = vdwg.mxu0
    %v5205 = vunpack.c.l.b16 %v5020
    %v5206 = vunpack.c.l.b16 %v5021
    %v5207 = vunpack.c.l.b16 %v5022
    %v5208 = vunpack.c.l.b16 %v5023
    %v5209 = vunpack.c.l.b16 %v5024
    %v5210 = vunpack.c.l.b16 %v5025
    %v5211 = vunpack.c.l.b16 %v5026
    %v5212 = vunpack.c.l.b16 %v5027
    %v5213 = vunpack.c.l.b16 %v5028
    %v5214 = vunpack.c.l.b16 %v5029
    %v5215 = vunpack.c.l.b16 %v5030
    %v5216 = vunpack.c.l.b16 %v5031
    %v5217 = vunpack.c.l.b16 %v5032
    %v5218 = vunpack.c.l.b16 %v5033
    %v5219 = vunpack.c.l.b16 %v5034
    %v5220 = vunpack.c.l.b16 %v5035
    %v5221 = vpack.c.b16 %v5206, %v5205
    %v5222 = vpack.c.b16 %v5208, %v5207
    %v5223 = vpack.c.b16 %v5210, %v5209
    %v5224 = vpack.c.b16 %v5212, %v5211
    %v5225 = vpack.c.b16 %v5214, %v5213
    %v5226 = vpack.c.b16 %v5216, %v5215
    %v5227 = vpack.c.b16 %v5218, %v5217
    %v5228 = vpack.c.b16 %v5220, %v5219
    %5237 = vrot.lane.b32.xlu0 %v2280, 56
    %v5238 = vpop.permute.xlu0 %5237
    %5239 = vrot.lane.b32.xlu0 %v2281, 56
    %v5240 = vpop.permute.xlu0 %5239
    %5241 = vrot.lane.b32.xlu0 %v2282, 56
    %v5242 = vpop.permute.xlu0 %5241
    %5243 = vrot.lane.b32.xlu0 %v2283, 56
    %v5244 = vpop.permute.xlu0 %5243
    %5245 = vrot.lane.b32.xlu0 %v2284, 56
    %v5246 = vpop.permute.xlu0 %5245
    %5247 = vrot.lane.b32.xlu0 %v2285, 56
    %v5248 = vpop.permute.xlu0 %5247
    %5249 = vrot.lane.b32.xlu0 %v2286, 56
    %v5250 = vpop.permute.xlu0 %5249
    %5251 = vrot.lane.b32.xlu0 %v2287, 56
    %v5252 = vpop.permute.xlu0 %5251
    %5261 = vmatpush.bf16.msra.mxu0 %v5252
    %5262 = vmatpush.bf16.msra.mxu0 %v5250
    %5263 = vmatpush.bf16.msra.mxu0 %v5248
    %5264 = vmatpush.bf16.msra.mxu0 %v5246
    %5265 = vmatpush.bf16.msra.mxu0 %v5244
    %5266 = vmatpush.bf16.msra.mxu0 %v5242
    %5267 = vmatpush.bf16.msra.mxu0 %v5240
    %5268 = vmatpush.bf16.msra.mxu0 %v5238
    %5269 = vmatmul.bf16.gmra.mxu0 %v5221
    %v5270 = vpop.f32.mrf.mxu0
    %v5271 = vadd.f32 0.0, %v5270
    %v5272 = vpop.f32.mrf.mxu0
    %v5273 = vadd.f32 0.0, %v5272
    %5274 = vmatmul.bf16.gmra.mxu0 %v5222
    %v5275 = vpop.f32.mrf.mxu0
    %v5276 = vadd.f32 0.0, %v5275
    %v5277 = vpop.f32.mrf.mxu0
    %v5278 = vadd.f32 0.0, %v5277
    %5279 = vmatmul.bf16.gmra.mxu0 %v5223
    %v5280 = vpop.f32.mrf.mxu0
    %v5281 = vadd.f32 0.0, %v5280
    %v5282 = vpop.f32.mrf.mxu0
    %v5283 = vadd.f32 0.0, %v5282
    %5284 = vmatmul.bf16.gmra.mxu0 %v5224
    %v5285 = vpop.f32.mrf.mxu0
    %v5286 = vadd.f32 0.0, %v5285
    %v5287 = vpop.f32.mrf.mxu0
    %v5288 = vadd.f32 0.0, %v5287
    %5289 = vmatmul.bf16.gmra.mxu0 %v5225
    %v5290 = vpop.f32.mrf.mxu0
    %v5291 = vadd.f32 0.0, %v5290
    %v5292 = vpop.f32.mrf.mxu0
    %v5293 = vadd.f32 0.0, %v5292
    %5294 = vmatmul.bf16.gmra.mxu0 %v5226
    %v5295 = vpop.f32.mrf.mxu0
    %v5296 = vadd.f32 0.0, %v5295
    %v5297 = vpop.f32.mrf.mxu0
    %v5298 = vadd.f32 0.0, %v5297
    %5299 = vmatmul.bf16.gmra.mxu0 %v5227
    %v5300 = vpop.f32.mrf.mxu0
    %v5301 = vadd.f32 0.0, %v5300
    %v5302 = vpop.f32.mrf.mxu0
    %v5303 = vadd.f32 0.0, %v5302
    %5304 = vmatmul.bf16.gmra.mxu0 %v5228
    %v5305 = vpop.f32.mrf.mxu0
    %v5306 = vadd.f32 0.0, %v5305
    %v5307 = vpop.f32.mrf.mxu0
    %v5308 = vadd.f32 0.0, %v5307
    %5309 = vdwg.mxu0
    %v5326 = vunpack.c.l.b16 %v5036
    %v5327 = vunpack.c.l.b16 %v5037
    %v5328 = vunpack.c.l.b16 %v5038
    %v5329 = vunpack.c.l.b16 %v5039
    %v5330 = vunpack.c.l.b16 %v5040
    %v5331 = vunpack.c.l.b16 %v5041
    %v5332 = vunpack.c.l.b16 %v5042
    %v5333 = vunpack.c.l.b16 %v5043
    %v5334 = vunpack.c.l.b16 %v5044
    %v5335 = vunpack.c.l.b16 %v5045
    %v5336 = vunpack.c.l.b16 %v5046
    %v5337 = vunpack.c.l.b16 %v5047
    %v5338 = vunpack.c.l.b16 %v5048
    %v5339 = vunpack.c.l.b16 %v5049
    %v5340 = vunpack.c.l.b16 %v5050
    %v5341 = vunpack.c.l.b16 %v5051
    %v5342 = vpack.c.b16 %v5327, %v5326
    %v5343 = vpack.c.b16 %v5329, %v5328
    %v5344 = vpack.c.b16 %v5331, %v5330
    %v5345 = vpack.c.b16 %v5333, %v5332
    %v5346 = vpack.c.b16 %v5335, %v5334
    %v5347 = vpack.c.b16 %v5337, %v5336
    %v5348 = vpack.c.b16 %v5339, %v5338
    %v5349 = vpack.c.b16 %v5341, %v5340
    %5358 = vrot.lane.b32.xlu0 %v2433, 56
    %v5359 = vpop.permute.xlu0 %5358
    %5360 = vrot.lane.b32.xlu0 %v2434, 56
    %v5361 = vpop.permute.xlu0 %5360
    %5362 = vrot.lane.b32.xlu0 %v2435, 56
    %v5363 = vpop.permute.xlu0 %5362
    %5364 = vrot.lane.b32.xlu0 %v2436, 56
    %v5365 = vpop.permute.xlu0 %5364
    %5366 = vrot.lane.b32.xlu0 %v2437, 56
    %v5367 = vpop.permute.xlu0 %5366
    %5368 = vrot.lane.b32.xlu0 %v2438, 56
    %v5369 = vpop.permute.xlu0 %5368
    %5370 = vrot.lane.b32.xlu0 %v2439, 56
    %v5371 = vpop.permute.xlu0 %5370
    %5372 = vrot.lane.b32.xlu0 %v2440, 56
    %v5373 = vpop.permute.xlu0 %5372
    %5382 = vmatpush.bf16.msra.mxu0 %v5373
    %5383 = vmatpush.bf16.msra.mxu0 %v5371
    %5384 = vmatpush.bf16.msra.mxu0 %v5369
    %5385 = vmatpush.bf16.msra.mxu0 %v5367
    %5386 = vmatpush.bf16.msra.mxu0 %v5365
    %5387 = vmatpush.bf16.msra.mxu0 %v5363
    %5388 = vmatpush.bf16.msra.mxu0 %v5361
    %5389 = vmatpush.bf16.msra.mxu0 %v5359
    %5390 = vmatmul.bf16.gmra.mxu0 %v5342
    %v5391 = vpop.f32.mrf.mxu0
    %v5392 = vadd.f32 0.0, %v5391
    %v5393 = vpop.f32.mrf.mxu0
    %v5394 = vadd.f32 0.0, %v5393
    %5395 = vmatmul.bf16.gmra.mxu0 %v5343
    %v5396 = vpop.f32.mrf.mxu0
    %v5397 = vadd.f32 0.0, %v5396
    %v5398 = vpop.f32.mrf.mxu0
    %v5399 = vadd.f32 0.0, %v5398
    %5400 = vmatmul.bf16.gmra.mxu0 %v5344
    %v5401 = vpop.f32.mrf.mxu0
    %v5402 = vadd.f32 0.0, %v5401
    %v5403 = vpop.f32.mrf.mxu0
    %v5404 = vadd.f32 0.0, %v5403
    %5405 = vmatmul.bf16.gmra.mxu0 %v5345
    %v5406 = vpop.f32.mrf.mxu0
    %v5407 = vadd.f32 0.0, %v5406
    %v5408 = vpop.f32.mrf.mxu0
    %v5409 = vadd.f32 0.0, %v5408
    %5410 = vmatmul.bf16.gmra.mxu0 %v5346
    %v5411 = vpop.f32.mrf.mxu0
    %v5412 = vadd.f32 0.0, %v5411
    %v5413 = vpop.f32.mrf.mxu0
    %v5414 = vadd.f32 0.0, %v5413
    %5415 = vmatmul.bf16.gmra.mxu0 %v5347
    %v5416 = vpop.f32.mrf.mxu0
    %v5417 = vadd.f32 0.0, %v5416
    %v5418 = vpop.f32.mrf.mxu0
    %v5419 = vadd.f32 0.0, %v5418
    %5420 = vmatmul.bf16.gmra.mxu0 %v5348
    %v5421 = vpop.f32.mrf.mxu0
    %v5422 = vadd.f32 0.0, %v5421
    %v5423 = vpop.f32.mrf.mxu0
    %v5424 = vadd.f32 0.0, %v5423
    %5425 = vmatmul.bf16.gmra.mxu0 %v5349
    %v5426 = vpop.f32.mrf.mxu0
    %v5427 = vadd.f32 0.0, %v5426
    %v5428 = vpop.f32.mrf.mxu0
    %v5429 = vadd.f32 0.0, %v5428
    %5430 = vdwg.mxu0
    %v5447 = vunpack.c.l.b16 %v5052
    %v5448 = vunpack.c.l.b16 %v5053
    %v5449 = vunpack.c.l.b16 %v5054
    %v5450 = vunpack.c.l.b16 %v5055
    %v5451 = vunpack.c.l.b16 %v5056
    %v5452 = vunpack.c.l.b16 %v5057
    %v5453 = vunpack.c.l.b16 %v5058
    %v5454 = vunpack.c.l.b16 %v5059
    %v5455 = vunpack.c.l.b16 %v5060
    %v5456 = vunpack.c.l.b16 %v5061
    %v5457 = vunpack.c.l.b16 %v5062
    %v5458 = vunpack.c.l.b16 %v5063
    %v5459 = vunpack.c.l.b16 %v5064
    %v5460 = vunpack.c.l.b16 %v5065
    %v5461 = vunpack.c.l.b16 %v5066
    %v5462 = vunpack.c.l.b16 %v5067
    %v5463 = vpack.c.b16 %v5448, %v5447
    %v5464 = vpack.c.b16 %v5450, %v5449
    %v5465 = vpack.c.b16 %v5452, %v5451
    %v5466 = vpack.c.b16 %v5454, %v5453
    %v5467 = vpack.c.b16 %v5456, %v5455
    %v5468 = vpack.c.b16 %v5458, %v5457
    %v5469 = vpack.c.b16 %v5460, %v5459
    %v5470 = vpack.c.b16 %v5462, %v5461
    %5479 = vrot.lane.b32.xlu0 %v2586, 56
    %v5480 = vpop.permute.xlu0 %5479
    %5481 = vrot.lane.b32.xlu0 %v2587, 56
    %v5482 = vpop.permute.xlu0 %5481
    %5483 = vrot.lane.b32.xlu0 %v2588, 56
    %v5484 = vpop.permute.xlu0 %5483
    %5485 = vrot.lane.b32.xlu0 %v2589, 56
    %v5486 = vpop.permute.xlu0 %5485
    %5487 = vrot.lane.b32.xlu0 %v2590, 56
    %v5488 = vpop.permute.xlu0 %5487
    %5489 = vrot.lane.b32.xlu0 %v2591, 56
    %v5490 = vpop.permute.xlu0 %5489
    %5491 = vrot.lane.b32.xlu0 %v2592, 56
    %v5492 = vpop.permute.xlu0 %5491
    %5493 = vrot.lane.b32.xlu0 %v2593, 56
    %v5494 = vpop.permute.xlu0 %5493
    %5503 = vmatpush.bf16.msra.mxu0 %v5494
    %5504 = vmatpush.bf16.msra.mxu0 %v5492
    %5505 = vmatpush.bf16.msra.mxu0 %v5490
    %5506 = vmatpush.bf16.msra.mxu0 %v5488
    %5507 = vmatpush.bf16.msra.mxu0 %v5486
    %5508 = vmatpush.bf16.msra.mxu0 %v5484
    %5509 = vmatpush.bf16.msra.mxu0 %v5482
    %5510 = vmatpush.bf16.msra.mxu0 %v5480
    %5511 = vmatmul.bf16.gmra.mxu0 %v5463
    %v5512 = vpop.f32.mrf.mxu0
    %v5513 = vadd.f32 0.0, %v5512
    %v5514 = vpop.f32.mrf.mxu0
    %v5515 = vadd.f32 0.0, %v5514
    %5516 = vmatmul.bf16.gmra.mxu0 %v5464
    %v5517 = vpop.f32.mrf.mxu0
    %v5518 = vadd.f32 0.0, %v5517
    %v5519 = vpop.f32.mrf.mxu0
    %v5520 = vadd.f32 0.0, %v5519
    %5521 = vmatmul.bf16.gmra.mxu0 %v5465
    %v5522 = vpop.f32.mrf.mxu0
    %v5523 = vadd.f32 0.0, %v5522
    %v5524 = vpop.f32.mrf.mxu0
    %v5525 = vadd.f32 0.0, %v5524
    %5526 = vmatmul.bf16.gmra.mxu0 %v5466
    %v5527 = vpop.f32.mrf.mxu0
    %v5528 = vadd.f32 0.0, %v5527
    %v5529 = vpop.f32.mrf.mxu0
    %v5530 = vadd.f32 0.0, %v5529
    %5531 = vmatmul.bf16.gmra.mxu0 %v5467
    %v5532 = vpop.f32.mrf.mxu0
    %v5533 = vadd.f32 0.0, %v5532
    %v5534 = vpop.f32.mrf.mxu0
    %v5535 = vadd.f32 0.0, %v5534
    %5536 = vmatmul.bf16.gmra.mxu0 %v5468
    %v5537 = vpop.f32.mrf.mxu0
    %v5538 = vadd.f32 0.0, %v5537
    %v5539 = vpop.f32.mrf.mxu0
    %v5540 = vadd.f32 0.0, %v5539
    %5541 = vmatmul.bf16.gmra.mxu0 %v5469
    %v5542 = vpop.f32.mrf.mxu0
    %v5543 = vadd.f32 0.0, %v5542
    %v5544 = vpop.f32.mrf.mxu0
    %v5545 = vadd.f32 0.0, %v5544
    %5546 = vmatmul.bf16.gmra.mxu0 %v5470
    %v5547 = vpop.f32.mrf.mxu0
    %v5548 = vadd.f32 0.0, %v5547
    %v5549 = vpop.f32.mrf.mxu0
    %v5550 = vadd.f32 0.0, %v5549
    %5551 = vdwg.mxu0
    %5616 = vrot.lane.b32.xlu0 %v5150, 8
    %v5617 = vpop.permute.xlu0 %5616
    %5618 = vrot.lane.b32.xlu0 %v5152, 8
    %v5619 = vpop.permute.xlu0 %5618
    %5620 = vrot.lane.b32.xlu0 %v5155, 8
    %v5621 = vpop.permute.xlu0 %5620
    %5622 = vrot.lane.b32.xlu0 %v5157, 8
    %v5623 = vpop.permute.xlu0 %5622
    %5624 = vrot.lane.b32.xlu0 %v5160, 8
    %v5625 = vpop.permute.xlu0 %5624
    %5626 = vrot.lane.b32.xlu0 %v5162, 8
    %v5627 = vpop.permute.xlu0 %5626
    %5628 = vrot.lane.b32.xlu0 %v5165, 8
    %v5629 = vpop.permute.xlu0 %5628
    %5630 = vrot.lane.b32.xlu0 %v5167, 8
    %v5631 = vpop.permute.xlu0 %5630
    %5632 = vrot.lane.b32.xlu0 %v5170, 8
    %v5633 = vpop.permute.xlu0 %5632
    %5634 = vrot.lane.b32.xlu0 %v5172, 8
    %v5635 = vpop.permute.xlu0 %5634
    %5636 = vrot.lane.b32.xlu0 %v5175, 8
    %v5637 = vpop.permute.xlu0 %5636
    %5638 = vrot.lane.b32.xlu0 %v5177, 8
    %v5639 = vpop.permute.xlu0 %5638
    %5640 = vrot.lane.b32.xlu0 %v5180, 8
    %v5641 = vpop.permute.xlu0 %5640
    %5642 = vrot.lane.b32.xlu0 %v5182, 8
    %v5643 = vpop.permute.xlu0 %5642
    %5644 = vrot.lane.b32.xlu0 %v5185, 8
    %v5645 = vpop.permute.xlu0 %5644
    %5646 = vrot.lane.b32.xlu0 %v5187, 8
    %v5647 = vpop.permute.xlu0 %5646
    %5648 = vrot.lane.b32.xlu0 %v5271, 8
    %v5649 = vpop.permute.xlu0 %5648
    %5650 = vrot.lane.b32.xlu0 %v5273, 8
    %v5651 = vpop.permute.xlu0 %5650
    %5652 = vrot.lane.b32.xlu0 %v5276, 8
    %v5653 = vpop.permute.xlu0 %5652
    %5654 = vrot.lane.b32.xlu0 %v5278, 8
    %v5655 = vpop.permute.xlu0 %5654
    %5656 = vrot.lane.b32.xlu0 %v5281, 8
    %v5657 = vpop.permute.xlu0 %5656
    %5658 = vrot.lane.b32.xlu0 %v5283, 8
    %v5659 = vpop.permute.xlu0 %5658
    %5660 = vrot.lane.b32.xlu0 %v5286, 8
    %v5661 = vpop.permute.xlu0 %5660
    %5662 = vrot.lane.b32.xlu0 %v5288, 8
    %v5663 = vpop.permute.xlu0 %5662
    %5664 = vrot.lane.b32.xlu0 %v5291, 8
    %v5665 = vpop.permute.xlu0 %5664
    %5666 = vrot.lane.b32.xlu0 %v5293, 8
    %v5667 = vpop.permute.xlu0 %5666
    %5668 = vrot.lane.b32.xlu0 %v5296, 8
    %v5669 = vpop.permute.xlu0 %5668
    %5670 = vrot.lane.b32.xlu0 %v5298, 8
    %v5671 = vpop.permute.xlu0 %5670
    %5672 = vrot.lane.b32.xlu0 %v5301, 8
    %v5673 = vpop.permute.xlu0 %5672
    %5674 = vrot.lane.b32.xlu0 %v5303, 8
    %v5675 = vpop.permute.xlu0 %5674
    %5676 = vrot.lane.b32.xlu0 %v5306, 8
    %v5677 = vpop.permute.xlu0 %5676
    %5678 = vrot.lane.b32.xlu0 %v5308, 8
    %v5679 = vpop.permute.xlu0 %5678
    %5680 = vrot.lane.b32.xlu0 %v5392, 8
    %v5681 = vpop.permute.xlu0 %5680
    %5682 = vrot.lane.b32.xlu0 %v5394, 8
    %v5683 = vpop.permute.xlu0 %5682
    %5684 = vrot.lane.b32.xlu0 %v5397, 8
    %v5685 = vpop.permute.xlu0 %5684
    %5686 = vrot.lane.b32.xlu0 %v5399, 8
    %v5687 = vpop.permute.xlu0 %5686
    %5688 = vrot.lane.b32.xlu0 %v5402, 8
    %v5689 = vpop.permute.xlu0 %5688
    %5690 = vrot.lane.b32.xlu0 %v5404, 8
    %v5691 = vpop.permute.xlu0 %5690
    %5692 = vrot.lane.b32.xlu0 %v5407, 8
    %v5693 = vpop.permute.xlu0 %5692
    %5694 = vrot.lane.b32.xlu0 %v5409, 8
    %v5695 = vpop.permute.xlu0 %5694
    %5696 = vrot.lane.b32.xlu0 %v5412, 8
    %v5697 = vpop.permute.xlu0 %5696
    %5698 = vrot.lane.b32.xlu0 %v5414, 8
    %v5699 = vpop.permute.xlu0 %5698
    %5700 = vrot.lane.b32.xlu0 %v5417, 8
    %v5701 = vpop.permute.xlu0 %5700
    %5702 = vrot.lane.b32.xlu0 %v5419, 8
    %v5703 = vpop.permute.xlu0 %5702
    %5704 = vrot.lane.b32.xlu0 %v5422, 8
    %v5705 = vpop.permute.xlu0 %5704
    %5706 = vrot.lane.b32.xlu0 %v5424, 8
    %v5707 = vpop.permute.xlu0 %5706
    %5708 = vrot.lane.b32.xlu0 %v5427, 8
    %v5709 = vpop.permute.xlu0 %5708
    %5710 = vrot.lane.b32.xlu0 %v5429, 8
    %v5711 = vpop.permute.xlu0 %5710
    %5712 = vrot.lane.b32.xlu0 %v5513, 8
    %v5713 = vpop.permute.xlu0 %5712
    %5714 = vrot.lane.b32.xlu0 %v5515, 8
    %v5715 = vpop.permute.xlu0 %5714
    %5716 = vrot.lane.b32.xlu0 %v5518, 8
    %v5717 = vpop.permute.xlu0 %5716
    %5718 = vrot.lane.b32.xlu0 %v5520, 8
    %v5719 = vpop.permute.xlu0 %5718
    %5720 = vrot.lane.b32.xlu0 %v5523, 8
    %v5721 = vpop.permute.xlu0 %5720
    %5722 = vrot.lane.b32.xlu0 %v5525, 8
    %v5723 = vpop.permute.xlu0 %5722
    %5724 = vrot.lane.b32.xlu0 %v5528, 8
    %v5725 = vpop.permute.xlu0 %5724
    %5726 = vrot.lane.b32.xlu0 %v5530, 8
    %v5727 = vpop.permute.xlu0 %5726
    %5728 = vrot.lane.b32.xlu0 %v5533, 8
    %v5729 = vpop.permute.xlu0 %5728
    %5730 = vrot.lane.b32.xlu0 %v5535, 8
    %v5731 = vpop.permute.xlu0 %5730
    %5732 = vrot.lane.b32.xlu0 %v5538, 8
    %v5733 = vpop.permute.xlu0 %5732
    %5734 = vrot.lane.b32.xlu0 %v5540, 8
    %v5735 = vpop.permute.xlu0 %5734
    %5736 = vrot.lane.b32.xlu0 %v5543, 8
    %v5737 = vpop.permute.xlu0 %5736
    %5738 = vrot.lane.b32.xlu0 %v5545, 8
    %v5739 = vpop.permute.xlu0 %5738
    %5740 = vrot.lane.b32.xlu0 %v5548, 8
    %v5741 = vpop.permute.xlu0 %5740
    %5742 = vrot.lane.b32.xlu0 %v5550, 8
    %v5743 = vpop.permute.xlu0 %5742
    %vm5808 = vcmask 130112
    %5809 = vst.msk [vmem:[#allocation2] sm:$0xff] %vm5808, %v5617
    %5810 = vst.msk [vmem:[#allocation2 + $0x8] sm:$0xff] %vm5808, %v5619
    %5811 = vst.msk [vmem:[#allocation2 + $0x10] sm:$0xff] %vm5808, %v5621
    %5812 = vst.msk [vmem:[#allocation2 + $0x18] sm:$0xff] %vm5808, %v5623
    %5813 = vst.msk [vmem:[#allocation2 + $0x20] sm:$0xff] %vm5808, %v5625
    %5814 = vst.msk [vmem:[#allocation2 + $0x28] sm:$0xff] %vm5808, %v5627
    %5815 = vst.msk [vmem:[#allocation2 + $0x30] sm:$0xff] %vm5808, %v5629
    %5816 = vst.msk [vmem:[#allocation2 + $0x38] sm:$0xff] %vm5808, %v5631
    %5817 = vst.msk [vmem:[#allocation2 + $0x40] sm:$0xff] %vm5808, %v5633
    %5818 = vst.msk [vmem:[#allocation2 + $0x48] sm:$0xff] %vm5808, %v5635
    %5819 = vst.msk [vmem:[#allocation2 + $0x50] sm:$0xff] %vm5808, %v5637
    %5820 = vst.msk [vmem:[#allocation2 + $0x58] sm:$0xff] %vm5808, %v5639
    %5821 = vst.msk [vmem:[#allocation2 + $0x60] sm:$0xff] %vm5808, %v5641
    %5822 = vst.msk [vmem:[#allocation2 + $0x68] sm:$0xff] %vm5808, %v5643
    %5823 = vst.msk [vmem:[#allocation2 + $0x70] sm:$0xff] %vm5808, %v5645
    %5824 = vst.msk [vmem:[#allocation2 + $0x78] sm:$0xff] %vm5808, %v5647
    %5825 = vst.msk [vmem:[#allocation2 + $0x80] sm:$0xff] %vm5808, %v5649
    %5826 = vst.msk [vmem:[#allocation2 + $0x88] sm:$0xff] %vm5808, %v5651
    %5827 = vst.msk [vmem:[#allocation2 + $0x90] sm:$0xff] %vm5808, %v5653
    %5828 = vst.msk [vmem:[#allocation2 + $0x98] sm:$0xff] %vm5808, %v5655
    %5829 = vst.msk [vmem:[#allocation2 + $0xa0] sm:$0xff] %vm5808, %v5657
    %5830 = vst.msk [vmem:[#allocation2 + $0xa8] sm:$0xff] %vm5808, %v5659
    %5831 = vst.msk [vmem:[#allocation2 + $0xb0] sm:$0xff] %vm5808, %v5661
    %5832 = vst.msk [vmem:[#allocation2 + $0xb8] sm:$0xff] %vm5808, %v5663
    %5833 = vst.msk [vmem:[#allocation2 + $0xc0] sm:$0xff] %vm5808, %v5665
    %5834 = vst.msk [vmem:[#allocation2 + $0xc8] sm:$0xff] %vm5808, %v5667
    %5835 = vst.msk [vmem:[#allocation2 + $0xd0] sm:$0xff] %vm5808, %v5669
    %5836 = vst.msk [vmem:[#allocation2 + $0xd8] sm:$0xff] %vm5808, %v5671
    %5837 = vst.msk [vmem:[#allocation2 + $0xe0] sm:$0xff] %vm5808, %v5673
    %5838 = vst.msk [vmem:[#allocation2 + $0xe8] sm:$0xff] %vm5808, %v5675
    %5839 = vst.msk [vmem:[#allocation2 + $0xf0] sm:$0xff] %vm5808, %v5677
    %5840 = vst.msk [vmem:[#allocation2 + $0xf8] sm:$0xff] %vm5808, %v5679
    %5841 = vst.msk [vmem:[#allocation2 + $0x100] sm:$0xff] %vm5808, %v5681
    %5842 = vst.msk [vmem:[#allocation2 + $0x108] sm:$0xff] %vm5808, %v5683
    %5843 = vst.msk [vmem:[#allocation2 + $0x110] sm:$0xff] %vm5808, %v5685
    %5844 = vst.msk [vmem:[#allocation2 + $0x118] sm:$0xff] %vm5808, %v5687
    %5845 = vst.msk [vmem:[#allocation2 + $0x120] sm:$0xff] %vm5808, %v5689
    %5846 = vst.msk [vmem:[#allocation2 + $0x128] sm:$0xff] %vm5808, %v5691
    %5847 = vst.msk [vmem:[#allocation2 + $0x130] sm:$0xff] %vm5808, %v5693
    %5848 = vst.msk [vmem:[#allocation2 + $0x138] sm:$0xff] %vm5808, %v5695
    %5849 = vst.msk [vmem:[#allocation2 + $0x140] sm:$0xff] %vm5808, %v5697
    %5850 = vst.msk [vmem:[#allocation2 + $0x148] sm:$0xff] %vm5808, %v5699
    %5851 = vst.msk [vmem:[#allocation2 + $0x150] sm:$0xff] %vm5808, %v5701
    %5852 = vst.msk [vmem:[#allocation2 + $0x158] sm:$0xff] %vm5808, %v5703
    %5853 = vst.msk [vmem:[#allocation2 + $0x160] sm:$0xff] %vm5808, %v5705
    %5854 = vst.msk [vmem:[#allocation2 + $0x168] sm:$0xff] %vm5808, %v5707
    %5855 = vst.msk [vmem:[#allocation2 + $0x170] sm:$0xff] %vm5808, %v5709
    %5856 = vst.msk [vmem:[#allocation2 + $0x178] sm:$0xff] %vm5808, %v5711
    %5857 = vst.msk [vmem:[#allocation2 + $0x180] sm:$0xff] %vm5808, %v5713
    %5858 = vst.msk [vmem:[#allocation2 + $0x188] sm:$0xff] %vm5808, %v5715
    %5859 = vst.msk [vmem:[#allocation2 + $0x190] sm:$0xff] %vm5808, %v5717
    %5860 = vst.msk [vmem:[#allocation2 + $0x198] sm:$0xff] %vm5808, %v5719
    %5861 = vst.msk [vmem:[#allocation2 + $0x1a0] sm:$0xff] %vm5808, %v5721
    %5862 = vst.msk [vmem:[#allocation2 + $0x1a8] sm:$0xff] %vm5808, %v5723
    %5863 = vst.msk [vmem:[#allocation2 + $0x1b0] sm:$0xff] %vm5808, %v5725
    %5864 = vst.msk [vmem:[#allocation2 + $0x1b8] sm:$0xff] %vm5808, %v5727
    %5865 = vst.msk [vmem:[#allocation2 + $0x1c0] sm:$0xff] %vm5808, %v5729
    %5866 = vst.msk [vmem:[#allocation2 + $0x1c8] sm:$0xff] %vm5808, %v5731
    %5867 = vst.msk [vmem:[#allocation2 + $0x1d0] sm:$0xff] %vm5808, %v5733
    %5868 = vst.msk [vmem:[#allocation2 + $0x1d8] sm:$0xff] %vm5808, %v5735
    %5869 = vst.msk [vmem:[#allocation2 + $0x1e0] sm:$0xff] %vm5808, %v5737
    %5870 = vst.msk [vmem:[#allocation2 + $0x1e8] sm:$0xff] %vm5808, %v5739
    %5871 = vst.msk [vmem:[#allocation2 + $0x1f0] sm:$0xff] %vm5808, %v5741
    %5872 = vst.msk [vmem:[#allocation2 + $0x1f8] sm:$0xff] %vm5808, %v5743
    %s5873 = scalar_lea.vmem [#allocation6], 256
    %v5874 = vld [vmem:[%s5873] sm:$0xff]
    %v5875 = vld [vmem:[%s5873 + $0x8] sm:$0xff]
    %v5876 = vld [vmem:[%s5873 + $0x10] sm:$0xff]
    %v5877 = vld [vmem:[%s5873 + $0x18] sm:$0xff]
    %v5878 = vld [vmem:[%s5873 + $0x20] sm:$0xff]
    %v5879 = vld [vmem:[%s5873 + $0x28] sm:$0xff]
    %v5880 = vld [vmem:[%s5873 + $0x30] sm:$0xff]
    %v5881 = vld [vmem:[%s5873 + $0x38] sm:$0xff]
    %v5882 = vld [vmem:[%s5873 + $0x40] sm:$0xff]
    %v5883 = vld [vmem:[%s5873 + $0x48] sm:$0xff]
    %v5884 = vld [vmem:[%s5873 + $0x50] sm:$0xff]
    %v5885 = vld [vmem:[%s5873 + $0x58] sm:$0xff]
    %v5886 = vld [vmem:[%s5873 + $0x60] sm:$0xff]
    %v5887 = vld [vmem:[%s5873 + $0x68] sm:$0xff]
    %v5888 = vld [vmem:[%s5873 + $0x70] sm:$0xff]
    %v5889 = vld [vmem:[%s5873 + $0x78] sm:$0xff]
    %5890 = vrot.lane.b32.xlu0 %v2126, 112
    %v5891 = vpop.permute.xlu0 %5890
    %5892 = vrot.lane.b32.xlu0 %v2127, 112
    %v5893 = vpop.permute.xlu0 %5892
    %5894 = vrot.lane.b32.xlu0 %v2128, 112
    %v5895 = vpop.permute.xlu0 %5894
    %5896 = vrot.lane.b32.xlu0 %v2129, 112
    %v5897 = vpop.permute.xlu0 %5896
    %5898 = vrot.lane.b32.xlu0 %v2130, 112
    %v5899 = vpop.permute.xlu0 %5898
    %5900 = vrot.lane.b32.xlu0 %v2131, 112
    %v5901 = vpop.permute.xlu0 %5900
    %5902 = vrot.lane.b32.xlu0 %v2132, 112
    %v5903 = vpop.permute.xlu0 %5902
    %5904 = vrot.lane.b32.xlu0 %v2133, 112
    %v5905 = vpop.permute.xlu0 %5904
    %5906 = vrot.lane.b32.xlu0 %v2126, 80
    %v5907 = vpop.permute.xlu0 %5906
    %5908 = vrot.lane.b32.xlu0 %v2127, 80
    %v5909 = vpop.permute.xlu0 %5908
    %5910 = vrot.lane.b32.xlu0 %v2128, 80
    %v5911 = vpop.permute.xlu0 %5910
    %5912 = vrot.lane.b32.xlu0 %v2129, 80
    %v5913 = vpop.permute.xlu0 %5912
    %5914 = vrot.lane.b32.xlu0 %v2130, 80
    %v5915 = vpop.permute.xlu0 %5914
    %5916 = vrot.lane.b32.xlu0 %v2131, 80
    %v5917 = vpop.permute.xlu0 %5916
    %5918 = vrot.lane.b32.xlu0 %v2132, 80
    %v5919 = vpop.permute.xlu0 %5918
    %5920 = vrot.lane.b32.xlu0 %v2133, 80
    %v5921 = vpop.permute.xlu0 %5920
    %v5923 = vsel %vm2150, %v5891, 0
    %v5926 = vsel %vm2150, %v5893, 0
    %v5929 = vsel %vm2150, %v5895, 0
    %v5932 = vsel %vm2150, %v5897, 0
    %v5935 = vsel %vm2150, %v5899, 0
    %v5938 = vsel %vm2150, %v5901, 0
    %v5941 = vsel %vm2150, %v5903, 0
    %v5944 = vsel %vm2150, %v5905, 0
    %v5947 = vsel %vm2150, %v5907, 0
    %v5950 = vsel %vm2150, %v5909, 0
    %v5953 = vsel %vm2150, %v5911, 0
    %v5956 = vsel %vm2150, %v5913, 0
    %v5959 = vsel %vm2150, %v5915, 0
    %v5962 = vsel %vm2150, %v5917, 0
    %v5965 = vsel %vm2150, %v5919, 0
    %v5968 = vsel %vm2150, %v5921, 0
    %5970 = vmatpush.bf16.xpose.msra.mxu0 %v5968
    %5971 = vmatpush.bf16.xpose.msra.mxu0 %v5965
    %5972 = vmatpush.bf16.xpose.msra.mxu0 %v5962
    %5973 = vmatpush.bf16.xpose.msra.mxu0 %v5959
    %5974 = vmatpush.bf16.xpose.msra.mxu0 %v5956
    %5975 = vmatpush.bf16.xpose.msra.mxu0 %v5953
    %5976 = vmatpush.bf16.xpose.msra.mxu0 %v5950
    %5977 = vmatpush.bf16.xpose.msra.mxu0 %v5947
    %5978 = vmatmul.bf16.gmra.mxu0 %v5923
    %v5979 = vpop.f32.mrf.mxu0
    %v5980 = vadd.f32 %v5874, %v5979
    %v5981 = vpop.f32.mrf.mxu0
    %v5982 = vadd.f32 %v5875, %v5981
    %5983 = vmatmul.bf16.gmra.mxu0 %v5926
    %v5984 = vpop.f32.mrf.mxu0
    %v5985 = vadd.f32 %v5876, %v5984
    %v5986 = vpop.f32.mrf.mxu0
    %v5987 = vadd.f32 %v5877, %v5986
    %5988 = vmatmul.bf16.gmra.mxu0 %v5929
    %v5989 = vpop.f32.mrf.mxu0
    %v5990 = vadd.f32 %v5878, %v5989
    %v5991 = vpop.f32.mrf.mxu0
    %v5992 = vadd.f32 %v5879, %v5991
    %5993 = vmatmul.bf16.gmra.mxu0 %v5932
    %v5994 = vpop.f32.mrf.mxu0
    %v5995 = vadd.f32 %v5880, %v5994
    %v5996 = vpop.f32.mrf.mxu0
    %v5997 = vadd.f32 %v5881, %v5996
    %5998 = vmatmul.bf16.gmra.mxu0 %v5935
    %v5999 = vpop.f32.mrf.mxu0
    %v6000 = vadd.f32 %v5882, %v5999
    %v6001 = vpop.f32.mrf.mxu0
    %v6002 = vadd.f32 %v5883, %v6001
    %6003 = vmatmul.bf16.gmra.mxu0 %v5938
    %v6004 = vpop.f32.mrf.mxu0
    %v6005 = vadd.f32 %v5884, %v6004
    %v6006 = vpop.f32.mrf.mxu0
    %v6007 = vadd.f32 %v5885, %v6006
    %6008 = vmatmul.bf16.gmra.mxu0 %v5941
    %v6009 = vpop.f32.mrf.mxu0
    %v6010 = vadd.f32 %v5886, %v6009
    %v6011 = vpop.f32.mrf.mxu0
    %v6012 = vadd.f32 %v5887, %v6011
    %6013 = vmatmul.bf16.gmra.mxu0 %v5944
    %v6014 = vpop.f32.mrf.mxu0
    %v6015 = vadd.f32 %v5888, %v6014
    %v6016 = vpop.f32.mrf.mxu0
    %v6017 = vadd.f32 %v5889, %v6016
    %6018 = vdwg.mxu0
    %6019 = vrot.lane.b32.xlu0 %v2280, 112
    %v6020 = vpop.permute.xlu0 %6019
    %6021 = vrot.lane.b32.xlu0 %v2281, 112
    %v6022 = vpop.permute.xlu0 %6021
    %6023 = vrot.lane.b32.xlu0 %v2282, 112
    %v6024 = vpop.permute.xlu0 %6023
    %6025 = vrot.lane.b32.xlu0 %v2283, 112
    %v6026 = vpop.permute.xlu0 %6025
    %6027 = vrot.lane.b32.xlu0 %v2284, 112
    %v6028 = vpop.permute.xlu0 %6027
    %6029 = vrot.lane.b32.xlu0 %v2285, 112
    %v6030 = vpop.permute.xlu0 %6029
    %6031 = vrot.lane.b32.xlu0 %v2286, 112
    %v6032 = vpop.permute.xlu0 %6031
    %6033 = vrot.lane.b32.xlu0 %v2287, 112
    %v6034 = vpop.permute.xlu0 %6033
    %6035 = vrot.lane.b32.xlu0 %v2280, 80
    %v6036 = vpop.permute.xlu0 %6035
    %6037 = vrot.lane.b32.xlu0 %v2281, 80
    %v6038 = vpop.permute.xlu0 %6037
    %6039 = vrot.lane.b32.xlu0 %v2282, 80
    %v6040 = vpop.permute.xlu0 %6039
    %6041 = vrot.lane.b32.xlu0 %v2283, 80
    %v6042 = vpop.permute.xlu0 %6041
    %6043 = vrot.lane.b32.xlu0 %v2284, 80
    %v6044 = vpop.permute.xlu0 %6043
    %6045 = vrot.lane.b32.xlu0 %v2285, 80
    %v6046 = vpop.permute.xlu0 %6045
    %6047 = vrot.lane.b32.xlu0 %v2286, 80
    %v6048 = vpop.permute.xlu0 %6047
    %6049 = vrot.lane.b32.xlu0 %v2287, 80
    %v6050 = vpop.permute.xlu0 %6049
    %v6052 = vsel %vm2150, %v6020, 0
    %v6055 = vsel %vm2150, %v6022, 0
    %v6058 = vsel %vm2150, %v6024, 0
    %v6061 = vsel %vm2150, %v6026, 0
    %v6064 = vsel %vm2150, %v6028, 0
    %v6067 = vsel %vm2150, %v6030, 0
    %v6070 = vsel %vm2150, %v6032, 0
    %v6073 = vsel %vm2150, %v6034, 0
    %v6076 = vsel %vm2150, %v6036, 0
    %v6079 = vsel %vm2150, %v6038, 0
    %v6082 = vsel %vm2150, %v6040, 0
    %v6085 = vsel %vm2150, %v6042, 0
    %v6088 = vsel %vm2150, %v6044, 0
    %v6091 = vsel %vm2150, %v6046, 0
    %v6094 = vsel %vm2150, %v6048, 0
    %v6097 = vsel %vm2150, %v6050, 0
    %6099 = vmatpush.bf16.xpose.msra.mxu0 %v6097
    %6100 = vmatpush.bf16.xpose.msra.mxu0 %v6094
    %6101 = vmatpush.bf16.xpose.msra.mxu0 %v6091
    %6102 = vmatpush.bf16.xpose.msra.mxu0 %v6088
    %6103 = vmatpush.bf16.xpose.msra.mxu0 %v6085
    %6104 = vmatpush.bf16.xpose.msra.mxu0 %v6082
    %6105 = vmatpush.bf16.xpose.msra.mxu0 %v6079
    %6106 = vmatpush.bf16.xpose.msra.mxu0 %v6076
    %6107 = vmatmul.bf16.gmra.mxu0 %v6052
    %v6108 = vpop.f32.mrf.mxu0
    %v6109 = vadd.f32 %v5874, %v6108
    %v6110 = vpop.f32.mrf.mxu0
    %v6111 = vadd.f32 %v5875, %v6110
    %6112 = vmatmul.bf16.gmra.mxu0 %v6055
    %v6113 = vpop.f32.mrf.mxu0
    %v6114 = vadd.f32 %v5876, %v6113
    %v6115 = vpop.f32.mrf.mxu0
    %v6116 = vadd.f32 %v5877, %v6115
    %6117 = vmatmul.bf16.gmra.mxu0 %v6058
    %v6118 = vpop.f32.mrf.mxu0
    %v6119 = vadd.f32 %v5878, %v6118
    %v6120 = vpop.f32.mrf.mxu0
    %v6121 = vadd.f32 %v5879, %v6120
    %6122 = vmatmul.bf16.gmra.mxu0 %v6061
    %v6123 = vpop.f32.mrf.mxu0
    %v6124 = vadd.f32 %v5880, %v6123
    %v6125 = vpop.f32.mrf.mxu0
    %v6126 = vadd.f32 %v5881, %v6125
    %6127 = vmatmul.bf16.gmra.mxu0 %v6064
    %v6128 = vpop.f32.mrf.mxu0
    %v6129 = vadd.f32 %v5882, %v6128
    %v6130 = vpop.f32.mrf.mxu0
    %v6131 = vadd.f32 %v5883, %v6130
    %6132 = vmatmul.bf16.gmra.mxu0 %v6067
    %v6133 = vpop.f32.mrf.mxu0
    %v6134 = vadd.f32 %v5884, %v6133
    %v6135 = vpop.f32.mrf.mxu0
    %v6136 = vadd.f32 %v5885, %v6135
    %6137 = vmatmul.bf16.gmra.mxu0 %v6070
    %v6138 = vpop.f32.mrf.mxu0
    %v6139 = vadd.f32 %v5886, %v6138
    %v6140 = vpop.f32.mrf.mxu0
    %v6141 = vadd.f32 %v5887, %v6140
    %6142 = vmatmul.bf16.gmra.mxu0 %v6073
    %v6143 = vpop.f32.mrf.mxu0
    %v6144 = vadd.f32 %v5888, %v6143
    %v6145 = vpop.f32.mrf.mxu0
    %v6146 = vadd.f32 %v5889, %v6145
    %6147 = vdwg.mxu0
    %6148 = vrot.lane.b32.xlu0 %v2433, 112
    %v6149 = vpop.permute.xlu0 %6148
    %6150 = vrot.lane.b32.xlu0 %v2434, 112
    %v6151 = vpop.permute.xlu0 %6150
    %6152 = vrot.lane.b32.xlu0 %v2435, 112
    %v6153 = vpop.permute.xlu0 %6152
    %6154 = vrot.lane.b32.xlu0 %v2436, 112
    %v6155 = vpop.permute.xlu0 %6154
    %6156 = vrot.lane.b32.xlu0 %v2437, 112
    %v6157 = vpop.permute.xlu0 %6156
    %6158 = vrot.lane.b32.xlu0 %v2438, 112
    %v6159 = vpop.permute.xlu0 %6158
    %6160 = vrot.lane.b32.xlu0 %v2439, 112
    %v6161 = vpop.permute.xlu0 %6160
    %6162 = vrot.lane.b32.xlu0 %v2440, 112
    %v6163 = vpop.permute.xlu0 %6162
    %6164 = vrot.lane.b32.xlu0 %v2433, 80
    %v6165 = vpop.permute.xlu0 %6164
    %6166 = vrot.lane.b32.xlu0 %v2434, 80
    %v6167 = vpop.permute.xlu0 %6166
    %6168 = vrot.lane.b32.xlu0 %v2435, 80
    %v6169 = vpop.permute.xlu0 %6168
    %6170 = vrot.lane.b32.xlu0 %v2436, 80
    %v6171 = vpop.permute.xlu0 %6170
    %6172 = vrot.lane.b32.xlu0 %v2437, 80
    %v6173 = vpop.permute.xlu0 %6172
    %6174 = vrot.lane.b32.xlu0 %v2438, 80
    %v6175 = vpop.permute.xlu0 %6174
    %6176 = vrot.lane.b32.xlu0 %v2439, 80
    %v6177 = vpop.permute.xlu0 %6176
    %6178 = vrot.lane.b32.xlu0 %v2440, 80
    %v6179 = vpop.permute.xlu0 %6178
    %v6181 = vsel %vm2150, %v6149, 0
    %v6184 = vsel %vm2150, %v6151, 0
    %v6187 = vsel %vm2150, %v6153, 0
    %v6190 = vsel %vm2150, %v6155, 0
    %v6193 = vsel %vm2150, %v6157, 0
    %v6196 = vsel %vm2150, %v6159, 0
    %v6199 = vsel %vm2150, %v6161, 0
    %v6202 = vsel %vm2150, %v6163, 0
    %v6205 = vsel %vm2150, %v6165, 0
    %v6208 = vsel %vm2150, %v6167, 0
    %v6211 = vsel %vm2150, %v6169, 0
    %v6214 = vsel %vm2150, %v6171, 0
    %v6217 = vsel %vm2150, %v6173, 0
    %v6220 = vsel %vm2150, %v6175, 0
    %v6223 = vsel %vm2150, %v6177, 0
    %v6226 = vsel %vm2150, %v6179, 0
    %6228 = vmatpush.bf16.xpose.msra.mxu0 %v6226
    %6229 = vmatpush.bf16.xpose.msra.mxu0 %v6223
    %6230 = vmatpush.bf16.xpose.msra.mxu0 %v6220
    %6231 = vmatpush.bf16.xpose.msra.mxu0 %v6217
    %6232 = vmatpush.bf16.xpose.msra.mxu0 %v6214
    %6233 = vmatpush.bf16.xpose.msra.mxu0 %v6211
    %6234 = vmatpush.bf16.xpose.msra.mxu0 %v6208
    %6235 = vmatpush.bf16.xpose.msra.mxu0 %v6205
    %6236 = vmatmul.bf16.gmra.mxu0 %v6181
    %v6237 = vpop.f32.mrf.mxu0
    %v6238 = vadd.f32 %v5874, %v6237
    %v6239 = vpop.f32.mrf.mxu0
    %v6240 = vadd.f32 %v5875, %v6239
    %6241 = vmatmul.bf16.gmra.mxu0 %v6184
    %v6242 = vpop.f32.mrf.mxu0
    %v6243 = vadd.f32 %v5876, %v6242
    %v6244 = vpop.f32.mrf.mxu0
    %v6245 = vadd.f32 %v5877, %v6244
    %6246 = vmatmul.bf16.gmra.mxu0 %v6187
    %v6247 = vpop.f32.mrf.mxu0
    %v6248 = vadd.f32 %v5878, %v6247
    %v6249 = vpop.f32.mrf.mxu0
    %v6250 = vadd.f32 %v5879, %v6249
    %6251 = vmatmul.bf16.gmra.mxu0 %v6190
    %v6252 = vpop.f32.mrf.mxu0
    %v6253 = vadd.f32 %v5880, %v6252
    %v6254 = vpop.f32.mrf.mxu0
    %v6255 = vadd.f32 %v5881, %v6254
    %6256 = vmatmul.bf16.gmra.mxu0 %v6193
    %v6257 = vpop.f32.mrf.mxu0
    %v6258 = vadd.f32 %v5882, %v6257
    %v6259 = vpop.f32.mrf.mxu0
    %v6260 = vadd.f32 %v5883, %v6259
    %6261 = vmatmul.bf16.gmra.mxu0 %v6196
    %v6262 = vpop.f32.mrf.mxu0
    %v6263 = vadd.f32 %v5884, %v6262
    %v6264 = vpop.f32.mrf.mxu0
    %v6265 = vadd.f32 %v5885, %v6264
    %6266 = vmatmul.bf16.gmra.mxu0 %v6199
    %v6267 = vpop.f32.mrf.mxu0
    %v6268 = vadd.f32 %v5886, %v6267
    %v6269 = vpop.f32.mrf.mxu0
    %v6270 = vadd.f32 %v5887, %v6269
    %6271 = vmatmul.bf16.gmra.mxu0 %v6202
    %v6272 = vpop.f32.mrf.mxu0
    %v6273 = vadd.f32 %v5888, %v6272
    %v6274 = vpop.f32.mrf.mxu0
    %v6275 = vadd.f32 %v5889, %v6274
    %6276 = vdwg.mxu0
    %6277 = vrot.lane.b32.xlu0 %v2586, 112
    %v6278 = vpop.permute.xlu0 %6277
    %6279 = vrot.lane.b32.xlu0 %v2587, 112
    %v6280 = vpop.permute.xlu0 %6279
    %6281 = vrot.lane.b32.xlu0 %v2588, 112
    %v6282 = vpop.permute.xlu0 %6281
    %6283 = vrot.lane.b32.xlu0 %v2589, 112
    %v6284 = vpop.permute.xlu0 %6283
    %6285 = vrot.lane.b32.xlu0 %v2590, 112
    %v6286 = vpop.permute.xlu0 %6285
    %6287 = vrot.lane.b32.xlu0 %v2591, 112
    %v6288 = vpop.permute.xlu0 %6287
    %6289 = vrot.lane.b32.xlu0 %v2592, 112
    %v6290 = vpop.permute.xlu0 %6289
    %6291 = vrot.lane.b32.xlu0 %v2593, 112
    %v6292 = vpop.permute.xlu0 %6291
    %6293 = vrot.lane.b32.xlu0 %v2586, 80
    %v6294 = vpop.permute.xlu0 %6293
    %6295 = vrot.lane.b32.xlu0 %v2587, 80
    %v6296 = vpop.permute.xlu0 %6295
    %6297 = vrot.lane.b32.xlu0 %v2588, 80
    %v6298 = vpop.permute.xlu0 %6297
    %6299 = vrot.lane.b32.xlu0 %v2589, 80
    %v6300 = vpop.permute.xlu0 %6299
    %6301 = vrot.lane.b32.xlu0 %v2590, 80
    %v6302 = vpop.permute.xlu0 %6301
    %6303 = vrot.lane.b32.xlu0 %v2591, 80
    %v6304 = vpop.permute.xlu0 %6303
    %6305 = vrot.lane.b32.xlu0 %v2592, 80
    %v6306 = vpop.permute.xlu0 %6305
    %6307 = vrot.lane.b32.xlu0 %v2593, 80
    %v6308 = vpop.permute.xlu0 %6307
    %v6310 = vsel %vm2150, %v6278, 0
    %v6313 = vsel %vm2150, %v6280, 0
    %v6316 = vsel %vm2150, %v6282, 0
    %v6319 = vsel %vm2150, %v6284, 0
    %v6322 = vsel %vm2150, %v6286, 0
    %v6325 = vsel %vm2150, %v6288, 0
    %v6328 = vsel %vm2150, %v6290, 0
    %v6331 = vsel %vm2150, %v6292, 0
    %v6334 = vsel %vm2150, %v6294, 0
    %v6337 = vsel %vm2150, %v6296, 0
    %v6340 = vsel %vm2150, %v6298, 0
    %v6343 = vsel %vm2150, %v6300, 0
    %v6346 = vsel %vm2150, %v6302, 0
    %v6349 = vsel %vm2150, %v6304, 0
    %v6352 = vsel %vm2150, %v6306, 0
    %v6355 = vsel %vm2150, %v6308, 0
    %6357 = vmatpush.bf16.xpose.msra.mxu0 %v6355
    %6358 = vmatpush.bf16.xpose.msra.mxu0 %v6352
    %6359 = vmatpush.bf16.xpose.msra.mxu0 %v6349
    %6360 = vmatpush.bf16.xpose.msra.mxu0 %v6346
    %6361 = vmatpush.bf16.xpose.msra.mxu0 %v6343
    %6362 = vmatpush.bf16.xpose.msra.mxu0 %v6340
    %6363 = vmatpush.bf16.xpose.msra.mxu0 %v6337
    %6364 = vmatpush.bf16.xpose.msra.mxu0 %v6334
    %6365 = vmatmul.bf16.gmra.mxu0 %v6310
    %v6366 = vpop.f32.mrf.mxu0
    %v6367 = vadd.f32 %v5874, %v6366
    %v6368 = vpop.f32.mrf.mxu0
    %v6369 = vadd.f32 %v5875, %v6368
    %6370 = vmatmul.bf16.gmra.mxu0 %v6313
    %v6371 = vpop.f32.mrf.mxu0
    %v6372 = vadd.f32 %v5876, %v6371
    %v6373 = vpop.f32.mrf.mxu0
    %v6374 = vadd.f32 %v5877, %v6373
    %6375 = vmatmul.bf16.gmra.mxu0 %v6316
    %v6376 = vpop.f32.mrf.mxu0
    %v6377 = vadd.f32 %v5878, %v6376
    %v6378 = vpop.f32.mrf.mxu0
    %v6379 = vadd.f32 %v5879, %v6378
    %6380 = vmatmul.bf16.gmra.mxu0 %v6319
    %v6381 = vpop.f32.mrf.mxu0
    %v6382 = vadd.f32 %v5880, %v6381
    %v6383 = vpop.f32.mrf.mxu0
    %v6384 = vadd.f32 %v5881, %v6383
    %6385 = vmatmul.bf16.gmra.mxu0 %v6322
    %v6386 = vpop.f32.mrf.mxu0
    %v6387 = vadd.f32 %v5882, %v6386
    %v6388 = vpop.f32.mrf.mxu0
    %v6389 = vadd.f32 %v5883, %v6388
    %6390 = vmatmul.bf16.gmra.mxu0 %v6325
    %v6391 = vpop.f32.mrf.mxu0
    %v6392 = vadd.f32 %v5884, %v6391
    %v6393 = vpop.f32.mrf.mxu0
    %v6394 = vadd.f32 %v5885, %v6393
    %6395 = vmatmul.bf16.gmra.mxu0 %v6328
    %v6396 = vpop.f32.mrf.mxu0
    %v6397 = vadd.f32 %v5886, %v6396
    %v6398 = vpop.f32.mrf.mxu0
    %v6399 = vadd.f32 %v5887, %v6398
    %6400 = vmatmul.bf16.gmra.mxu0 %v6331
    %v6401 = vpop.f32.mrf.mxu0
    %v6402 = vadd.f32 %v5888, %v6401
    %v6403 = vpop.f32.mrf.mxu0
    %v6404 = vadd.f32 %v5889, %v6403
    %6405 = vdwg.mxu0
    %6406 = vmax.xlane.f32.xlu0 %v5980
    %v6407 = vpop.xlane.xlu0 %6406
    %6408 = vmax.xlane.f32.xlu0 %v5982
    %v6409 = vpop.xlane.xlu0 %6408
    %6410 = vmax.xlane.f32.xlu0 %v5985
    %v6411 = vpop.xlane.xlu0 %6410
    %6412 = vmax.xlane.f32.xlu0 %v5987
    %v6413 = vpop.xlane.xlu0 %6412
    %6414 = vmax.xlane.f32.xlu0 %v5990
    %v6415 = vpop.xlane.xlu0 %6414
    %6416 = vmax.xlane.f32.xlu0 %v5992
    %v6417 = vpop.xlane.xlu0 %6416
    %6418 = vmax.xlane.f32.xlu0 %v5995
    %v6419 = vpop.xlane.xlu0 %6418
    %6420 = vmax.xlane.f32.xlu0 %v5997
    %v6421 = vpop.xlane.xlu0 %6420
    %6422 = vmax.xlane.f32.xlu0 %v6000
    %v6423 = vpop.xlane.xlu0 %6422
    %6424 = vmax.xlane.f32.xlu0 %v6002
    %v6425 = vpop.xlane.xlu0 %6424
    %6426 = vmax.xlane.f32.xlu0 %v6005
    %v6427 = vpop.xlane.xlu0 %6426
    %6428 = vmax.xlane.f32.xlu0 %v6007
    %v6429 = vpop.xlane.xlu0 %6428
    %6430 = vmax.xlane.f32.xlu0 %v6010
    %v6431 = vpop.xlane.xlu0 %6430
    %6432 = vmax.xlane.f32.xlu0 %v6012
    %v6433 = vpop.xlane.xlu0 %6432
    %6434 = vmax.xlane.f32.xlu0 %v6015
    %v6435 = vpop.xlane.xlu0 %6434
    %6436 = vmax.xlane.f32.xlu0 %v6017
    %v6437 = vpop.xlane.xlu0 %6436
    %6438 = vmax.xlane.f32.xlu0 %v6109
    %v6439 = vpop.xlane.xlu0 %6438
    %6440 = vmax.xlane.f32.xlu0 %v6111
    %v6441 = vpop.xlane.xlu0 %6440
    %6442 = vmax.xlane.f32.xlu0 %v6114
    %v6443 = vpop.xlane.xlu0 %6442
    %6444 = vmax.xlane.f32.xlu0 %v6116
    %v6445 = vpop.xlane.xlu0 %6444
    %6446 = vmax.xlane.f32.xlu0 %v6119
    %v6447 = vpop.xlane.xlu0 %6446
    %6448 = vmax.xlane.f32.xlu0 %v6121
    %v6449 = vpop.xlane.xlu0 %6448
    %6450 = vmax.xlane.f32.xlu0 %v6124
    %v6451 = vpop.xlane.xlu0 %6450
    %6452 = vmax.xlane.f32.xlu0 %v6126
    %v6453 = vpop.xlane.xlu0 %6452
    %6454 = vmax.xlane.f32.xlu0 %v6129
    %v6455 = vpop.xlane.xlu0 %6454
    %6456 = vmax.xlane.f32.xlu0 %v6131
    %v6457 = vpop.xlane.xlu0 %6456
    %6458 = vmax.xlane.f32.xlu0 %v6134
    %v6459 = vpop.xlane.xlu0 %6458
    %6460 = vmax.xlane.f32.xlu0 %v6136
    %v6461 = vpop.xlane.xlu0 %6460
    %6462 = vmax.xlane.f32.xlu0 %v6139
    %v6463 = vpop.xlane.xlu0 %6462
    %6464 = vmax.xlane.f32.xlu0 %v6141
    %v6465 = vpop.xlane.xlu0 %6464
    %6466 = vmax.xlane.f32.xlu0 %v6144
    %v6467 = vpop.xlane.xlu0 %6466
    %6468 = vmax.xlane.f32.xlu0 %v6146
    %v6469 = vpop.xlane.xlu0 %6468
    %6470 = vmax.xlane.f32.xlu0 %v6238
    %v6471 = vpop.xlane.xlu0 %6470
    %6472 = vmax.xlane.f32.xlu0 %v6240
    %v6473 = vpop.xlane.xlu0 %6472
    %6474 = vmax.xlane.f32.xlu0 %v6243
    %v6475 = vpop.xlane.xlu0 %6474
    %6476 = vmax.xlane.f32.xlu0 %v6245
    %v6477 = vpop.xlane.xlu0 %6476
    %6478 = vmax.xlane.f32.xlu0 %v6248
    %v6479 = vpop.xlane.xlu0 %6478
    %6480 = vmax.xlane.f32.xlu0 %v6250
    %v6481 = vpop.xlane.xlu0 %6480
    %6482 = vmax.xlane.f32.xlu0 %v6253
    %v6483 = vpop.xlane.xlu0 %6482
    %6484 = vmax.xlane.f32.xlu0 %v6255
    %v6485 = vpop.xlane.xlu0 %6484
    %6486 = vmax.xlane.f32.xlu0 %v6258
    %v6487 = vpop.xlane.xlu0 %6486
    %6488 = vmax.xlane.f32.xlu0 %v6260
    %v6489 = vpop.xlane.xlu0 %6488
    %6490 = vmax.xlane.f32.xlu0 %v6263
    %v6491 = vpop.xlane.xlu0 %6490
    %6492 = vmax.xlane.f32.xlu0 %v6265
    %v6493 = vpop.xlane.xlu0 %6492
    %6494 = vmax.xlane.f32.xlu0 %v6268
    %v6495 = vpop.xlane.xlu0 %6494
    %6496 = vmax.xlane.f32.xlu0 %v6270
    %v6497 = vpop.xlane.xlu0 %6496
    %6498 = vmax.xlane.f32.xlu0 %v6273
    %v6499 = vpop.xlane.xlu0 %6498
    %6500 = vmax.xlane.f32.xlu0 %v6275
    %v6501 = vpop.xlane.xlu0 %6500
    %6502 = vmax.xlane.f32.xlu0 %v6367
    %v6503 = vpop.xlane.xlu0 %6502
    %6504 = vmax.xlane.f32.xlu0 %v6369
    %v6505 = vpop.xlane.xlu0 %6504
    %6506 = vmax.xlane.f32.xlu0 %v6372
    %v6507 = vpop.xlane.xlu0 %6506
    %6508 = vmax.xlane.f32.xlu0 %v6374
    %v6509 = vpop.xlane.xlu0 %6508
    %6510 = vmax.xlane.f32.xlu0 %v6377
    %v6511 = vpop.xlane.xlu0 %6510
    %6512 = vmax.xlane.f32.xlu0 %v6379
    %v6513 = vpop.xlane.xlu0 %6512
    %6514 = vmax.xlane.f32.xlu0 %v6382
    %v6515 = vpop.xlane.xlu0 %6514
    %6516 = vmax.xlane.f32.xlu0 %v6384
    %v6517 = vpop.xlane.xlu0 %6516
    %6518 = vmax.xlane.f32.xlu0 %v6387
    %v6519 = vpop.xlane.xlu0 %6518
    %6520 = vmax.xlane.f32.xlu0 %v6389
    %v6521 = vpop.xlane.xlu0 %6520
    %6522 = vmax.xlane.f32.xlu0 %v6392
    %v6523 = vpop.xlane.xlu0 %6522
    %6524 = vmax.xlane.f32.xlu0 %v6394
    %v6525 = vpop.xlane.xlu0 %6524
    %6526 = vmax.xlane.f32.xlu0 %v6397
    %v6527 = vpop.xlane.xlu0 %6526
    %6528 = vmax.xlane.f32.xlu0 %v6399
    %v6529 = vpop.xlane.xlu0 %6528
    %6530 = vmax.xlane.f32.xlu0 %v6402
    %v6531 = vpop.xlane.xlu0 %6530
    %6532 = vmax.xlane.f32.xlu0 %v6404
    %v6533 = vpop.xlane.xlu0 %6532
    %v6534 = vsub.f32 %v5980, %v6407
    %v6535 = vsub.f32 %v5982, %v6409
    %v6536 = vsub.f32 %v5985, %v6411
    %v6537 = vsub.f32 %v5987, %v6413
    %v6538 = vsub.f32 %v5990, %v6415
    %v6539 = vsub.f32 %v5992, %v6417
    %v6540 = vsub.f32 %v5995, %v6419
    %v6541 = vsub.f32 %v5997, %v6421
    %v6542 = vsub.f32 %v6000, %v6423
    %v6543 = vsub.f32 %v6002, %v6425
    %v6544 = vsub.f32 %v6005, %v6427
    %v6545 = vsub.f32 %v6007, %v6429
    %v6546 = vsub.f32 %v6010, %v6431
    %v6547 = vsub.f32 %v6012, %v6433
    %v6548 = vsub.f32 %v6015, %v6435
    %v6549 = vsub.f32 %v6017, %v6437
    %v6550 = vsub.f32 %v6109, %v6439
    %v6551 = vsub.f32 %v6111, %v6441
    %v6552 = vsub.f32 %v6114, %v6443
    %v6553 = vsub.f32 %v6116, %v6445
    %v6554 = vsub.f32 %v6119, %v6447
    %v6555 = vsub.f32 %v6121, %v6449
    %v6556 = vsub.f32 %v6124, %v6451
    %v6557 = vsub.f32 %v6126, %v6453
    %v6558 = vsub.f32 %v6129, %v6455
    %v6559 = vsub.f32 %v6131, %v6457
    %v6560 = vsub.f32 %v6134, %v6459
    %v6561 = vsub.f32 %v6136, %v6461
    %v6562 = vsub.f32 %v6139, %v6463
    %v6563 = vsub.f32 %v6141, %v6465
    %v6564 = vsub.f32 %v6144, %v6467
    %v6565 = vsub.f32 %v6146, %v6469
    %v6566 = vsub.f32 %v6238, %v6471
    %v6567 = vsub.f32 %v6240, %v6473
    %v6568 = vsub.f32 %v6243, %v6475
    %v6569 = vsub.f32 %v6245, %v6477
    %v6570 = vsub.f32 %v6248, %v6479
    %v6571 = vsub.f32 %v6250, %v6481
    %v6572 = vsub.f32 %v6253, %v6483
    %v6573 = vsub.f32 %v6255, %v6485
    %v6574 = vsub.f32 %v6258, %v6487
    %v6575 = vsub.f32 %v6260, %v6489
    %v6576 = vsub.f32 %v6263, %v6491
    %v6577 = vsub.f32 %v6265, %v6493
    %v6578 = vsub.f32 %v6268, %v6495
    %v6579 = vsub.f32 %v6270, %v6497
    %v6580 = vsub.f32 %v6273, %v6499
    %v6581 = vsub.f32 %v6275, %v6501
    %v6582 = vsub.f32 %v6367, %v6503
    %v6583 = vsub.f32 %v6369, %v6505
    %v6584 = vsub.f32 %v6372, %v6507
    %v6585 = vsub.f32 %v6374, %v6509
    %v6586 = vsub.f32 %v6377, %v6511
    %v6587 = vsub.f32 %v6379, %v6513
    %v6588 = vsub.f32 %v6382, %v6515
    %v6589 = vsub.f32 %v6384, %v6517
    %v6590 = vsub.f32 %v6387, %v6519
    %v6591 = vsub.f32 %v6389, %v6521
    %v6592 = vsub.f32 %v6392, %v6523
    %v6593 = vsub.f32 %v6394, %v6525
    %v6594 = vsub.f32 %v6397, %v6527
    %v6595 = vsub.f32 %v6399, %v6529
    %v6596 = vsub.f32 %v6402, %v6531
    %v6597 = vsub.f32 %v6404, %v6533
    %v6598 = vmul.f32 %v6534, 1.442695
    %v6599 = vpow.pop %v6598
    %v6600 = vmul.f32 %v6535, 1.442695
    %v6601 = vpow.pop %v6600
    %v6602 = vmul.f32 %v6536, 1.442695
    %v6603 = vpow.pop %v6602
    %v6604 = vmul.f32 %v6537, 1.442695
    %v6605 = vpow.pop %v6604
    %v6606 = vmul.f32 %v6538, 1.442695
    %v6607 = vpow.pop %v6606
    %v6608 = vmul.f32 %v6539, 1.442695
    %v6609 = vpow.pop %v6608
    %v6610 = vmul.f32 %v6540, 1.442695
    %v6611 = vpow.pop %v6610
    %v6612 = vmul.f32 %v6541, 1.442695
    %v6613 = vpow.pop %v6612
    %v6614 = vmul.f32 %v6542, 1.442695
    %v6615 = vpow.pop %v6614
    %v6616 = vmul.f32 %v6543, 1.442695
    %v6617 = vpow.pop %v6616
    %v6618 = vmul.f32 %v6544, 1.442695
    %v6619 = vpow.pop %v6618
    %v6620 = vmul.f32 %v6545, 1.442695
    %v6621 = vpow.pop %v6620
    %v6622 = vmul.f32 %v6546, 1.442695
    %v6623 = vpow.pop %v6622
    %v6624 = vmul.f32 %v6547, 1.442695
    %v6625 = vpow.pop %v6624
    %v6626 = vmul.f32 %v6548, 1.442695
    %v6627 = vpow.pop %v6626
    %v6628 = vmul.f32 %v6549, 1.442695
    %v6629 = vpow.pop %v6628
    %v6630 = vmul.f32 %v6550, 1.442695
    %v6631 = vpow.pop %v6630
    %v6632 = vmul.f32 %v6551, 1.442695
    %v6633 = vpow.pop %v6632
    %v6634 = vmul.f32 %v6552, 1.442695
    %v6635 = vpow.pop %v6634
    %v6636 = vmul.f32 %v6553, 1.442695
    %v6637 = vpow.pop %v6636
    %v6638 = vmul.f32 %v6554, 1.442695
    %v6639 = vpow.pop %v6638
    %v6640 = vmul.f32 %v6555, 1.442695
    %v6641 = vpow.pop %v6640
    %v6642 = vmul.f32 %v6556, 1.442695
    %v6643 = vpow.pop %v6642
    %v6644 = vmul.f32 %v6557, 1.442695
    %v6645 = vpow.pop %v6644
    %v6646 = vmul.f32 %v6558, 1.442695
    %v6647 = vpow.pop %v6646
    %v6648 = vmul.f32 %v6559, 1.442695
    %v6649 = vpow.pop %v6648
    %v6650 = vmul.f32 %v6560, 1.442695
    %v6651 = vpow.pop %v6650
    %v6652 = vmul.f32 %v6561, 1.442695
    %v6653 = vpow.pop %v6652
    %v6654 = vmul.f32 %v6562, 1.442695
    %v6655 = vpow.pop %v6654
    %v6656 = vmul.f32 %v6563, 1.442695
    %v6657 = vpow.pop %v6656
    %v6658 = vmul.f32 %v6564, 1.442695
    %v6659 = vpow.pop %v6658
    %v6660 = vmul.f32 %v6565, 1.442695
    %v6661 = vpow.pop %v6660
    %v6662 = vmul.f32 %v6566, 1.442695
    %v6663 = vpow.pop %v6662
    %v6664 = vmul.f32 %v6567, 1.442695
    %v6665 = vpow.pop %v6664
    %v6666 = vmul.f32 %v6568, 1.442695
    %v6667 = vpow.pop %v6666
    %v6668 = vmul.f32 %v6569, 1.442695
    %v6669 = vpow.pop %v6668
    %v6670 = vmul.f32 %v6570, 1.442695
    %v6671 = vpow.pop %v6670
    %v6672 = vmul.f32 %v6571, 1.442695
    %v6673 = vpow.pop %v6672
    %v6674 = vmul.f32 %v6572, 1.442695
    %v6675 = vpow.pop %v6674
    %v6676 = vmul.f32 %v6573, 1.442695
    %v6677 = vpow.pop %v6676
    %v6678 = vmul.f32 %v6574, 1.442695
    %v6679 = vpow.pop %v6678
    %v6680 = vmul.f32 %v6575, 1.442695
    %v6681 = vpow.pop %v6680
    %v6682 = vmul.f32 %v6576, 1.442695
    %v6683 = vpow.pop %v6682
    %v6684 = vmul.f32 %v6577, 1.442695
    %v6685 = vpow.pop %v6684
    %v6686 = vmul.f32 %v6578, 1.442695
    %v6687 = vpow.pop %v6686
    %v6688 = vmul.f32 %v6579, 1.442695
    %v6689 = vpow.pop %v6688
    %v6690 = vmul.f32 %v6580, 1.442695
    %v6691 = vpow.pop %v6690
    %v6692 = vmul.f32 %v6581, 1.442695
    %v6693 = vpow.pop %v6692
    %v6694 = vmul.f32 %v6582, 1.442695
    %v6695 = vpow.pop %v6694
    %v6696 = vmul.f32 %v6583, 1.442695
    %v6697 = vpow.pop %v6696
    %v6698 = vmul.f32 %v6584, 1.442695
    %v6699 = vpow.pop %v6698
    %v6700 = vmul.f32 %v6585, 1.442695
    %v6701 = vpow.pop %v6700
    %v6702 = vmul.f32 %v6586, 1.442695
    %v6703 = vpow.pop %v6702
    %v6704 = vmul.f32 %v6587, 1.442695
    %v6705 = vpow.pop %v6704
    %v6706 = vmul.f32 %v6588, 1.442695
    %v6707 = vpow.pop %v6706
    %v6708 = vmul.f32 %v6589, 1.442695
    %v6709 = vpow.pop %v6708
    %v6710 = vmul.f32 %v6590, 1.442695
    %v6711 = vpow.pop %v6710
    %v6712 = vmul.f32 %v6591, 1.442695
    %v6713 = vpow.pop %v6712
    %v6714 = vmul.f32 %v6592, 1.442695
    %v6715 = vpow.pop %v6714
    %v6716 = vmul.f32 %v6593, 1.442695
    %v6717 = vpow.pop %v6716
    %v6718 = vmul.f32 %v6594, 1.442695
    %v6719 = vpow.pop %v6718
    %v6720 = vmul.f32 %v6595, 1.442695
    %v6721 = vpow.pop %v6720
    %v6722 = vmul.f32 %v6596, 1.442695
    %v6723 = vpow.pop %v6722
    %v6724 = vmul.f32 %v6597, 1.442695
    %v6725 = vpow.pop %v6724
    %6726 = vadd.xlane.f32.xlu0 %v6599
    %v6727 = vpop.xlane.xlu0 %6726
    %6728 = vadd.xlane.f32.xlu0 %v6601
    %v6729 = vpop.xlane.xlu0 %6728
    %6730 = vadd.xlane.f32.xlu0 %v6603
    %v6731 = vpop.xlane.xlu0 %6730
    %6732 = vadd.xlane.f32.xlu0 %v6605
    %v6733 = vpop.xlane.xlu0 %6732
    %6734 = vadd.xlane.f32.xlu0 %v6607
    %v6735 = vpop.xlane.xlu0 %6734
    %6736 = vadd.xlane.f32.xlu0 %v6609
    %v6737 = vpop.xlane.xlu0 %6736
    %6738 = vadd.xlane.f32.xlu0 %v6611
    %v6739 = vpop.xlane.xlu0 %6738
    %6740 = vadd.xlane.f32.xlu0 %v6613
    %v6741 = vpop.xlane.xlu0 %6740
    %6742 = vadd.xlane.f32.xlu0 %v6615
    %v6743 = vpop.xlane.xlu0 %6742
    %6744 = vadd.xlane.f32.xlu0 %v6617
    %v6745 = vpop.xlane.xlu0 %6744
    %6746 = vadd.xlane.f32.xlu0 %v6619
    %v6747 = vpop.xlane.xlu0 %6746
    %6748 = vadd.xlane.f32.xlu0 %v6621
    %v6749 = vpop.xlane.xlu0 %6748
    %6750 = vadd.xlane.f32.xlu0 %v6623
    %v6751 = vpop.xlane.xlu0 %6750
    %6752 = vadd.xlane.f32.xlu0 %v6625
    %v6753 = vpop.xlane.xlu0 %6752
    %6754 = vadd.xlane.f32.xlu0 %v6627
    %v6755 = vpop.xlane.xlu0 %6754
    %6756 = vadd.xlane.f32.xlu0 %v6629
    %v6757 = vpop.xlane.xlu0 %6756
    %6758 = vadd.xlane.f32.xlu0 %v6631
    %v6759 = vpop.xlane.xlu0 %6758
    %6760 = vadd.xlane.f32.xlu0 %v6633
    %v6761 = vpop.xlane.xlu0 %6760
    %6762 = vadd.xlane.f32.xlu0 %v6635
    %v6763 = vpop.xlane.xlu0 %6762
    %6764 = vadd.xlane.f32.xlu0 %v6637
    %v6765 = vpop.xlane.xlu0 %6764
    %6766 = vadd.xlane.f32.xlu0 %v6639
    %v6767 = vpop.xlane.xlu0 %6766
    %6768 = vadd.xlane.f32.xlu0 %v6641
    %v6769 = vpop.xlane.xlu0 %6768
    %6770 = vadd.xlane.f32.xlu0 %v6643
    %v6771 = vpop.xlane.xlu0 %6770
    %6772 = vadd.xlane.f32.xlu0 %v6645
    %v6773 = vpop.xlane.xlu0 %6772
    %6774 = vadd.xlane.f32.xlu0 %v6647
    %v6775 = vpop.xlane.xlu0 %6774
    %6776 = vadd.xlane.f32.xlu0 %v6649
    %v6777 = vpop.xlane.xlu0 %6776
    %6778 = vadd.xlane.f32.xlu0 %v6651
    %v6779 = vpop.xlane.xlu0 %6778
    %6780 = vadd.xlane.f32.xlu0 %v6653
    %v6781 = vpop.xlane.xlu0 %6780
    %6782 = vadd.xlane.f32.xlu0 %v6655
    %v6783 = vpop.xlane.xlu0 %6782
    %6784 = vadd.xlane.f32.xlu0 %v6657
    %v6785 = vpop.xlane.xlu0 %6784
    %6786 = vadd.xlane.f32.xlu0 %v6659
    %v6787 = vpop.xlane.xlu0 %6786
    %6788 = vadd.xlane.f32.xlu0 %v6661
    %v6789 = vpop.xlane.xlu0 %6788
    %6790 = vadd.xlane.f32.xlu0 %v6663
    %v6791 = vpop.xlane.xlu0 %6790
    %6792 = vadd.xlane.f32.xlu0 %v6665
    %v6793 = vpop.xlane.xlu0 %6792
    %6794 = vadd.xlane.f32.xlu0 %v6667
    %v6795 = vpop.xlane.xlu0 %6794
    %6796 = vadd.xlane.f32.xlu0 %v6669
    %v6797 = vpop.xlane.xlu0 %6796
    %6798 = vadd.xlane.f32.xlu0 %v6671
    %v6799 = vpop.xlane.xlu0 %6798
    %6800 = vadd.xlane.f32.xlu0 %v6673
    %v6801 = vpop.xlane.xlu0 %6800
    %6802 = vadd.xlane.f32.xlu0 %v6675
    %v6803 = vpop.xlane.xlu0 %6802
    %6804 = vadd.xlane.f32.xlu0 %v6677
    %v6805 = vpop.xlane.xlu0 %6804
    %6806 = vadd.xlane.f32.xlu0 %v6679
    %v6807 = vpop.xlane.xlu0 %6806
    %6808 = vadd.xlane.f32.xlu0 %v6681
    %v6809 = vpop.xlane.xlu0 %6808
    %6810 = vadd.xlane.f32.xlu0 %v6683
    %v6811 = vpop.xlane.xlu0 %6810
    %6812 = vadd.xlane.f32.xlu0 %v6685
    %v6813 = vpop.xlane.xlu0 %6812
    %6814 = vadd.xlane.f32.xlu0 %v6687
    %v6815 = vpop.xlane.xlu0 %6814
    %6816 = vadd.xlane.f32.xlu0 %v6689
    %v6817 = vpop.xlane.xlu0 %6816
    %6818 = vadd.xlane.f32.xlu0 %v6691
    %v6819 = vpop.xlane.xlu0 %6818
    %6820 = vadd.xlane.f32.xlu0 %v6693
    %v6821 = vpop.xlane.xlu0 %6820
    %6822 = vadd.xlane.f32.xlu0 %v6695
    %v6823 = vpop.xlane.xlu0 %6822
    %6824 = vadd.xlane.f32.xlu0 %v6697
    %v6825 = vpop.xlane.xlu0 %6824
    %6826 = vadd.xlane.f32.xlu0 %v6699
    %v6827 = vpop.xlane.xlu0 %6826
    %6828 = vadd.xlane.f32.xlu0 %v6701
    %v6829 = vpop.xlane.xlu0 %6828
    %6830 = vadd.xlane.f32.xlu0 %v6703
    %v6831 = vpop.xlane.xlu0 %6830
    %6832 = vadd.xlane.f32.xlu0 %v6705
    %v6833 = vpop.xlane.xlu0 %6832
    %6834 = vadd.xlane.f32.xlu0 %v6707
    %v6835 = vpop.xlane.xlu0 %6834
    %6836 = vadd.xlane.f32.xlu0 %v6709
    %v6837 = vpop.xlane.xlu0 %6836
    %6838 = vadd.xlane.f32.xlu0 %v6711
    %v6839 = vpop.xlane.xlu0 %6838
    %6840 = vadd.xlane.f32.xlu0 %v6713
    %v6841 = vpop.xlane.xlu0 %6840
    %6842 = vadd.xlane.f32.xlu0 %v6715
    %v6843 = vpop.xlane.xlu0 %6842
    %6844 = vadd.xlane.f32.xlu0 %v6717
    %v6845 = vpop.xlane.xlu0 %6844
    %6846 = vadd.xlane.f32.xlu0 %v6719
    %v6847 = vpop.xlane.xlu0 %6846
    %6848 = vadd.xlane.f32.xlu0 %v6721
    %v6849 = vpop.xlane.xlu0 %6848
    %6850 = vadd.xlane.f32.xlu0 %v6723
    %v6851 = vpop.xlane.xlu0 %6850
    %6852 = vadd.xlane.f32.xlu0 %v6725
    %v6853 = vpop.xlane.xlu0 %6852
    %v6854 = vrcp.pop %v6727
    %v6855 = vrcp.pop %v6729
    %v6856 = vrcp.pop %v6731
    %v6857 = vrcp.pop %v6733
    %v6858 = vrcp.pop %v6735
    %v6859 = vrcp.pop %v6737
    %v6860 = vrcp.pop %v6739
    %v6861 = vrcp.pop %v6741
    %v6862 = vrcp.pop %v6743
    %v6863 = vrcp.pop %v6745
    %v6864 = vrcp.pop %v6747
    %v6865 = vrcp.pop %v6749
    %v6866 = vrcp.pop %v6751
    %v6867 = vrcp.pop %v6753
    %v6868 = vrcp.pop %v6755
    %v6869 = vrcp.pop %v6757
    %v6870 = vrcp.pop %v6759
    %v6871 = vrcp.pop %v6761
    %v6872 = vrcp.pop %v6763
    %v6873 = vrcp.pop %v6765
    %v6874 = vrcp.pop %v6767
    %v6875 = vrcp.pop %v6769
    %v6876 = vrcp.pop %v6771
    %v6877 = vrcp.pop %v6773
    %v6878 = vrcp.pop %v6775
    %v6879 = vrcp.pop %v6777
    %v6880 = vrcp.pop %v6779
    %v6881 = vrcp.pop %v6781
    %v6882 = vrcp.pop %v6783
    %v6883 = vrcp.pop %v6785
    %v6884 = vrcp.pop %v6787
    %v6885 = vrcp.pop %v6789
    %v6886 = vrcp.pop %v6791
    %v6887 = vrcp.pop %v6793
    %v6888 = vrcp.pop %v6795
    %v6889 = vrcp.pop %v6797
    %v6890 = vrcp.pop %v6799
    %v6891 = vrcp.pop %v6801
    %v6892 = vrcp.pop %v6803
    %v6893 = vrcp.pop %v6805
    %v6894 = vrcp.pop %v6807
    %v6895 = vrcp.pop %v6809
    %v6896 = vrcp.pop %v6811
    %v6897 = vrcp.pop %v6813
    %v6898 = vrcp.pop %v6815
    %v6899 = vrcp.pop %v6817
    %v6900 = vrcp.pop %v6819
    %v6901 = vrcp.pop %v6821
    %v6902 = vrcp.pop %v6823
    %v6903 = vrcp.pop %v6825
    %v6904 = vrcp.pop %v6827
    %v6905 = vrcp.pop %v6829
    %v6906 = vrcp.pop %v6831
    %v6907 = vrcp.pop %v6833
    %v6908 = vrcp.pop %v6835
    %v6909 = vrcp.pop %v6837
    %v6910 = vrcp.pop %v6839
    %v6911 = vrcp.pop %v6841
    %v6912 = vrcp.pop %v6843
    %v6913 = vrcp.pop %v6845
    %v6914 = vrcp.pop %v6847
    %v6915 = vrcp.pop %v6849
    %v6916 = vrcp.pop %v6851
    %v6917 = vrcp.pop %v6853
    %v6918 = vmul.f32 %v6599, %v6854
    %v6919 = vmul.f32 %v6601, %v6855
    %v6920 = vmul.f32 %v6603, %v6856
    %v6921 = vmul.f32 %v6605, %v6857
    %v6922 = vmul.f32 %v6607, %v6858
    %v6923 = vmul.f32 %v6609, %v6859
    %v6924 = vmul.f32 %v6611, %v6860
    %v6925 = vmul.f32 %v6613, %v6861
    %v6926 = vmul.f32 %v6615, %v6862
    %v6927 = vmul.f32 %v6617, %v6863
    %v6928 = vmul.f32 %v6619, %v6864
    %v6929 = vmul.f32 %v6621, %v6865
    %v6930 = vmul.f32 %v6623, %v6866
    %v6931 = vmul.f32 %v6625, %v6867
    %v6932 = vmul.f32 %v6627, %v6868
    %v6933 = vmul.f32 %v6629, %v6869
    %v6934 = vmul.f32 %v6631, %v6870
    %v6935 = vmul.f32 %v6633, %v6871
    %v6936 = vmul.f32 %v6635, %v6872
    %v6937 = vmul.f32 %v6637, %v6873
    %v6938 = vmul.f32 %v6639, %v6874
    %v6939 = vmul.f32 %v6641, %v6875
    %v6940 = vmul.f32 %v6643, %v6876
    %v6941 = vmul.f32 %v6645, %v6877
    %v6942 = vmul.f32 %v6647, %v6878
    %v6943 = vmul.f32 %v6649, %v6879
    %v6944 = vmul.f32 %v6651, %v6880
    %v6945 = vmul.f32 %v6653, %v6881
    %v6946 = vmul.f32 %v6655, %v6882
    %v6947 = vmul.f32 %v6657, %v6883
    %v6948 = vmul.f32 %v6659, %v6884
    %v6949 = vmul.f32 %v6661, %v6885
    %v6950 = vmul.f32 %v6663, %v6886
    %v6951 = vmul.f32 %v6665, %v6887
    %v6952 = vmul.f32 %v6667, %v6888
    %v6953 = vmul.f32 %v6669, %v6889
    %v6954 = vmul.f32 %v6671, %v6890
    %v6955 = vmul.f32 %v6673, %v6891
    %v6956 = vmul.f32 %v6675, %v6892
    %v6957 = vmul.f32 %v6677, %v6893
    %v6958 = vmul.f32 %v6679, %v6894
    %v6959 = vmul.f32 %v6681, %v6895
    %v6960 = vmul.f32 %v6683, %v6896
    %v6961 = vmul.f32 %v6685, %v6897
    %v6962 = vmul.f32 %v6687, %v6898
    %v6963 = vmul.f32 %v6689, %v6899
    %v6964 = vmul.f32 %v6691, %v6900
    %v6965 = vmul.f32 %v6693, %v6901
    %v6966 = vmul.f32 %v6695, %v6902
    %v6967 = vmul.f32 %v6697, %v6903
    %v6968 = vmul.f32 %v6699, %v6904
    %v6969 = vmul.f32 %v6701, %v6905
    %v6970 = vmul.f32 %v6703, %v6906
    %v6971 = vmul.f32 %v6705, %v6907
    %v6972 = vmul.f32 %v6707, %v6908
    %v6973 = vmul.f32 %v6709, %v6909
    %v6974 = vmul.f32 %v6711, %v6910
    %v6975 = vmul.f32 %v6713, %v6911
    %v6976 = vmul.f32 %v6715, %v6912
    %v6977 = vmul.f32 %v6717, %v6913
    %v6978 = vmul.f32 %v6719, %v6914
    %v6979 = vmul.f32 %v6721, %v6915
    %v6980 = vmul.f32 %v6723, %v6916
    %v6981 = vmul.f32 %v6725, %v6917
    %v6982 = vpack.c.bf16 %v6918, %v6918
    %v6983 = vpack.c.bf16 %v6919, %v6919
    %v6984 = vpack.c.bf16 %v6920, %v6920
    %v6985 = vpack.c.bf16 %v6921, %v6921
    %v6986 = vpack.c.bf16 %v6922, %v6922
    %v6987 = vpack.c.bf16 %v6923, %v6923
    %v6988 = vpack.c.bf16 %v6924, %v6924
    %v6989 = vpack.c.bf16 %v6925, %v6925
    %v6990 = vpack.c.bf16 %v6926, %v6926
    %v6991 = vpack.c.bf16 %v6927, %v6927
    %v6992 = vpack.c.bf16 %v6928, %v6928
    %v6993 = vpack.c.bf16 %v6929, %v6929
    %v6994 = vpack.c.bf16 %v6930, %v6930
    %v6995 = vpack.c.bf16 %v6931, %v6931
    %v6996 = vpack.c.bf16 %v6932, %v6932
    %v6997 = vpack.c.bf16 %v6933, %v6933
    %v6998 = vpack.c.bf16 %v6934, %v6934
    %v6999 = vpack.c.bf16 %v6935, %v6935
    %v7000 = vpack.c.bf16 %v6936, %v6936
    %v7001 = vpack.c.bf16 %v6937, %v6937
    %v7002 = vpack.c.bf16 %v6938, %v6938
    %v7003 = vpack.c.bf16 %v6939, %v6939
    %v7004 = vpack.c.bf16 %v6940, %v6940
    %v7005 = vpack.c.bf16 %v6941, %v6941
    %v7006 = vpack.c.bf16 %v6942, %v6942
    %v7007 = vpack.c.bf16 %v6943, %v6943
    %v7008 = vpack.c.bf16 %v6944, %v6944
    %v7009 = vpack.c.bf16 %v6945, %v6945
    %v7010 = vpack.c.bf16 %v6946, %v6946
    %v7011 = vpack.c.bf16 %v6947, %v6947
    %v7012 = vpack.c.bf16 %v6948, %v6948
    %v7013 = vpack.c.bf16 %v6949, %v6949
    %v7014 = vpack.c.bf16 %v6950, %v6950
    %v7015 = vpack.c.bf16 %v6951, %v6951
    %v7016 = vpack.c.bf16 %v6952, %v6952
    %v7017 = vpack.c.bf16 %v6953, %v6953
    %v7018 = vpack.c.bf16 %v6954, %v6954
    %v7019 = vpack.c.bf16 %v6955, %v6955
    %v7020 = vpack.c.bf16 %v6956, %v6956
    %v7021 = vpack.c.bf16 %v6957, %v6957
    %v7022 = vpack.c.bf16 %v6958, %v6958
    %v7023 = vpack.c.bf16 %v6959, %v6959
    %v7024 = vpack.c.bf16 %v6960, %v6960
    %v7025 = vpack.c.bf16 %v6961, %v6961
    %v7026 = vpack.c.bf16 %v6962, %v6962
    %v7027 = vpack.c.bf16 %v6963, %v6963
    %v7028 = vpack.c.bf16 %v6964, %v6964
    %v7029 = vpack.c.bf16 %v6965, %v6965
    %v7030 = vpack.c.bf16 %v6966, %v6966
    %v7031 = vpack.c.bf16 %v6967, %v6967
    %v7032 = vpack.c.bf16 %v6968, %v6968
    %v7033 = vpack.c.bf16 %v6969, %v6969
    %v7034 = vpack.c.bf16 %v6970, %v6970
    %v7035 = vpack.c.bf16 %v6971, %v6971
    %v7036 = vpack.c.bf16 %v6972, %v6972
    %v7037 = vpack.c.bf16 %v6973, %v6973
    %v7038 = vpack.c.bf16 %v6974, %v6974
    %v7039 = vpack.c.bf16 %v6975, %v6975
    %v7040 = vpack.c.bf16 %v6976, %v6976
    %v7041 = vpack.c.bf16 %v6977, %v6977
    %v7042 = vpack.c.bf16 %v6978, %v6978
    %v7043 = vpack.c.bf16 %v6979, %v6979
    %v7044 = vpack.c.bf16 %v6980, %v6980
    %v7045 = vpack.c.bf16 %v6981, %v6981
    %v7062 = vunpack.c.l.b16 %v6982
    %v7063 = vunpack.c.l.b16 %v6983
    %v7064 = vunpack.c.l.b16 %v6984
    %v7065 = vunpack.c.l.b16 %v6985
    %v7066 = vunpack.c.l.b16 %v6986
    %v7067 = vunpack.c.l.b16 %v6987
    %v7068 = vunpack.c.l.b16 %v6988
    %v7069 = vunpack.c.l.b16 %v6989
    %v7070 = vunpack.c.l.b16 %v6990
    %v7071 = vunpack.c.l.b16 %v6991
    %v7072 = vunpack.c.l.b16 %v6992
    %v7073 = vunpack.c.l.b16 %v6993
    %v7074 = vunpack.c.l.b16 %v6994
    %v7075 = vunpack.c.l.b16 %v6995
    %v7076 = vunpack.c.l.b16 %v6996
    %v7077 = vunpack.c.l.b16 %v6997
    %v7078 = vpack.c.b16 %v7063, %v7062
    %v7079 = vpack.c.b16 %v7065, %v7064
    %v7080 = vpack.c.b16 %v7067, %v7066
    %v7081 = vpack.c.b16 %v7069, %v7068
    %v7082 = vpack.c.b16 %v7071, %v7070
    %v7083 = vpack.c.b16 %v7073, %v7072
    %v7084 = vpack.c.b16 %v7075, %v7074
    %v7085 = vpack.c.b16 %v7077, %v7076
    %7094 = vrot.lane.b32.xlu0 %v2126, 48
    %v7095 = vpop.permute.xlu0 %7094
    %7096 = vrot.lane.b32.xlu0 %v2127, 48
    %v7097 = vpop.permute.xlu0 %7096
    %7098 = vrot.lane.b32.xlu0 %v2128, 48
    %v7099 = vpop.permute.xlu0 %7098
    %7100 = vrot.lane.b32.xlu0 %v2129, 48
    %v7101 = vpop.permute.xlu0 %7100
    %7102 = vrot.lane.b32.xlu0 %v2130, 48
    %v7103 = vpop.permute.xlu0 %7102
    %7104 = vrot.lane.b32.xlu0 %v2131, 48
    %v7105 = vpop.permute.xlu0 %7104
    %7106 = vrot.lane.b32.xlu0 %v2132, 48
    %v7107 = vpop.permute.xlu0 %7106
    %7108 = vrot.lane.b32.xlu0 %v2133, 48
    %v7109 = vpop.permute.xlu0 %7108
    %7118 = vmatpush.bf16.msra.mxu0 %v7109
    %7119 = vmatpush.bf16.msra.mxu0 %v7107
    %7120 = vmatpush.bf16.msra.mxu0 %v7105
    %7121 = vmatpush.bf16.msra.mxu0 %v7103
    %7122 = vmatpush.bf16.msra.mxu0 %v7101
    %7123 = vmatpush.bf16.msra.mxu0 %v7099
    %7124 = vmatpush.bf16.msra.mxu0 %v7097
    %7125 = vmatpush.bf16.msra.mxu0 %v7095
    %7126 = vmatmul.bf16.gmra.mxu0 %v7078
    %v7127 = vpop.f32.mrf.mxu0
    %v7128 = vadd.f32 0.0, %v7127
    %v7129 = vpop.f32.mrf.mxu0
    %v7130 = vadd.f32 0.0, %v7129
    %7131 = vmatmul.bf16.gmra.mxu0 %v7079
    %v7132 = vpop.f32.mrf.mxu0
    %v7133 = vadd.f32 0.0, %v7132
    %v7134 = vpop.f32.mrf.mxu0
    %v7135 = vadd.f32 0.0, %v7134
    %7136 = vmatmul.bf16.gmra.mxu0 %v7080
    %v7137 = vpop.f32.mrf.mxu0
    %v7138 = vadd.f32 0.0, %v7137
    %v7139 = vpop.f32.mrf.mxu0
    %v7140 = vadd.f32 0.0, %v7139
    %7141 = vmatmul.bf16.gmra.mxu0 %v7081
    %v7142 = vpop.f32.mrf.mxu0
    %v7143 = vadd.f32 0.0, %v7142
    %v7144 = vpop.f32.mrf.mxu0
    %v7145 = vadd.f32 0.0, %v7144
    %7146 = vmatmul.bf16.gmra.mxu0 %v7082
    %v7147 = vpop.f32.mrf.mxu0
    %v7148 = vadd.f32 0.0, %v7147
    %v7149 = vpop.f32.mrf.mxu0
    %v7150 = vadd.f32 0.0, %v7149
    %7151 = vmatmul.bf16.gmra.mxu0 %v7083
    %v7152 = vpop.f32.mrf.mxu0
    %v7153 = vadd.f32 0.0, %v7152
    %v7154 = vpop.f32.mrf.mxu0
    %v7155 = vadd.f32 0.0, %v7154
    %7156 = vmatmul.bf16.gmra.mxu0 %v7084
    %v7157 = vpop.f32.mrf.mxu0
    %v7158 = vadd.f32 0.0, %v7157
    %v7159 = vpop.f32.mrf.mxu0
    %v7160 = vadd.f32 0.0, %v7159
    %7161 = vmatmul.bf16.gmra.mxu0 %v7085
    %v7162 = vpop.f32.mrf.mxu0
    %v7163 = vadd.f32 0.0, %v7162
    %v7164 = vpop.f32.mrf.mxu0
    %v7165 = vadd.f32 0.0, %v7164
    %7166 = vdwg.mxu0
    %v7183 = vunpack.c.l.b16 %v6998
    %v7184 = vunpack.c.l.b16 %v6999
    %v7185 = vunpack.c.l.b16 %v7000
    %v7186 = vunpack.c.l.b16 %v7001
    %v7187 = vunpack.c.l.b16 %v7002
    %v7188 = vunpack.c.l.b16 %v7003
    %v7189 = vunpack.c.l.b16 %v7004
    %v7190 = vunpack.c.l.b16 %v7005
    %v7191 = vunpack.c.l.b16 %v7006
    %v7192 = vunpack.c.l.b16 %v7007
    %v7193 = vunpack.c.l.b16 %v7008
    %v7194 = vunpack.c.l.b16 %v7009
    %v7195 = vunpack.c.l.b16 %v7010
    %v7196 = vunpack.c.l.b16 %v7011
    %v7197 = vunpack.c.l.b16 %v7012
    %v7198 = vunpack.c.l.b16 %v7013
    %v7199 = vpack.c.b16 %v7184, %v7183
    %v7200 = vpack.c.b16 %v7186, %v7185
    %v7201 = vpack.c.b16 %v7188, %v7187
    %v7202 = vpack.c.b16 %v7190, %v7189
    %v7203 = vpack.c.b16 %v7192, %v7191
    %v7204 = vpack.c.b16 %v7194, %v7193
    %v7205 = vpack.c.b16 %v7196, %v7195
    %v7206 = vpack.c.b16 %v7198, %v7197
    %7215 = vrot.lane.b32.xlu0 %v2280, 48
    %v7216 = vpop.permute.xlu0 %7215
    %7217 = vrot.lane.b32.xlu0 %v2281, 48
    %v7218 = vpop.permute.xlu0 %7217
    %7219 = vrot.lane.b32.xlu0 %v2282, 48
    %v7220 = vpop.permute.xlu0 %7219
    %7221 = vrot.lane.b32.xlu0 %v2283, 48
    %v7222 = vpop.permute.xlu0 %7221
    %7223 = vrot.lane.b32.xlu0 %v2284, 48
    %v7224 = vpop.permute.xlu0 %7223
    %7225 = vrot.lane.b32.xlu0 %v2285, 48
    %v7226 = vpop.permute.xlu0 %7225
    %7227 = vrot.lane.b32.xlu0 %v2286, 48
    %v7228 = vpop.permute.xlu0 %7227
    %7229 = vrot.lane.b32.xlu0 %v2287, 48
    %v7230 = vpop.permute.xlu0 %7229
    %7239 = vmatpush.bf16.msra.mxu0 %v7230
    %7240 = vmatpush.bf16.msra.mxu0 %v7228
    %7241 = vmatpush.bf16.msra.mxu0 %v7226
    %7242 = vmatpush.bf16.msra.mxu0 %v7224
    %7243 = vmatpush.bf16.msra.mxu0 %v7222
    %7244 = vmatpush.bf16.msra.mxu0 %v7220
    %7245 = vmatpush.bf16.msra.mxu0 %v7218
    %7246 = vmatpush.bf16.msra.mxu0 %v7216
    %7247 = vmatmul.bf16.gmra.mxu0 %v7199
    %v7248 = vpop.f32.mrf.mxu0
    %v7249 = vadd.f32 0.0, %v7248
    %v7250 = vpop.f32.mrf.mxu0
    %v7251 = vadd.f32 0.0, %v7250
    %7252 = vmatmul.bf16.gmra.mxu0 %v7200
    %v7253 = vpop.f32.mrf.mxu0
    %v7254 = vadd.f32 0.0, %v7253
    %v7255 = vpop.f32.mrf.mxu0
    %v7256 = vadd.f32 0.0, %v7255
    %7257 = vmatmul.bf16.gmra.mxu0 %v7201
    %v7258 = vpop.f32.mrf.mxu0
    %v7259 = vadd.f32 0.0, %v7258
    %v7260 = vpop.f32.mrf.mxu0
    %v7261 = vadd.f32 0.0, %v7260
    %7262 = vmatmul.bf16.gmra.mxu0 %v7202
    %v7263 = vpop.f32.mrf.mxu0
    %v7264 = vadd.f32 0.0, %v7263
    %v7265 = vpop.f32.mrf.mxu0
    %v7266 = vadd.f32 0.0, %v7265
    %7267 = vmatmul.bf16.gmra.mxu0 %v7203
    %v7268 = vpop.f32.mrf.mxu0
    %v7269 = vadd.f32 0.0, %v7268
    %v7270 = vpop.f32.mrf.mxu0
    %v7271 = vadd.f32 0.0, %v7270
    %7272 = vmatmul.bf16.gmra.mxu0 %v7204
    %v7273 = vpop.f32.mrf.mxu0
    %v7274 = vadd.f32 0.0, %v7273
    %v7275 = vpop.f32.mrf.mxu0
    %v7276 = vadd.f32 0.0, %v7275
    %7277 = vmatmul.bf16.gmra.mxu0 %v7205
    %v7278 = vpop.f32.mrf.mxu0
    %v7279 = vadd.f32 0.0, %v7278
    %v7280 = vpop.f32.mrf.mxu0
    %v7281 = vadd.f32 0.0, %v7280
    %7282 = vmatmul.bf16.gmra.mxu0 %v7206
    %v7283 = vpop.f32.mrf.mxu0
    %v7284 = vadd.f32 0.0, %v7283
    %v7285 = vpop.f32.mrf.mxu0
    %v7286 = vadd.f32 0.0, %v7285
    %7287 = vdwg.mxu0
    %v7304 = vunpack.c.l.b16 %v7014
    %v7305 = vunpack.c.l.b16 %v7015
    %v7306 = vunpack.c.l.b16 %v7016
    %v7307 = vunpack.c.l.b16 %v7017
    %v7308 = vunpack.c.l.b16 %v7018
    %v7309 = vunpack.c.l.b16 %v7019
    %v7310 = vunpack.c.l.b16 %v7020
    %v7311 = vunpack.c.l.b16 %v7021
    %v7312 = vunpack.c.l.b16 %v7022
    %v7313 = vunpack.c.l.b16 %v7023
    %v7314 = vunpack.c.l.b16 %v7024
    %v7315 = vunpack.c.l.b16 %v7025
    %v7316 = vunpack.c.l.b16 %v7026
    %v7317 = vunpack.c.l.b16 %v7027
    %v7318 = vunpack.c.l.b16 %v7028
    %v7319 = vunpack.c.l.b16 %v7029
    %v7320 = vpack.c.b16 %v7305, %v7304
    %v7321 = vpack.c.b16 %v7307, %v7306
    %v7322 = vpack.c.b16 %v7309, %v7308
    %v7323 = vpack.c.b16 %v7311, %v7310
    %v7324 = vpack.c.b16 %v7313, %v7312
    %v7325 = vpack.c.b16 %v7315, %v7314
    %v7326 = vpack.c.b16 %v7317, %v7316
    %v7327 = vpack.c.b16 %v7319, %v7318
    %7336 = vrot.lane.b32.xlu0 %v2433, 48
    %v7337 = vpop.permute.xlu0 %7336
    %7338 = vrot.lane.b32.xlu0 %v2434, 48
    %v7339 = vpop.permute.xlu0 %7338
    %7340 = vrot.lane.b32.xlu0 %v2435, 48
    %v7341 = vpop.permute.xlu0 %7340
    %7342 = vrot.lane.b32.xlu0 %v2436, 48
    %v7343 = vpop.permute.xlu0 %7342
    %7344 = vrot.lane.b32.xlu0 %v2437, 48
    %v7345 = vpop.permute.xlu0 %7344
    %7346 = vrot.lane.b32.xlu0 %v2438, 48
    %v7347 = vpop.permute.xlu0 %7346
    %7348 = vrot.lane.b32.xlu0 %v2439, 48
    %v7349 = vpop.permute.xlu0 %7348
    %7350 = vrot.lane.b32.xlu0 %v2440, 48
    %v7351 = vpop.permute.xlu0 %7350
    %7360 = vmatpush.bf16.msra.mxu0 %v7351
    %7361 = vmatpush.bf16.msra.mxu0 %v7349
    %7362 = vmatpush.bf16.msra.mxu0 %v7347
    %7363 = vmatpush.bf16.msra.mxu0 %v7345
    %7364 = vmatpush.bf16.msra.mxu0 %v7343
    %7365 = vmatpush.bf16.msra.mxu0 %v7341
    %7366 = vmatpush.bf16.msra.mxu0 %v7339
    %7367 = vmatpush.bf16.msra.mxu0 %v7337
    %7368 = vmatmul.bf16.gmra.mxu0 %v7320
    %v7369 = vpop.f32.mrf.mxu0
    %v7370 = vadd.f32 0.0, %v7369
    %v7371 = vpop.f32.mrf.mxu0
    %v7372 = vadd.f32 0.0, %v7371
    %7373 = vmatmul.bf16.gmra.mxu0 %v7321
    %v7374 = vpop.f32.mrf.mxu0
    %v7375 = vadd.f32 0.0, %v7374
    %v7376 = vpop.f32.mrf.mxu0
    %v7377 = vadd.f32 0.0, %v7376
    %7378 = vmatmul.bf16.gmra.mxu0 %v7322
    %v7379 = vpop.f32.mrf.mxu0
    %v7380 = vadd.f32 0.0, %v7379
    %v7381 = vpop.f32.mrf.mxu0
    %v7382 = vadd.f32 0.0, %v7381
    %7383 = vmatmul.bf16.gmra.mxu0 %v7323
    %v7384 = vpop.f32.mrf.mxu0
    %v7385 = vadd.f32 0.0, %v7384
    %v7386 = vpop.f32.mrf.mxu0
    %v7387 = vadd.f32 0.0, %v7386
    %7388 = vmatmul.bf16.gmra.mxu0 %v7324
    %v7389 = vpop.f32.mrf.mxu0
    %v7390 = vadd.f32 0.0, %v7389
    %v7391 = vpop.f32.mrf.mxu0
    %v7392 = vadd.f32 0.0, %v7391
    %7393 = vmatmul.bf16.gmra.mxu0 %v7325
    %v7394 = vpop.f32.mrf.mxu0
    %v7395 = vadd.f32 0.0, %v7394
    %v7396 = vpop.f32.mrf.mxu0
    %v7397 = vadd.f32 0.0, %v7396
    %7398 = vmatmul.bf16.gmra.mxu0 %v7326
    %v7399 = vpop.f32.mrf.mxu0
    %v7400 = vadd.f32 0.0, %v7399
    %v7401 = vpop.f32.mrf.mxu0
    %v7402 = vadd.f32 0.0, %v7401
    %7403 = vmatmul.bf16.gmra.mxu0 %v7327
    %v7404 = vpop.f32.mrf.mxu0
    %v7405 = vadd.f32 0.0, %v7404
    %v7406 = vpop.f32.mrf.mxu0
    %v7407 = vadd.f32 0.0, %v7406
    %7408 = vdwg.mxu0
    %v7425 = vunpack.c.l.b16 %v7030
    %v7426 = vunpack.c.l.b16 %v7031
    %v7427 = vunpack.c.l.b16 %v7032
    %v7428 = vunpack.c.l.b16 %v7033
    %v7429 = vunpack.c.l.b16 %v7034
    %v7430 = vunpack.c.l.b16 %v7035
    %v7431 = vunpack.c.l.b16 %v7036
    %v7432 = vunpack.c.l.b16 %v7037
    %v7433 = vunpack.c.l.b16 %v7038
    %v7434 = vunpack.c.l.b16 %v7039
    %v7435 = vunpack.c.l.b16 %v7040
    %v7436 = vunpack.c.l.b16 %v7041
    %v7437 = vunpack.c.l.b16 %v7042
    %v7438 = vunpack.c.l.b16 %v7043
    %v7439 = vunpack.c.l.b16 %v7044
    %v7440 = vunpack.c.l.b16 %v7045
    %v7441 = vpack.c.b16 %v7426, %v7425
    %v7442 = vpack.c.b16 %v7428, %v7427
    %v7443 = vpack.c.b16 %v7430, %v7429
    %v7444 = vpack.c.b16 %v7432, %v7431
    %v7445 = vpack.c.b16 %v7434, %v7433
    %v7446 = vpack.c.b16 %v7436, %v7435
    %v7447 = vpack.c.b16 %v7438, %v7437
    %v7448 = vpack.c.b16 %v7440, %v7439
    %7457 = vrot.lane.b32.xlu0 %v2586, 48
    %v7458 = vpop.permute.xlu0 %7457
    %7459 = vrot.lane.b32.xlu0 %v2587, 48
    %v7460 = vpop.permute.xlu0 %7459
    %7461 = vrot.lane.b32.xlu0 %v2588, 48
    %v7462 = vpop.permute.xlu0 %7461
    %7463 = vrot.lane.b32.xlu0 %v2589, 48
    %v7464 = vpop.permute.xlu0 %7463
    %7465 = vrot.lane.b32.xlu0 %v2590, 48
    %v7466 = vpop.permute.xlu0 %7465
    %7467 = vrot.lane.b32.xlu0 %v2591, 48
    %v7468 = vpop.permute.xlu0 %7467
    %7469 = vrot.lane.b32.xlu0 %v2592, 48
    %v7470 = vpop.permute.xlu0 %7469
    %7471 = vrot.lane.b32.xlu0 %v2593, 48
    %v7472 = vpop.permute.xlu0 %7471
    %7481 = vmatpush.bf16.msra.mxu0 %v7472
    %7482 = vmatpush.bf16.msra.mxu0 %v7470
    %7483 = vmatpush.bf16.msra.mxu0 %v7468
    %7484 = vmatpush.bf16.msra.mxu0 %v7466
    %7485 = vmatpush.bf16.msra.mxu0 %v7464
    %7486 = vmatpush.bf16.msra.mxu0 %v7462
    %7487 = vmatpush.bf16.msra.mxu0 %v7460
    %7488 = vmatpush.bf16.msra.mxu0 %v7458
    %7489 = vmatmul.bf16.gmra.mxu0 %v7441
    %v7490 = vpop.f32.mrf.mxu0
    %v7491 = vadd.f32 0.0, %v7490
    %v7492 = vpop.f32.mrf.mxu0
    %v7493 = vadd.f32 0.0, %v7492
    %7494 = vmatmul.bf16.gmra.mxu0 %v7442
    %v7495 = vpop.f32.mrf.mxu0
    %v7496 = vadd.f32 0.0, %v7495
    %v7497 = vpop.f32.mrf.mxu0
    %v7498 = vadd.f32 0.0, %v7497
    %7499 = vmatmul.bf16.gmra.mxu0 %v7443
    %v7500 = vpop.f32.mrf.mxu0
    %v7501 = vadd.f32 0.0, %v7500
    %v7502 = vpop.f32.mrf.mxu0
    %v7503 = vadd.f32 0.0, %v7502
    %7504 = vmatmul.bf16.gmra.mxu0 %v7444
    %v7505 = vpop.f32.mrf.mxu0
    %v7506 = vadd.f32 0.0, %v7505
    %v7507 = vpop.f32.mrf.mxu0
    %v7508 = vadd.f32 0.0, %v7507
    %7509 = vmatmul.bf16.gmra.mxu0 %v7445
    %v7510 = vpop.f32.mrf.mxu0
    %v7511 = vadd.f32 0.0, %v7510
    %v7512 = vpop.f32.mrf.mxu0
    %v7513 = vadd.f32 0.0, %v7512
    %7514 = vmatmul.bf16.gmra.mxu0 %v7446
    %v7515 = vpop.f32.mrf.mxu0
    %v7516 = vadd.f32 0.0, %v7515
    %v7517 = vpop.f32.mrf.mxu0
    %v7518 = vadd.f32 0.0, %v7517
    %7519 = vmatmul.bf16.gmra.mxu0 %v7447
    %v7520 = vpop.f32.mrf.mxu0
    %v7521 = vadd.f32 0.0, %v7520
    %v7522 = vpop.f32.mrf.mxu0
    %v7523 = vadd.f32 0.0, %v7522
    %7524 = vmatmul.bf16.gmra.mxu0 %v7448
    %v7525 = vpop.f32.mrf.mxu0
    %v7526 = vadd.f32 0.0, %v7525
    %v7527 = vpop.f32.mrf.mxu0
    %v7528 = vadd.f32 0.0, %v7527
    %7529 = vdwg.mxu0
    %7594 = vrot.lane.b32.xlu0 %v7128, 16
    %v7595 = vpop.permute.xlu0 %7594
    %7596 = vrot.lane.b32.xlu0 %v7130, 16
    %v7597 = vpop.permute.xlu0 %7596
    %7598 = vrot.lane.b32.xlu0 %v7133, 16
    %v7599 = vpop.permute.xlu0 %7598
    %7600 = vrot.lane.b32.xlu0 %v7135, 16
    %v7601 = vpop.permute.xlu0 %7600
    %7602 = vrot.lane.b32.xlu0 %v7138, 16
    %v7603 = vpop.permute.xlu0 %7602
    %7604 = vrot.lane.b32.xlu0 %v7140, 16
    %v7605 = vpop.permute.xlu0 %7604
    %7606 = vrot.lane.b32.xlu0 %v7143, 16
    %v7607 = vpop.permute.xlu0 %7606
    %7608 = vrot.lane.b32.xlu0 %v7145, 16
    %v7609 = vpop.permute.xlu0 %7608
    %7610 = vrot.lane.b32.xlu0 %v7148, 16
    %v7611 = vpop.permute.xlu0 %7610
    %7612 = vrot.lane.b32.xlu0 %v7150, 16
    %v7613 = vpop.permute.xlu0 %7612
    %7614 = vrot.lane.b32.xlu0 %v7153, 16
    %v7615 = vpop.permute.xlu0 %7614
    %7616 = vrot.lane.b32.xlu0 %v7155, 16
    %v7617 = vpop.permute.xlu0 %7616
    %7618 = vrot.lane.b32.xlu0 %v7158, 16
    %v7619 = vpop.permute.xlu0 %7618
    %7620 = vrot.lane.b32.xlu0 %v7160, 16
    %v7621 = vpop.permute.xlu0 %7620
    %7622 = vrot.lane.b32.xlu0 %v7163, 16
    %v7623 = vpop.permute.xlu0 %7622
    %7624 = vrot.lane.b32.xlu0 %v7165, 16
    %v7625 = vpop.permute.xlu0 %7624
    %7626 = vrot.lane.b32.xlu0 %v7249, 16
    %v7627 = vpop.permute.xlu0 %7626
    %7628 = vrot.lane.b32.xlu0 %v7251, 16
    %v7629 = vpop.permute.xlu0 %7628
    %7630 = vrot.lane.b32.xlu0 %v7254, 16
    %v7631 = vpop.permute.xlu0 %7630
    %7632 = vrot.lane.b32.xlu0 %v7256, 16
    %v7633 = vpop.permute.xlu0 %7632
    %7634 = vrot.lane.b32.xlu0 %v7259, 16
    %v7635 = vpop.permute.xlu0 %7634
    %7636 = vrot.lane.b32.xlu0 %v7261, 16
    %v7637 = vpop.permute.xlu0 %7636
    %7638 = vrot.lane.b32.xlu0 %v7264, 16
    %v7639 = vpop.permute.xlu0 %7638
    %7640 = vrot.lane.b32.xlu0 %v7266, 16
    %v7641 = vpop.permute.xlu0 %7640
    %7642 = vrot.lane.b32.xlu0 %v7269, 16
    %v7643 = vpop.permute.xlu0 %7642
    %7644 = vrot.lane.b32.xlu0 %v7271, 16
    %v7645 = vpop.permute.xlu0 %7644
    %7646 = vrot.lane.b32.xlu0 %v7274, 16
    %v7647 = vpop.permute.xlu0 %7646
    %7648 = vrot.lane.b32.xlu0 %v7276, 16
    %v7649 = vpop.permute.xlu0 %7648
    %7650 = vrot.lane.b32.xlu0 %v7279, 16
    %v7651 = vpop.permute.xlu0 %7650
    %7652 = vrot.lane.b32.xlu0 %v7281, 16
    %v7653 = vpop.permute.xlu0 %7652
    %7654 = vrot.lane.b32.xlu0 %v7284, 16
    %v7655 = vpop.permute.xlu0 %7654
    %7656 = vrot.lane.b32.xlu0 %v7286, 16
    %v7657 = vpop.permute.xlu0 %7656
    %7658 = vrot.lane.b32.xlu0 %v7370, 16
    %v7659 = vpop.permute.xlu0 %7658
    %7660 = vrot.lane.b32.xlu0 %v7372, 16
    %v7661 = vpop.permute.xlu0 %7660
    %7662 = vrot.lane.b32.xlu0 %v7375, 16
    %v7663 = vpop.permute.xlu0 %7662
    %7664 = vrot.lane.b32.xlu0 %v7377, 16
    %v7665 = vpop.permute.xlu0 %7664
    %7666 = vrot.lane.b32.xlu0 %v7380, 16
    %v7667 = vpop.permute.xlu0 %7666
    %7668 = vrot.lane.b32.xlu0 %v7382, 16
    %v7669 = vpop.permute.xlu0 %7668
    %7670 = vrot.lane.b32.xlu0 %v7385, 16
    %v7671 = vpop.permute.xlu0 %7670
    %7672 = vrot.lane.b32.xlu0 %v7387, 16
    %v7673 = vpop.permute.xlu0 %7672
    %7674 = vrot.lane.b32.xlu0 %v7390, 16
    %v7675 = vpop.permute.xlu0 %7674
    %7676 = vrot.lane.b32.xlu0 %v7392, 16
    %v7677 = vpop.permute.xlu0 %7676
    %7678 = vrot.lane.b32.xlu0 %v7395, 16
    %v7679 = vpop.permute.xlu0 %7678
    %7680 = vrot.lane.b32.xlu0 %v7397, 16
    %v7681 = vpop.permute.xlu0 %7680
    %7682 = vrot.lane.b32.xlu0 %v7400, 16
    %v7683 = vpop.permute.xlu0 %7682
    %7684 = vrot.lane.b32.xlu0 %v7402, 16
    %v7685 = vpop.permute.xlu0 %7684
    %7686 = vrot.lane.b32.xlu0 %v7405, 16
    %v7687 = vpop.permute.xlu0 %7686
    %7688 = vrot.lane.b32.xlu0 %v7407, 16
    %v7689 = vpop.permute.xlu0 %7688
    %7690 = vrot.lane.b32.xlu0 %v7491, 16
    %v7691 = vpop.permute.xlu0 %7690
    %7692 = vrot.lane.b32.xlu0 %v7493, 16
    %v7693 = vpop.permute.xlu0 %7692
    %7694 = vrot.lane.b32.xlu0 %v7496, 16
    %v7695 = vpop.permute.xlu0 %7694
    %7696 = vrot.lane.b32.xlu0 %v7498, 16
    %v7697 = vpop.permute.xlu0 %7696
    %7698 = vrot.lane.b32.xlu0 %v7501, 16
    %v7699 = vpop.permute.xlu0 %7698
    %7700 = vrot.lane.b32.xlu0 %v7503, 16
    %v7701 = vpop.permute.xlu0 %7700
    %7702 = vrot.lane.b32.xlu0 %v7506, 16
    %v7703 = vpop.permute.xlu0 %7702
    %7704 = vrot.lane.b32.xlu0 %v7508, 16
    %v7705 = vpop.permute.xlu0 %7704
    %7706 = vrot.lane.b32.xlu0 %v7511, 16
    %v7707 = vpop.permute.xlu0 %7706
    %7708 = vrot.lane.b32.xlu0 %v7513, 16
    %v7709 = vpop.permute.xlu0 %7708
    %7710 = vrot.lane.b32.xlu0 %v7516, 16
    %v7711 = vpop.permute.xlu0 %7710
    %7712 = vrot.lane.b32.xlu0 %v7518, 16
    %v7713 = vpop.permute.xlu0 %7712
    %7714 = vrot.lane.b32.xlu0 %v7521, 16
    %v7715 = vpop.permute.xlu0 %7714
    %7716 = vrot.lane.b32.xlu0 %v7523, 16
    %v7717 = vpop.permute.xlu0 %7716
    %7718 = vrot.lane.b32.xlu0 %v7526, 16
    %v7719 = vpop.permute.xlu0 %7718
    %7720 = vrot.lane.b32.xlu0 %v7528, 16
    %v7721 = vpop.permute.xlu0 %7720
    %vm7786 = vcmask 195712
    %7787 = vst.msk [vmem:[#allocation2] sm:$0xff] %vm7786, %v7595
    %7788 = vst.msk [vmem:[#allocation2 + $0x8] sm:$0xff] %vm7786, %v7597
    %7789 = vst.msk [vmem:[#allocation2 + $0x10] sm:$0xff] %vm7786, %v7599
    %7790 = vst.msk [vmem:[#allocation2 + $0x18] sm:$0xff] %vm7786, %v7601
    %7791 = vst.msk [vmem:[#allocation2 + $0x20] sm:$0xff] %vm7786, %v7603
    %7792 = vst.msk [vmem:[#allocation2 + $0x28] sm:$0xff] %vm7786, %v7605
    %7793 = vst.msk [vmem:[#allocation2 + $0x30] sm:$0xff] %vm7786, %v7607
    %7794 = vst.msk [vmem:[#allocation2 + $0x38] sm:$0xff] %vm7786, %v7609
    %7795 = vst.msk [vmem:[#allocation2 + $0x40] sm:$0xff] %vm7786, %v7611
    %7796 = vst.msk [vmem:[#allocation2 + $0x48] sm:$0xff] %vm7786, %v7613
    %7797 = vst.msk [vmem:[#allocation2 + $0x50] sm:$0xff] %vm7786, %v7615
    %7798 = vst.msk [vmem:[#allocation2 + $0x58] sm:$0xff] %vm7786, %v7617
    %7799 = vst.msk [vmem:[#allocation2 + $0x60] sm:$0xff] %vm7786, %v7619
    %7800 = vst.msk [vmem:[#allocation2 + $0x68] sm:$0xff] %vm7786, %v7621
    %7801 = vst.msk [vmem:[#allocation2 + $0x70] sm:$0xff] %vm7786, %v7623
    %7802 = vst.msk [vmem:[#allocation2 + $0x78] sm:$0xff] %vm7786, %v7625
    %7803 = vst.msk [vmem:[#allocation2 + $0x80] sm:$0xff] %vm7786, %v7627
    %7804 = vst.msk [vmem:[#allocation2 + $0x88] sm:$0xff] %vm7786, %v7629
    %7805 = vst.msk [vmem:[#allocation2 + $0x90] sm:$0xff] %vm7786, %v7631
    %7806 = vst.msk [vmem:[#allocation2 + $0x98] sm:$0xff] %vm7786, %v7633
    %7807 = vst.msk [vmem:[#allocation2 + $0xa0] sm:$0xff] %vm7786, %v7635
    %7808 = vst.msk [vmem:[#allocation2 + $0xa8] sm:$0xff] %vm7786, %v7637
    %7809 = vst.msk [vmem:[#allocation2 + $0xb0] sm:$0xff] %vm7786, %v7639
    %7810 = vst.msk [vmem:[#allocation2 + $0xb8] sm:$0xff] %vm7786, %v7641
    %7811 = vst.msk [vmem:[#allocation2 + $0xc0] sm:$0xff] %vm7786, %v7643
    %7812 = vst.msk [vmem:[#allocation2 + $0xc8] sm:$0xff] %vm7786, %v7645
    %7813 = vst.msk [vmem:[#allocation2 + $0xd0] sm:$0xff] %vm7786, %v7647
    %7814 = vst.msk [vmem:[#allocation2 + $0xd8] sm:$0xff] %vm7786, %v7649
    %7815 = vst.msk [vmem:[#allocation2 + $0xe0] sm:$0xff] %vm7786, %v7651
    %7816 = vst.msk [vmem:[#allocation2 + $0xe8] sm:$0xff] %vm7786, %v7653
    %7817 = vst.msk [vmem:[#allocation2 + $0xf0] sm:$0xff] %vm7786, %v7655
    %7818 = vst.msk [vmem:[#allocation2 + $0xf8] sm:$0xff] %vm7786, %v7657
    %7819 = vst.msk [vmem:[#allocation2 + $0x100] sm:$0xff] %vm7786, %v7659
    %7820 = vst.msk [vmem:[#allocation2 + $0x108] sm:$0xff] %vm7786, %v7661
    %7821 = vst.msk [vmem:[#allocation2 + $0x110] sm:$0xff] %vm7786, %v7663
    %7822 = vst.msk [vmem:[#allocation2 + $0x118] sm:$0xff] %vm7786, %v7665
    %7823 = vst.msk [vmem:[#allocation2 + $0x120] sm:$0xff] %vm7786, %v7667
    %7824 = vst.msk [vmem:[#allocation2 + $0x128] sm:$0xff] %vm7786, %v7669
    %7825 = vst.msk [vmem:[#allocation2 + $0x130] sm:$0xff] %vm7786, %v7671
    %7826 = vst.msk [vmem:[#allocation2 + $0x138] sm:$0xff] %vm7786, %v7673
    %7827 = vst.msk [vmem:[#allocation2 + $0x140] sm:$0xff] %vm7786, %v7675
    %7828 = vst.msk [vmem:[#allocation2 + $0x148] sm:$0xff] %vm7786, %v7677
    %7829 = vst.msk [vmem:[#allocation2 + $0x150] sm:$0xff] %vm7786, %v7679
    %7830 = vst.msk [vmem:[#allocation2 + $0x158] sm:$0xff] %vm7786, %v7681
    %7831 = vst.msk [vmem:[#allocation2 + $0x160] sm:$0xff] %vm7786, %v7683
    %7832 = vst.msk [vmem:[#allocation2 + $0x168] sm:$0xff] %vm7786, %v7685
    %7833 = vst.msk [vmem:[#allocation2 + $0x170] sm:$0xff] %vm7786, %v7687
    %7834 = vst.msk [vmem:[#allocation2 + $0x178] sm:$0xff] %vm7786, %v7689
    %7835 = vst.msk [vmem:[#allocation2 + $0x180] sm:$0xff] %vm7786, %v7691
    %7836 = vst.msk [vmem:[#allocation2 + $0x188] sm:$0xff] %vm7786, %v7693
    %7837 = vst.msk [vmem:[#allocation2 + $0x190] sm:$0xff] %vm7786, %v7695
    %7838 = vst.msk [vmem:[#allocation2 + $0x198] sm:$0xff] %vm7786, %v7697
    %7839 = vst.msk [vmem:[#allocation2 + $0x1a0] sm:$0xff] %vm7786, %v7699
    %7840 = vst.msk [vmem:[#allocation2 + $0x1a8] sm:$0xff] %vm7786, %v7701
    %7841 = vst.msk [vmem:[#allocation2 + $0x1b0] sm:$0xff] %vm7786, %v7703
    %7842 = vst.msk [vmem:[#allocation2 + $0x1b8] sm:$0xff] %vm7786, %v7705
    %7843 = vst.msk [vmem:[#allocation2 + $0x1c0] sm:$0xff] %vm7786, %v7707
    %7844 = vst.msk [vmem:[#allocation2 + $0x1c8] sm:$0xff] %vm7786, %v7709
    %7845 = vst.msk [vmem:[#allocation2 + $0x1d0] sm:$0xff] %vm7786, %v7711
    %7846 = vst.msk [vmem:[#allocation2 + $0x1d8] sm:$0xff] %vm7786, %v7713
    %7847 = vst.msk [vmem:[#allocation2 + $0x1e0] sm:$0xff] %vm7786, %v7715
    %7848 = vst.msk [vmem:[#allocation2 + $0x1e8] sm:$0xff] %vm7786, %v7717
    %7849 = vst.msk [vmem:[#allocation2 + $0x1f0] sm:$0xff] %vm7786, %v7719
    %7850 = vst.msk [vmem:[#allocation2 + $0x1f8] sm:$0xff] %vm7786, %v7721
    %s7851 = scalar_lea.vmem [#allocation6], 384
    %v7852 = vld [vmem:[%s7851] sm:$0xff]
    %v7853 = vld [vmem:[%s7851 + $0x8] sm:$0xff]
    %v7854 = vld [vmem:[%s7851 + $0x10] sm:$0xff]
    %v7855 = vld [vmem:[%s7851 + $0x18] sm:$0xff]
    %v7856 = vld [vmem:[%s7851 + $0x20] sm:$0xff]
    %v7857 = vld [vmem:[%s7851 + $0x28] sm:$0xff]
    %v7858 = vld [vmem:[%s7851 + $0x30] sm:$0xff]
    %v7859 = vld [vmem:[%s7851 + $0x38] sm:$0xff]
    %v7860 = vld [vmem:[%s7851 + $0x40] sm:$0xff]
    %v7861 = vld [vmem:[%s7851 + $0x48] sm:$0xff]
    %v7862 = vld [vmem:[%s7851 + $0x50] sm:$0xff]
    %v7863 = vld [vmem:[%s7851 + $0x58] sm:$0xff]
    %v7864 = vld [vmem:[%s7851 + $0x60] sm:$0xff]
    %v7865 = vld [vmem:[%s7851 + $0x68] sm:$0xff]
    %v7866 = vld [vmem:[%s7851 + $0x70] sm:$0xff]
    %v7867 = vld [vmem:[%s7851 + $0x78] sm:$0xff]
    %7868 = vrot.lane.b32.xlu0 %v2126, 104
    %v7869 = vpop.permute.xlu0 %7868
    %7870 = vrot.lane.b32.xlu0 %v2127, 104
    %v7871 = vpop.permute.xlu0 %7870
    %7872 = vrot.lane.b32.xlu0 %v2128, 104
    %v7873 = vpop.permute.xlu0 %7872
    %7874 = vrot.lane.b32.xlu0 %v2129, 104
    %v7875 = vpop.permute.xlu0 %7874
    %7876 = vrot.lane.b32.xlu0 %v2130, 104
    %v7877 = vpop.permute.xlu0 %7876
    %7878 = vrot.lane.b32.xlu0 %v2131, 104
    %v7879 = vpop.permute.xlu0 %7878
    %7880 = vrot.lane.b32.xlu0 %v2132, 104
    %v7881 = vpop.permute.xlu0 %7880
    %7882 = vrot.lane.b32.xlu0 %v2133, 104
    %v7883 = vpop.permute.xlu0 %7882
    %7884 = vrot.lane.b32.xlu0 %v2126, 72
    %v7885 = vpop.permute.xlu0 %7884
    %7886 = vrot.lane.b32.xlu0 %v2127, 72
    %v7887 = vpop.permute.xlu0 %7886
    %7888 = vrot.lane.b32.xlu0 %v2128, 72
    %v7889 = vpop.permute.xlu0 %7888
    %7890 = vrot.lane.b32.xlu0 %v2129, 72
    %v7891 = vpop.permute.xlu0 %7890
    %7892 = vrot.lane.b32.xlu0 %v2130, 72
    %v7893 = vpop.permute.xlu0 %7892
    %7894 = vrot.lane.b32.xlu0 %v2131, 72
    %v7895 = vpop.permute.xlu0 %7894
    %7896 = vrot.lane.b32.xlu0 %v2132, 72
    %v7897 = vpop.permute.xlu0 %7896
    %7898 = vrot.lane.b32.xlu0 %v2133, 72
    %v7899 = vpop.permute.xlu0 %7898
    %v7901 = vsel %vm2150, %v7869, 0
    %v7904 = vsel %vm2150, %v7871, 0
    %v7907 = vsel %vm2150, %v7873, 0
    %v7910 = vsel %vm2150, %v7875, 0
    %v7913 = vsel %vm2150, %v7877, 0
    %v7916 = vsel %vm2150, %v7879, 0
    %v7919 = vsel %vm2150, %v7881, 0
    %v7922 = vsel %vm2150, %v7883, 0
    %v7925 = vsel %vm2150, %v7885, 0
    %v7928 = vsel %vm2150, %v7887, 0
    %v7931 = vsel %vm2150, %v7889, 0
    %v7934 = vsel %vm2150, %v7891, 0
    %v7937 = vsel %vm2150, %v7893, 0
    %v7940 = vsel %vm2150, %v7895, 0
    %v7943 = vsel %vm2150, %v7897, 0
    %v7946 = vsel %vm2150, %v7899, 0
    %7948 = vmatpush.bf16.xpose.msra.mxu0 %v7946
    %7949 = vmatpush.bf16.xpose.msra.mxu0 %v7943
    %7950 = vmatpush.bf16.xpose.msra.mxu0 %v7940
    %7951 = vmatpush.bf16.xpose.msra.mxu0 %v7937
    %7952 = vmatpush.bf16.xpose.msra.mxu0 %v7934
    %7953 = vmatpush.bf16.xpose.msra.mxu0 %v7931
    %7954 = vmatpush.bf16.xpose.msra.mxu0 %v7928
    %7955 = vmatpush.bf16.xpose.msra.mxu0 %v7925
    %7956 = vmatmul.bf16.gmra.mxu0 %v7901
    %v7957 = vpop.f32.mrf.mxu0
    %v7958 = vadd.f32 %v7852, %v7957
    %v7959 = vpop.f32.mrf.mxu0
    %v7960 = vadd.f32 %v7853, %v7959
    %7961 = vmatmul.bf16.gmra.mxu0 %v7904
    %v7962 = vpop.f32.mrf.mxu0
    %v7963 = vadd.f32 %v7854, %v7962
    %v7964 = vpop.f32.mrf.mxu0
    %v7965 = vadd.f32 %v7855, %v7964
    %7966 = vmatmul.bf16.gmra.mxu0 %v7907
    %v7967 = vpop.f32.mrf.mxu0
    %v7968 = vadd.f32 %v7856, %v7967
    %v7969 = vpop.f32.mrf.mxu0
    %v7970 = vadd.f32 %v7857, %v7969
    %7971 = vmatmul.bf16.gmra.mxu0 %v7910
    %v7972 = vpop.f32.mrf.mxu0
    %v7973 = vadd.f32 %v7858, %v7972
    %v7974 = vpop.f32.mrf.mxu0
    %v7975 = vadd.f32 %v7859, %v7974
    %7976 = vmatmul.bf16.gmra.mxu0 %v7913
    %v7977 = vpop.f32.mrf.mxu0
    %v7978 = vadd.f32 %v7860, %v7977
    %v7979 = vpop.f32.mrf.mxu0
    %v7980 = vadd.f32 %v7861, %v7979
    %7981 = vmatmul.bf16.gmra.mxu0 %v7916
    %v7982 = vpop.f32.mrf.mxu0
    %v7983 = vadd.f32 %v7862, %v7982
    %v7984 = vpop.f32.mrf.mxu0
    %v7985 = vadd.f32 %v7863, %v7984
    %7986 = vmatmul.bf16.gmra.mxu0 %v7919
    %v7987 = vpop.f32.mrf.mxu0
    %v7988 = vadd.f32 %v7864, %v7987
    %v7989 = vpop.f32.mrf.mxu0
    %v7990 = vadd.f32 %v7865, %v7989
    %7991 = vmatmul.bf16.gmra.mxu0 %v7922
    %v7992 = vpop.f32.mrf.mxu0
    %v7993 = vadd.f32 %v7866, %v7992
    %v7994 = vpop.f32.mrf.mxu0
    %v7995 = vadd.f32 %v7867, %v7994
    %7996 = vdwg.mxu0
    %7997 = vrot.lane.b32.xlu0 %v2280, 104
    %v7998 = vpop.permute.xlu0 %7997
    %7999 = vrot.lane.b32.xlu0 %v2281, 104
    %v8000 = vpop.permute.xlu0 %7999
    %8001 = vrot.lane.b32.xlu0 %v2282, 104
    %v8002 = vpop.permute.xlu0 %8001
    %8003 = vrot.lane.b32.xlu0 %v2283, 104
    %v8004 = vpop.permute.xlu0 %8003
    %8005 = vrot.lane.b32.xlu0 %v2284, 104
    %v8006 = vpop.permute.xlu0 %8005
    %8007 = vrot.lane.b32.xlu0 %v2285, 104
    %v8008 = vpop.permute.xlu0 %8007
    %8009 = vrot.lane.b32.xlu0 %v2286, 104
    %v8010 = vpop.permute.xlu0 %8009
    %8011 = vrot.lane.b32.xlu0 %v2287, 104
    %v8012 = vpop.permute.xlu0 %8011
    %8013 = vrot.lane.b32.xlu0 %v2280, 72
    %v8014 = vpop.permute.xlu0 %8013
    %8015 = vrot.lane.b32.xlu0 %v2281, 72
    %v8016 = vpop.permute.xlu0 %8015
    %8017 = vrot.lane.b32.xlu0 %v2282, 72
    %v8018 = vpop.permute.xlu0 %8017
    %8019 = vrot.lane.b32.xlu0 %v2283, 72
    %v8020 = vpop.permute.xlu0 %8019
    %8021 = vrot.lane.b32.xlu0 %v2284, 72
    %v8022 = vpop.permute.xlu0 %8021
    %8023 = vrot.lane.b32.xlu0 %v2285, 72
    %v8024 = vpop.permute.xlu0 %8023
    %8025 = vrot.lane.b32.xlu0 %v2286, 72
    %v8026 = vpop.permute.xlu0 %8025
    %8027 = vrot.lane.b32.xlu0 %v2287, 72
    %v8028 = vpop.permute.xlu0 %8027
    %v8030 = vsel %vm2150, %v7998, 0
    %v8033 = vsel %vm2150, %v8000, 0
    %v8036 = vsel %vm2150, %v8002, 0
    %v8039 = vsel %vm2150, %v8004, 0
    %v8042 = vsel %vm2150, %v8006, 0
    %v8045 = vsel %vm2150, %v8008, 0
    %v8048 = vsel %vm2150, %v8010, 0
    %v8051 = vsel %vm2150, %v8012, 0
    %v8054 = vsel %vm2150, %v8014, 0
    %v8057 = vsel %vm2150, %v8016, 0
    %v8060 = vsel %vm2150, %v8018, 0
    %v8063 = vsel %vm2150, %v8020, 0
    %v8066 = vsel %vm2150, %v8022, 0
    %v8069 = vsel %vm2150, %v8024, 0
    %v8072 = vsel %vm2150, %v8026, 0
    %v8075 = vsel %vm2150, %v8028, 0
    %8077 = vmatpush.bf16.xpose.msra.mxu0 %v8075
    %8078 = vmatpush.bf16.xpose.msra.mxu0 %v8072
    %8079 = vmatpush.bf16.xpose.msra.mxu0 %v8069
    %8080 = vmatpush.bf16.xpose.msra.mxu0 %v8066
    %8081 = vmatpush.bf16.xpose.msra.mxu0 %v8063
    %8082 = vmatpush.bf16.xpose.msra.mxu0 %v8060
    %8083 = vmatpush.bf16.xpose.msra.mxu0 %v8057
    %8084 = vmatpush.bf16.xpose.msra.mxu0 %v8054
    %8085 = vmatmul.bf16.gmra.mxu0 %v8030
    %v8086 = vpop.f32.mrf.mxu0
    %v8087 = vadd.f32 %v7852, %v8086
    %v8088 = vpop.f32.mrf.mxu0
    %v8089 = vadd.f32 %v7853, %v8088
    %8090 = vmatmul.bf16.gmra.mxu0 %v8033
    %v8091 = vpop.f32.mrf.mxu0
    %v8092 = vadd.f32 %v7854, %v8091
    %v8093 = vpop.f32.mrf.mxu0
    %v8094 = vadd.f32 %v7855, %v8093
    %8095 = vmatmul.bf16.gmra.mxu0 %v8036
    %v8096 = vpop.f32.mrf.mxu0
    %v8097 = vadd.f32 %v7856, %v8096
    %v8098 = vpop.f32.mrf.mxu0
    %v8099 = vadd.f32 %v7857, %v8098
    %8100 = vmatmul.bf16.gmra.mxu0 %v8039
    %v8101 = vpop.f32.mrf.mxu0
    %v8102 = vadd.f32 %v7858, %v8101
    %v8103 = vpop.f32.mrf.mxu0
    %v8104 = vadd.f32 %v7859, %v8103
    %8105 = vmatmul.bf16.gmra.mxu0 %v8042
    %v8106 = vpop.f32.mrf.mxu0
    %v8107 = vadd.f32 %v7860, %v8106
    %v8108 = vpop.f32.mrf.mxu0
    %v8109 = vadd.f32 %v7861, %v8108
    %8110 = vmatmul.bf16.gmra.mxu0 %v8045
    %v8111 = vpop.f32.mrf.mxu0
    %v8112 = vadd.f32 %v7862, %v8111
    %v8113 = vpop.f32.mrf.mxu0
    %v8114 = vadd.f32 %v7863, %v8113
    %8115 = vmatmul.bf16.gmra.mxu0 %v8048
    %v8116 = vpop.f32.mrf.mxu0
    %v8117 = vadd.f32 %v7864, %v8116
    %v8118 = vpop.f32.mrf.mxu0
    %v8119 = vadd.f32 %v7865, %v8118
    %8120 = vmatmul.bf16.gmra.mxu0 %v8051
    %v8121 = vpop.f32.mrf.mxu0
    %v8122 = vadd.f32 %v7866, %v8121
    %v8123 = vpop.f32.mrf.mxu0
    %v8124 = vadd.f32 %v7867, %v8123
    %8125 = vdwg.mxu0
    %8126 = vrot.lane.b32.xlu0 %v2433, 104
    %v8127 = vpop.permute.xlu0 %8126
    %8128 = vrot.lane.b32.xlu0 %v2434, 104
    %v8129 = vpop.permute.xlu0 %8128
    %8130 = vrot.lane.b32.xlu0 %v2435, 104
    %v8131 = vpop.permute.xlu0 %8130
    %8132 = vrot.lane.b32.xlu0 %v2436, 104
    %v8133 = vpop.permute.xlu0 %8132
    %8134 = vrot.lane.b32.xlu0 %v2437, 104
    %v8135 = vpop.permute.xlu0 %8134
    %8136 = vrot.lane.b32.xlu0 %v2438, 104
    %v8137 = vpop.permute.xlu0 %8136
    %8138 = vrot.lane.b32.xlu0 %v2439, 104
    %v8139 = vpop.permute.xlu0 %8138
    %8140 = vrot.lane.b32.xlu0 %v2440, 104
    %v8141 = vpop.permute.xlu0 %8140
    %8142 = vrot.lane.b32.xlu0 %v2433, 72
    %v8143 = vpop.permute.xlu0 %8142
    %8144 = vrot.lane.b32.xlu0 %v2434, 72
    %v8145 = vpop.permute.xlu0 %8144
    %8146 = vrot.lane.b32.xlu0 %v2435, 72
    %v8147 = vpop.permute.xlu0 %8146
    %8148 = vrot.lane.b32.xlu0 %v2436, 72
    %v8149 = vpop.permute.xlu0 %8148
    %8150 = vrot.lane.b32.xlu0 %v2437, 72
    %v8151 = vpop.permute.xlu0 %8150
    %8152 = vrot.lane.b32.xlu0 %v2438, 72
    %v8153 = vpop.permute.xlu0 %8152
    %8154 = vrot.lane.b32.xlu0 %v2439, 72
    %v8155 = vpop.permute.xlu0 %8154
    %8156 = vrot.lane.b32.xlu0 %v2440, 72
    %v8157 = vpop.permute.xlu0 %8156
    %v8159 = vsel %vm2150, %v8127, 0
    %v8162 = vsel %vm2150, %v8129, 0
    %v8165 = vsel %vm2150, %v8131, 0
    %v8168 = vsel %vm2150, %v8133, 0
    %v8171 = vsel %vm2150, %v8135, 0
    %v8174 = vsel %vm2150, %v8137, 0
    %v8177 = vsel %vm2150, %v8139, 0
    %v8180 = vsel %vm2150, %v8141, 0
    %v8183 = vsel %vm2150, %v8143, 0
    %v8186 = vsel %vm2150, %v8145, 0
    %v8189 = vsel %vm2150, %v8147, 0
    %v8192 = vsel %vm2150, %v8149, 0
    %v8195 = vsel %vm2150, %v8151, 0
    %v8198 = vsel %vm2150, %v8153, 0
    %v8201 = vsel %vm2150, %v8155, 0
    %v8204 = vsel %vm2150, %v8157, 0
    %8206 = vmatpush.bf16.xpose.msra.mxu0 %v8204
    %8207 = vmatpush.bf16.xpose.msra.mxu0 %v8201
    %8208 = vmatpush.bf16.xpose.msra.mxu0 %v8198
    %8209 = vmatpush.bf16.xpose.msra.mxu0 %v8195
    %8210 = vmatpush.bf16.xpose.msra.mxu0 %v8192
    %8211 = vmatpush.bf16.xpose.msra.mxu0 %v8189
    %8212 = vmatpush.bf16.xpose.msra.mxu0 %v8186
    %8213 = vmatpush.bf16.xpose.msra.mxu0 %v8183
    %8214 = vmatmul.bf16.gmra.mxu0 %v8159
    %v8215 = vpop.f32.mrf.mxu0
    %v8216 = vadd.f32 %v7852, %v8215
    %v8217 = vpop.f32.mrf.mxu0
    %v8218 = vadd.f32 %v7853, %v8217
    %8219 = vmatmul.bf16.gmra.mxu0 %v8162
    %v8220 = vpop.f32.mrf.mxu0
    %v8221 = vadd.f32 %v7854, %v8220
    %v8222 = vpop.f32.mrf.mxu0
    %v8223 = vadd.f32 %v7855, %v8222
    %8224 = vmatmul.bf16.gmra.mxu0 %v8165
    %v8225 = vpop.f32.mrf.mxu0
    %v8226 = vadd.f32 %v7856, %v8225
    %v8227 = vpop.f32.mrf.mxu0
    %v8228 = vadd.f32 %v7857, %v8227
    %8229 = vmatmul.bf16.gmra.mxu0 %v8168
    %v8230 = vpop.f32.mrf.mxu0
    %v8231 = vadd.f32 %v7858, %v8230
    %v8232 = vpop.f32.mrf.mxu0
    %v8233 = vadd.f32 %v7859, %v8232
    %8234 = vmatmul.bf16.gmra.mxu0 %v8171
    %v8235 = vpop.f32.mrf.mxu0
    %v8236 = vadd.f32 %v7860, %v8235
    %v8237 = vpop.f32.mrf.mxu0
    %v8238 = vadd.f32 %v7861, %v8237
    %8239 = vmatmul.bf16.gmra.mxu0 %v8174
    %v8240 = vpop.f32.mrf.mxu0
    %v8241 = vadd.f32 %v7862, %v8240
    %v8242 = vpop.f32.mrf.mxu0
    %v8243 = vadd.f32 %v7863, %v8242
    %8244 = vmatmul.bf16.gmra.mxu0 %v8177
    %v8245 = vpop.f32.mrf.mxu0
    %v8246 = vadd.f32 %v7864, %v8245
    %v8247 = vpop.f32.mrf.mxu0
    %v8248 = vadd.f32 %v7865, %v8247
    %8249 = vmatmul.bf16.gmra.mxu0 %v8180
    %v8250 = vpop.f32.mrf.mxu0
    %v8251 = vadd.f32 %v7866, %v8250
    %v8252 = vpop.f32.mrf.mxu0
    %v8253 = vadd.f32 %v7867, %v8252
    %8254 = vdwg.mxu0
    %8255 = vrot.lane.b32.xlu0 %v2586, 104
    %v8256 = vpop.permute.xlu0 %8255
    %8257 = vrot.lane.b32.xlu0 %v2587, 104
    %v8258 = vpop.permute.xlu0 %8257
    %8259 = vrot.lane.b32.xlu0 %v2588, 104
    %v8260 = vpop.permute.xlu0 %8259
    %8261 = vrot.lane.b32.xlu0 %v2589, 104
    %v8262 = vpop.permute.xlu0 %8261
    %8263 = vrot.lane.b32.xlu0 %v2590, 104
    %v8264 = vpop.permute.xlu0 %8263
    %8265 = vrot.lane.b32.xlu0 %v2591, 104
    %v8266 = vpop.permute.xlu0 %8265
    %8267 = vrot.lane.b32.xlu0 %v2592, 104
    %v8268 = vpop.permute.xlu0 %8267
    %8269 = vrot.lane.b32.xlu0 %v2593, 104
    %v8270 = vpop.permute.xlu0 %8269
    %8271 = vrot.lane.b32.xlu0 %v2586, 72
    %v8272 = vpop.permute.xlu0 %8271
    %8273 = vrot.lane.b32.xlu0 %v2587, 72
    %v8274 = vpop.permute.xlu0 %8273
    %8275 = vrot.lane.b32.xlu0 %v2588, 72
    %v8276 = vpop.permute.xlu0 %8275
    %8277 = vrot.lane.b32.xlu0 %v2589, 72
    %v8278 = vpop.permute.xlu0 %8277
    %8279 = vrot.lane.b32.xlu0 %v2590, 72
    %v8280 = vpop.permute.xlu0 %8279
    %8281 = vrot.lane.b32.xlu0 %v2591, 72
    %v8282 = vpop.permute.xlu0 %8281
    %8283 = vrot.lane.b32.xlu0 %v2592, 72
    %v8284 = vpop.permute.xlu0 %8283
    %8285 = vrot.lane.b32.xlu0 %v2593, 72
    %v8286 = vpop.permute.xlu0 %8285
    %v8288 = vsel %vm2150, %v8256, 0
    %v8291 = vsel %vm2150, %v8258, 0
    %v8294 = vsel %vm2150, %v8260, 0
    %v8297 = vsel %vm2150, %v8262, 0
    %v8300 = vsel %vm2150, %v8264, 0
    %v8303 = vsel %vm2150, %v8266, 0
    %v8306 = vsel %vm2150, %v8268, 0
    %v8309 = vsel %vm2150, %v8270, 0
    %v8312 = vsel %vm2150, %v8272, 0
    %v8315 = vsel %vm2150, %v8274, 0
    %v8318 = vsel %vm2150, %v8276, 0
    %v8321 = vsel %vm2150, %v8278, 0
    %v8324 = vsel %vm2150, %v8280, 0
    %v8327 = vsel %vm2150, %v8282, 0
    %v8330 = vsel %vm2150, %v8284, 0
    %v8333 = vsel %vm2150, %v8286, 0
    %8335 = vmatpush.bf16.xpose.msra.mxu0 %v8333
    %8336 = vmatpush.bf16.xpose.msra.mxu0 %v8330
    %8337 = vmatpush.bf16.xpose.msra.mxu0 %v8327
    %8338 = vmatpush.bf16.xpose.msra.mxu0 %v8324
    %8339 = vmatpush.bf16.xpose.msra.mxu0 %v8321
    %8340 = vmatpush.bf16.xpose.msra.mxu0 %v8318
    %8341 = vmatpush.bf16.xpose.msra.mxu0 %v8315
    %8342 = vmatpush.bf16.xpose.msra.mxu0 %v8312
    %8343 = vmatmul.bf16.gmra.mxu0 %v8288
    %v8344 = vpop.f32.mrf.mxu0
    %v8345 = vadd.f32 %v7852, %v8344
    %v8346 = vpop.f32.mrf.mxu0
    %v8347 = vadd.f32 %v7853, %v8346
    %8348 = vmatmul.bf16.gmra.mxu0 %v8291
    %v8349 = vpop.f32.mrf.mxu0
    %v8350 = vadd.f32 %v7854, %v8349
    %v8351 = vpop.f32.mrf.mxu0
    %v8352 = vadd.f32 %v7855, %v8351
    %8353 = vmatmul.bf16.gmra.mxu0 %v8294
    %v8354 = vpop.f32.mrf.mxu0
    %v8355 = vadd.f32 %v7856, %v8354
    %v8356 = vpop.f32.mrf.mxu0
    %v8357 = vadd.f32 %v7857, %v8356
    %8358 = vmatmul.bf16.gmra.mxu0 %v8297
    %v8359 = vpop.f32.mrf.mxu0
    %v8360 = vadd.f32 %v7858, %v8359
    %v8361 = vpop.f32.mrf.mxu0
    %v8362 = vadd.f32 %v7859, %v8361
    %8363 = vmatmul.bf16.gmra.mxu0 %v8300
    %v8364 = vpop.f32.mrf.mxu0
    %v8365 = vadd.f32 %v7860, %v8364
    %v8366 = vpop.f32.mrf.mxu0
    %v8367 = vadd.f32 %v7861, %v8366
    %8368 = vmatmul.bf16.gmra.mxu0 %v8303
    %v8369 = vpop.f32.mrf.mxu0
    %v8370 = vadd.f32 %v7862, %v8369
    %v8371 = vpop.f32.mrf.mxu0
    %v8372 = vadd.f32 %v7863, %v8371
    %8373 = vmatmul.bf16.gmra.mxu0 %v8306
    %v8374 = vpop.f32.mrf.mxu0
    %v8375 = vadd.f32 %v7864, %v8374
    %v8376 = vpop.f32.mrf.mxu0
    %v8377 = vadd.f32 %v7865, %v8376
    %8378 = vmatmul.bf16.gmra.mxu0 %v8309
    %v8379 = vpop.f32.mrf.mxu0
    %v8380 = vadd.f32 %v7866, %v8379
    %v8381 = vpop.f32.mrf.mxu0
    %v8382 = vadd.f32 %v7867, %v8381
    %8383 = vdwg.mxu0
    %8384 = vmax.xlane.f32.xlu0 %v7958
    %v8385 = vpop.xlane.xlu0 %8384
    %8386 = vmax.xlane.f32.xlu0 %v7960
    %v8387 = vpop.xlane.xlu0 %8386
    %8388 = vmax.xlane.f32.xlu0 %v7963
    %v8389 = vpop.xlane.xlu0 %8388
    %8390 = vmax.xlane.f32.xlu0 %v7965
    %v8391 = vpop.xlane.xlu0 %8390
    %8392 = vmax.xlane.f32.xlu0 %v7968
    %v8393 = vpop.xlane.xlu0 %8392
    %8394 = vmax.xlane.f32.xlu0 %v7970
    %v8395 = vpop.xlane.xlu0 %8394
    %8396 = vmax.xlane.f32.xlu0 %v7973
    %v8397 = vpop.xlane.xlu0 %8396
    %8398 = vmax.xlane.f32.xlu0 %v7975
    %v8399 = vpop.xlane.xlu0 %8398
    %8400 = vmax.xlane.f32.xlu0 %v7978
    %v8401 = vpop.xlane.xlu0 %8400
    %8402 = vmax.xlane.f32.xlu0 %v7980
    %v8403 = vpop.xlane.xlu0 %8402
    %8404 = vmax.xlane.f32.xlu0 %v7983
    %v8405 = vpop.xlane.xlu0 %8404
    %8406 = vmax.xlane.f32.xlu0 %v7985
    %v8407 = vpop.xlane.xlu0 %8406
    %8408 = vmax.xlane.f32.xlu0 %v7988
    %v8409 = vpop.xlane.xlu0 %8408
    %8410 = vmax.xlane.f32.xlu0 %v7990
    %v8411 = vpop.xlane.xlu0 %8410
    %8412 = vmax.xlane.f32.xlu0 %v7993
    %v8413 = vpop.xlane.xlu0 %8412
    %8414 = vmax.xlane.f32.xlu0 %v7995
    %v8415 = vpop.xlane.xlu0 %8414
    %8416 = vmax.xlane.f32.xlu0 %v8087
    %v8417 = vpop.xlane.xlu0 %8416
    %8418 = vmax.xlane.f32.xlu0 %v8089
    %v8419 = vpop.xlane.xlu0 %8418
    %8420 = vmax.xlane.f32.xlu0 %v8092
    %v8421 = vpop.xlane.xlu0 %8420
    %8422 = vmax.xlane.f32.xlu0 %v8094
    %v8423 = vpop.xlane.xlu0 %8422
    %8424 = vmax.xlane.f32.xlu0 %v8097
    %v8425 = vpop.xlane.xlu0 %8424
    %8426 = vmax.xlane.f32.xlu0 %v8099
    %v8427 = vpop.xlane.xlu0 %8426
    %8428 = vmax.xlane.f32.xlu0 %v8102
    %v8429 = vpop.xlane.xlu0 %8428
    %8430 = vmax.xlane.f32.xlu0 %v8104
    %v8431 = vpop.xlane.xlu0 %8430
    %8432 = vmax.xlane.f32.xlu0 %v8107
    %v8433 = vpop.xlane.xlu0 %8432
    %8434 = vmax.xlane.f32.xlu0 %v8109
    %v8435 = vpop.xlane.xlu0 %8434
    %8436 = vmax.xlane.f32.xlu0 %v8112
    %v8437 = vpop.xlane.xlu0 %8436
    %8438 = vmax.xlane.f32.xlu0 %v8114
    %v8439 = vpop.xlane.xlu0 %8438
    %8440 = vmax.xlane.f32.xlu0 %v8117
    %v8441 = vpop.xlane.xlu0 %8440
    %8442 = vmax.xlane.f32.xlu0 %v8119
    %v8443 = vpop.xlane.xlu0 %8442
    %8444 = vmax.xlane.f32.xlu0 %v8122
    %v8445 = vpop.xlane.xlu0 %8444
    %8446 = vmax.xlane.f32.xlu0 %v8124
    %v8447 = vpop.xlane.xlu0 %8446
    %8448 = vmax.xlane.f32.xlu0 %v8216
    %v8449 = vpop.xlane.xlu0 %8448
    %8450 = vmax.xlane.f32.xlu0 %v8218
    %v8451 = vpop.xlane.xlu0 %8450
    %8452 = vmax.xlane.f32.xlu0 %v8221
    %v8453 = vpop.xlane.xlu0 %8452
    %8454 = vmax.xlane.f32.xlu0 %v8223
    %v8455 = vpop.xlane.xlu0 %8454
    %8456 = vmax.xlane.f32.xlu0 %v8226
    %v8457 = vpop.xlane.xlu0 %8456
    %8458 = vmax.xlane.f32.xlu0 %v8228
    %v8459 = vpop.xlane.xlu0 %8458
    %8460 = vmax.xlane.f32.xlu0 %v8231
    %v8461 = vpop.xlane.xlu0 %8460
    %8462 = vmax.xlane.f32.xlu0 %v8233
    %v8463 = vpop.xlane.xlu0 %8462
    %8464 = vmax.xlane.f32.xlu0 %v8236
    %v8465 = vpop.xlane.xlu0 %8464
    %8466 = vmax.xlane.f32.xlu0 %v8238
    %v8467 = vpop.xlane.xlu0 %8466
    %8468 = vmax.xlane.f32.xlu0 %v8241
    %v8469 = vpop.xlane.xlu0 %8468
    %8470 = vmax.xlane.f32.xlu0 %v8243
    %v8471 = vpop.xlane.xlu0 %8470
    %8472 = vmax.xlane.f32.xlu0 %v8246
    %v8473 = vpop.xlane.xlu0 %8472
    %8474 = vmax.xlane.f32.xlu0 %v8248
    %v8475 = vpop.xlane.xlu0 %8474
    %8476 = vmax.xlane.f32.xlu0 %v8251
    %v8477 = vpop.xlane.xlu0 %8476
    %8478 = vmax.xlane.f32.xlu0 %v8253
    %v8479 = vpop.xlane.xlu0 %8478
    %8480 = vmax.xlane.f32.xlu0 %v8345
    %v8481 = vpop.xlane.xlu0 %8480
    %8482 = vmax.xlane.f32.xlu0 %v8347
    %v8483 = vpop.xlane.xlu0 %8482
    %8484 = vmax.xlane.f32.xlu0 %v8350
    %v8485 = vpop.xlane.xlu0 %8484
    %8486 = vmax.xlane.f32.xlu0 %v8352
    %v8487 = vpop.xlane.xlu0 %8486
    %8488 = vmax.xlane.f32.xlu0 %v8355
    %v8489 = vpop.xlane.xlu0 %8488
    %8490 = vmax.xlane.f32.xlu0 %v8357
    %v8491 = vpop.xlane.xlu0 %8490
    %8492 = vmax.xlane.f32.xlu0 %v8360
    %v8493 = vpop.xlane.xlu0 %8492
    %8494 = vmax.xlane.f32.xlu0 %v8362
    %v8495 = vpop.xlane.xlu0 %8494
    %8496 = vmax.xlane.f32.xlu0 %v8365
    %v8497 = vpop.xlane.xlu0 %8496
    %8498 = vmax.xlane.f32.xlu0 %v8367
    %v8499 = vpop.xlane.xlu0 %8498
    %8500 = vmax.xlane.f32.xlu0 %v8370
    %v8501 = vpop.xlane.xlu0 %8500
    %8502 = vmax.xlane.f32.xlu0 %v8372
    %v8503 = vpop.xlane.xlu0 %8502
    %8504 = vmax.xlane.f32.xlu0 %v8375
    %v8505 = vpop.xlane.xlu0 %8504
    %8506 = vmax.xlane.f32.xlu0 %v8377
    %v8507 = vpop.xlane.xlu0 %8506
    %8508 = vmax.xlane.f32.xlu0 %v8380
    %v8509 = vpop.xlane.xlu0 %8508
    %8510 = vmax.xlane.f32.xlu0 %v8382
    %v8511 = vpop.xlane.xlu0 %8510
    %v8512 = vsub.f32 %v7958, %v8385
    %v8513 = vsub.f32 %v7960, %v8387
    %v8514 = vsub.f32 %v7963, %v8389
    %v8515 = vsub.f32 %v7965, %v8391
    %v8516 = vsub.f32 %v7968, %v8393
    %v8517 = vsub.f32 %v7970, %v8395
    %v8518 = vsub.f32 %v7973, %v8397
    %v8519 = vsub.f32 %v7975, %v8399
    %v8520 = vsub.f32 %v7978, %v8401
    %v8521 = vsub.f32 %v7980, %v8403
    %v8522 = vsub.f32 %v7983, %v8405
    %v8523 = vsub.f32 %v7985, %v8407
    %v8524 = vsub.f32 %v7988, %v8409
    %v8525 = vsub.f32 %v7990, %v8411
    %v8526 = vsub.f32 %v7993, %v8413
    %v8527 = vsub.f32 %v7995, %v8415
    %v8528 = vsub.f32 %v8087, %v8417
    %v8529 = vsub.f32 %v8089, %v8419
    %v8530 = vsub.f32 %v8092, %v8421
    %v8531 = vsub.f32 %v8094, %v8423
    %v8532 = vsub.f32 %v8097, %v8425
    %v8533 = vsub.f32 %v8099, %v8427
    %v8534 = vsub.f32 %v8102, %v8429
    %v8535 = vsub.f32 %v8104, %v8431
    %v8536 = vsub.f32 %v8107, %v8433
    %v8537 = vsub.f32 %v8109, %v8435
    %v8538 = vsub.f32 %v8112, %v8437
    %v8539 = vsub.f32 %v8114, %v8439
    %v8540 = vsub.f32 %v8117, %v8441
    %v8541 = vsub.f32 %v8119, %v8443
    %v8542 = vsub.f32 %v8122, %v8445
    %v8543 = vsub.f32 %v8124, %v8447
    %v8544 = vsub.f32 %v8216, %v8449
    %v8545 = vsub.f32 %v8218, %v8451
    %v8546 = vsub.f32 %v8221, %v8453
    %v8547 = vsub.f32 %v8223, %v8455
    %v8548 = vsub.f32 %v8226, %v8457
    %v8549 = vsub.f32 %v8228, %v8459
    %v8550 = vsub.f32 %v8231, %v8461
    %v8551 = vsub.f32 %v8233, %v8463
    %v8552 = vsub.f32 %v8236, %v8465
    %v8553 = vsub.f32 %v8238, %v8467
    %v8554 = vsub.f32 %v8241, %v8469
    %v8555 = vsub.f32 %v8243, %v8471
    %v8556 = vsub.f32 %v8246, %v8473
    %v8557 = vsub.f32 %v8248, %v8475
    %v8558 = vsub.f32 %v8251, %v8477
    %v8559 = vsub.f32 %v8253, %v8479
    %v8560 = vsub.f32 %v8345, %v8481
    %v8561 = vsub.f32 %v8347, %v8483
    %v8562 = vsub.f32 %v8350, %v8485
    %v8563 = vsub.f32 %v8352, %v8487
    %v8564 = vsub.f32 %v8355, %v8489
    %v8565 = vsub.f32 %v8357, %v8491
    %v8566 = vsub.f32 %v8360, %v8493
    %v8567 = vsub.f32 %v8362, %v8495
    %v8568 = vsub.f32 %v8365, %v8497
    %v8569 = vsub.f32 %v8367, %v8499
    %v8570 = vsub.f32 %v8370, %v8501
    %v8571 = vsub.f32 %v8372, %v8503
    %v8572 = vsub.f32 %v8375, %v8505
    %v8573 = vsub.f32 %v8377, %v8507
    %v8574 = vsub.f32 %v8380, %v8509
    %v8575 = vsub.f32 %v8382, %v8511
    %v8576 = vmul.f32 %v8512, 1.442695
    %v8577 = vpow.pop %v8576
    %v8578 = vmul.f32 %v8513, 1.442695
    %v8579 = vpow.pop %v8578
    %v8580 = vmul.f32 %v8514, 1.442695
    %v8581 = vpow.pop %v8580
    %v8582 = vmul.f32 %v8515, 1.442695
    %v8583 = vpow.pop %v8582
    %v8584 = vmul.f32 %v8516, 1.442695
    %v8585 = vpow.pop %v8584
    %v8586 = vmul.f32 %v8517, 1.442695
    %v8587 = vpow.pop %v8586
    %v8588 = vmul.f32 %v8518, 1.442695
    %v8589 = vpow.pop %v8588
    %v8590 = vmul.f32 %v8519, 1.442695
    %v8591 = vpow.pop %v8590
    %v8592 = vmul.f32 %v8520, 1.442695
    %v8593 = vpow.pop %v8592
    %v8594 = vmul.f32 %v8521, 1.442695
    %v8595 = vpow.pop %v8594
    %v8596 = vmul.f32 %v8522, 1.442695
    %v8597 = vpow.pop %v8596
    %v8598 = vmul.f32 %v8523, 1.442695
    %v8599 = vpow.pop %v8598
    %v8600 = vmul.f32 %v8524, 1.442695
    %v8601 = vpow.pop %v8600
    %v8602 = vmul.f32 %v8525, 1.442695
    %v8603 = vpow.pop %v8602
    %v8604 = vmul.f32 %v8526, 1.442695
    %v8605 = vpow.pop %v8604
    %v8606 = vmul.f32 %v8527, 1.442695
    %v8607 = vpow.pop %v8606
    %v8608 = vmul.f32 %v8528, 1.442695
    %v8609 = vpow.pop %v8608
    %v8610 = vmul.f32 %v8529, 1.442695
    %v8611 = vpow.pop %v8610
    %v8612 = vmul.f32 %v8530, 1.442695
    %v8613 = vpow.pop %v8612
    %v8614 = vmul.f32 %v8531, 1.442695
    %v8615 = vpow.pop %v8614
    %v8616 = vmul.f32 %v8532, 1.442695
    %v8617 = vpow.pop %v8616
    %v8618 = vmul.f32 %v8533, 1.442695
    %v8619 = vpow.pop %v8618
    %v8620 = vmul.f32 %v8534, 1.442695
    %v8621 = vpow.pop %v8620
    %v8622 = vmul.f32 %v8535, 1.442695
    %v8623 = vpow.pop %v8622
    %v8624 = vmul.f32 %v8536, 1.442695
    %v8625 = vpow.pop %v8624
    %v8626 = vmul.f32 %v8537, 1.442695
    %v8627 = vpow.pop %v8626
    %v8628 = vmul.f32 %v8538, 1.442695
    %v8629 = vpow.pop %v8628
    %v8630 = vmul.f32 %v8539, 1.442695
    %v8631 = vpow.pop %v8630
    %v8632 = vmul.f32 %v8540, 1.442695
    %v8633 = vpow.pop %v8632
    %v8634 = vmul.f32 %v8541, 1.442695
    %v8635 = vpow.pop %v8634
    %v8636 = vmul.f32 %v8542, 1.442695
    %v8637 = vpow.pop %v8636
    %v8638 = vmul.f32 %v8543, 1.442695
    %v8639 = vpow.pop %v8638
    %v8640 = vmul.f32 %v8544, 1.442695
    %v8641 = vpow.pop %v8640
    %v8642 = vmul.f32 %v8545, 1.442695
    %v8643 = vpow.pop %v8642
    %v8644 = vmul.f32 %v8546, 1.442695
    %v8645 = vpow.pop %v8644
    %v8646 = vmul.f32 %v8547, 1.442695
    %v8647 = vpow.pop %v8646
    %v8648 = vmul.f32 %v8548, 1.442695
    %v8649 = vpow.pop %v8648
    %v8650 = vmul.f32 %v8549, 1.442695
    %v8651 = vpow.pop %v8650
    %v8652 = vmul.f32 %v8550, 1.442695
    %v8653 = vpow.pop %v8652
    %v8654 = vmul.f32 %v8551, 1.442695
    %v8655 = vpow.pop %v8654
    %v8656 = vmul.f32 %v8552, 1.442695
    %v8657 = vpow.pop %v8656
    %v8658 = vmul.f32 %v8553, 1.442695
    %v8659 = vpow.pop %v8658
    %v8660 = vmul.f32 %v8554, 1.442695
    %v8661 = vpow.pop %v8660
    %v8662 = vmul.f32 %v8555, 1.442695
    %v8663 = vpow.pop %v8662
    %v8664 = vmul.f32 %v8556, 1.442695
    %v8665 = vpow.pop %v8664
    %v8666 = vmul.f32 %v8557, 1.442695
    %v8667 = vpow.pop %v8666
    %v8668 = vmul.f32 %v8558, 1.442695
    %v8669 = vpow.pop %v8668
    %v8670 = vmul.f32 %v8559, 1.442695
    %v8671 = vpow.pop %v8670
    %v8672 = vmul.f32 %v8560, 1.442695
    %v8673 = vpow.pop %v8672
    %v8674 = vmul.f32 %v8561, 1.442695
    %v8675 = vpow.pop %v8674
    %v8676 = vmul.f32 %v8562, 1.442695
    %v8677 = vpow.pop %v8676
    %v8678 = vmul.f32 %v8563, 1.442695
    %v8679 = vpow.pop %v8678
    %v8680 = vmul.f32 %v8564, 1.442695
    %v8681 = vpow.pop %v8680
    %v8682 = vmul.f32 %v8565, 1.442695
    %v8683 = vpow.pop %v8682
    %v8684 = vmul.f32 %v8566, 1.442695
    %v8685 = vpow.pop %v8684
    %v8686 = vmul.f32 %v8567, 1.442695
    %v8687 = vpow.pop %v8686
    %v8688 = vmul.f32 %v8568, 1.442695
    %v8689 = vpow.pop %v8688
    %v8690 = vmul.f32 %v8569, 1.442695
    %v8691 = vpow.pop %v8690
    %v8692 = vmul.f32 %v8570, 1.442695
    %v8693 = vpow.pop %v8692
    %v8694 = vmul.f32 %v8571, 1.442695
    %v8695 = vpow.pop %v8694
    %v8696 = vmul.f32 %v8572, 1.442695
    %v8697 = vpow.pop %v8696
    %v8698 = vmul.f32 %v8573, 1.442695
    %v8699 = vpow.pop %v8698
    %v8700 = vmul.f32 %v8574, 1.442695
    %v8701 = vpow.pop %v8700
    %v8702 = vmul.f32 %v8575, 1.442695
    %v8703 = vpow.pop %v8702
    %8704 = vadd.xlane.f32.xlu0 %v8577
    %v8705 = vpop.xlane.xlu0 %8704
    %8706 = vadd.xlane.f32.xlu0 %v8579
    %v8707 = vpop.xlane.xlu0 %8706
    %8708 = vadd.xlane.f32.xlu0 %v8581
    %v8709 = vpop.xlane.xlu0 %8708
    %8710 = vadd.xlane.f32.xlu0 %v8583
    %v8711 = vpop.xlane.xlu0 %8710
    %8712 = vadd.xlane.f32.xlu0 %v8585
    %v8713 = vpop.xlane.xlu0 %8712
    %8714 = vadd.xlane.f32.xlu0 %v8587
    %v8715 = vpop.xlane.xlu0 %8714
    %8716 = vadd.xlane.f32.xlu0 %v8589
    %v8717 = vpop.xlane.xlu0 %8716
    %8718 = vadd.xlane.f32.xlu0 %v8591
    %v8719 = vpop.xlane.xlu0 %8718
    %8720 = vadd.xlane.f32.xlu0 %v8593
    %v8721 = vpop.xlane.xlu0 %8720
    %8722 = vadd.xlane.f32.xlu0 %v8595
    %v8723 = vpop.xlane.xlu0 %8722
    %8724 = vadd.xlane.f32.xlu0 %v8597
    %v8725 = vpop.xlane.xlu0 %8724
    %8726 = vadd.xlane.f32.xlu0 %v8599
    %v8727 = vpop.xlane.xlu0 %8726
    %8728 = vadd.xlane.f32.xlu0 %v8601
    %v8729 = vpop.xlane.xlu0 %8728
    %8730 = vadd.xlane.f32.xlu0 %v8603
    %v8731 = vpop.xlane.xlu0 %8730
    %8732 = vadd.xlane.f32.xlu0 %v8605
    %v8733 = vpop.xlane.xlu0 %8732
    %8734 = vadd.xlane.f32.xlu0 %v8607
    %v8735 = vpop.xlane.xlu0 %8734
    %8736 = vadd.xlane.f32.xlu0 %v8609
    %v8737 = vpop.xlane.xlu0 %8736
    %8738 = vadd.xlane.f32.xlu0 %v8611
    %v8739 = vpop.xlane.xlu0 %8738
    %8740 = vadd.xlane.f32.xlu0 %v8613
    %v8741 = vpop.xlane.xlu0 %8740
    %8742 = vadd.xlane.f32.xlu0 %v8615
    %v8743 = vpop.xlane.xlu0 %8742
    %8744 = vadd.xlane.f32.xlu0 %v8617
    %v8745 = vpop.xlane.xlu0 %8744
    %8746 = vadd.xlane.f32.xlu0 %v8619
    %v8747 = vpop.xlane.xlu0 %8746
    %8748 = vadd.xlane.f32.xlu0 %v8621
    %v8749 = vpop.xlane.xlu0 %8748
    %8750 = vadd.xlane.f32.xlu0 %v8623
    %v8751 = vpop.xlane.xlu0 %8750
    %8752 = vadd.xlane.f32.xlu0 %v8625
    %v8753 = vpop.xlane.xlu0 %8752
    %8754 = vadd.xlane.f32.xlu0 %v8627
    %v8755 = vpop.xlane.xlu0 %8754
    %8756 = vadd.xlane.f32.xlu0 %v8629
    %v8757 = vpop.xlane.xlu0 %8756
    %8758 = vadd.xlane.f32.xlu0 %v8631
    %v8759 = vpop.xlane.xlu0 %8758
    %8760 = vadd.xlane.f32.xlu0 %v8633
    %v8761 = vpop.xlane.xlu0 %8760
    %8762 = vadd.xlane.f32.xlu0 %v8635
    %v8763 = vpop.xlane.xlu0 %8762
    %8764 = vadd.xlane.f32.xlu0 %v8637
    %v8765 = vpop.xlane.xlu0 %8764
    %8766 = vadd.xlane.f32.xlu0 %v8639
    %v8767 = vpop.xlane.xlu0 %8766
    %8768 = vadd.xlane.f32.xlu0 %v8641
    %v8769 = vpop.xlane.xlu0 %8768
    %8770 = vadd.xlane.f32.xlu0 %v8643
    %v8771 = vpop.xlane.xlu0 %8770
    %8772 = vadd.xlane.f32.xlu0 %v8645
    %v8773 = vpop.xlane.xlu0 %8772
    %8774 = vadd.xlane.f32.xlu0 %v8647
    %v8775 = vpop.xlane.xlu0 %8774
    %8776 = vadd.xlane.f32.xlu0 %v8649
    %v8777 = vpop.xlane.xlu0 %8776
    %8778 = vadd.xlane.f32.xlu0 %v8651
    %v8779 = vpop.xlane.xlu0 %8778
    %8780 = vadd.xlane.f32.xlu0 %v8653
    %v8781 = vpop.xlane.xlu0 %8780
    %8782 = vadd.xlane.f32.xlu0 %v8655
    %v8783 = vpop.xlane.xlu0 %8782
    %8784 = vadd.xlane.f32.xlu0 %v8657
    %v8785 = vpop.xlane.xlu0 %8784
    %8786 = vadd.xlane.f32.xlu0 %v8659
    %v8787 = vpop.xlane.xlu0 %8786
    %8788 = vadd.xlane.f32.xlu0 %v8661
    %v8789 = vpop.xlane.xlu0 %8788
    %8790 = vadd.xlane.f32.xlu0 %v8663
    %v8791 = vpop.xlane.xlu0 %8790
    %8792 = vadd.xlane.f32.xlu0 %v8665
    %v8793 = vpop.xlane.xlu0 %8792
    %8794 = vadd.xlane.f32.xlu0 %v8667
    %v8795 = vpop.xlane.xlu0 %8794
    %8796 = vadd.xlane.f32.xlu0 %v8669
    %v8797 = vpop.xlane.xlu0 %8796
    %8798 = vadd.xlane.f32.xlu0 %v8671
    %v8799 = vpop.xlane.xlu0 %8798
    %8800 = vadd.xlane.f32.xlu0 %v8673
    %v8801 = vpop.xlane.xlu0 %8800
    %8802 = vadd.xlane.f32.xlu0 %v8675
    %v8803 = vpop.xlane.xlu0 %8802
    %8804 = vadd.xlane.f32.xlu0 %v8677
    %v8805 = vpop.xlane.xlu0 %8804
    %8806 = vadd.xlane.f32.xlu0 %v8679
    %v8807 = vpop.xlane.xlu0 %8806
    %8808 = vadd.xlane.f32.xlu0 %v8681
    %v8809 = vpop.xlane.xlu0 %8808
    %8810 = vadd.xlane.f32.xlu0 %v8683
    %v8811 = vpop.xlane.xlu0 %8810
    %8812 = vadd.xlane.f32.xlu0 %v8685
    %v8813 = vpop.xlane.xlu0 %8812
    %8814 = vadd.xlane.f32.xlu0 %v8687
    %v8815 = vpop.xlane.xlu0 %8814
    %8816 = vadd.xlane.f32.xlu0 %v8689
    %v8817 = vpop.xlane.xlu0 %8816
    %8818 = vadd.xlane.f32.xlu0 %v8691
    %v8819 = vpop.xlane.xlu0 %8818
    %8820 = vadd.xlane.f32.xlu0 %v8693
    %v8821 = vpop.xlane.xlu0 %8820
    %8822 = vadd.xlane.f32.xlu0 %v8695
    %v8823 = vpop.xlane.xlu0 %8822
    %8824 = vadd.xlane.f32.xlu0 %v8697
    %v8825 = vpop.xlane.xlu0 %8824
    %8826 = vadd.xlane.f32.xlu0 %v8699
    %v8827 = vpop.xlane.xlu0 %8826
    %8828 = vadd.xlane.f32.xlu0 %v8701
    %v8829 = vpop.xlane.xlu0 %8828
    %8830 = vadd.xlane.f32.xlu0 %v8703
    %v8831 = vpop.xlane.xlu0 %8830
    %v8832 = vrcp.pop %v8705
    %v8833 = vrcp.pop %v8707
    %v8834 = vrcp.pop %v8709
    %v8835 = vrcp.pop %v8711
    %v8836 = vrcp.pop %v8713
    %v8837 = vrcp.pop %v8715
    %v8838 = vrcp.pop %v8717
    %v8839 = vrcp.pop %v8719
    %v8840 = vrcp.pop %v8721
    %v8841 = vrcp.pop %v8723
    %v8842 = vrcp.pop %v8725
    %v8843 = vrcp.pop %v8727
    %v8844 = vrcp.pop %v8729
    %v8845 = vrcp.pop %v8731
    %v8846 = vrcp.pop %v8733
    %v8847 = vrcp.pop %v8735
    %v8848 = vrcp.pop %v8737
    %v8849 = vrcp.pop %v8739
    %v8850 = vrcp.pop %v8741
    %v8851 = vrcp.pop %v8743
    %v8852 = vrcp.pop %v8745
    %v8853 = vrcp.pop %v8747
    %v8854 = vrcp.pop %v8749
    %v8855 = vrcp.pop %v8751
    %v8856 = vrcp.pop %v8753
    %v8857 = vrcp.pop %v8755
    %v8858 = vrcp.pop %v8757
    %v8859 = vrcp.pop %v8759
    %v8860 = vrcp.pop %v8761
    %v8861 = vrcp.pop %v8763
    %v8862 = vrcp.pop %v8765
    %v8863 = vrcp.pop %v8767
    %v8864 = vrcp.pop %v8769
    %v8865 = vrcp.pop %v8771
    %v8866 = vrcp.pop %v8773
    %v8867 = vrcp.pop %v8775
    %v8868 = vrcp.pop %v8777
    %v8869 = vrcp.pop %v8779
    %v8870 = vrcp.pop %v8781
    %v8871 = vrcp.pop %v8783
    %v8872 = vrcp.pop %v8785
    %v8873 = vrcp.pop %v8787
    %v8874 = vrcp.pop %v8789
    %v8875 = vrcp.pop %v8791
    %v8876 = vrcp.pop %v8793
    %v8877 = vrcp.pop %v8795
    %v8878 = vrcp.pop %v8797
    %v8879 = vrcp.pop %v8799
    %v8880 = vrcp.pop %v8801
    %v8881 = vrcp.pop %v8803
    %v8882 = vrcp.pop %v8805
    %v8883 = vrcp.pop %v8807
    %v8884 = vrcp.pop %v8809
    %v8885 = vrcp.pop %v8811
    %v8886 = vrcp.pop %v8813
    %v8887 = vrcp.pop %v8815
    %v8888 = vrcp.pop %v8817
    %v8889 = vrcp.pop %v8819
    %v8890 = vrcp.pop %v8821
    %v8891 = vrcp.pop %v8823
    %v8892 = vrcp.pop %v8825
    %v8893 = vrcp.pop %v8827
    %v8894 = vrcp.pop %v8829
    %v8895 = vrcp.pop %v8831
    %v8896 = vmul.f32 %v8577, %v8832
    %v8897 = vmul.f32 %v8579, %v8833
    %v8898 = vmul.f32 %v8581, %v8834
    %v8899 = vmul.f32 %v8583, %v8835
    %v8900 = vmul.f32 %v8585, %v8836
    %v8901 = vmul.f32 %v8587, %v8837
    %v8902 = vmul.f32 %v8589, %v8838
    %v8903 = vmul.f32 %v8591, %v8839
    %v8904 = vmul.f32 %v8593, %v8840
    %v8905 = vmul.f32 %v8595, %v8841
    %v8906 = vmul.f32 %v8597, %v8842
    %v8907 = vmul.f32 %v8599, %v8843
    %v8908 = vmul.f32 %v8601, %v8844
    %v8909 = vmul.f32 %v8603, %v8845
    %v8910 = vmul.f32 %v8605, %v8846
    %v8911 = vmul.f32 %v8607, %v8847
    %v8912 = vmul.f32 %v8609, %v8848
    %v8913 = vmul.f32 %v8611, %v8849
    %v8914 = vmul.f32 %v8613, %v8850
    %v8915 = vmul.f32 %v8615, %v8851
    %v8916 = vmul.f32 %v8617, %v8852
    %v8917 = vmul.f32 %v8619, %v8853
    %v8918 = vmul.f32 %v8621, %v8854
    %v8919 = vmul.f32 %v8623, %v8855
    %v8920 = vmul.f32 %v8625, %v8856
    %v8921 = vmul.f32 %v8627, %v8857
    %v8922 = vmul.f32 %v8629, %v8858
    %v8923 = vmul.f32 %v8631, %v8859
    %v8924 = vmul.f32 %v8633, %v8860
    %v8925 = vmul.f32 %v8635, %v8861
    %v8926 = vmul.f32 %v8637, %v8862
    %v8927 = vmul.f32 %v8639, %v8863
    %v8928 = vmul.f32 %v8641, %v8864
    %v8929 = vmul.f32 %v8643, %v8865
    %v8930 = vmul.f32 %v8645, %v8866
    %v8931 = vmul.f32 %v8647, %v8867
    %v8932 = vmul.f32 %v8649, %v8868
    %v8933 = vmul.f32 %v8651, %v8869
    %v8934 = vmul.f32 %v8653, %v8870
    %v8935 = vmul.f32 %v8655, %v8871
    %v8936 = vmul.f32 %v8657, %v8872
    %v8937 = vmul.f32 %v8659, %v8873
    %v8938 = vmul.f32 %v8661, %v8874
    %v8939 = vmul.f32 %v8663, %v8875
    %v8940 = vmul.f32 %v8665, %v8876
    %v8941 = vmul.f32 %v8667, %v8877
    %v8942 = vmul.f32 %v8669, %v8878
    %v8943 = vmul.f32 %v8671, %v8879
    %v8944 = vmul.f32 %v8673, %v8880
    %v8945 = vmul.f32 %v8675, %v8881
    %v8946 = vmul.f32 %v8677, %v8882
    %v8947 = vmul.f32 %v8679, %v8883
    %v8948 = vmul.f32 %v8681, %v8884
    %v8949 = vmul.f32 %v8683, %v8885
    %v8950 = vmul.f32 %v8685, %v8886
    %v8951 = vmul.f32 %v8687, %v8887
    %v8952 = vmul.f32 %v8689, %v8888
    %v8953 = vmul.f32 %v8691, %v8889
    %v8954 = vmul.f32 %v8693, %v8890
    %v8955 = vmul.f32 %v8695, %v8891
    %v8956 = vmul.f32 %v8697, %v8892
    %v8957 = vmul.f32 %v8699, %v8893
    %v8958 = vmul.f32 %v8701, %v8894
    %v8959 = vmul.f32 %v8703, %v8895
    %v8960 = vpack.c.bf16 %v8896, %v8896
    %v8961 = vpack.c.bf16 %v8897, %v8897
    %v8962 = vpack.c.bf16 %v8898, %v8898
    %v8963 = vpack.c.bf16 %v8899, %v8899
    %v8964 = vpack.c.bf16 %v8900, %v8900
    %v8965 = vpack.c.bf16 %v8901, %v8901
    %v8966 = vpack.c.bf16 %v8902, %v8902
    %v8967 = vpack.c.bf16 %v8903, %v8903
    %v8968 = vpack.c.bf16 %v8904, %v8904
    %v8969 = vpack.c.bf16 %v8905, %v8905
    %v8970 = vpack.c.bf16 %v8906, %v8906
    %v8971 = vpack.c.bf16 %v8907, %v8907
    %v8972 = vpack.c.bf16 %v8908, %v8908
    %v8973 = vpack.c.bf16 %v8909, %v8909
    %v8974 = vpack.c.bf16 %v8910, %v8910
    %v8975 = vpack.c.bf16 %v8911, %v8911
    %v8976 = vpack.c.bf16 %v8912, %v8912
    %v8977 = vpack.c.bf16 %v8913, %v8913
    %v8978 = vpack.c.bf16 %v8914, %v8914
    %v8979 = vpack.c.bf16 %v8915, %v8915
    %v8980 = vpack.c.bf16 %v8916, %v8916
    %v8981 = vpack.c.bf16 %v8917, %v8917
    %v8982 = vpack.c.bf16 %v8918, %v8918
    %v8983 = vpack.c.bf16 %v8919, %v8919
    %v8984 = vpack.c.bf16 %v8920, %v8920
    %v8985 = vpack.c.bf16 %v8921, %v8921
    %v8986 = vpack.c.bf16 %v8922, %v8922
    %v8987 = vpack.c.bf16 %v8923, %v8923
    %v8988 = vpack.c.bf16 %v8924, %v8924
    %v8989 = vpack.c.bf16 %v8925, %v8925
    %v8990 = vpack.c.bf16 %v8926, %v8926
    %v8991 = vpack.c.bf16 %v8927, %v8927
    %v8992 = vpack.c.bf16 %v8928, %v8928
    %v8993 = vpack.c.bf16 %v8929, %v8929
    %v8994 = vpack.c.bf16 %v8930, %v8930
    %v8995 = vpack.c.bf16 %v8931, %v8931
    %v8996 = vpack.c.bf16 %v8932, %v8932
    %v8997 = vpack.c.bf16 %v8933, %v8933
    %v8998 = vpack.c.bf16 %v8934, %v8934
    %v8999 = vpack.c.bf16 %v8935, %v8935
    %v9000 = vpack.c.bf16 %v8936, %v8936
    %v9001 = vpack.c.bf16 %v8937, %v8937
    %v9002 = vpack.c.bf16 %v8938, %v8938
    %v9003 = vpack.c.bf16 %v8939, %v8939
    %v9004 = vpack.c.bf16 %v8940, %v8940
    %v9005 = vpack.c.bf16 %v8941, %v8941
    %v9006 = vpack.c.bf16 %v8942, %v8942
    %v9007 = vpack.c.bf16 %v8943, %v8943
    %v9008 = vpack.c.bf16 %v8944, %v8944
    %v9009 = vpack.c.bf16 %v8945, %v8945
    %v9010 = vpack.c.bf16 %v8946, %v8946
    %v9011 = vpack.c.bf16 %v8947, %v8947
    %v9012 = vpack.c.bf16 %v8948, %v8948
    %v9013 = vpack.c.bf16 %v8949, %v8949
    %v9014 = vpack.c.bf16 %v8950, %v8950
    %v9015 = vpack.c.bf16 %v8951, %v8951
    %v9016 = vpack.c.bf16 %v8952, %v8952
    %v9017 = vpack.c.bf16 %v8953, %v8953
    %v9018 = vpack.c.bf16 %v8954, %v8954
    %v9019 = vpack.c.bf16 %v8955, %v8955
    %v9020 = vpack.c.bf16 %v8956, %v8956
    %v9021 = vpack.c.bf16 %v8957, %v8957
    %v9022 = vpack.c.bf16 %v8958, %v8958
    %v9023 = vpack.c.bf16 %v8959, %v8959
    %v9040 = vunpack.c.l.b16 %v8960
    %v9041 = vunpack.c.l.b16 %v8961
    %v9042 = vunpack.c.l.b16 %v8962
    %v9043 = vunpack.c.l.b16 %v8963
    %v9044 = vunpack.c.l.b16 %v8964
    %v9045 = vunpack.c.l.b16 %v8965
    %v9046 = vunpack.c.l.b16 %v8966
    %v9047 = vunpack.c.l.b16 %v8967
    %v9048 = vunpack.c.l.b16 %v8968
    %v9049 = vunpack.c.l.b16 %v8969
    %v9050 = vunpack.c.l.b16 %v8970
    %v9051 = vunpack.c.l.b16 %v8971
    %v9052 = vunpack.c.l.b16 %v8972
    %v9053 = vunpack.c.l.b16 %v8973
    %v9054 = vunpack.c.l.b16 %v8974
    %v9055 = vunpack.c.l.b16 %v8975
    %v9056 = vpack.c.b16 %v9041, %v9040
    %v9057 = vpack.c.b16 %v9043, %v9042
    %v9058 = vpack.c.b16 %v9045, %v9044
    %v9059 = vpack.c.b16 %v9047, %v9046
    %v9060 = vpack.c.b16 %v9049, %v9048
    %v9061 = vpack.c.b16 %v9051, %v9050
    %v9062 = vpack.c.b16 %v9053, %v9052
    %v9063 = vpack.c.b16 %v9055, %v9054
    %9072 = vrot.lane.b32.xlu0 %v2126, 40
    %v9073 = vpop.permute.xlu0 %9072
    %9074 = vrot.lane.b32.xlu0 %v2127, 40
    %v9075 = vpop.permute.xlu0 %9074
    %9076 = vrot.lane.b32.xlu0 %v2128, 40
    %v9077 = vpop.permute.xlu0 %9076
    %9078 = vrot.lane.b32.xlu0 %v2129, 40
    %v9079 = vpop.permute.xlu0 %9078
    %9080 = vrot.lane.b32.xlu0 %v2130, 40
    %v9081 = vpop.permute.xlu0 %9080
    %9082 = vrot.lane.b32.xlu0 %v2131, 40
    %v9083 = vpop.permute.xlu0 %9082
    %9084 = vrot.lane.b32.xlu0 %v2132, 40
    %v9085 = vpop.permute.xlu0 %9084
    %9086 = vrot.lane.b32.xlu0 %v2133, 40
    %v9087 = vpop.permute.xlu0 %9086
    %9096 = vmatpush.bf16.msra.mxu0 %v9087
    %9097 = vmatpush.bf16.msra.mxu0 %v9085
    %9098 = vmatpush.bf16.msra.mxu0 %v9083
    %9099 = vmatpush.bf16.msra.mxu0 %v9081
    %9100 = vmatpush.bf16.msra.mxu0 %v9079
    %9101 = vmatpush.bf16.msra.mxu0 %v9077
    %9102 = vmatpush.bf16.msra.mxu0 %v9075
    %9103 = vmatpush.bf16.msra.mxu0 %v9073
    %9104 = vmatmul.bf16.gmra.mxu0 %v9056
    %v9105 = vpop.f32.mrf.mxu0
    %v9106 = vadd.f32 0.0, %v9105
    %v9107 = vpop.f32.mrf.mxu0
    %v9108 = vadd.f32 0.0, %v9107
    %9109 = vmatmul.bf16.gmra.mxu0 %v9057
    %v9110 = vpop.f32.mrf.mxu0
    %v9111 = vadd.f32 0.0, %v9110
    %v9112 = vpop.f32.mrf.mxu0
    %v9113 = vadd.f32 0.0, %v9112
    %9114 = vmatmul.bf16.gmra.mxu0 %v9058
    %v9115 = vpop.f32.mrf.mxu0
    %v9116 = vadd.f32 0.0, %v9115
    %v9117 = vpop.f32.mrf.mxu0
    %v9118 = vadd.f32 0.0, %v9117
    %9119 = vmatmul.bf16.gmra.mxu0 %v9059
    %v9120 = vpop.f32.mrf.mxu0
    %v9121 = vadd.f32 0.0, %v9120
    %v9122 = vpop.f32.mrf.mxu0
    %v9123 = vadd.f32 0.0, %v9122
    %9124 = vmatmul.bf16.gmra.mxu0 %v9060
    %v9125 = vpop.f32.mrf.mxu0
    %v9126 = vadd.f32 0.0, %v9125
    %v9127 = vpop.f32.mrf.mxu0
    %v9128 = vadd.f32 0.0, %v9127
    %9129 = vmatmul.bf16.gmra.mxu0 %v9061
    %v9130 = vpop.f32.mrf.mxu0
    %v9131 = vadd.f32 0.0, %v9130
    %v9132 = vpop.f32.mrf.mxu0
    %v9133 = vadd.f32 0.0, %v9132
    %9134 = vmatmul.bf16.gmra.mxu0 %v9062
    %v9135 = vpop.f32.mrf.mxu0
    %v9136 = vadd.f32 0.0, %v9135
    %v9137 = vpop.f32.mrf.mxu0
    %v9138 = vadd.f32 0.0, %v9137
    %9139 = vmatmul.bf16.gmra.mxu0 %v9063
    %v9140 = vpop.f32.mrf.mxu0
    %v9141 = vadd.f32 0.0, %v9140
    %v9142 = vpop.f32.mrf.mxu0
    %v9143 = vadd.f32 0.0, %v9142
    %9144 = vdwg.mxu0
    %v9161 = vunpack.c.l.b16 %v8976
    %v9162 = vunpack.c.l.b16 %v8977
    %v9163 = vunpack.c.l.b16 %v8978
    %v9164 = vunpack.c.l.b16 %v8979
    %v9165 = vunpack.c.l.b16 %v8980
    %v9166 = vunpack.c.l.b16 %v8981
    %v9167 = vunpack.c.l.b16 %v8982
    %v9168 = vunpack.c.l.b16 %v8983
    %v9169 = vunpack.c.l.b16 %v8984
    %v9170 = vunpack.c.l.b16 %v8985
    %v9171 = vunpack.c.l.b16 %v8986
    %v9172 = vunpack.c.l.b16 %v8987
    %v9173 = vunpack.c.l.b16 %v8988
    %v9174 = vunpack.c.l.b16 %v8989
    %v9175 = vunpack.c.l.b16 %v8990
    %v9176 = vunpack.c.l.b16 %v8991
    %v9177 = vpack.c.b16 %v9162, %v9161
    %v9178 = vpack.c.b16 %v9164, %v9163
    %v9179 = vpack.c.b16 %v9166, %v9165
    %v9180 = vpack.c.b16 %v9168, %v9167
    %v9181 = vpack.c.b16 %v9170, %v9169
    %v9182 = vpack.c.b16 %v9172, %v9171
    %v9183 = vpack.c.b16 %v9174, %v9173
    %v9184 = vpack.c.b16 %v9176, %v9175
    %9193 = vrot.lane.b32.xlu0 %v2280, 40
    %v9194 = vpop.permute.xlu0 %9193
    %9195 = vrot.lane.b32.xlu0 %v2281, 40
    %v9196 = vpop.permute.xlu0 %9195
    %9197 = vrot.lane.b32.xlu0 %v2282, 40
    %v9198 = vpop.permute.xlu0 %9197
    %9199 = vrot.lane.b32.xlu0 %v2283, 40
    %v9200 = vpop.permute.xlu0 %9199
    %9201 = vrot.lane.b32.xlu0 %v2284, 40
    %v9202 = vpop.permute.xlu0 %9201
    %9203 = vrot.lane.b32.xlu0 %v2285, 40
    %v9204 = vpop.permute.xlu0 %9203
    %9205 = vrot.lane.b32.xlu0 %v2286, 40
    %v9206 = vpop.permute.xlu0 %9205
    %9207 = vrot.lane.b32.xlu0 %v2287, 40
    %v9208 = vpop.permute.xlu0 %9207
    %9217 = vmatpush.bf16.msra.mxu0 %v9208
    %9218 = vmatpush.bf16.msra.mxu0 %v9206
    %9219 = vmatpush.bf16.msra.mxu0 %v9204
    %9220 = vmatpush.bf16.msra.mxu0 %v9202
    %9221 = vmatpush.bf16.msra.mxu0 %v9200
    %9222 = vmatpush.bf16.msra.mxu0 %v9198
    %9223 = vmatpush.bf16.msra.mxu0 %v9196
    %9224 = vmatpush.bf16.msra.mxu0 %v9194
    %9225 = vmatmul.bf16.gmra.mxu0 %v9177
    %v9226 = vpop.f32.mrf.mxu0
    %v9227 = vadd.f32 0.0, %v9226
    %v9228 = vpop.f32.mrf.mxu0
    %v9229 = vadd.f32 0.0, %v9228
    %9230 = vmatmul.bf16.gmra.mxu0 %v9178
    %v9231 = vpop.f32.mrf.mxu0
    %v9232 = vadd.f32 0.0, %v9231
    %v9233 = vpop.f32.mrf.mxu0
    %v9234 = vadd.f32 0.0, %v9233
    %9235 = vmatmul.bf16.gmra.mxu0 %v9179
    %v9236 = vpop.f32.mrf.mxu0
    %v9237 = vadd.f32 0.0, %v9236
    %v9238 = vpop.f32.mrf.mxu0
    %v9239 = vadd.f32 0.0, %v9238
    %9240 = vmatmul.bf16.gmra.mxu0 %v9180
    %v9241 = vpop.f32.mrf.mxu0
    %v9242 = vadd.f32 0.0, %v9241
    %v9243 = vpop.f32.mrf.mxu0
    %v9244 = vadd.f32 0.0, %v9243
    %9245 = vmatmul.bf16.gmra.mxu0 %v9181
    %v9246 = vpop.f32.mrf.mxu0
    %v9247 = vadd.f32 0.0, %v9246
    %v9248 = vpop.f32.mrf.mxu0
    %v9249 = vadd.f32 0.0, %v9248
    %9250 = vmatmul.bf16.gmra.mxu0 %v9182
    %v9251 = vpop.f32.mrf.mxu0
    %v9252 = vadd.f32 0.0, %v9251
    %v9253 = vpop.f32.mrf.mxu0
    %v9254 = vadd.f32 0.0, %v9253
    %9255 = vmatmul.bf16.gmra.mxu0 %v9183
    %v9256 = vpop.f32.mrf.mxu0
    %v9257 = vadd.f32 0.0, %v9256
    %v9258 = vpop.f32.mrf.mxu0
    %v9259 = vadd.f32 0.0, %v9258
    %9260 = vmatmul.bf16.gmra.mxu0 %v9184
    %v9261 = vpop.f32.mrf.mxu0
    %v9262 = vadd.f32 0.0, %v9261
    %v9263 = vpop.f32.mrf.mxu0
    %v9264 = vadd.f32 0.0, %v9263
    %9265 = vdwg.mxu0
    %v9282 = vunpack.c.l.b16 %v8992
    %v9283 = vunpack.c.l.b16 %v8993
    %v9284 = vunpack.c.l.b16 %v8994
    %v9285 = vunpack.c.l.b16 %v8995
    %v9286 = vunpack.c.l.b16 %v8996
    %v9287 = vunpack.c.l.b16 %v8997
    %v9288 = vunpack.c.l.b16 %v8998
    %v9289 = vunpack.c.l.b16 %v8999
    %v9290 = vunpack.c.l.b16 %v9000
    %v9291 = vunpack.c.l.b16 %v9001
    %v9292 = vunpack.c.l.b16 %v9002
    %v9293 = vunpack.c.l.b16 %v9003
    %v9294 = vunpack.c.l.b16 %v9004
    %v9295 = vunpack.c.l.b16 %v9005
    %v9296 = vunpack.c.l.b16 %v9006
    %v9297 = vunpack.c.l.b16 %v9007
    %v9298 = vpack.c.b16 %v9283, %v9282
    %v9299 = vpack.c.b16 %v9285, %v9284
    %v9300 = vpack.c.b16 %v9287, %v9286
    %v9301 = vpack.c.b16 %v9289, %v9288
    %v9302 = vpack.c.b16 %v9291, %v9290
    %v9303 = vpack.c.b16 %v9293, %v9292
    %v9304 = vpack.c.b16 %v9295, %v9294
    %v9305 = vpack.c.b16 %v9297, %v9296
    %9314 = vrot.lane.b32.xlu0 %v2433, 40
    %v9315 = vpop.permute.xlu0 %9314
    %9316 = vrot.lane.b32.xlu0 %v2434, 40
    %v9317 = vpop.permute.xlu0 %9316
    %9318 = vrot.lane.b32.xlu0 %v2435, 40
    %v9319 = vpop.permute.xlu0 %9318
    %9320 = vrot.lane.b32.xlu0 %v2436, 40
    %v9321 = vpop.permute.xlu0 %9320
    %9322 = vrot.lane.b32.xlu0 %v2437, 40
    %v9323 = vpop.permute.xlu0 %9322
    %9324 = vrot.lane.b32.xlu0 %v2438, 40
    %v9325 = vpop.permute.xlu0 %9324
    %9326 = vrot.lane.b32.xlu0 %v2439, 40
    %v9327 = vpop.permute.xlu0 %9326
    %9328 = vrot.lane.b32.xlu0 %v2440, 40
    %v9329 = vpop.permute.xlu0 %9328
    %9338 = vmatpush.bf16.msra.mxu0 %v9329
    %9339 = vmatpush.bf16.msra.mxu0 %v9327
    %9340 = vmatpush.bf16.msra.mxu0 %v9325
    %9341 = vmatpush.bf16.msra.mxu0 %v9323
    %9342 = vmatpush.bf16.msra.mxu0 %v9321
    %9343 = vmatpush.bf16.msra.mxu0 %v9319
    %9344 = vmatpush.bf16.msra.mxu0 %v9317
    %9345 = vmatpush.bf16.msra.mxu0 %v9315
    %9346 = vmatmul.bf16.gmra.mxu0 %v9298
    %v9347 = vpop.f32.mrf.mxu0
    %v9348 = vadd.f32 0.0, %v9347
    %v9349 = vpop.f32.mrf.mxu0
    %v9350 = vadd.f32 0.0, %v9349
    %9351 = vmatmul.bf16.gmra.mxu0 %v9299
    %v9352 = vpop.f32.mrf.mxu0
    %v9353 = vadd.f32 0.0, %v9352
    %v9354 = vpop.f32.mrf.mxu0
    %v9355 = vadd.f32 0.0, %v9354
    %9356 = vmatmul.bf16.gmra.mxu0 %v9300
    %v9357 = vpop.f32.mrf.mxu0
    %v9358 = vadd.f32 0.0, %v9357
    %v9359 = vpop.f32.mrf.mxu0
    %v9360 = vadd.f32 0.0, %v9359
    %9361 = vmatmul.bf16.gmra.mxu0 %v9301
    %v9362 = vpop.f32.mrf.mxu0
    %v9363 = vadd.f32 0.0, %v9362
    %v9364 = vpop.f32.mrf.mxu0
    %v9365 = vadd.f32 0.0, %v9364
    %9366 = vmatmul.bf16.gmra.mxu0 %v9302
    %v9367 = vpop.f32.mrf.mxu0
    %v9368 = vadd.f32 0.0, %v9367
    %v9369 = vpop.f32.mrf.mxu0
    %v9370 = vadd.f32 0.0, %v9369
    %9371 = vmatmul.bf16.gmra.mxu0 %v9303
    %v9372 = vpop.f32.mrf.mxu0
    %v9373 = vadd.f32 0.0, %v9372
    %v9374 = vpop.f32.mrf.mxu0
    %v9375 = vadd.f32 0.0, %v9374
    %9376 = vmatmul.bf16.gmra.mxu0 %v9304
    %v9377 = vpop.f32.mrf.mxu0
    %v9378 = vadd.f32 0.0, %v9377
    %v9379 = vpop.f32.mrf.mxu0
    %v9380 = vadd.f32 0.0, %v9379
    %9381 = vmatmul.bf16.gmra.mxu0 %v9305
    %v9382 = vpop.f32.mrf.mxu0
    %v9383 = vadd.f32 0.0, %v9382
    %v9384 = vpop.f32.mrf.mxu0
    %v9385 = vadd.f32 0.0, %v9384
    %9386 = vdwg.mxu0
    %v9403 = vunpack.c.l.b16 %v9008
    %v9404 = vunpack.c.l.b16 %v9009
    %v9405 = vunpack.c.l.b16 %v9010
    %v9406 = vunpack.c.l.b16 %v9011
    %v9407 = vunpack.c.l.b16 %v9012
    %v9408 = vunpack.c.l.b16 %v9013
    %v9409 = vunpack.c.l.b16 %v9014
    %v9410 = vunpack.c.l.b16 %v9015
    %v9411 = vunpack.c.l.b16 %v9016
    %v9412 = vunpack.c.l.b16 %v9017
    %v9413 = vunpack.c.l.b16 %v9018
    %v9414 = vunpack.c.l.b16 %v9019
    %v9415 = vunpack.c.l.b16 %v9020
    %v9416 = vunpack.c.l.b16 %v9021
    %v9417 = vunpack.c.l.b16 %v9022
    %v9418 = vunpack.c.l.b16 %v9023
    %v9419 = vpack.c.b16 %v9404, %v9403
    %v9420 = vpack.c.b16 %v9406, %v9405
    %v9421 = vpack.c.b16 %v9408, %v9407
    %v9422 = vpack.c.b16 %v9410, %v9409
    %v9423 = vpack.c.b16 %v9412, %v9411
    %v9424 = vpack.c.b16 %v9414, %v9413
    %v9425 = vpack.c.b16 %v9416, %v9415
    %v9426 = vpack.c.b16 %v9418, %v9417
    %9435 = vrot.lane.b32.xlu0 %v2586, 40
    %v9436 = vpop.permute.xlu0 %9435
    %9437 = vrot.lane.b32.xlu0 %v2587, 40
    %v9438 = vpop.permute.xlu0 %9437
    %9439 = vrot.lane.b32.xlu0 %v2588, 40
    %v9440 = vpop.permute.xlu0 %9439
    %9441 = vrot.lane.b32.xlu0 %v2589, 40
    %v9442 = vpop.permute.xlu0 %9441
    %9443 = vrot.lane.b32.xlu0 %v2590, 40
    %v9444 = vpop.permute.xlu0 %9443
    %9445 = vrot.lane.b32.xlu0 %v2591, 40
    %v9446 = vpop.permute.xlu0 %9445
    %9447 = vrot.lane.b32.xlu0 %v2592, 40
    %v9448 = vpop.permute.xlu0 %9447
    %9449 = vrot.lane.b32.xlu0 %v2593, 40
    %v9450 = vpop.permute.xlu0 %9449
    %9459 = vmatpush.bf16.msra.mxu0 %v9450
    %9460 = vmatpush.bf16.msra.mxu0 %v9448
    %9461 = vmatpush.bf16.msra.mxu0 %v9446
    %9462 = vmatpush.bf16.msra.mxu0 %v9444
    %9463 = vmatpush.bf16.msra.mxu0 %v9442
    %9464 = vmatpush.bf16.msra.mxu0 %v9440
    %9465 = vmatpush.bf16.msra.mxu0 %v9438
    %9466 = vmatpush.bf16.msra.mxu0 %v9436
    %9467 = vmatmul.bf16.gmra.mxu0 %v9419
    %v9468 = vpop.f32.mrf.mxu0
    %v9469 = vadd.f32 0.0, %v9468
    %v9470 = vpop.f32.mrf.mxu0
    %v9471 = vadd.f32 0.0, %v9470
    %9472 = vmatmul.bf16.gmra.mxu0 %v9420
    %v9473 = vpop.f32.mrf.mxu0
    %v9474 = vadd.f32 0.0, %v9473
    %v9475 = vpop.f32.mrf.mxu0
    %v9476 = vadd.f32 0.0, %v9475
    %9477 = vmatmul.bf16.gmra.mxu0 %v9421
    %v9478 = vpop.f32.mrf.mxu0
    %v9479 = vadd.f32 0.0, %v9478
    %v9480 = vpop.f32.mrf.mxu0
    %v9481 = vadd.f32 0.0, %v9480
    %9482 = vmatmul.bf16.gmra.mxu0 %v9422
    %v9483 = vpop.f32.mrf.mxu0
    %v9484 = vadd.f32 0.0, %v9483
    %v9485 = vpop.f32.mrf.mxu0
    %v9486 = vadd.f32 0.0, %v9485
    %9487 = vmatmul.bf16.gmra.mxu0 %v9423
    %v9488 = vpop.f32.mrf.mxu0
    %v9489 = vadd.f32 0.0, %v9488
    %v9490 = vpop.f32.mrf.mxu0
    %v9491 = vadd.f32 0.0, %v9490
    %9492 = vmatmul.bf16.gmra.mxu0 %v9424
    %v9493 = vpop.f32.mrf.mxu0
    %v9494 = vadd.f32 0.0, %v9493
    %v9495 = vpop.f32.mrf.mxu0
    %v9496 = vadd.f32 0.0, %v9495
    %9497 = vmatmul.bf16.gmra.mxu0 %v9425
    %v9498 = vpop.f32.mrf.mxu0
    %v9499 = vadd.f32 0.0, %v9498
    %v9500 = vpop.f32.mrf.mxu0
    %v9501 = vadd.f32 0.0, %v9500
    %9502 = vmatmul.bf16.gmra.mxu0 %v9426
    %v9503 = vpop.f32.mrf.mxu0
    %v9504 = vadd.f32 0.0, %v9503
    %v9505 = vpop.f32.mrf.mxu0
    %v9506 = vadd.f32 0.0, %v9505
    %9507 = vdwg.mxu0
    %9572 = vrot.lane.b32.xlu0 %v9106, 24
    %v9573 = vpop.permute.xlu0 %9572
    %9574 = vrot.lane.b32.xlu0 %v9108, 24
    %v9575 = vpop.permute.xlu0 %9574
    %9576 = vrot.lane.b32.xlu0 %v9111, 24
    %v9577 = vpop.permute.xlu0 %9576
    %9578 = vrot.lane.b32.xlu0 %v9113, 24
    %v9579 = vpop.permute.xlu0 %9578
    %9580 = vrot.lane.b32.xlu0 %v9116, 24
    %v9581 = vpop.permute.xlu0 %9580
    %9582 = vrot.lane.b32.xlu0 %v9118, 24
    %v9583 = vpop.permute.xlu0 %9582
    %9584 = vrot.lane.b32.xlu0 %v9121, 24
    %v9585 = vpop.permute.xlu0 %9584
    %9586 = vrot.lane.b32.xlu0 %v9123, 24
    %v9587 = vpop.permute.xlu0 %9586
    %9588 = vrot.lane.b32.xlu0 %v9126, 24
    %v9589 = vpop.permute.xlu0 %9588
    %9590 = vrot.lane.b32.xlu0 %v9128, 24
    %v9591 = vpop.permute.xlu0 %9590
    %9592 = vrot.lane.b32.xlu0 %v9131, 24
    %v9593 = vpop.permute.xlu0 %9592
    %9594 = vrot.lane.b32.xlu0 %v9133, 24
    %v9595 = vpop.permute.xlu0 %9594
    %9596 = vrot.lane.b32.xlu0 %v9136, 24
    %v9597 = vpop.permute.xlu0 %9596
    %9598 = vrot.lane.b32.xlu0 %v9138, 24
    %v9599 = vpop.permute.xlu0 %9598
    %9600 = vrot.lane.b32.xlu0 %v9141, 24
    %v9601 = vpop.permute.xlu0 %9600
    %9602 = vrot.lane.b32.xlu0 %v9143, 24
    %v9603 = vpop.permute.xlu0 %9602
    %9604 = vrot.lane.b32.xlu0 %v9227, 24
    %v9605 = vpop.permute.xlu0 %9604
    %9606 = vrot.lane.b32.xlu0 %v9229, 24
    %v9607 = vpop.permute.xlu0 %9606
    %9608 = vrot.lane.b32.xlu0 %v9232, 24
    %v9609 = vpop.permute.xlu0 %9608
    %9610 = vrot.lane.b32.xlu0 %v9234, 24
    %v9611 = vpop.permute.xlu0 %9610
    %9612 = vrot.lane.b32.xlu0 %v9237, 24
    %v9613 = vpop.permute.xlu0 %9612
    %9614 = vrot.lane.b32.xlu0 %v9239, 24
    %v9615 = vpop.permute.xlu0 %9614
    %9616 = vrot.lane.b32.xlu0 %v9242, 24
    %v9617 = vpop.permute.xlu0 %9616
    %9618 = vrot.lane.b32.xlu0 %v9244, 24
    %v9619 = vpop.permute.xlu0 %9618
    %9620 = vrot.lane.b32.xlu0 %v9247, 24
    %v9621 = vpop.permute.xlu0 %9620
    %9622 = vrot.lane.b32.xlu0 %v9249, 24
    %v9623 = vpop.permute.xlu0 %9622
    %9624 = vrot.lane.b32.xlu0 %v9252, 24
    %v9625 = vpop.permute.xlu0 %9624
    %9626 = vrot.lane.b32.xlu0 %v9254, 24
    %v9627 = vpop.permute.xlu0 %9626
    %9628 = vrot.lane.b32.xlu0 %v9257, 24
    %v9629 = vpop.permute.xlu0 %9628
    %9630 = vrot.lane.b32.xlu0 %v9259, 24
    %v9631 = vpop.permute.xlu0 %9630
    %9632 = vrot.lane.b32.xlu0 %v9262, 24
    %v9633 = vpop.permute.xlu0 %9632
    %9634 = vrot.lane.b32.xlu0 %v9264, 24
    %v9635 = vpop.permute.xlu0 %9634
    %9636 = vrot.lane.b32.xlu0 %v9348, 24
    %v9637 = vpop.permute.xlu0 %9636
    %9638 = vrot.lane.b32.xlu0 %v9350, 24
    %v9639 = vpop.permute.xlu0 %9638
    %9640 = vrot.lane.b32.xlu0 %v9353, 24
    %v9641 = vpop.permute.xlu0 %9640
    %9642 = vrot.lane.b32.xlu0 %v9355, 24
    %v9643 = vpop.permute.xlu0 %9642
    %9644 = vrot.lane.b32.xlu0 %v9358, 24
    %v9645 = vpop.permute.xlu0 %9644
    %9646 = vrot.lane.b32.xlu0 %v9360, 24
    %v9647 = vpop.permute.xlu0 %9646
    %9648 = vrot.lane.b32.xlu0 %v9363, 24
    %v9649 = vpop.permute.xlu0 %9648
    %9650 = vrot.lane.b32.xlu0 %v9365, 24
    %v9651 = vpop.permute.xlu0 %9650
    %9652 = vrot.lane.b32.xlu0 %v9368, 24
    %v9653 = vpop.permute.xlu0 %9652
    %9654 = vrot.lane.b32.xlu0 %v9370, 24
    %v9655 = vpop.permute.xlu0 %9654
    %9656 = vrot.lane.b32.xlu0 %v9373, 24
    %v9657 = vpop.permute.xlu0 %9656
    %9658 = vrot.lane.b32.xlu0 %v9375, 24
    %v9659 = vpop.permute.xlu0 %9658
    %9660 = vrot.lane.b32.xlu0 %v9378, 24
    %v9661 = vpop.permute.xlu0 %9660
    %9662 = vrot.lane.b32.xlu0 %v9380, 24
    %v9663 = vpop.permute.xlu0 %9662
    %9664 = vrot.lane.b32.xlu0 %v9383, 24
    %v9665 = vpop.permute.xlu0 %9664
    %9666 = vrot.lane.b32.xlu0 %v9385, 24
    %v9667 = vpop.permute.xlu0 %9666
    %9668 = vrot.lane.b32.xlu0 %v9469, 24
    %v9669 = vpop.permute.xlu0 %9668
    %9670 = vrot.lane.b32.xlu0 %v9471, 24
    %v9671 = vpop.permute.xlu0 %9670
    %9672 = vrot.lane.b32.xlu0 %v9474, 24
    %v9673 = vpop.permute.xlu0 %9672
    %9674 = vrot.lane.b32.xlu0 %v9476, 24
    %v9675 = vpop.permute.xlu0 %9674
    %9676 = vrot.lane.b32.xlu0 %v9479, 24
    %v9677 = vpop.permute.xlu0 %9676
    %9678 = vrot.lane.b32.xlu0 %v9481, 24
    %v9679 = vpop.permute.xlu0 %9678
    %9680 = vrot.lane.b32.xlu0 %v9484, 24
    %v9681 = vpop.permute.xlu0 %9680
    %9682 = vrot.lane.b32.xlu0 %v9486, 24
    %v9683 = vpop.permute.xlu0 %9682
    %9684 = vrot.lane.b32.xlu0 %v9489, 24
    %v9685 = vpop.permute.xlu0 %9684
    %9686 = vrot.lane.b32.xlu0 %v9491, 24
    %v9687 = vpop.permute.xlu0 %9686
    %9688 = vrot.lane.b32.xlu0 %v9494, 24
    %v9689 = vpop.permute.xlu0 %9688
    %9690 = vrot.lane.b32.xlu0 %v9496, 24
    %v9691 = vpop.permute.xlu0 %9690
    %9692 = vrot.lane.b32.xlu0 %v9499, 24
    %v9693 = vpop.permute.xlu0 %9692
    %9694 = vrot.lane.b32.xlu0 %v9501, 24
    %v9695 = vpop.permute.xlu0 %9694
    %9696 = vrot.lane.b32.xlu0 %v9504, 24
    %v9697 = vpop.permute.xlu0 %9696
    %9698 = vrot.lane.b32.xlu0 %v9506, 24
    %v9699 = vpop.permute.xlu0 %9698
    %vm9764 = vcmask 261312
    %9765 = vst.msk [vmem:[#allocation2] sm:$0xff] %vm9764, %v9573
    %9766 = vst.msk [vmem:[#allocation2 + $0x8] sm:$0xff] %vm9764, %v9575
    %9767 = vst.msk [vmem:[#allocation2 + $0x10] sm:$0xff] %vm9764, %v9577
    %9768 = vst.msk [vmem:[#allocation2 + $0x18] sm:$0xff] %vm9764, %v9579
    %9769 = vst.msk [vmem:[#allocation2 + $0x20] sm:$0xff] %vm9764, %v9581
    %9770 = vst.msk [vmem:[#allocation2 + $0x28] sm:$0xff] %vm9764, %v9583
    %9771 = vst.msk [vmem:[#allocation2 + $0x30] sm:$0xff] %vm9764, %v9585
    %9772 = vst.msk [vmem:[#allocation2 + $0x38] sm:$0xff] %vm9764, %v9587
    %9773 = vst.msk [vmem:[#allocation2 + $0x40] sm:$0xff] %vm9764, %v9589
    %9774 = vst.msk [vmem:[#allocation2 + $0x48] sm:$0xff] %vm9764, %v9591
    %9775 = vst.msk [vmem:[#allocation2 + $0x50] sm:$0xff] %vm9764, %v9593
    %9776 = vst.msk [vmem:[#allocation2 + $0x58] sm:$0xff] %vm9764, %v9595
    %9777 = vst.msk [vmem:[#allocation2 + $0x60] sm:$0xff] %vm9764, %v9597
    %9778 = vst.msk [vmem:[#allocation2 + $0x68] sm:$0xff] %vm9764, %v9599
    %9779 = vst.msk [vmem:[#allocation2 + $0x70] sm:$0xff] %vm9764, %v9601
    %9780 = vst.msk [vmem:[#allocation2 + $0x78] sm:$0xff] %vm9764, %v9603
    %9781 = vst.msk [vmem:[#allocation2 + $0x80] sm:$0xff] %vm9764, %v9605
    %9782 = vst.msk [vmem:[#allocation2 + $0x88] sm:$0xff] %vm9764, %v9607
    %9783 = vst.msk [vmem:[#allocation2 + $0x90] sm:$0xff] %vm9764, %v9609
    %9784 = vst.msk [vmem:[#allocation2 + $0x98] sm:$0xff] %vm9764, %v9611
    %9785 = vst.msk [vmem:[#allocation2 + $0xa0] sm:$0xff] %vm9764, %v9613
    %9786 = vst.msk [vmem:[#allocation2 + $0xa8] sm:$0xff] %vm9764, %v9615
    %9787 = vst.msk [vmem:[#allocation2 + $0xb0] sm:$0xff] %vm9764, %v9617
    %9788 = vst.msk [vmem:[#allocation2 + $0xb8] sm:$0xff] %vm9764, %v9619
    %9789 = vst.msk [vmem:[#allocation2 + $0xc0] sm:$0xff] %vm9764, %v9621
    %9790 = vst.msk [vmem:[#allocation2 + $0xc8] sm:$0xff] %vm9764, %v9623
    %9791 = vst.msk [vmem:[#allocation2 + $0xd0] sm:$0xff] %vm9764, %v9625
    %9792 = vst.msk [vmem:[#allocation2 + $0xd8] sm:$0xff] %vm9764, %v9627
    %9793 = vst.msk [vmem:[#allocation2 + $0xe0] sm:$0xff] %vm9764, %v9629
    %9794 = vst.msk [vmem:[#allocation2 + $0xe8] sm:$0xff] %vm9764, %v9631
    %9795 = vst.msk [vmem:[#allocation2 + $0xf0] sm:$0xff] %vm9764, %v9633
    %9796 = vst.msk [vmem:[#allocation2 + $0xf8] sm:$0xff] %vm9764, %v9635
    %9797 = vst.msk [vmem:[#allocation2 + $0x100] sm:$0xff] %vm9764, %v9637
    %9798 = vst.msk [vmem:[#allocation2 + $0x108] sm:$0xff] %vm9764, %v9639
    %9799 = vst.msk [vmem:[#allocation2 + $0x110] sm:$0xff] %vm9764, %v9641
    %9800 = vst.msk [vmem:[#allocation2 + $0x118] sm:$0xff] %vm9764, %v9643
    %9801 = vst.msk [vmem:[#allocation2 + $0x120] sm:$0xff] %vm9764, %v9645
    %9802 = vst.msk [vmem:[#allocation2 + $0x128] sm:$0xff] %vm9764, %v9647
    %9803 = vst.msk [vmem:[#allocation2 + $0x130] sm:$0xff] %vm9764, %v9649
    %9804 = vst.msk [vmem:[#allocation2 + $0x138] sm:$0xff] %vm9764, %v9651
    %9805 = vst.msk [vmem:[#allocation2 + $0x140] sm:$0xff] %vm9764, %v9653
    %9806 = vst.msk [vmem:[#allocation2 + $0x148] sm:$0xff] %vm9764, %v9655
    %9807 = vst.msk [vmem:[#allocation2 + $0x150] sm:$0xff] %vm9764, %v9657
    %9808 = vst.msk [vmem:[#allocation2 + $0x158] sm:$0xff] %vm9764, %v9659
    %9809 = vst.msk [vmem:[#allocation2 + $0x160] sm:$0xff] %vm9764, %v9661
    %9810 = vst.msk [vmem:[#allocation2 + $0x168] sm:$0xff] %vm9764, %v9663
    %9811 = vst.msk [vmem:[#allocation2 + $0x170] sm:$0xff] %vm9764, %v9665
    %9812 = vst.msk [vmem:[#allocation2 + $0x178] sm:$0xff] %vm9764, %v9667
    %9813 = vst.msk [vmem:[#allocation2 + $0x180] sm:$0xff] %vm9764, %v9669
    %9814 = vst.msk [vmem:[#allocation2 + $0x188] sm:$0xff] %vm9764, %v9671
    %9815 = vst.msk [vmem:[#allocation2 + $0x190] sm:$0xff] %vm9764, %v9673
    %9816 = vst.msk [vmem:[#allocation2 + $0x198] sm:$0xff] %vm9764, %v9675
    %9817 = vst.msk [vmem:[#allocation2 + $0x1a0] sm:$0xff] %vm9764, %v9677
    %9818 = vst.msk [vmem:[#allocation2 + $0x1a8] sm:$0xff] %vm9764, %v9679
    %9819 = vst.msk [vmem:[#allocation2 + $0x1b0] sm:$0xff] %vm9764, %v9681
    %9820 = vst.msk [vmem:[#allocation2 + $0x1b8] sm:$0xff] %vm9764, %v9683
    %9821 = vst.msk [vmem:[#allocation2 + $0x1c0] sm:$0xff] %vm9764, %v9685
    %9822 = vst.msk [vmem:[#allocation2 + $0x1c8] sm:$0xff] %vm9764, %v9687
    %9823 = vst.msk [vmem:[#allocation2 + $0x1d0] sm:$0xff] %vm9764, %v9689
    %9824 = vst.msk [vmem:[#allocation2 + $0x1d8] sm:$0xff] %vm9764, %v9691
    %9825 = vst.msk [vmem:[#allocation2 + $0x1e0] sm:$0xff] %vm9764, %v9693
    %9826 = vst.msk [vmem:[#allocation2 + $0x1e8] sm:$0xff] %vm9764, %v9695
    %9827 = vst.msk [vmem:[#allocation2 + $0x1f0] sm:$0xff] %vm9764, %v9697
    %9828 = vst.msk [vmem:[#allocation2 + $0x1f8] sm:$0xff] %vm9764, %v9699
    %v9829 = vld [vmem:[#allocation2] sm:$0xff]
    %v9830 = vld [vmem:[#allocation2 + $0x8] sm:$0xff]
    %v9831 = vld [vmem:[#allocation2 + $0x10] sm:$0xff]
    %v9832 = vld [vmem:[#allocation2 + $0x18] sm:$0xff]
    %v9833 = vld [vmem:[#allocation2 + $0x20] sm:$0xff]
    %v9834 = vld [vmem:[#allocation2 + $0x28] sm:$0xff]
    %v9835 = vld [vmem:[#allocation2 + $0x30] sm:$0xff]
    %v9836 = vld [vmem:[#allocation2 + $0x38] sm:$0xff]
    %v9837 = vld [vmem:[#allocation2 + $0x40] sm:$0xff]
    %v9838 = vld [vmem:[#allocation2 + $0x48] sm:$0xff]
    %v9839 = vld [vmem:[#allocation2 + $0x50] sm:$0xff]
    %v9840 = vld [vmem:[#allocation2 + $0x58] sm:$0xff]
    %v9841 = vld [vmem:[#allocation2 + $0x60] sm:$0xff]
    %v9842 = vld [vmem:[#allocation2 + $0x68] sm:$0xff]
    %v9843 = vld [vmem:[#allocation2 + $0x70] sm:$0xff]
    %v9844 = vld [vmem:[#allocation2 + $0x78] sm:$0xff]
    %v9845 = vld [vmem:[#allocation2 + $0x80] sm:$0xff]
    %v9846 = vld [vmem:[#allocation2 + $0x88] sm:$0xff]
    %v9847 = vld [vmem:[#allocation2 + $0x90] sm:$0xff]
    %v9848 = vld [vmem:[#allocation2 + $0x98] sm:$0xff]
    %v9849 = vld [vmem:[#allocation2 + $0xa0] sm:$0xff]
    %v9850 = vld [vmem:[#allocation2 + $0xa8] sm:$0xff]
    %v9851 = vld [vmem:[#allocation2 + $0xb0] sm:$0xff]
    %v9852 = vld [vmem:[#allocation2 + $0xb8] sm:$0xff]
    %v9853 = vld [vmem:[#allocation2 + $0xc0] sm:$0xff]
    %v9854 = vld [vmem:[#allocation2 + $0xc8] sm:$0xff]
    %v9855 = vld [vmem:[#allocation2 + $0xd0] sm:$0xff]
    %v9856 = vld [vmem:[#allocation2 + $0xd8] sm:$0xff]
    %v9857 = vld [vmem:[#allocation2 + $0xe0] sm:$0xff]
    %v9858 = vld [vmem:[#allocation2 + $0xe8] sm:$0xff]
    %v9859 = vld [vmem:[#allocation2 + $0xf0] sm:$0xff]
    %v9860 = vld [vmem:[#allocation2 + $0xf8] sm:$0xff]
    %v9861 = vld [vmem:[#allocation2 + $0x100] sm:$0xff]
    %v9862 = vld [vmem:[#allocation2 + $0x108] sm:$0xff]
    %v9863 = vld [vmem:[#allocation2 + $0x110] sm:$0xff]
    %v9864 = vld [vmem:[#allocation2 + $0x118] sm:$0xff]
    %v9865 = vld [vmem:[#allocation2 + $0x120] sm:$0xff]
    %v9866 = vld [vmem:[#allocation2 + $0x128] sm:$0xff]
    %v9867 = vld [vmem:[#allocation2 + $0x130] sm:$0xff]
    %v9868 = vld [vmem:[#allocation2 + $0x138] sm:$0xff]
    %v9869 = vld [vmem:[#allocation2 + $0x140] sm:$0xff]
    %v9870 = vld [vmem:[#allocation2 + $0x148] sm:$0xff]
    %v9871 = vld [vmem:[#allocation2 + $0x150] sm:$0xff]
    %v9872 = vld [vmem:[#allocation2 + $0x158] sm:$0xff]
    %v9873 = vld [vmem:[#allocation2 + $0x160] sm:$0xff]
    %v9874 = vld [vmem:[#allocation2 + $0x168] sm:$0xff]
    %v9875 = vld [vmem:[#allocation2 + $0x170] sm:$0xff]
    %v9876 = vld [vmem:[#allocation2 + $0x178] sm:$0xff]
    %v9877 = vld [vmem:[#allocation2 + $0x180] sm:$0xff]
    %v9878 = vld [vmem:[#allocation2 + $0x188] sm:$0xff]
    %v9879 = vld [vmem:[#allocation2 + $0x190] sm:$0xff]
    %v9880 = vld [vmem:[#allocation2 + $0x198] sm:$0xff]
    %v9881 = vld [vmem:[#allocation2 + $0x1a0] sm:$0xff]
    %v9882 = vld [vmem:[#allocation2 + $0x1a8] sm:$0xff]
    %v9883 = vld [vmem:[#allocation2 + $0x1b0] sm:$0xff]
    %v9884 = vld [vmem:[#allocation2 + $0x1b8] sm:$0xff]
    %v9885 = vld [vmem:[#allocation2 + $0x1c0] sm:$0xff]
    %v9886 = vld [vmem:[#allocation2 + $0x1c8] sm:$0xff]
    %v9887 = vld [vmem:[#allocation2 + $0x1d0] sm:$0xff]
    %v9888 = vld [vmem:[#allocation2 + $0x1d8] sm:$0xff]
    %v9889 = vld [vmem:[#allocation2 + $0x1e0] sm:$0xff]
    %v9890 = vld [vmem:[#allocation2 + $0x1e8] sm:$0xff]
    %v9891 = vld [vmem:[#allocation2 + $0x1f0] sm:$0xff]
    %v9892 = vld [vmem:[#allocation2 + $0x1f8] sm:$0xff]
    %v9893 = vpack.c.bf16 %v9830, %v9829
    %v9894 = vpack.c.bf16 %v9832, %v9831
    %v9895 = vpack.c.bf16 %v9834, %v9833
    %v9896 = vpack.c.bf16 %v9836, %v9835
    %v9897 = vpack.c.bf16 %v9838, %v9837
    %v9898 = vpack.c.bf16 %v9840, %v9839
    %v9899 = vpack.c.bf16 %v9842, %v9841
    %v9900 = vpack.c.bf16 %v9844, %v9843
    %v9901 = vpack.c.bf16 %v9846, %v9845
    %v9902 = vpack.c.bf16 %v9848, %v9847
    %v9903 = vpack.c.bf16 %v9850, %v9849
    %v9904 = vpack.c.bf16 %v9852, %v9851
    %v9905 = vpack.c.bf16 %v9854, %v9853
    %v9906 = vpack.c.bf16 %v9856, %v9855
    %v9907 = vpack.c.bf16 %v9858, %v9857
    %v9908 = vpack.c.bf16 %v9860, %v9859
    %v9909 = vpack.c.bf16 %v9862, %v9861
    %v9910 = vpack.c.bf16 %v9864, %v9863
    %v9911 = vpack.c.bf16 %v9866, %v9865
    %v9912 = vpack.c.bf16 %v9868, %v9867
    %v9913 = vpack.c.bf16 %v9870, %v9869
    %v9914 = vpack.c.bf16 %v9872, %v9871
    %v9915 = vpack.c.bf16 %v9874, %v9873
    %v9916 = vpack.c.bf16 %v9876, %v9875
    %v9917 = vpack.c.bf16 %v9878, %v9877
    %v9918 = vpack.c.bf16 %v9880, %v9879
    %v9919 = vpack.c.bf16 %v9882, %v9881
    %v9920 = vpack.c.bf16 %v9884, %v9883
    %v9921 = vpack.c.bf16 %v9886, %v9885
    %v9922 = vpack.c.bf16 %v9888, %v9887
    %v9923 = vpack.c.bf16 %v9890, %v9889
    %v9924 = vpack.c.bf16 %v9892, %v9891
    %v9925 = vld [vmem:[%s6] sm:$0xf]
    %v9926 = vld [vmem:[%s6 + $0x4] sm:$0xf]
    %v9927 = vld [vmem:[%s6 + $0x8] sm:$0xf]
    %v9928 = vld [vmem:[%s6 + $0xc] sm:$0xf]
    %v9929 = vld [vmem:[%s7] sm:$0x1]
    %v9931 = vperm.slane %v9929, 0
    %v9937 = vunpack.c.l.b16 %v9925
    %v9938 = vunpack.c.l.b16 %v9926
    %v9939 = vunpack.c.l.b16 %v9927
    %v9940 = vunpack.c.l.b16 %v9928
    %v9941 = vpack.c.b16 %v9938, %v9937
    %v9942 = vpack.c.b16 %v9940, %v9939
    %v9946 = vsel %vm145, %v9893, 0
    %v9949 = vsel %vm145, %v9894, 0
    %v9952 = vsel %vm145, %v9895, 0
    %v9955 = vsel %vm145, %v9896, 0
    %v9958 = vsel %vm145, %v9897, 0
    %v9961 = vsel %vm145, %v9898, 0
    %v9964 = vsel %vm145, %v9899, 0
    %v9967 = vsel %vm145, %v9900, 0
    %v9970 = vsel %vm145, %v9901, 0
    %v9973 = vsel %vm145, %v9902, 0
    %v9976 = vsel %vm145, %v9903, 0
    %v9979 = vsel %vm145, %v9904, 0
    %v9982 = vsel %vm145, %v9905, 0
    %v9985 = vsel %vm145, %v9906, 0
    %v9988 = vsel %vm145, %v9907, 0
    %v9991 = vsel %vm145, %v9908, 0
    %v9994 = vsel %vm145, %v9909, 0
    %v9997 = vsel %vm145, %v9910, 0
    %v10000 = vsel %vm145, %v9911, 0
    %v10003 = vsel %vm145, %v9912, 0
    %v10006 = vsel %vm145, %v9913, 0
    %v10009 = vsel %vm145, %v9914, 0
    %v10012 = vsel %vm145, %v9915, 0
    %v10015 = vsel %vm145, %v9916, 0
    %v10018 = vsel %vm145, %v9917, 0
    %v10021 = vsel %vm145, %v9918, 0
    %v10024 = vsel %vm145, %v9919, 0
    %v10027 = vsel %vm145, %v9920, 0
    %v10030 = vsel %vm145, %v9921, 0
    %v10033 = vsel %vm145, %v9922, 0
    %v10036 = vsel %vm145, %v9923, 0
    %v10039 = vsel %vm145, %v9924, 0
    %10041 = vmatpush.bf16.msra.mxu0 0
    %10042 = vmatpush.bf16.msra.mxu0 0
    %10043 = vmatpush.bf16.msra.mxu0 0
    %10044 = vmatpush.bf16.msra.mxu0 0
    %10045 = vmatpush.bf16.msra.mxu0 0
    %10046 = vmatpush.bf16.msra.mxu0 0
    %10047 = vmatpush.bf16.msra.mxu0 %v9942
    %10048 = vmatpush.bf16.msra.mxu0 %v9941
    %10049 = vmatmul.bf16.gmra.mxu0 %v9946
    %v10050 = vpop.f32.mrf.mxu0
    %v10051 = vadd.f32 %v9931, %v10050
    %v10052 = vpop.f32.mrf.mxu0
    %v10053 = vadd.f32 %v9931, %v10052
    %10054 = vmatmul.bf16.gmra.mxu0 %v9949
    %v10055 = vpop.f32.mrf.mxu0
    %v10056 = vadd.f32 %v9931, %v10055
    %v10057 = vpop.f32.mrf.mxu0
    %v10058 = vadd.f32 %v9931, %v10057
    %10059 = vmatmul.bf16.gmra.mxu0 %v9952
    %v10060 = vpop.f32.mrf.mxu0
    %v10061 = vadd.f32 %v9931, %v10060
    %v10062 = vpop.f32.mrf.mxu0
    %v10063 = vadd.f32 %v9931, %v10062
    %10064 = vmatmul.bf16.gmra.mxu0 %v9955
    %v10065 = vpop.f32.mrf.mxu0
    %v10066 = vadd.f32 %v9931, %v10065
    %v10067 = vpop.f32.mrf.mxu0
    %v10068 = vadd.f32 %v9931, %v10067
    %10069 = vmatmul.bf16.gmra.mxu0 %v9958
    %v10070 = vpop.f32.mrf.mxu0
    %v10071 = vadd.f32 %v9931, %v10070
    %v10072 = vpop.f32.mrf.mxu0
    %v10073 = vadd.f32 %v9931, %v10072
    %10074 = vmatmul.bf16.gmra.mxu0 %v9961
    %v10075 = vpop.f32.mrf.mxu0
    %v10076 = vadd.f32 %v9931, %v10075
    %v10077 = vpop.f32.mrf.mxu0
    %v10078 = vadd.f32 %v9931, %v10077
    %10079 = vmatmul.bf16.gmra.mxu0 %v9964
    %v10080 = vpop.f32.mrf.mxu0
    %v10081 = vadd.f32 %v9931, %v10080
    %v10082 = vpop.f32.mrf.mxu0
    %v10083 = vadd.f32 %v9931, %v10082
    %10084 = vmatmul.bf16.gmra.mxu0 %v9967
    %v10085 = vpop.f32.mrf.mxu0
    %v10086 = vadd.f32 %v9931, %v10085
    %v10087 = vpop.f32.mrf.mxu0
    %v10088 = vadd.f32 %v9931, %v10087
    %10089 = vmatmul.bf16.gmra.mxu0 %v9970
    %v10090 = vpop.f32.mrf.mxu0
    %v10091 = vadd.f32 %v9931, %v10090
    %v10092 = vpop.f32.mrf.mxu0
    %v10093 = vadd.f32 %v9931, %v10092
    %10094 = vmatmul.bf16.gmra.mxu0 %v9973
    %v10095 = vpop.f32.mrf.mxu0
    %v10096 = vadd.f32 %v9931, %v10095
    %v10097 = vpop.f32.mrf.mxu0
    %v10098 = vadd.f32 %v9931, %v10097
    %10099 = vmatmul.bf16.gmra.mxu0 %v9976
    %v10100 = vpop.f32.mrf.mxu0
    %v10101 = vadd.f32 %v9931, %v10100
    %v10102 = vpop.f32.mrf.mxu0
    %v10103 = vadd.f32 %v9931, %v10102
    %10104 = vmatmul.bf16.gmra.mxu0 %v9979
    %v10105 = vpop.f32.mrf.mxu0
    %v10106 = vadd.f32 %v9931, %v10105
    %v10107 = vpop.f32.mrf.mxu0
    %v10108 = vadd.f32 %v9931, %v10107
    %10109 = vmatmul.bf16.gmra.mxu0 %v9982
    %v10110 = vpop.f32.mrf.mxu0
    %v10111 = vadd.f32 %v9931, %v10110
    %v10112 = vpop.f32.mrf.mxu0
    %v10113 = vadd.f32 %v9931, %v10112
    %10114 = vmatmul.bf16.gmra.mxu0 %v9985
    %v10115 = vpop.f32.mrf.mxu0
    %v10116 = vadd.f32 %v9931, %v10115
    %v10117 = vpop.f32.mrf.mxu0
    %v10118 = vadd.f32 %v9931, %v10117
    %10119 = vmatmul.bf16.gmra.mxu0 %v9988
    %v10120 = vpop.f32.mrf.mxu0
    %v10121 = vadd.f32 %v9931, %v10120
    %v10122 = vpop.f32.mrf.mxu0
    %v10123 = vadd.f32 %v9931, %v10122
    %10124 = vmatmul.bf16.gmra.mxu0 %v9991
    %v10125 = vpop.f32.mrf.mxu0
    %v10126 = vadd.f32 %v9931, %v10125
    %v10127 = vpop.f32.mrf.mxu0
    %v10128 = vadd.f32 %v9931, %v10127
    %10129 = vmatmul.bf16.gmra.mxu0 %v9994
    %v10130 = vpop.f32.mrf.mxu0
    %v10131 = vadd.f32 %v9931, %v10130
    %v10132 = vpop.f32.mrf.mxu0
    %v10133 = vadd.f32 %v9931, %v10132
    %10134 = vmatmul.bf16.gmra.mxu0 %v9997
    %v10135 = vpop.f32.mrf.mxu0
    %v10136 = vadd.f32 %v9931, %v10135
    %v10137 = vpop.f32.mrf.mxu0
    %v10138 = vadd.f32 %v9931, %v10137
    %10139 = vmatmul.bf16.gmra.mxu0 %v10000
    %v10140 = vpop.f32.mrf.mxu0
    %v10141 = vadd.f32 %v9931, %v10140
    %v10142 = vpop.f32.mrf.mxu0
    %v10143 = vadd.f32 %v9931, %v10142
    %10144 = vmatmul.bf16.gmra.mxu0 %v10003
    %v10145 = vpop.f32.mrf.mxu0
    %v10146 = vadd.f32 %v9931, %v10145
    %v10147 = vpop.f32.mrf.mxu0
    %v10148 = vadd.f32 %v9931, %v10147
    %10149 = vmatmul.bf16.gmra.mxu0 %v10006
    %v10150 = vpop.f32.mrf.mxu0
    %v10151 = vadd.f32 %v9931, %v10150
    %v10152 = vpop.f32.mrf.mxu0
    %v10153 = vadd.f32 %v9931, %v10152
    %10154 = vmatmul.bf16.gmra.mxu0 %v10009
    %v10155 = vpop.f32.mrf.mxu0
    %v10156 = vadd.f32 %v9931, %v10155
    %v10157 = vpop.f32.mrf.mxu0
    %v10158 = vadd.f32 %v9931, %v10157
    %10159 = vmatmul.bf16.gmra.mxu0 %v10012
    %v10160 = vpop.f32.mrf.mxu0
    %v10161 = vadd.f32 %v9931, %v10160
    %v10162 = vpop.f32.mrf.mxu0
    %v10163 = vadd.f32 %v9931, %v10162
    %10164 = vmatmul.bf16.gmra.mxu0 %v10015
    %v10165 = vpop.f32.mrf.mxu0
    %v10166 = vadd.f32 %v9931, %v10165
    %v10167 = vpop.f32.mrf.mxu0
    %v10168 = vadd.f32 %v9931, %v10167
    %10169 = vmatmul.bf16.gmra.mxu0 %v10018
    %v10170 = vpop.f32.mrf.mxu0
    %v10171 = vadd.f32 %v9931, %v10170
    %v10172 = vpop.f32.mrf.mxu0
    %v10173 = vadd.f32 %v9931, %v10172
    %10174 = vmatmul.bf16.gmra.mxu0 %v10021
    %v10175 = vpop.f32.mrf.mxu0
    %v10176 = vadd.f32 %v9931, %v10175
    %v10177 = vpop.f32.mrf.mxu0
    %v10178 = vadd.f32 %v9931, %v10177
    %10179 = vmatmul.bf16.gmra.mxu0 %v10024
    %v10180 = vpop.f32.mrf.mxu0
    %v10181 = vadd.f32 %v9931, %v10180
    %v10182 = vpop.f32.mrf.mxu0
    %v10183 = vadd.f32 %v9931, %v10182
    %10184 = vmatmul.bf16.gmra.mxu0 %v10027
    %v10185 = vpop.f32.mrf.mxu0
    %v10186 = vadd.f32 %v9931, %v10185
    %v10187 = vpop.f32.mrf.mxu0
    %v10188 = vadd.f32 %v9931, %v10187
    %10189 = vmatmul.bf16.gmra.mxu0 %v10030
    %v10190 = vpop.f32.mrf.mxu0
    %v10191 = vadd.f32 %v9931, %v10190
    %v10192 = vpop.f32.mrf.mxu0
    %v10193 = vadd.f32 %v9931, %v10192
    %10194 = vmatmul.bf16.gmra.mxu0 %v10033
    %v10195 = vpop.f32.mrf.mxu0
    %v10196 = vadd.f32 %v9931, %v10195
    %v10197 = vpop.f32.mrf.mxu0
    %v10198 = vadd.f32 %v9931, %v10197
    %10199 = vmatmul.bf16.gmra.mxu0 %v10036
    %v10200 = vpop.f32.mrf.mxu0
    %v10201 = vadd.f32 %v9931, %v10200
    %v10202 = vpop.f32.mrf.mxu0
    %v10203 = vadd.f32 %v9931, %v10202
    %10204 = vmatmul.bf16.gmra.mxu0 %v10039
    %v10205 = vpop.f32.mrf.mxu0
    %v10206 = vadd.f32 %v9931, %v10205
    %v10207 = vpop.f32.mrf.mxu0
    %v10208 = vadd.f32 %v9931, %v10207
    %10209 = vdwg.mxu0
    %v10210 = vadd.f32 %v81, %v10051
    %v10211 = vadd.f32 %v82, %v10053
    %v10212 = vadd.f32 %v83, %v10056
    %v10213 = vadd.f32 %v84, %v10058
    %v10214 = vadd.f32 %v85, %v10061
    %v10215 = vadd.f32 %v86, %v10063
    %v10216 = vadd.f32 %v87, %v10066
    %v10217 = vadd.f32 %v88, %v10068
    %v10218 = vadd.f32 %v89, %v10071
    %v10219 = vadd.f32 %v90, %v10073
    %v10220 = vadd.f32 %v91, %v10076
    %v10221 = vadd.f32 %v92, %v10078
    %v10222 = vadd.f32 %v93, %v10081
    %v10223 = vadd.f32 %v94, %v10083
    %v10224 = vadd.f32 %v95, %v10086
    %v10225 = vadd.f32 %v96, %v10088
    %v10226 = vadd.f32 %v97, %v10091
    %v10227 = vadd.f32 %v98, %v10093
    %v10228 = vadd.f32 %v99, %v10096
    %v10229 = vadd.f32 %v100, %v10098
    %v10230 = vadd.f32 %v101, %v10101
    %v10231 = vadd.f32 %v102, %v10103
    %v10232 = vadd.f32 %v103, %v10106
    %v10233 = vadd.f32 %v104, %v10108
    %v10234 = vadd.f32 %v105, %v10111
    %v10235 = vadd.f32 %v106, %v10113
    %v10236 = vadd.f32 %v107, %v10116
    %v10237 = vadd.f32 %v108, %v10118
    %v10238 = vadd.f32 %v109, %v10121
    %v10239 = vadd.f32 %v110, %v10123
    %v10240 = vadd.f32 %v111, %v10126
    %v10241 = vadd.f32 %v112, %v10128
    %v10242 = vadd.f32 %v113, %v10131
    %v10243 = vadd.f32 %v114, %v10133
    %v10244 = vadd.f32 %v115, %v10136
    %v10245 = vadd.f32 %v116, %v10138
    %v10246 = vadd.f32 %v117, %v10141
    %v10247 = vadd.f32 %v118, %v10143
    %v10248 = vadd.f32 %v119, %v10146
    %v10249 = vadd.f32 %v120, %v10148
    %v10250 = vadd.f32 %v121, %v10151
    %v10251 = vadd.f32 %v122, %v10153
    %v10252 = vadd.f32 %v123, %v10156
    %v10253 = vadd.f32 %v124, %v10158
    %v10254 = vadd.f32 %v125, %v10161
    %v10255 = vadd.f32 %v126, %v10163
    %v10256 = vadd.f32 %v127, %v10166
    %v10257 = vadd.f32 %v128, %v10168
    %v10258 = vadd.f32 %v129, %v10171
    %v10259 = vadd.f32 %v130, %v10173
    %v10260 = vadd.f32 %v131, %v10176
    %v10261 = vadd.f32 %v132, %v10178
    %v10262 = vadd.f32 %v133, %v10181
    %v10263 = vadd.f32 %v134, %v10183
    %v10264 = vadd.f32 %v135, %v10186
    %v10265 = vadd.f32 %v136, %v10188
    %v10266 = vadd.f32 %v137, %v10191
    %v10267 = vadd.f32 %v138, %v10193
    %v10268 = vadd.f32 %v139, %v10196
    %v10269 = vadd.f32 %v140, %v10198
    %v10270 = vadd.f32 %v141, %v10201
    %v10271 = vadd.f32 %v142, %v10203
    %v10272 = vadd.f32 %v143, %v10206
    %v10273 = vadd.f32 %v144, %v10208
    %v10274 = vsel %vm145, %v10210, 0.0
    %10275 = vadd.xlane.f32.xlu0 %v10274
    %v10276 = vpop.xlane.xlu0 %10275
    %v10277 = vsel %vm145, %v10211, 0.0
    %10278 = vadd.xlane.f32.xlu0 %v10277
    %v10279 = vpop.xlane.xlu0 %10278
    %v10280 = vsel %vm145, %v10212, 0.0
    %10281 = vadd.xlane.f32.xlu0 %v10280
    %v10282 = vpop.xlane.xlu0 %10281
    %v10283 = vsel %vm145, %v10213, 0.0
    %10284 = vadd.xlane.f32.xlu0 %v10283
    %v10285 = vpop.xlane.xlu0 %10284
    %v10286 = vsel %vm145, %v10214, 0.0
    %10287 = vadd.xlane.f32.xlu0 %v10286
    %v10288 = vpop.xlane.xlu0 %10287
    %v10289 = vsel %vm145, %v10215, 0.0
    %10290 = vadd.xlane.f32.xlu0 %v10289
    %v10291 = vpop.xlane.xlu0 %10290
    %v10292 = vsel %vm145, %v10216, 0.0
    %10293 = vadd.xlane.f32.xlu0 %v10292
    %v10294 = vpop.xlane.xlu0 %10293
    %v10295 = vsel %vm145, %v10217, 0.0
    %10296 = vadd.xlane.f32.xlu0 %v10295
    %v10297 = vpop.xlane.xlu0 %10296
    %v10298 = vsel %vm145, %v10218, 0.0
    %10299 = vadd.xlane.f32.xlu0 %v10298
    %v10300 = vpop.xlane.xlu0 %10299
    %v10301 = vsel %vm145, %v10219, 0.0
    %10302 = vadd.xlane.f32.xlu0 %v10301
    %v10303 = vpop.xlane.xlu0 %10302
    %v10304 = vsel %vm145, %v10220, 0.0
    %10305 = vadd.xlane.f32.xlu0 %v10304
    %v10306 = vpop.xlane.xlu0 %10305
    %v10307 = vsel %vm145, %v10221, 0.0
    %10308 = vadd.xlane.f32.xlu0 %v10307
    %v10309 = vpop.xlane.xlu0 %10308
    %v10310 = vsel %vm145, %v10222, 0.0
    %10311 = vadd.xlane.f32.xlu0 %v10310
    %v10312 = vpop.xlane.xlu0 %10311
    %v10313 = vsel %vm145, %v10223, 0.0
    %10314 = vadd.xlane.f32.xlu0 %v10313
    %v10315 = vpop.xlane.xlu0 %10314
    %v10316 = vsel %vm145, %v10224, 0.0
    %10317 = vadd.xlane.f32.xlu0 %v10316
    %v10318 = vpop.xlane.xlu0 %10317
    %v10319 = vsel %vm145, %v10225, 0.0
    %10320 = vadd.xlane.f32.xlu0 %v10319
    %v10321 = vpop.xlane.xlu0 %10320
    %v10322 = vsel %vm145, %v10226, 0.0
    %10323 = vadd.xlane.f32.xlu0 %v10322
    %v10324 = vpop.xlane.xlu0 %10323
    %v10325 = vsel %vm145, %v10227, 0.0
    %10326 = vadd.xlane.f32.xlu0 %v10325
    %v10327 = vpop.xlane.xlu0 %10326
    %v10328 = vsel %vm145, %v10228, 0.0
    %10329 = vadd.xlane.f32.xlu0 %v10328
    %v10330 = vpop.xlane.xlu0 %10329
    %v10331 = vsel %vm145, %v10229, 0.0
    %10332 = vadd.xlane.f32.xlu0 %v10331
    %v10333 = vpop.xlane.xlu0 %10332
    %v10334 = vsel %vm145, %v10230, 0.0
    %10335 = vadd.xlane.f32.xlu0 %v10334
    %v10336 = vpop.xlane.xlu0 %10335
    %v10337 = vsel %vm145, %v10231, 0.0
    %10338 = vadd.xlane.f32.xlu0 %v10337
    %v10339 = vpop.xlane.xlu0 %10338
    %v10340 = vsel %vm145, %v10232, 0.0
    %10341 = vadd.xlane.f32.xlu0 %v10340
    %v10342 = vpop.xlane.xlu0 %10341
    %v10343 = vsel %vm145, %v10233, 0.0
    %10344 = vadd.xlane.f32.xlu0 %v10343
    %v10345 = vpop.xlane.xlu0 %10344
    %v10346 = vsel %vm145, %v10234, 0.0
    %10347 = vadd.xlane.f32.xlu0 %v10346
    %v10348 = vpop.xlane.xlu0 %10347
    %v10349 = vsel %vm145, %v10235, 0.0
    %10350 = vadd.xlane.f32.xlu0 %v10349
    %v10351 = vpop.xlane.xlu0 %10350
    %v10352 = vsel %vm145, %v10236, 0.0
    %10353 = vadd.xlane.f32.xlu0 %v10352
    %v10354 = vpop.xlane.xlu0 %10353
    %v10355 = vsel %vm145, %v10237, 0.0
    %10356 = vadd.xlane.f32.xlu0 %v10355
    %v10357 = vpop.xlane.xlu0 %10356
    %v10358 = vsel %vm145, %v10238, 0.0
    %10359 = vadd.xlane.f32.xlu0 %v10358
    %v10360 = vpop.xlane.xlu0 %10359
    %v10361 = vsel %vm145, %v10239, 0.0
    %10362 = vadd.xlane.f32.xlu0 %v10361
    %v10363 = vpop.xlane.xlu0 %10362
    %v10364 = vsel %vm145, %v10240, 0.0
    %10365 = vadd.xlane.f32.xlu0 %v10364
    %v10366 = vpop.xlane.xlu0 %10365
    %v10367 = vsel %vm145, %v10241, 0.0
    %10368 = vadd.xlane.f32.xlu0 %v10367
    %v10369 = vpop.xlane.xlu0 %10368
    %v10370 = vsel %vm145, %v10242, 0.0
    %10371 = vadd.xlane.f32.xlu0 %v10370
    %v10372 = vpop.xlane.xlu0 %10371
    %v10373 = vsel %vm145, %v10243, 0.0
    %10374 = vadd.xlane.f32.xlu0 %v10373
    %v10375 = vpop.xlane.xlu0 %10374
    %v10376 = vsel %vm145, %v10244, 0.0
    %10377 = vadd.xlane.f32.xlu0 %v10376
    %v10378 = vpop.xlane.xlu0 %10377
    %v10379 = vsel %vm145, %v10245, 0.0
    %10380 = vadd.xlane.f32.xlu0 %v10379
    %v10381 = vpop.xlane.xlu0 %10380
    %v10382 = vsel %vm145, %v10246, 0.0
    %10383 = vadd.xlane.f32.xlu0 %v10382
    %v10384 = vpop.xlane.xlu0 %10383
    %v10385 = vsel %vm145, %v10247, 0.0
    %10386 = vadd.xlane.f32.xlu0 %v10385
    %v10387 = vpop.xlane.xlu0 %10386
    %v10388 = vsel %vm145, %v10248, 0.0
    %10389 = vadd.xlane.f32.xlu0 %v10388
    %v10390 = vpop.xlane.xlu0 %10389
    %v10391 = vsel %vm145, %v10249, 0.0
    %10392 = vadd.xlane.f32.xlu0 %v10391
    %v10393 = vpop.xlane.xlu0 %10392
    %v10394 = vsel %vm145, %v10250, 0.0
    %10395 = vadd.xlane.f32.xlu0 %v10394
    %v10396 = vpop.xlane.xlu0 %10395
    %v10397 = vsel %vm145, %v10251, 0.0
    %10398 = vadd.xlane.f32.xlu0 %v10397
    %v10399 = vpop.xlane.xlu0 %10398
    %v10400 = vsel %vm145, %v10252, 0.0
    %10401 = vadd.xlane.f32.xlu0 %v10400
    %v10402 = vpop.xlane.xlu0 %10401
    %v10403 = vsel %vm145, %v10253, 0.0
    %10404 = vadd.xlane.f32.xlu0 %v10403
    %v10405 = vpop.xlane.xlu0 %10404
    %v10406 = vsel %vm145, %v10254, 0.0
    %10407 = vadd.xlane.f32.xlu0 %v10406
    %v10408 = vpop.xlane.xlu0 %10407
    %v10409 = vsel %vm145, %v10255, 0.0
    %10410 = vadd.xlane.f32.xlu0 %v10409
    %v10411 = vpop.xlane.xlu0 %10410
    %v10412 = vsel %vm145, %v10256, 0.0
    %10413 = vadd.xlane.f32.xlu0 %v10412
    %v10414 = vpop.xlane.xlu0 %10413
    %v10415 = vsel %vm145, %v10257, 0.0
    %10416 = vadd.xlane.f32.xlu0 %v10415
    %v10417 = vpop.xlane.xlu0 %10416
    %v10418 = vsel %vm145, %v10258, 0.0
    %10419 = vadd.xlane.f32.xlu0 %v10418
    %v10420 = vpop.xlane.xlu0 %10419
    %v10421 = vsel %vm145, %v10259, 0.0
    %10422 = vadd.xlane.f32.xlu0 %v10421
    %v10423 = vpop.xlane.xlu0 %10422
    %v10424 = vsel %vm145, %v10260, 0.0
    %10425 = vadd.xlane.f32.xlu0 %v10424
    %v10426 = vpop.xlane.xlu0 %10425
    %v10427 = vsel %vm145, %v10261, 0.0
    %10428 = vadd.xlane.f32.xlu0 %v10427
    %v10429 = vpop.xlane.xlu0 %10428
    %v10430 = vsel %vm145, %v10262, 0.0
    %10431 = vadd.xlane.f32.xlu0 %v10430
    %v10432 = vpop.xlane.xlu0 %10431
    %v10433 = vsel %vm145, %v10263, 0.0
    %10434 = vadd.xlane.f32.xlu0 %v10433
    %v10435 = vpop.xlane.xlu0 %10434
    %v10436 = vsel %vm145, %v10264, 0.0
    %10437 = vadd.xlane.f32.xlu0 %v10436
    %v10438 = vpop.xlane.xlu0 %10437
    %v10439 = vsel %vm145, %v10265, 0.0
    %10440 = vadd.xlane.f32.xlu0 %v10439
    %v10441 = vpop.xlane.xlu0 %10440
    %v10442 = vsel %vm145, %v10266, 0.0
    %10443 = vadd.xlane.f32.xlu0 %v10442
    %v10444 = vpop.xlane.xlu0 %10443
    %v10445 = vsel %vm145, %v10267, 0.0
    %10446 = vadd.xlane.f32.xlu0 %v10445
    %v10447 = vpop.xlane.xlu0 %10446
    %v10448 = vsel %vm145, %v10268, 0.0
    %10449 = vadd.xlane.f32.xlu0 %v10448
    %v10450 = vpop.xlane.xlu0 %10449
    %v10451 = vsel %vm145, %v10269, 0.0
    %10452 = vadd.xlane.f32.xlu0 %v10451
    %v10453 = vpop.xlane.xlu0 %10452
    %v10454 = vsel %vm145, %v10270, 0.0
    %10455 = vadd.xlane.f32.xlu0 %v10454
    %v10456 = vpop.xlane.xlu0 %10455
    %v10457 = vsel %vm145, %v10271, 0.0
    %10458 = vadd.xlane.f32.xlu0 %v10457
    %v10459 = vpop.xlane.xlu0 %10458
    %v10460 = vsel %vm145, %v10272, 0.0
    %10461 = vadd.xlane.f32.xlu0 %v10460
    %v10462 = vpop.xlane.xlu0 %10461
    %v10463 = vsel %vm145, %v10273, 0.0
    %10464 = vadd.xlane.f32.xlu0 %v10463
    %v10465 = vpop.xlane.xlu0 %10464
    %v10466 = vmul.f32 %v10276, %v344
    %v10467 = vmul.f32 %v10279, %v344
    %v10468 = vmul.f32 %v10282, %v344
    %v10469 = vmul.f32 %v10285, %v344
    %v10470 = vmul.f32 %v10288, %v344
    %v10471 = vmul.f32 %v10291, %v344
    %v10472 = vmul.f32 %v10294, %v344
    %v10473 = vmul.f32 %v10297, %v344
    %v10474 = vmul.f32 %v10300, %v344
    %v10475 = vmul.f32 %v10303, %v344
    %v10476 = vmul.f32 %v10306, %v344
    %v10477 = vmul.f32 %v10309, %v344
    %v10478 = vmul.f32 %v10312, %v344
    %v10479 = vmul.f32 %v10315, %v344
    %v10480 = vmul.f32 %v10318, %v344
    %v10481 = vmul.f32 %v10321, %v344
    %v10482 = vmul.f32 %v10324, %v344
    %v10483 = vmul.f32 %v10327, %v344
    %v10484 = vmul.f32 %v10330, %v344
    %v10485 = vmul.f32 %v10333, %v344
    %v10486 = vmul.f32 %v10336, %v344
    %v10487 = vmul.f32 %v10339, %v344
    %v10488 = vmul.f32 %v10342, %v344
    %v10489 = vmul.f32 %v10345, %v344
    %v10490 = vmul.f32 %v10348, %v344
    %v10491 = vmul.f32 %v10351, %v344
    %v10492 = vmul.f32 %v10354, %v344
    %v10493 = vmul.f32 %v10357, %v344
    %v10494 = vmul.f32 %v10360, %v344
    %v10495 = vmul.f32 %v10363, %v344
    %v10496 = vmul.f32 %v10366, %v344
    %v10497 = vmul.f32 %v10369, %v344
    %v10498 = vmul.f32 %v10372, %v344
    %v10499 = vmul.f32 %v10375, %v344
    %v10500 = vmul.f32 %v10378, %v344
    %v10501 = vmul.f32 %v10381, %v344
    %v10502 = vmul.f32 %v10384, %v344
    %v10503 = vmul.f32 %v10387, %v344
    %v10504 = vmul.f32 %v10390, %v344
    %v10505 = vmul.f32 %v10393, %v344
    %v10506 = vmul.f32 %v10396, %v344
    %v10507 = vmul.f32 %v10399, %v344
    %v10508 = vmul.f32 %v10402, %v344
    %v10509 = vmul.f32 %v10405, %v344
    %v10510 = vmul.f32 %v10408, %v344
    %v10511 = vmul.f32 %v10411, %v344
    %v10512 = vmul.f32 %v10414, %v344
    %v10513 = vmul.f32 %v10417, %v344
    %v10514 = vmul.f32 %v10420, %v344
    %v10515 = vmul.f32 %v10423, %v344
    %v10516 = vmul.f32 %v10426, %v344
    %v10517 = vmul.f32 %v10429, %v344
    %v10518 = vmul.f32 %v10432, %v344
    %v10519 = vmul.f32 %v10435, %v344
    %v10520 = vmul.f32 %v10438, %v344
    %v10521 = vmul.f32 %v10441, %v344
    %v10522 = vmul.f32 %v10444, %v344
    %v10523 = vmul.f32 %v10447, %v344
    %v10524 = vmul.f32 %v10450, %v344
    %v10525 = vmul.f32 %v10453, %v344
    %v10526 = vmul.f32 %v10456, %v344
    %v10527 = vmul.f32 %v10459, %v344
    %v10528 = vmul.f32 %v10462, %v344
    %v10529 = vmul.f32 %v10465, %v344
    %v10530 = vsub.f32 %v10210, %v10466
    %v10531 = vsub.f32 %v10211, %v10467
    %v10532 = vsub.f32 %v10212, %v10468
    %v10533 = vsub.f32 %v10213, %v10469
    %v10534 = vsub.f32 %v10214, %v10470
    %v10535 = vsub.f32 %v10215, %v10471
    %v10536 = vsub.f32 %v10216, %v10472
    %v10537 = vsub.f32 %v10217, %v10473
    %v10538 = vsub.f32 %v10218, %v10474
    %v10539 = vsub.f32 %v10219, %v10475
    %v10540 = vsub.f32 %v10220, %v10476
    %v10541 = vsub.f32 %v10221, %v10477
    %v10542 = vsub.f32 %v10222, %v10478
    %v10543 = vsub.f32 %v10223, %v10479
    %v10544 = vsub.f32 %v10224, %v10480
    %v10545 = vsub.f32 %v10225, %v10481
    %v10546 = vsub.f32 %v10226, %v10482
    %v10547 = vsub.f32 %v10227, %v10483
    %v10548 = vsub.f32 %v10228, %v10484
    %v10549 = vsub.f32 %v10229, %v10485
    %v10550 = vsub.f32 %v10230, %v10486
    %v10551 = vsub.f32 %v10231, %v10487
    %v10552 = vsub.f32 %v10232, %v10488
    %v10553 = vsub.f32 %v10233, %v10489
    %v10554 = vsub.f32 %v10234, %v10490
    %v10555 = vsub.f32 %v10235, %v10491
    %v10556 = vsub.f32 %v10236, %v10492
    %v10557 = vsub.f32 %v10237, %v10493
    %v10558 = vsub.f32 %v10238, %v10494
    %v10559 = vsub.f32 %v10239, %v10495
    %v10560 = vsub.f32 %v10240, %v10496
    %v10561 = vsub.f32 %v10241, %v10497
    %v10562 = vsub.f32 %v10242, %v10498
    %v10563 = vsub.f32 %v10243, %v10499
    %v10564 = vsub.f32 %v10244, %v10500
    %v10565 = vsub.f32 %v10245, %v10501
    %v10566 = vsub.f32 %v10246, %v10502
    %v10567 = vsub.f32 %v10247, %v10503
    %v10568 = vsub.f32 %v10248, %v10504
    %v10569 = vsub.f32 %v10249, %v10505
    %v10570 = vsub.f32 %v10250, %v10506
    %v10571 = vsub.f32 %v10251, %v10507
    %v10572 = vsub.f32 %v10252, %v10508
    %v10573 = vsub.f32 %v10253, %v10509
    %v10574 = vsub.f32 %v10254, %v10510
    %v10575 = vsub.f32 %v10255, %v10511
    %v10576 = vsub.f32 %v10256, %v10512
    %v10577 = vsub.f32 %v10257, %v10513
    %v10578 = vsub.f32 %v10258, %v10514
    %v10579 = vsub.f32 %v10259, %v10515
    %v10580 = vsub.f32 %v10260, %v10516
    %v10581 = vsub.f32 %v10261, %v10517
    %v10582 = vsub.f32 %v10262, %v10518
    %v10583 = vsub.f32 %v10263, %v10519
    %v10584 = vsub.f32 %v10264, %v10520
    %v10585 = vsub.f32 %v10265, %v10521
    %v10586 = vsub.f32 %v10266, %v10522
    %v10587 = vsub.f32 %v10267, %v10523
    %v10588 = vsub.f32 %v10268, %v10524
    %v10589 = vsub.f32 %v10269, %v10525
    %v10590 = vsub.f32 %v10270, %v10526
    %v10591 = vsub.f32 %v10271, %v10527
    %v10592 = vsub.f32 %v10272, %v10528
    %v10593 = vsub.f32 %v10273, %v10529
    %v10594 = vmul.f32 %v10530, %v10530
    %v10595 = vmul.f32 %v10531, %v10531
    %v10596 = vmul.f32 %v10532, %v10532
    %v10597 = vmul.f32 %v10533, %v10533
    %v10598 = vmul.f32 %v10534, %v10534
    %v10599 = vmul.f32 %v10535, %v10535
    %v10600 = vmul.f32 %v10536, %v10536
    %v10601 = vmul.f32 %v10537, %v10537
    %v10602 = vmul.f32 %v10538, %v10538
    %v10603 = vmul.f32 %v10539, %v10539
    %v10604 = vmul.f32 %v10540, %v10540
    %v10605 = vmul.f32 %v10541, %v10541
    %v10606 = vmul.f32 %v10542, %v10542
    %v10607 = vmul.f32 %v10543, %v10543
    %v10608 = vmul.f32 %v10544, %v10544
    %v10609 = vmul.f32 %v10545, %v10545
    %v10610 = vmul.f32 %v10546, %v10546
    %v10611 = vmul.f32 %v10547, %v10547
    %v10612 = vmul.f32 %v10548, %v10548
    %v10613 = vmul.f32 %v10549, %v10549
    %v10614 = vmul.f32 %v10550, %v10550
    %v10615 = vmul.f32 %v10551, %v10551
    %v10616 = vmul.f32 %v10552, %v10552
    %v10617 = vmul.f32 %v10553, %v10553
    %v10618 = vmul.f32 %v10554, %v10554
    %v10619 = vmul.f32 %v10555, %v10555
    %v10620 = vmul.f32 %v10556, %v10556
    %v10621 = vmul.f32 %v10557, %v10557
    %v10622 = vmul.f32 %v10558, %v10558
    %v10623 = vmul.f32 %v10559, %v10559
    %v10624 = vmul.f32 %v10560, %v10560
    %v10625 = vmul.f32 %v10561, %v10561
    %v10626 = vmul.f32 %v10562, %v10562
    %v10627 = vmul.f32 %v10563, %v10563
    %v10628 = vmul.f32 %v10564, %v10564
    %v10629 = vmul.f32 %v10565, %v10565
    %v10630 = vmul.f32 %v10566, %v10566
    %v10631 = vmul.f32 %v10567, %v10567
    %v10632 = vmul.f32 %v10568, %v10568
    %v10633 = vmul.f32 %v10569, %v10569
    %v10634 = vmul.f32 %v10570, %v10570
    %v10635 = vmul.f32 %v10571, %v10571
    %v10636 = vmul.f32 %v10572, %v10572
    %v10637 = vmul.f32 %v10573, %v10573
    %v10638 = vmul.f32 %v10574, %v10574
    %v10639 = vmul.f32 %v10575, %v10575
    %v10640 = vmul.f32 %v10576, %v10576
    %v10641 = vmul.f32 %v10577, %v10577
    %v10642 = vmul.f32 %v10578, %v10578
    %v10643 = vmul.f32 %v10579, %v10579
    %v10644 = vmul.f32 %v10580, %v10580
    %v10645 = vmul.f32 %v10581, %v10581
    %v10646 = vmul.f32 %v10582, %v10582
    %v10647 = vmul.f32 %v10583, %v10583
    %v10648 = vmul.f32 %v10584, %v10584
    %v10649 = vmul.f32 %v10585, %v10585
    %v10650 = vmul.f32 %v10586, %v10586
    %v10651 = vmul.f32 %v10587, %v10587
    %v10652 = vmul.f32 %v10588, %v10588
    %v10653 = vmul.f32 %v10589, %v10589
    %v10654 = vmul.f32 %v10590, %v10590
    %v10655 = vmul.f32 %v10591, %v10591
    %v10656 = vmul.f32 %v10592, %v10592
    %v10657 = vmul.f32 %v10593, %v10593
    %v10658 = vsel %vm145, %v10594, 0.0
    %10659 = vadd.xlane.f32.xlu0 %v10658
    %v10660 = vpop.xlane.xlu0 %10659
    %v10661 = vsel %vm145, %v10595, 0.0
    %10662 = vadd.xlane.f32.xlu0 %v10661
    %v10663 = vpop.xlane.xlu0 %10662
    %v10664 = vsel %vm145, %v10596, 0.0
    %10665 = vadd.xlane.f32.xlu0 %v10664
    %v10666 = vpop.xlane.xlu0 %10665
    %v10667 = vsel %vm145, %v10597, 0.0
    %10668 = vadd.xlane.f32.xlu0 %v10667
    %v10669 = vpop.xlane.xlu0 %10668
    %v10670 = vsel %vm145, %v10598, 0.0
    %10671 = vadd.xlane.f32.xlu0 %v10670
    %v10672 = vpop.xlane.xlu0 %10671
    %v10673 = vsel %vm145, %v10599, 0.0
    %10674 = vadd.xlane.f32.xlu0 %v10673
    %v10675 = vpop.xlane.xlu0 %10674
    %v10676 = vsel %vm145, %v10600, 0.0
    %10677 = vadd.xlane.f32.xlu0 %v10676
    %v10678 = vpop.xlane.xlu0 %10677
    %v10679 = vsel %vm145, %v10601, 0.0
    %10680 = vadd.xlane.f32.xlu0 %v10679
    %v10681 = vpop.xlane.xlu0 %10680
    %v10682 = vsel %vm145, %v10602, 0.0
    %10683 = vadd.xlane.f32.xlu0 %v10682
    %v10684 = vpop.xlane.xlu0 %10683
    %v10685 = vsel %vm145, %v10603, 0.0
    %10686 = vadd.xlane.f32.xlu0 %v10685
    %v10687 = vpop.xlane.xlu0 %10686
    %v10688 = vsel %vm145, %v10604, 0.0
    %10689 = vadd.xlane.f32.xlu0 %v10688
    %v10690 = vpop.xlane.xlu0 %10689
    %v10691 = vsel %vm145, %v10605, 0.0
    %10692 = vadd.xlane.f32.xlu0 %v10691
    %v10693 = vpop.xlane.xlu0 %10692
    %v10694 = vsel %vm145, %v10606, 0.0
    %10695 = vadd.xlane.f32.xlu0 %v10694
    %v10696 = vpop.xlane.xlu0 %10695
    %v10697 = vsel %vm145, %v10607, 0.0
    %10698 = vadd.xlane.f32.xlu0 %v10697
    %v10699 = vpop.xlane.xlu0 %10698
    %v10700 = vsel %vm145, %v10608, 0.0
    %10701 = vadd.xlane.f32.xlu0 %v10700
    %v10702 = vpop.xlane.xlu0 %10701
    %v10703 = vsel %vm145, %v10609, 0.0
    %10704 = vadd.xlane.f32.xlu0 %v10703
    %v10705 = vpop.xlane.xlu0 %10704
    %v10706 = vsel %vm145, %v10610, 0.0
    %10707 = vadd.xlane.f32.xlu0 %v10706
    %v10708 = vpop.xlane.xlu0 %10707
    %v10709 = vsel %vm145, %v10611, 0.0
    %10710 = vadd.xlane.f32.xlu0 %v10709
    %v10711 = vpop.xlane.xlu0 %10710
    %v10712 = vsel %vm145, %v10612, 0.0
    %10713 = vadd.xlane.f32.xlu0 %v10712
    %v10714 = vpop.xlane.xlu0 %10713
    %v10715 = vsel %vm145, %v10613, 0.0
    %10716 = vadd.xlane.f32.xlu0 %v10715
    %v10717 = vpop.xlane.xlu0 %10716
    %v10718 = vsel %vm145, %v10614, 0.0
    %10719 = vadd.xlane.f32.xlu0 %v10718
    %v10720 = vpop.xlane.xlu0 %10719
    %v10721 = vsel %vm145, %v10615, 0.0
    %10722 = vadd.xlane.f32.xlu0 %v10721
    %v10723 = vpop.xlane.xlu0 %10722
    %v10724 = vsel %vm145, %v10616, 0.0
    %10725 = vadd.xlane.f32.xlu0 %v10724
    %v10726 = vpop.xlane.xlu0 %10725
    %v10727 = vsel %vm145, %v10617, 0.0
    %10728 = vadd.xlane.f32.xlu0 %v10727
    %v10729 = vpop.xlane.xlu0 %10728
    %v10730 = vsel %vm145, %v10618, 0.0
    %10731 = vadd.xlane.f32.xlu0 %v10730
    %v10732 = vpop.xlane.xlu0 %10731
    %v10733 = vsel %vm145, %v10619, 0.0
    %10734 = vadd.xlane.f32.xlu0 %v10733
    %v10735 = vpop.xlane.xlu0 %10734
    %v10736 = vsel %vm145, %v10620, 0.0
    %10737 = vadd.xlane.f32.xlu0 %v10736
    %v10738 = vpop.xlane.xlu0 %10737
    %v10739 = vsel %vm145, %v10621, 0.0
    %10740 = vadd.xlane.f32.xlu0 %v10739
    %v10741 = vpop.xlane.xlu0 %10740
    %v10742 = vsel %vm145, %v10622, 0.0
    %10743 = vadd.xlane.f32.xlu0 %v10742
    %v10744 = vpop.xlane.xlu0 %10743
    %v10745 = vsel %vm145, %v10623, 0.0
    %10746 = vadd.xlane.f32.xlu0 %v10745
    %v10747 = vpop.xlane.xlu0 %10746
    %v10748 = vsel %vm145, %v10624, 0.0
    %10749 = vadd.xlane.f32.xlu0 %v10748
    %v10750 = vpop.xlane.xlu0 %10749
    %v10751 = vsel %vm145, %v10625, 0.0
    %10752 = vadd.xlane.f32.xlu0 %v10751
    %v10753 = vpop.xlane.xlu0 %10752
    %v10754 = vsel %vm145, %v10626, 0.0
    %10755 = vadd.xlane.f32.xlu0 %v10754
    %v10756 = vpop.xlane.xlu0 %10755
    %v10757 = vsel %vm145, %v10627, 0.0
    %10758 = vadd.xlane.f32.xlu0 %v10757
    %v10759 = vpop.xlane.xlu0 %10758
    %v10760 = vsel %vm145, %v10628, 0.0
    %10761 = vadd.xlane.f32.xlu0 %v10760
    %v10762 = vpop.xlane.xlu0 %10761
    %v10763 = vsel %vm145, %v10629, 0.0
    %10764 = vadd.xlane.f32.xlu0 %v10763
    %v10765 = vpop.xlane.xlu0 %10764
    %v10766 = vsel %vm145, %v10630, 0.0
    %10767 = vadd.xlane.f32.xlu0 %v10766
    %v10768 = vpop.xlane.xlu0 %10767
    %v10769 = vsel %vm145, %v10631, 0.0
    %10770 = vadd.xlane.f32.xlu0 %v10769
    %v10771 = vpop.xlane.xlu0 %10770
    %v10772 = vsel %vm145, %v10632, 0.0
    %10773 = vadd.xlane.f32.xlu0 %v10772
    %v10774 = vpop.xlane.xlu0 %10773
    %v10775 = vsel %vm145, %v10633, 0.0
    %10776 = vadd.xlane.f32.xlu0 %v10775
    %v10777 = vpop.xlane.xlu0 %10776
    %v10778 = vsel %vm145, %v10634, 0.0
    %10779 = vadd.xlane.f32.xlu0 %v10778
    %v10780 = vpop.xlane.xlu0 %10779
    %v10781 = vsel %vm145, %v10635, 0.0
    %10782 = vadd.xlane.f32.xlu0 %v10781
    %v10783 = vpop.xlane.xlu0 %10782
    %v10784 = vsel %vm145, %v10636, 0.0
    %10785 = vadd.xlane.f32.xlu0 %v10784
    %v10786 = vpop.xlane.xlu0 %10785
    %v10787 = vsel %vm145, %v10637, 0.0
    %10788 = vadd.xlane.f32.xlu0 %v10787
    %v10789 = vpop.xlane.xlu0 %10788
    %v10790 = vsel %vm145, %v10638, 0.0
    %10791 = vadd.xlane.f32.xlu0 %v10790
    %v10792 = vpop.xlane.xlu0 %10791
    %v10793 = vsel %vm145, %v10639, 0.0
    %10794 = vadd.xlane.f32.xlu0 %v10793
    %v10795 = vpop.xlane.xlu0 %10794
    %v10796 = vsel %vm145, %v10640, 0.0
    %10797 = vadd.xlane.f32.xlu0 %v10796
    %v10798 = vpop.xlane.xlu0 %10797
    %v10799 = vsel %vm145, %v10641, 0.0
    %10800 = vadd.xlane.f32.xlu0 %v10799
    %v10801 = vpop.xlane.xlu0 %10800
    %v10802 = vsel %vm145, %v10642, 0.0
    %10803 = vadd.xlane.f32.xlu0 %v10802
    %v10804 = vpop.xlane.xlu0 %10803
    %v10805 = vsel %vm145, %v10643, 0.0
    %10806 = vadd.xlane.f32.xlu0 %v10805
    %v10807 = vpop.xlane.xlu0 %10806
    %v10808 = vsel %vm145, %v10644, 0.0
    %10809 = vadd.xlane.f32.xlu0 %v10808
    %v10810 = vpop.xlane.xlu0 %10809
    %v10811 = vsel %vm145, %v10645, 0.0
    %10812 = vadd.xlane.f32.xlu0 %v10811
    %v10813 = vpop.xlane.xlu0 %10812
    %v10814 = vsel %vm145, %v10646, 0.0
    %10815 = vadd.xlane.f32.xlu0 %v10814
    %v10816 = vpop.xlane.xlu0 %10815
    %v10817 = vsel %vm145, %v10647, 0.0
    %10818 = vadd.xlane.f32.xlu0 %v10817
    %v10819 = vpop.xlane.xlu0 %10818
    %v10820 = vsel %vm145, %v10648, 0.0
    %10821 = vadd.xlane.f32.xlu0 %v10820
    %v10822 = vpop.xlane.xlu0 %10821
    %v10823 = vsel %vm145, %v10649, 0.0
    %10824 = vadd.xlane.f32.xlu0 %v10823
    %v10825 = vpop.xlane.xlu0 %10824
    %v10826 = vsel %vm145, %v10650, 0.0
    %10827 = vadd.xlane.f32.xlu0 %v10826
    %v10828 = vpop.xlane.xlu0 %10827
    %v10829 = vsel %vm145, %v10651, 0.0
    %10830 = vadd.xlane.f32.xlu0 %v10829
    %v10831 = vpop.xlane.xlu0 %10830
    %v10832 = vsel %vm145, %v10652, 0.0
    %10833 = vadd.xlane.f32.xlu0 %v10832
    %v10834 = vpop.xlane.xlu0 %10833
    %v10835 = vsel %vm145, %v10653, 0.0
    %10836 = vadd.xlane.f32.xlu0 %v10835
    %v10837 = vpop.xlane.xlu0 %10836
    %v10838 = vsel %vm145, %v10654, 0.0
    %10839 = vadd.xlane.f32.xlu0 %v10838
    %v10840 = vpop.xlane.xlu0 %10839
    %v10841 = vsel %vm145, %v10655, 0.0
    %10842 = vadd.xlane.f32.xlu0 %v10841
    %v10843 = vpop.xlane.xlu0 %10842
    %v10844 = vsel %vm145, %v10656, 0.0
    %10845 = vadd.xlane.f32.xlu0 %v10844
    %v10846 = vpop.xlane.xlu0 %10845
    %v10847 = vsel %vm145, %v10657, 0.0
    %10848 = vadd.xlane.f32.xlu0 %v10847
    %v10849 = vpop.xlane.xlu0 %10848
    %v10850 = vmul.f32 %v10660, %v344
    %v10851 = vmul.f32 %v10663, %v344
    %v10852 = vmul.f32 %v10666, %v344
    %v10853 = vmul.f32 %v10669, %v344
    %v10854 = vmul.f32 %v10672, %v344
    %v10855 = vmul.f32 %v10675, %v344
    %v10856 = vmul.f32 %v10678, %v344
    %v10857 = vmul.f32 %v10681, %v344
    %v10858 = vmul.f32 %v10684, %v344
    %v10859 = vmul.f32 %v10687, %v344
    %v10860 = vmul.f32 %v10690, %v344
    %v10861 = vmul.f32 %v10693, %v344
    %v10862 = vmul.f32 %v10696, %v344
    %v10863 = vmul.f32 %v10699, %v344
    %v10864 = vmul.f32 %v10702, %v344
    %v10865 = vmul.f32 %v10705, %v344
    %v10866 = vmul.f32 %v10708, %v344
    %v10867 = vmul.f32 %v10711, %v344
    %v10868 = vmul.f32 %v10714, %v344
    %v10869 = vmul.f32 %v10717, %v344
    %v10870 = vmul.f32 %v10720, %v344
    %v10871 = vmul.f32 %v10723, %v344
    %v10872 = vmul.f32 %v10726, %v344
    %v10873 = vmul.f32 %v10729, %v344
    %v10874 = vmul.f32 %v10732, %v344
    %v10875 = vmul.f32 %v10735, %v344
    %v10876 = vmul.f32 %v10738, %v344
    %v10877 = vmul.f32 %v10741, %v344
    %v10878 = vmul.f32 %v10744, %v344
    %v10879 = vmul.f32 %v10747, %v344
    %v10880 = vmul.f32 %v10750, %v344
    %v10881 = vmul.f32 %v10753, %v344
    %v10882 = vmul.f32 %v10756, %v344
    %v10883 = vmul.f32 %v10759, %v344
    %v10884 = vmul.f32 %v10762, %v344
    %v10885 = vmul.f32 %v10765, %v344
    %v10886 = vmul.f32 %v10768, %v344
    %v10887 = vmul.f32 %v10771, %v344
    %v10888 = vmul.f32 %v10774, %v344
    %v10889 = vmul.f32 %v10777, %v344
    %v10890 = vmul.f32 %v10780, %v344
    %v10891 = vmul.f32 %v10783, %v344
    %v10892 = vmul.f32 %v10786, %v344
    %v10893 = vmul.f32 %v10789, %v344
    %v10894 = vmul.f32 %v10792, %v344
    %v10895 = vmul.f32 %v10795, %v344
    %v10896 = vmul.f32 %v10798, %v344
    %v10897 = vmul.f32 %v10801, %v344
    %v10898 = vmul.f32 %v10804, %v344
    %v10899 = vmul.f32 %v10807, %v344
    %v10900 = vmul.f32 %v10810, %v344
    %v10901 = vmul.f32 %v10813, %v344
    %v10902 = vmul.f32 %v10816, %v344
    %v10903 = vmul.f32 %v10819, %v344
    %v10904 = vmul.f32 %v10822, %v344
    %v10905 = vmul.f32 %v10825, %v344
    %v10906 = vmul.f32 %v10828, %v344
    %v10907 = vmul.f32 %v10831, %v344
    %v10908 = vmul.f32 %v10834, %v344
    %v10909 = vmul.f32 %v10837, %v344
    %v10910 = vmul.f32 %v10840, %v344
    %v10911 = vmul.f32 %v10843, %v344
    %v10912 = vmul.f32 %v10846, %v344
    %v10913 = vmul.f32 %v10849, %v344
    %v10914 = vadd.f32 %v10850, 1e-05
    %v10915 = vadd.f32 %v10851, 1e-05
    %v10916 = vadd.f32 %v10852, 1e-05
    %v10917 = vadd.f32 %v10853, 1e-05
    %v10918 = vadd.f32 %v10854, 1e-05
    %v10919 = vadd.f32 %v10855, 1e-05
    %v10920 = vadd.f32 %v10856, 1e-05
    %v10921 = vadd.f32 %v10857, 1e-05
    %v10922 = vadd.f32 %v10858, 1e-05
    %v10923 = vadd.f32 %v10859, 1e-05
    %v10924 = vadd.f32 %v10860, 1e-05
    %v10925 = vadd.f32 %v10861, 1e-05
    %v10926 = vadd.f32 %v10862, 1e-05
    %v10927 = vadd.f32 %v10863, 1e-05
    %v10928 = vadd.f32 %v10864, 1e-05
    %v10929 = vadd.f32 %v10865, 1e-05
    %v10930 = vadd.f32 %v10866, 1e-05
    %v10931 = vadd.f32 %v10867, 1e-05
    %v10932 = vadd.f32 %v10868, 1e-05
    %v10933 = vadd.f32 %v10869, 1e-05
    %v10934 = vadd.f32 %v10870, 1e-05
    %v10935 = vadd.f32 %v10871, 1e-05
    %v10936 = vadd.f32 %v10872, 1e-05
    %v10937 = vadd.f32 %v10873, 1e-05
    %v10938 = vadd.f32 %v10874, 1e-05
    %v10939 = vadd.f32 %v10875, 1e-05
    %v10940 = vadd.f32 %v10876, 1e-05
    %v10941 = vadd.f32 %v10877, 1e-05
    %v10942 = vadd.f32 %v10878, 1e-05
    %v10943 = vadd.f32 %v10879, 1e-05
    %v10944 = vadd.f32 %v10880, 1e-05
    %v10945 = vadd.f32 %v10881, 1e-05
    %v10946 = vadd.f32 %v10882, 1e-05
    %v10947 = vadd.f32 %v10883, 1e-05
    %v10948 = vadd.f32 %v10884, 1e-05
    %v10949 = vadd.f32 %v10885, 1e-05
    %v10950 = vadd.f32 %v10886, 1e-05
    %v10951 = vadd.f32 %v10887, 1e-05
    %v10952 = vadd.f32 %v10888, 1e-05
    %v10953 = vadd.f32 %v10889, 1e-05
    %v10954 = vadd.f32 %v10890, 1e-05
    %v10955 = vadd.f32 %v10891, 1e-05
    %v10956 = vadd.f32 %v10892, 1e-05
    %v10957 = vadd.f32 %v10893, 1e-05
    %v10958 = vadd.f32 %v10894, 1e-05
    %v10959 = vadd.f32 %v10895, 1e-05
    %v10960 = vadd.f32 %v10896, 1e-05
    %v10961 = vadd.f32 %v10897, 1e-05
    %v10962 = vadd.f32 %v10898, 1e-05
    %v10963 = vadd.f32 %v10899, 1e-05
    %v10964 = vadd.f32 %v10900, 1e-05
    %v10965 = vadd.f32 %v10901, 1e-05
    %v10966 = vadd.f32 %v10902, 1e-05
    %v10967 = vadd.f32 %v10903, 1e-05
    %v10968 = vadd.f32 %v10904, 1e-05
    %v10969 = vadd.f32 %v10905, 1e-05
    %v10970 = vadd.f32 %v10906, 1e-05
    %v10971 = vadd.f32 %v10907, 1e-05
    %v10972 = vadd.f32 %v10908, 1e-05
    %v10973 = vadd.f32 %v10909, 1e-05
    %v10974 = vadd.f32 %v10910, 1e-05
    %v10975 = vadd.f32 %v10911, 1e-05
    %v10976 = vadd.f32 %v10912, 1e-05
    %v10977 = vadd.f32 %v10913, 1e-05
    %v10978 = vrsqrt.pop %v10914
    %v10979 = vmul.f32 %v10978, %v10914
    %v10980 = vmul.f32 %v10979, %v10978
    %v10981 = vmul.f32 0.5, %v10980
    %v10982 = vsub.f32 1.5, %v10981
    %v10983 = vmul.f32 %v10978, %v10982
    %vm10984 = vweird.f32 %v10914
    %vm10985 = vweird.f32 %v10978
    %vm10986 = vmor %vm10984, %vm10985
    %v10987 = vsel %vm10986, %v10978, %v10983
    %v10988 = vrsqrt.pop %v10915
    %v10989 = vmul.f32 %v10988, %v10915
    %v10990 = vmul.f32 %v10989, %v10988
    %v10991 = vmul.f32 0.5, %v10990
    %v10992 = vsub.f32 1.5, %v10991
    %v10993 = vmul.f32 %v10988, %v10992
    %vm10994 = vweird.f32 %v10915
    %vm10995 = vweird.f32 %v10988
    %vm10996 = vmor %vm10994, %vm10995
    %v10997 = vsel %vm10996, %v10988, %v10993
    %v10998 = vrsqrt.pop %v10916
    %v10999 = vmul.f32 %v10998, %v10916
    %v11000 = vmul.f32 %v10999, %v10998
    %v11001 = vmul.f32 0.5, %v11000
    %v11002 = vsub.f32 1.5, %v11001
    %v11003 = vmul.f32 %v10998, %v11002
    %vm11004 = vweird.f32 %v10916
    %vm11005 = vweird.f32 %v10998
    %vm11006 = vmor %vm11004, %vm11005
    %v11007 = vsel %vm11006, %v10998, %v11003
    %v11008 = vrsqrt.pop %v10917
    %v11009 = vmul.f32 %v11008, %v10917
    %v11010 = vmul.f32 %v11009, %v11008
    %v11011 = vmul.f32 0.5, %v11010
    %v11012 = vsub.f32 1.5, %v11011
    %v11013 = vmul.f32 %v11008, %v11012
    %vm11014 = vweird.f32 %v10917
    %vm11015 = vweird.f32 %v11008
    %vm11016 = vmor %vm11014, %vm11015
    %v11017 = vsel %vm11016, %v11008, %v11013
    %v11018 = vrsqrt.pop %v10918
    %v11019 = vmul.f32 %v11018, %v10918
    %v11020 = vmul.f32 %v11019, %v11018
    %v11021 = vmul.f32 0.5, %v11020
    %v11022 = vsub.f32 1.5, %v11021
    %v11023 = vmul.f32 %v11018, %v11022
    %vm11024 = vweird.f32 %v10918
    %vm11025 = vweird.f32 %v11018
    %vm11026 = vmor %vm11024, %vm11025
    %v11027 = vsel %vm11026, %v11018, %v11023
    %v11028 = vrsqrt.pop %v10919
    %v11029 = vmul.f32 %v11028, %v10919
    %v11030 = vmul.f32 %v11029, %v11028
    %v11031 = vmul.f32 0.5, %v11030
    %v11032 = vsub.f32 1.5, %v11031
    %v11033 = vmul.f32 %v11028, %v11032
    %vm11034 = vweird.f32 %v10919
    %vm11035 = vweird.f32 %v11028
    %vm11036 = vmor %vm11034, %vm11035
    %v11037 = vsel %vm11036, %v11028, %v11033
    %v11038 = vrsqrt.pop %v10920
    %v11039 = vmul.f32 %v11038, %v10920
    %v11040 = vmul.f32 %v11039, %v11038
    %v11041 = vmul.f32 0.5, %v11040
    %v11042 = vsub.f32 1.5, %v11041
    %v11043 = vmul.f32 %v11038, %v11042
    %vm11044 = vweird.f32 %v10920
    %vm11045 = vweird.f32 %v11038
    %vm11046 = vmor %vm11044, %vm11045
    %v11047 = vsel %vm11046, %v11038, %v11043
    %v11048 = vrsqrt.pop %v10921
    %v11049 = vmul.f32 %v11048, %v10921
    %v11050 = vmul.f32 %v11049, %v11048
    %v11051 = vmul.f32 0.5, %v11050
    %v11052 = vsub.f32 1.5, %v11051
    %v11053 = vmul.f32 %v11048, %v11052
    %vm11054 = vweird.f32 %v10921
    %vm11055 = vweird.f32 %v11048
    %vm11056 = vmor %vm11054, %vm11055
    %v11057 = vsel %vm11056, %v11048, %v11053
    %v11058 = vrsqrt.pop %v10922
    %v11059 = vmul.f32 %v11058, %v10922
    %v11060 = vmul.f32 %v11059, %v11058
    %v11061 = vmul.f32 0.5, %v11060
    %v11062 = vsub.f32 1.5, %v11061
    %v11063 = vmul.f32 %v11058, %v11062
    %vm11064 = vweird.f32 %v10922
    %vm11065 = vweird.f32 %v11058
    %vm11066 = vmor %vm11064, %vm11065
    %v11067 = vsel %vm11066, %v11058, %v11063
    %v11068 = vrsqrt.pop %v10923
    %v11069 = vmul.f32 %v11068, %v10923
    %v11070 = vmul.f32 %v11069, %v11068
    %v11071 = vmul.f32 0.5, %v11070
    %v11072 = vsub.f32 1.5, %v11071
    %v11073 = vmul.f32 %v11068, %v11072
    %vm11074 = vweird.f32 %v10923
    %vm11075 = vweird.f32 %v11068
    %vm11076 = vmor %vm11074, %vm11075
    %v11077 = vsel %vm11076, %v11068, %v11073
    %v11078 = vrsqrt.pop %v10924
    %v11079 = vmul.f32 %v11078, %v10924
    %v11080 = vmul.f32 %v11079, %v11078
    %v11081 = vmul.f32 0.5, %v11080
    %v11082 = vsub.f32 1.5, %v11081
    %v11083 = vmul.f32 %v11078, %v11082
    %vm11084 = vweird.f32 %v10924
    %vm11085 = vweird.f32 %v11078
    %vm11086 = vmor %vm11084, %vm11085
    %v11087 = vsel %vm11086, %v11078, %v11083
    %v11088 = vrsqrt.pop %v10925
    %v11089 = vmul.f32 %v11088, %v10925
    %v11090 = vmul.f32 %v11089, %v11088
    %v11091 = vmul.f32 0.5, %v11090
    %v11092 = vsub.f32 1.5, %v11091
    %v11093 = vmul.f32 %v11088, %v11092
    %vm11094 = vweird.f32 %v10925
    %vm11095 = vweird.f32 %v11088
    %vm11096 = vmor %vm11094, %vm11095
    %v11097 = vsel %vm11096, %v11088, %v11093
    %v11098 = vrsqrt.pop %v10926
    %v11099 = vmul.f32 %v11098, %v10926
    %v11100 = vmul.f32 %v11099, %v11098
    %v11101 = vmul.f32 0.5, %v11100
    %v11102 = vsub.f32 1.5, %v11101
    %v11103 = vmul.f32 %v11098, %v11102
    %vm11104 = vweird.f32 %v10926
    %vm11105 = vweird.f32 %v11098
    %vm11106 = vmor %vm11104, %vm11105
    %v11107 = vsel %vm11106, %v11098, %v11103
    %v11108 = vrsqrt.pop %v10927
    %v11109 = vmul.f32 %v11108, %v10927
    %v11110 = vmul.f32 %v11109, %v11108
    %v11111 = vmul.f32 0.5, %v11110
    %v11112 = vsub.f32 1.5, %v11111
    %v11113 = vmul.f32 %v11108, %v11112
    %vm11114 = vweird.f32 %v10927
    %vm11115 = vweird.f32 %v11108
    %vm11116 = vmor %vm11114, %vm11115
    %v11117 = vsel %vm11116, %v11108, %v11113
    %v11118 = vrsqrt.pop %v10928
    %v11119 = vmul.f32 %v11118, %v10928
    %v11120 = vmul.f32 %v11119, %v11118
    %v11121 = vmul.f32 0.5, %v11120
    %v11122 = vsub.f32 1.5, %v11121
    %v11123 = vmul.f32 %v11118, %v11122
    %vm11124 = vweird.f32 %v10928
    %vm11125 = vweird.f32 %v11118
    %vm11126 = vmor %vm11124, %vm11125
    %v11127 = vsel %vm11126, %v11118, %v11123
    %v11128 = vrsqrt.pop %v10929
    %v11129 = vmul.f32 %v11128, %v10929
    %v11130 = vmul.f32 %v11129, %v11128
    %v11131 = vmul.f32 0.5, %v11130
    %v11132 = vsub.f32 1.5, %v11131
    %v11133 = vmul.f32 %v11128, %v11132
    %vm11134 = vweird.f32 %v10929
    %vm11135 = vweird.f32 %v11128
    %vm11136 = vmor %vm11134, %vm11135
    %v11137 = vsel %vm11136, %v11128, %v11133
    %v11138 = vrsqrt.pop %v10930
    %v11139 = vmul.f32 %v11138, %v10930
    %v11140 = vmul.f32 %v11139, %v11138
    %v11141 = vmul.f32 0.5, %v11140
    %v11142 = vsub.f32 1.5, %v11141
    %v11143 = vmul.f32 %v11138, %v11142
    %vm11144 = vweird.f32 %v10930
    %vm11145 = vweird.f32 %v11138
    %vm11146 = vmor %vm11144, %vm11145
    %v11147 = vsel %vm11146, %v11138, %v11143
    %v11148 = vrsqrt.pop %v10931
    %v11149 = vmul.f32 %v11148, %v10931
    %v11150 = vmul.f32 %v11149, %v11148
    %v11151 = vmul.f32 0.5, %v11150
    %v11152 = vsub.f32 1.5, %v11151
    %v11153 = vmul.f32 %v11148, %v11152
    %vm11154 = vweird.f32 %v10931
    %vm11155 = vweird.f32 %v11148
    %vm11156 = vmor %vm11154, %vm11155
    %v11157 = vsel %vm11156, %v11148, %v11153
    %v11158 = vrsqrt.pop %v10932
    %v11159 = vmul.f32 %v11158, %v10932
    %v11160 = vmul.f32 %v11159, %v11158
    %v11161 = vmul.f32 0.5, %v11160
    %v11162 = vsub.f32 1.5, %v11161
    %v11163 = vmul.f32 %v11158, %v11162
    %vm11164 = vweird.f32 %v10932
    %vm11165 = vweird.f32 %v11158
    %vm11166 = vmor %vm11164, %vm11165
    %v11167 = vsel %vm11166, %v11158, %v11163
    %v11168 = vrsqrt.pop %v10933
    %v11169 = vmul.f32 %v11168, %v10933
    %v11170 = vmul.f32 %v11169, %v11168
    %v11171 = vmul.f32 0.5, %v11170
    %v11172 = vsub.f32 1.5, %v11171
    %v11173 = vmul.f32 %v11168, %v11172
    %vm11174 = vweird.f32 %v10933
    %vm11175 = vweird.f32 %v11168
    %vm11176 = vmor %vm11174, %vm11175
    %v11177 = vsel %vm11176, %v11168, %v11173
    %v11178 = vrsqrt.pop %v10934
    %v11179 = vmul.f32 %v11178, %v10934
    %v11180 = vmul.f32 %v11179, %v11178
    %v11181 = vmul.f32 0.5, %v11180
    %v11182 = vsub.f32 1.5, %v11181
    %v11183 = vmul.f32 %v11178, %v11182
    %vm11184 = vweird.f32 %v10934
    %vm11185 = vweird.f32 %v11178
    %vm11186 = vmor %vm11184, %vm11185
    %v11187 = vsel %vm11186, %v11178, %v11183
    %v11188 = vrsqrt.pop %v10935
    %v11189 = vmul.f32 %v11188, %v10935
    %v11190 = vmul.f32 %v11189, %v11188
    %v11191 = vmul.f32 0.5, %v11190
    %v11192 = vsub.f32 1.5, %v11191
    %v11193 = vmul.f32 %v11188, %v11192
    %vm11194 = vweird.f32 %v10935
    %vm11195 = vweird.f32 %v11188
    %vm11196 = vmor %vm11194, %vm11195
    %v11197 = vsel %vm11196, %v11188, %v11193
    %v11198 = vrsqrt.pop %v10936
    %v11199 = vmul.f32 %v11198, %v10936
    %v11200 = vmul.f32 %v11199, %v11198
    %v11201 = vmul.f32 0.5, %v11200
    %v11202 = vsub.f32 1.5, %v11201
    %v11203 = vmul.f32 %v11198, %v11202
    %vm11204 = vweird.f32 %v10936
    %vm11205 = vweird.f32 %v11198
    %vm11206 = vmor %vm11204, %vm11205
    %v11207 = vsel %vm11206, %v11198, %v11203
    %v11208 = vrsqrt.pop %v10937
    %v11209 = vmul.f32 %v11208, %v10937
    %v11210 = vmul.f32 %v11209, %v11208
    %v11211 = vmul.f32 0.5, %v11210
    %v11212 = vsub.f32 1.5, %v11211
    %v11213 = vmul.f32 %v11208, %v11212
    %vm11214 = vweird.f32 %v10937
    %vm11215 = vweird.f32 %v11208
    %vm11216 = vmor %vm11214, %vm11215
    %v11217 = vsel %vm11216, %v11208, %v11213
    %v11218 = vrsqrt.pop %v10938
    %v11219 = vmul.f32 %v11218, %v10938
    %v11220 = vmul.f32 %v11219, %v11218
    %v11221 = vmul.f32 0.5, %v11220
    %v11222 = vsub.f32 1.5, %v11221
    %v11223 = vmul.f32 %v11218, %v11222
    %vm11224 = vweird.f32 %v10938
    %vm11225 = vweird.f32 %v11218
    %vm11226 = vmor %vm11224, %vm11225
    %v11227 = vsel %vm11226, %v11218, %v11223
    %v11228 = vrsqrt.pop %v10939
    %v11229 = vmul.f32 %v11228, %v10939
    %v11230 = vmul.f32 %v11229, %v11228
    %v11231 = vmul.f32 0.5, %v11230
    %v11232 = vsub.f32 1.5, %v11231
    %v11233 = vmul.f32 %v11228, %v11232
    %vm11234 = vweird.f32 %v10939
    %vm11235 = vweird.f32 %v11228
    %vm11236 = vmor %vm11234, %vm11235
    %v11237 = vsel %vm11236, %v11228, %v11233
    %v11238 = vrsqrt.pop %v10940
    %v11239 = vmul.f32 %v11238, %v10940
    %v11240 = vmul.f32 %v11239, %v11238
    %v11241 = vmul.f32 0.5, %v11240
    %v11242 = vsub.f32 1.5, %v11241
    %v11243 = vmul.f32 %v11238, %v11242
    %vm11244 = vweird.f32 %v10940
    %vm11245 = vweird.f32 %v11238
    %vm11246 = vmor %vm11244, %vm11245
    %v11247 = vsel %vm11246, %v11238, %v11243
    %v11248 = vrsqrt.pop %v10941
    %v11249 = vmul.f32 %v11248, %v10941
    %v11250 = vmul.f32 %v11249, %v11248
    %v11251 = vmul.f32 0.5, %v11250
    %v11252 = vsub.f32 1.5, %v11251
    %v11253 = vmul.f32 %v11248, %v11252
    %vm11254 = vweird.f32 %v10941
    %vm11255 = vweird.f32 %v11248
    %vm11256 = vmor %vm11254, %vm11255
    %v11257 = vsel %vm11256, %v11248, %v11253
    %v11258 = vrsqrt.pop %v10942
    %v11259 = vmul.f32 %v11258, %v10942
    %v11260 = vmul.f32 %v11259, %v11258
    %v11261 = vmul.f32 0.5, %v11260
    %v11262 = vsub.f32 1.5, %v11261
    %v11263 = vmul.f32 %v11258, %v11262
    %vm11264 = vweird.f32 %v10942
    %vm11265 = vweird.f32 %v11258
    %vm11266 = vmor %vm11264, %vm11265
    %v11267 = vsel %vm11266, %v11258, %v11263
    %v11268 = vrsqrt.pop %v10943
    %v11269 = vmul.f32 %v11268, %v10943
    %v11270 = vmul.f32 %v11269, %v11268
    %v11271 = vmul.f32 0.5, %v11270
    %v11272 = vsub.f32 1.5, %v11271
    %v11273 = vmul.f32 %v11268, %v11272
    %vm11274 = vweird.f32 %v10943
    %vm11275 = vweird.f32 %v11268
    %vm11276 = vmor %vm11274, %vm11275
    %v11277 = vsel %vm11276, %v11268, %v11273
    %v11278 = vrsqrt.pop %v10944
    %v11279 = vmul.f32 %v11278, %v10944
    %v11280 = vmul.f32 %v11279, %v11278
    %v11281 = vmul.f32 0.5, %v11280
    %v11282 = vsub.f32 1.5, %v11281
    %v11283 = vmul.f32 %v11278, %v11282
    %vm11284 = vweird.f32 %v10944
    %vm11285 = vweird.f32 %v11278
    %vm11286 = vmor %vm11284, %vm11285
    %v11287 = vsel %vm11286, %v11278, %v11283
    %v11288 = vrsqrt.pop %v10945
    %v11289 = vmul.f32 %v11288, %v10945
    %v11290 = vmul.f32 %v11289, %v11288
    %v11291 = vmul.f32 0.5, %v11290
    %v11292 = vsub.f32 1.5, %v11291
    %v11293 = vmul.f32 %v11288, %v11292
    %vm11294 = vweird.f32 %v10945
    %vm11295 = vweird.f32 %v11288
    %vm11296 = vmor %vm11294, %vm11295
    %v11297 = vsel %vm11296, %v11288, %v11293
    %v11298 = vrsqrt.pop %v10946
    %v11299 = vmul.f32 %v11298, %v10946
    %v11300 = vmul.f32 %v11299, %v11298
    %v11301 = vmul.f32 0.5, %v11300
    %v11302 = vsub.f32 1.5, %v11301
    %v11303 = vmul.f32 %v11298, %v11302
    %vm11304 = vweird.f32 %v10946
    %vm11305 = vweird.f32 %v11298
    %vm11306 = vmor %vm11304, %vm11305
    %v11307 = vsel %vm11306, %v11298, %v11303
    %v11308 = vrsqrt.pop %v10947
    %v11309 = vmul.f32 %v11308, %v10947
    %v11310 = vmul.f32 %v11309, %v11308
    %v11311 = vmul.f32 0.5, %v11310
    %v11312 = vsub.f32 1.5, %v11311
    %v11313 = vmul.f32 %v11308, %v11312
    %vm11314 = vweird.f32 %v10947
    %vm11315 = vweird.f32 %v11308
    %vm11316 = vmor %vm11314, %vm11315
    %v11317 = vsel %vm11316, %v11308, %v11313
    %v11318 = vrsqrt.pop %v10948
    %v11319 = vmul.f32 %v11318, %v10948
    %v11320 = vmul.f32 %v11319, %v11318
    %v11321 = vmul.f32 0.5, %v11320
    %v11322 = vsub.f32 1.5, %v11321
    %v11323 = vmul.f32 %v11318, %v11322
    %vm11324 = vweird.f32 %v10948
    %vm11325 = vweird.f32 %v11318
    %vm11326 = vmor %vm11324, %vm11325
    %v11327 = vsel %vm11326, %v11318, %v11323
    %v11328 = vrsqrt.pop %v10949
    %v11329 = vmul.f32 %v11328, %v10949
    %v11330 = vmul.f32 %v11329, %v11328
    %v11331 = vmul.f32 0.5, %v11330
    %v11332 = vsub.f32 1.5, %v11331
    %v11333 = vmul.f32 %v11328, %v11332
    %vm11334 = vweird.f32 %v10949
    %vm11335 = vweird.f32 %v11328
    %vm11336 = vmor %vm11334, %vm11335
    %v11337 = vsel %vm11336, %v11328, %v11333
    %v11338 = vrsqrt.pop %v10950
    %v11339 = vmul.f32 %v11338, %v10950
    %v11340 = vmul.f32 %v11339, %v11338
    %v11341 = vmul.f32 0.5, %v11340
    %v11342 = vsub.f32 1.5, %v11341
    %v11343 = vmul.f32 %v11338, %v11342
    %vm11344 = vweird.f32 %v10950
    %vm11345 = vweird.f32 %v11338
    %vm11346 = vmor %vm11344, %vm11345
    %v11347 = vsel %vm11346, %v11338, %v11343
    %v11348 = vrsqrt.pop %v10951
    %v11349 = vmul.f32 %v11348, %v10951
    %v11350 = vmul.f32 %v11349, %v11348
    %v11351 = vmul.f32 0.5, %v11350
    %v11352 = vsub.f32 1.5, %v11351
    %v11353 = vmul.f32 %v11348, %v11352
    %vm11354 = vweird.f32 %v10951
    %vm11355 = vweird.f32 %v11348
    %vm11356 = vmor %vm11354, %vm11355
    %v11357 = vsel %vm11356, %v11348, %v11353
    %v11358 = vrsqrt.pop %v10952
    %v11359 = vmul.f32 %v11358, %v10952
    %v11360 = vmul.f32 %v11359, %v11358
    %v11361 = vmul.f32 0.5, %v11360
    %v11362 = vsub.f32 1.5, %v11361
    %v11363 = vmul.f32 %v11358, %v11362
    %vm11364 = vweird.f32 %v10952
    %vm11365 = vweird.f32 %v11358
    %vm11366 = vmor %vm11364, %vm11365
    %v11367 = vsel %vm11366, %v11358, %v11363
    %v11368 = vrsqrt.pop %v10953
    %v11369 = vmul.f32 %v11368, %v10953
    %v11370 = vmul.f32 %v11369, %v11368
    %v11371 = vmul.f32 0.5, %v11370
    %v11372 = vsub.f32 1.5, %v11371
    %v11373 = vmul.f32 %v11368, %v11372
    %vm11374 = vweird.f32 %v10953
    %vm11375 = vweird.f32 %v11368
    %vm11376 = vmor %vm11374, %vm11375
    %v11377 = vsel %vm11376, %v11368, %v11373
    %v11378 = vrsqrt.pop %v10954
    %v11379 = vmul.f32 %v11378, %v10954
    %v11380 = vmul.f32 %v11379, %v11378
    %v11381 = vmul.f32 0.5, %v11380
    %v11382 = vsub.f32 1.5, %v11381
    %v11383 = vmul.f32 %v11378, %v11382
    %vm11384 = vweird.f32 %v10954
    %vm11385 = vweird.f32 %v11378
    %vm11386 = vmor %vm11384, %vm11385
    %v11387 = vsel %vm11386, %v11378, %v11383
    %v11388 = vrsqrt.pop %v10955
    %v11389 = vmul.f32 %v11388, %v10955
    %v11390 = vmul.f32 %v11389, %v11388
    %v11391 = vmul.f32 0.5, %v11390
    %v11392 = vsub.f32 1.5, %v11391
    %v11393 = vmul.f32 %v11388, %v11392
    %vm11394 = vweird.f32 %v10955
    %vm11395 = vweird.f32 %v11388
    %vm11396 = vmor %vm11394, %vm11395
    %v11397 = vsel %vm11396, %v11388, %v11393
    %v11398 = vrsqrt.pop %v10956
    %v11399 = vmul.f32 %v11398, %v10956
    %v11400 = vmul.f32 %v11399, %v11398
    %v11401 = vmul.f32 0.5, %v11400
    %v11402 = vsub.f32 1.5, %v11401
    %v11403 = vmul.f32 %v11398, %v11402
    %vm11404 = vweird.f32 %v10956
    %vm11405 = vweird.f32 %v11398
    %vm11406 = vmor %vm11404, %vm11405
    %v11407 = vsel %vm11406, %v11398, %v11403
    %v11408 = vrsqrt.pop %v10957
    %v11409 = vmul.f32 %v11408, %v10957
    %v11410 = vmul.f32 %v11409, %v11408
    %v11411 = vmul.f32 0.5, %v11410
    %v11412 = vsub.f32 1.5, %v11411
    %v11413 = vmul.f32 %v11408, %v11412
    %vm11414 = vweird.f32 %v10957
    %vm11415 = vweird.f32 %v11408
    %vm11416 = vmor %vm11414, %vm11415
    %v11417 = vsel %vm11416, %v11408, %v11413
    %v11418 = vrsqrt.pop %v10958
    %v11419 = vmul.f32 %v11418, %v10958
    %v11420 = vmul.f32 %v11419, %v11418
    %v11421 = vmul.f32 0.5, %v11420
    %v11422 = vsub.f32 1.5, %v11421
    %v11423 = vmul.f32 %v11418, %v11422
    %vm11424 = vweird.f32 %v10958
    %vm11425 = vweird.f32 %v11418
    %vm11426 = vmor %vm11424, %vm11425
    %v11427 = vsel %vm11426, %v11418, %v11423
    %v11428 = vrsqrt.pop %v10959
    %v11429 = vmul.f32 %v11428, %v10959
    %v11430 = vmul.f32 %v11429, %v11428
    %v11431 = vmul.f32 0.5, %v11430
    %v11432 = vsub.f32 1.5, %v11431
    %v11433 = vmul.f32 %v11428, %v11432
    %vm11434 = vweird.f32 %v10959
    %vm11435 = vweird.f32 %v11428
    %vm11436 = vmor %vm11434, %vm11435
    %v11437 = vsel %vm11436, %v11428, %v11433
    %v11438 = vrsqrt.pop %v10960
    %v11439 = vmul.f32 %v11438, %v10960
    %v11440 = vmul.f32 %v11439, %v11438
    %v11441 = vmul.f32 0.5, %v11440
    %v11442 = vsub.f32 1.5, %v11441
    %v11443 = vmul.f32 %v11438, %v11442
    %vm11444 = vweird.f32 %v10960
    %vm11445 = vweird.f32 %v11438
    %vm11446 = vmor %vm11444, %vm11445
    %v11447 = vsel %vm11446, %v11438, %v11443
    %v11448 = vrsqrt.pop %v10961
    %v11449 = vmul.f32 %v11448, %v10961
    %v11450 = vmul.f32 %v11449, %v11448
    %v11451 = vmul.f32 0.5, %v11450
    %v11452 = vsub.f32 1.5, %v11451
    %v11453 = vmul.f32 %v11448, %v11452
    %vm11454 = vweird.f32 %v10961
    %vm11455 = vweird.f32 %v11448
    %vm11456 = vmor %vm11454, %vm11455
    %v11457 = vsel %vm11456, %v11448, %v11453
    %v11458 = vrsqrt.pop %v10962
    %v11459 = vmul.f32 %v11458, %v10962
    %v11460 = vmul.f32 %v11459, %v11458
    %v11461 = vmul.f32 0.5, %v11460
    %v11462 = vsub.f32 1.5, %v11461
    %v11463 = vmul.f32 %v11458, %v11462
    %vm11464 = vweird.f32 %v10962
    %vm11465 = vweird.f32 %v11458
    %vm11466 = vmor %vm11464, %vm11465
    %v11467 = vsel %vm11466, %v11458, %v11463
    %v11468 = vrsqrt.pop %v10963
    %v11469 = vmul.f32 %v11468, %v10963
    %v11470 = vmul.f32 %v11469, %v11468
    %v11471 = vmul.f32 0.5, %v11470
    %v11472 = vsub.f32 1.5, %v11471
    %v11473 = vmul.f32 %v11468, %v11472
    %vm11474 = vweird.f32 %v10963
    %vm11475 = vweird.f32 %v11468
    %vm11476 = vmor %vm11474, %vm11475
    %v11477 = vsel %vm11476, %v11468, %v11473
    %v11478 = vrsqrt.pop %v10964
    %v11479 = vmul.f32 %v11478, %v10964
    %v11480 = vmul.f32 %v11479, %v11478
    %v11481 = vmul.f32 0.5, %v11480
    %v11482 = vsub.f32 1.5, %v11481
    %v11483 = vmul.f32 %v11478, %v11482
    %vm11484 = vweird.f32 %v10964
    %vm11485 = vweird.f32 %v11478
    %vm11486 = vmor %vm11484, %vm11485
    %v11487 = vsel %vm11486, %v11478, %v11483
    %v11488 = vrsqrt.pop %v10965
    %v11489 = vmul.f32 %v11488, %v10965
    %v11490 = vmul.f32 %v11489, %v11488
    %v11491 = vmul.f32 0.5, %v11490
    %v11492 = vsub.f32 1.5, %v11491
    %v11493 = vmul.f32 %v11488, %v11492
    %vm11494 = vweird.f32 %v10965
    %vm11495 = vweird.f32 %v11488
    %vm11496 = vmor %vm11494, %vm11495
    %v11497 = vsel %vm11496, %v11488, %v11493
    %v11498 = vrsqrt.pop %v10966
    %v11499 = vmul.f32 %v11498, %v10966
    %v11500 = vmul.f32 %v11499, %v11498
    %v11501 = vmul.f32 0.5, %v11500
    %v11502 = vsub.f32 1.5, %v11501
    %v11503 = vmul.f32 %v11498, %v11502
    %vm11504 = vweird.f32 %v10966
    %vm11505 = vweird.f32 %v11498
    %vm11506 = vmor %vm11504, %vm11505
    %v11507 = vsel %vm11506, %v11498, %v11503
    %v11508 = vrsqrt.pop %v10967
    %v11509 = vmul.f32 %v11508, %v10967
    %v11510 = vmul.f32 %v11509, %v11508
    %v11511 = vmul.f32 0.5, %v11510
    %v11512 = vsub.f32 1.5, %v11511
    %v11513 = vmul.f32 %v11508, %v11512
    %vm11514 = vweird.f32 %v10967
    %vm11515 = vweird.f32 %v11508
    %vm11516 = vmor %vm11514, %vm11515
    %v11517 = vsel %vm11516, %v11508, %v11513
    %v11518 = vrsqrt.pop %v10968
    %v11519 = vmul.f32 %v11518, %v10968
    %v11520 = vmul.f32 %v11519, %v11518
    %v11521 = vmul.f32 0.5, %v11520
    %v11522 = vsub.f32 1.5, %v11521
    %v11523 = vmul.f32 %v11518, %v11522
    %vm11524 = vweird.f32 %v10968
    %vm11525 = vweird.f32 %v11518
    %vm11526 = vmor %vm11524, %vm11525
    %v11527 = vsel %vm11526, %v11518, %v11523
    %v11528 = vrsqrt.pop %v10969
    %v11529 = vmul.f32 %v11528, %v10969
    %v11530 = vmul.f32 %v11529, %v11528
    %v11531 = vmul.f32 0.5, %v11530
    %v11532 = vsub.f32 1.5, %v11531
    %v11533 = vmul.f32 %v11528, %v11532
    %vm11534 = vweird.f32 %v10969
    %vm11535 = vweird.f32 %v11528
    %vm11536 = vmor %vm11534, %vm11535
    %v11537 = vsel %vm11536, %v11528, %v11533
    %v11538 = vrsqrt.pop %v10970
    %v11539 = vmul.f32 %v11538, %v10970
    %v11540 = vmul.f32 %v11539, %v11538
    %v11541 = vmul.f32 0.5, %v11540
    %v11542 = vsub.f32 1.5, %v11541
    %v11543 = vmul.f32 %v11538, %v11542
    %vm11544 = vweird.f32 %v10970
    %vm11545 = vweird.f32 %v11538
    %vm11546 = vmor %vm11544, %vm11545
    %v11547 = vsel %vm11546, %v11538, %v11543
    %v11548 = vrsqrt.pop %v10971
    %v11549 = vmul.f32 %v11548, %v10971
    %v11550 = vmul.f32 %v11549, %v11548
    %v11551 = vmul.f32 0.5, %v11550
    %v11552 = vsub.f32 1.5, %v11551
    %v11553 = vmul.f32 %v11548, %v11552
    %vm11554 = vweird.f32 %v10971
    %vm11555 = vweird.f32 %v11548
    %vm11556 = vmor %vm11554, %vm11555
    %v11557 = vsel %vm11556, %v11548, %v11553
    %v11558 = vrsqrt.pop %v10972
    %v11559 = vmul.f32 %v11558, %v10972
    %v11560 = vmul.f32 %v11559, %v11558
    %v11561 = vmul.f32 0.5, %v11560
    %v11562 = vsub.f32 1.5, %v11561
    %v11563 = vmul.f32 %v11558, %v11562
    %vm11564 = vweird.f32 %v10972
    %vm11565 = vweird.f32 %v11558
    %vm11566 = vmor %vm11564, %vm11565
    %v11567 = vsel %vm11566, %v11558, %v11563
    %v11568 = vrsqrt.pop %v10973
    %v11569 = vmul.f32 %v11568, %v10973
    %v11570 = vmul.f32 %v11569, %v11568
    %v11571 = vmul.f32 0.5, %v11570
    %v11572 = vsub.f32 1.5, %v11571
    %v11573 = vmul.f32 %v11568, %v11572
    %vm11574 = vweird.f32 %v10973
    %vm11575 = vweird.f32 %v11568
    %vm11576 = vmor %vm11574, %vm11575
    %v11577 = vsel %vm11576, %v11568, %v11573
    %v11578 = vrsqrt.pop %v10974
    %v11579 = vmul.f32 %v11578, %v10974
    %v11580 = vmul.f32 %v11579, %v11578
    %v11581 = vmul.f32 0.5, %v11580
    %v11582 = vsub.f32 1.5, %v11581
    %v11583 = vmul.f32 %v11578, %v11582
    %vm11584 = vweird.f32 %v10974
    %vm11585 = vweird.f32 %v11578
    %vm11586 = vmor %vm11584, %vm11585
    %v11587 = vsel %vm11586, %v11578, %v11583
    %v11588 = vrsqrt.pop %v10975
    %v11589 = vmul.f32 %v11588, %v10975
    %v11590 = vmul.f32 %v11589, %v11588
    %v11591 = vmul.f32 0.5, %v11590
    %v11592 = vsub.f32 1.5, %v11591
    %v11593 = vmul.f32 %v11588, %v11592
    %vm11594 = vweird.f32 %v10975
    %vm11595 = vweird.f32 %v11588
    %vm11596 = vmor %vm11594, %vm11595
    %v11597 = vsel %vm11596, %v11588, %v11593
    %v11598 = vrsqrt.pop %v10976
    %v11599 = vmul.f32 %v11598, %v10976
    %v11600 = vmul.f32 %v11599, %v11598
    %v11601 = vmul.f32 0.5, %v11600
    %v11602 = vsub.f32 1.5, %v11601
    %v11603 = vmul.f32 %v11598, %v11602
    %vm11604 = vweird.f32 %v10976
    %vm11605 = vweird.f32 %v11598
    %vm11606 = vmor %vm11604, %vm11605
    %v11607 = vsel %vm11606, %v11598, %v11603
    %v11608 = vrsqrt.pop %v10977
    %v11609 = vmul.f32 %v11608, %v10977
    %v11610 = vmul.f32 %v11609, %v11608
    %v11611 = vmul.f32 0.5, %v11610
    %v11612 = vsub.f32 1.5, %v11611
    %v11613 = vmul.f32 %v11608, %v11612
    %vm11614 = vweird.f32 %v10977
    %vm11615 = vweird.f32 %v11608
    %vm11616 = vmor %vm11614, %vm11615
    %v11617 = vsel %vm11616, %v11608, %v11613
    %v11618 = vmul.f32 %v10530, %v10987
    %v11619 = vmul.f32 %v10531, %v10997
    %v11620 = vmul.f32 %v10532, %v11007
    %v11621 = vmul.f32 %v10533, %v11017
    %v11622 = vmul.f32 %v10534, %v11027
    %v11623 = vmul.f32 %v10535, %v11037
    %v11624 = vmul.f32 %v10536, %v11047
    %v11625 = vmul.f32 %v10537, %v11057
    %v11626 = vmul.f32 %v10538, %v11067
    %v11627 = vmul.f32 %v10539, %v11077
    %v11628 = vmul.f32 %v10540, %v11087
    %v11629 = vmul.f32 %v10541, %v11097
    %v11630 = vmul.f32 %v10542, %v11107
    %v11631 = vmul.f32 %v10543, %v11117
    %v11632 = vmul.f32 %v10544, %v11127
    %v11633 = vmul.f32 %v10545, %v11137
    %v11634 = vmul.f32 %v10546, %v11147
    %v11635 = vmul.f32 %v10547, %v11157
    %v11636 = vmul.f32 %v10548, %v11167
    %v11637 = vmul.f32 %v10549, %v11177
    %v11638 = vmul.f32 %v10550, %v11187
    %v11639 = vmul.f32 %v10551, %v11197
    %v11640 = vmul.f32 %v10552, %v11207
    %v11641 = vmul.f32 %v10553, %v11217
    %v11642 = vmul.f32 %v10554, %v11227
    %v11643 = vmul.f32 %v10555, %v11237
    %v11644 = vmul.f32 %v10556, %v11247
    %v11645 = vmul.f32 %v10557, %v11257
    %v11646 = vmul.f32 %v10558, %v11267
    %v11647 = vmul.f32 %v10559, %v11277
    %v11648 = vmul.f32 %v10560, %v11287
    %v11649 = vmul.f32 %v10561, %v11297
    %v11650 = vmul.f32 %v10562, %v11307
    %v11651 = vmul.f32 %v10563, %v11317
    %v11652 = vmul.f32 %v10564, %v11327
    %v11653 = vmul.f32 %v10565, %v11337
    %v11654 = vmul.f32 %v10566, %v11347
    %v11655 = vmul.f32 %v10567, %v11357
    %v11656 = vmul.f32 %v10568, %v11367
    %v11657 = vmul.f32 %v10569, %v11377
    %v11658 = vmul.f32 %v10570, %v11387
    %v11659 = vmul.f32 %v10571, %v11397
    %v11660 = vmul.f32 %v10572, %v11407
    %v11661 = vmul.f32 %v10573, %v11417
    %v11662 = vmul.f32 %v10574, %v11427
    %v11663 = vmul.f32 %v10575, %v11437
    %v11664 = vmul.f32 %v10576, %v11447
    %v11665 = vmul.f32 %v10577, %v11457
    %v11666 = vmul.f32 %v10578, %v11467
    %v11667 = vmul.f32 %v10579, %v11477
    %v11668 = vmul.f32 %v10580, %v11487
    %v11669 = vmul.f32 %v10581, %v11497
    %v11670 = vmul.f32 %v10582, %v11507
    %v11671 = vmul.f32 %v10583, %v11517
    %v11672 = vmul.f32 %v10584, %v11527
    %v11673 = vmul.f32 %v10585, %v11537
    %v11674 = vmul.f32 %v10586, %v11547
    %v11675 = vmul.f32 %v10587, %v11557
    %v11676 = vmul.f32 %v10588, %v11567
    %v11677 = vmul.f32 %v10589, %v11577
    %v11678 = vmul.f32 %v10590, %v11587
    %v11679 = vmul.f32 %v10591, %v11597
    %v11680 = vmul.f32 %v10592, %v11607
    %v11681 = vmul.f32 %v10593, %v11617
    %v11682 = vld [vmem:[%s8] sm:$0x1]
    %v11684 = vperm.slane %v11682, 0
    %v11686 = vmul.f32 %v11618, %v11684
    %v11687 = vmul.f32 %v11619, %v11684
    %v11688 = vmul.f32 %v11620, %v11684
    %v11689 = vmul.f32 %v11621, %v11684
    %v11690 = vmul.f32 %v11622, %v11684
    %v11691 = vmul.f32 %v11623, %v11684
    %v11692 = vmul.f32 %v11624, %v11684
    %v11693 = vmul.f32 %v11625, %v11684
    %v11694 = vmul.f32 %v11626, %v11684
    %v11695 = vmul.f32 %v11627, %v11684
    %v11696 = vmul.f32 %v11628, %v11684
    %v11697 = vmul.f32 %v11629, %v11684
    %v11698 = vmul.f32 %v11630, %v11684
    %v11699 = vmul.f32 %v11631, %v11684
    %v11700 = vmul.f32 %v11632, %v11684
    %v11701 = vmul.f32 %v11633, %v11684
    %v11702 = vmul.f32 %v11634, %v11684
    %v11703 = vmul.f32 %v11635, %v11684
    %v11704 = vmul.f32 %v11636, %v11684
    %v11705 = vmul.f32 %v11637, %v11684
    %v11706 = vmul.f32 %v11638, %v11684
    %v11707 = vmul.f32 %v11639, %v11684
    %v11708 = vmul.f32 %v11640, %v11684
    %v11709 = vmul.f32 %v11641, %v11684
    %v11710 = vmul.f32 %v11642, %v11684
    %v11711 = vmul.f32 %v11643, %v11684
    %v11712 = vmul.f32 %v11644, %v11684
    %v11713 = vmul.f32 %v11645, %v11684
    %v11714 = vmul.f32 %v11646, %v11684
    %v11715 = vmul.f32 %v11647, %v11684
    %v11716 = vmul.f32 %v11648, %v11684
    %v11717 = vmul.f32 %v11649, %v11684
    %v11718 = vmul.f32 %v11650, %v11684
    %v11719 = vmul.f32 %v11651, %v11684
    %v11720 = vmul.f32 %v11652, %v11684
    %v11721 = vmul.f32 %v11653, %v11684
    %v11722 = vmul.f32 %v11654, %v11684
    %v11723 = vmul.f32 %v11655, %v11684
    %v11724 = vmul.f32 %v11656, %v11684
    %v11725 = vmul.f32 %v11657, %v11684
    %v11726 = vmul.f32 %v11658, %v11684
    %v11727 = vmul.f32 %v11659, %v11684
    %v11728 = vmul.f32 %v11660, %v11684
    %v11729 = vmul.f32 %v11661, %v11684
    %v11730 = vmul.f32 %v11662, %v11684
    %v11731 = vmul.f32 %v11663, %v11684
    %v11732 = vmul.f32 %v11664, %v11684
    %v11733 = vmul.f32 %v11665, %v11684
    %v11734 = vmul.f32 %v11666, %v11684
    %v11735 = vmul.f32 %v11667, %v11684
    %v11736 = vmul.f32 %v11668, %v11684
    %v11737 = vmul.f32 %v11669, %v11684
    %v11738 = vmul.f32 %v11670, %v11684
    %v11739 = vmul.f32 %v11671, %v11684
    %v11740 = vmul.f32 %v11672, %v11684
    %v11741 = vmul.f32 %v11673, %v11684
    %v11742 = vmul.f32 %v11674, %v11684
    %v11743 = vmul.f32 %v11675, %v11684
    %v11744 = vmul.f32 %v11676, %v11684
    %v11745 = vmul.f32 %v11677, %v11684
    %v11746 = vmul.f32 %v11678, %v11684
    %v11747 = vmul.f32 %v11679, %v11684
    %v11748 = vmul.f32 %v11680, %v11684
    %v11749 = vmul.f32 %v11681, %v11684
    %v11750 = vld [vmem:[%s9] sm:$0x1]
    %v11752 = vperm.slane %v11750, 0
    %v11754 = vadd.f32 %v11686, %v11752
    %v11755 = vadd.f32 %v11687, %v11752
    %v11756 = vadd.f32 %v11688, %v11752
    %v11757 = vadd.f32 %v11689, %v11752
    %v11758 = vadd.f32 %v11690, %v11752
    %v11759 = vadd.f32 %v11691, %v11752
    %v11760 = vadd.f32 %v11692, %v11752
    %v11761 = vadd.f32 %v11693, %v11752
    %v11762 = vadd.f32 %v11694, %v11752
    %v11763 = vadd.f32 %v11695, %v11752
    %v11764 = vadd.f32 %v11696, %v11752
    %v11765 = vadd.f32 %v11697, %v11752
    %v11766 = vadd.f32 %v11698, %v11752
    %v11767 = vadd.f32 %v11699, %v11752
    %v11768 = vadd.f32 %v11700, %v11752
    %v11769 = vadd.f32 %v11701, %v11752
    %v11770 = vadd.f32 %v11702, %v11752
    %v11771 = vadd.f32 %v11703, %v11752
    %v11772 = vadd.f32 %v11704, %v11752
    %v11773 = vadd.f32 %v11705, %v11752
    %v11774 = vadd.f32 %v11706, %v11752
    %v11775 = vadd.f32 %v11707, %v11752
    %v11776 = vadd.f32 %v11708, %v11752
    %v11777 = vadd.f32 %v11709, %v11752
    %v11778 = vadd.f32 %v11710, %v11752
    %v11779 = vadd.f32 %v11711, %v11752
    %v11780 = vadd.f32 %v11712, %v11752
    %v11781 = vadd.f32 %v11713, %v11752
    %v11782 = vadd.f32 %v11714, %v11752
    %v11783 = vadd.f32 %v11715, %v11752
    %v11784 = vadd.f32 %v11716, %v11752
    %v11785 = vadd.f32 %v11717, %v11752
    %v11786 = vadd.f32 %v11718, %v11752
    %v11787 = vadd.f32 %v11719, %v11752
    %v11788 = vadd.f32 %v11720, %v11752
    %v11789 = vadd.f32 %v11721, %v11752
    %v11790 = vadd.f32 %v11722, %v11752
    %v11791 = vadd.f32 %v11723, %v11752
    %v11792 = vadd.f32 %v11724, %v11752
    %v11793 = vadd.f32 %v11725, %v11752
    %v11794 = vadd.f32 %v11726, %v11752
    %v11795 = vadd.f32 %v11727, %v11752
    %v11796 = vadd.f32 %v11728, %v11752
    %v11797 = vadd.f32 %v11729, %v11752
    %v11798 = vadd.f32 %v11730, %v11752
    %v11799 = vadd.f32 %v11731, %v11752
    %v11800 = vadd.f32 %v11732, %v11752
    %v11801 = vadd.f32 %v11733, %v11752
    %v11802 = vadd.f32 %v11734, %v11752
    %v11803 = vadd.f32 %v11735, %v11752
    %v11804 = vadd.f32 %v11736, %v11752
    %v11805 = vadd.f32 %v11737, %v11752
    %v11806 = vadd.f32 %v11738, %v11752
    %v11807 = vadd.f32 %v11739, %v11752
    %v11808 = vadd.f32 %v11740, %v11752
    %v11809 = vadd.f32 %v11741, %v11752
    %v11810 = vadd.f32 %v11742, %v11752
    %v11811 = vadd.f32 %v11743, %v11752
    %v11812 = vadd.f32 %v11744, %v11752
    %v11813 = vadd.f32 %v11745, %v11752
    %v11814 = vadd.f32 %v11746, %v11752
    %v11815 = vadd.f32 %v11747, %v11752
    %v11816 = vadd.f32 %v11748, %v11752
    %v11817 = vadd.f32 %v11749, %v11752
    %v11818 = vpack.c.bf16 %v11755, %v11754
    %v11819 = vpack.c.bf16 %v11757, %v11756
    %v11820 = vpack.c.bf16 %v11759, %v11758
    %v11821 = vpack.c.bf16 %v11761, %v11760
    %v11822 = vpack.c.bf16 %v11763, %v11762
    %v11823 = vpack.c.bf16 %v11765, %v11764
    %v11824 = vpack.c.bf16 %v11767, %v11766
    %v11825 = vpack.c.bf16 %v11769, %v11768
    %v11826 = vpack.c.bf16 %v11771, %v11770
    %v11827 = vpack.c.bf16 %v11773, %v11772
    %v11828 = vpack.c.bf16 %v11775, %v11774
    %v11829 = vpack.c.bf16 %v11777, %v11776
    %v11830 = vpack.c.bf16 %v11779, %v11778
    %v11831 = vpack.c.bf16 %v11781, %v11780
    %v11832 = vpack.c.bf16 %v11783, %v11782
    %v11833 = vpack.c.bf16 %v11785, %v11784
    %v11834 = vpack.c.bf16 %v11787, %v11786
    %v11835 = vpack.c.bf16 %v11789, %v11788
    %v11836 = vpack.c.bf16 %v11791, %v11790
    %v11837 = vpack.c.bf16 %v11793, %v11792
    %v11838 = vpack.c.bf16 %v11795, %v11794
    %v11839 = vpack.c.bf16 %v11797, %v11796
    %v11840 = vpack.c.bf16 %v11799, %v11798
    %v11841 = vpack.c.bf16 %v11801, %v11800
    %v11842 = vpack.c.bf16 %v11803, %v11802
    %v11843 = vpack.c.bf16 %v11805, %v11804
    %v11844 = vpack.c.bf16 %v11807, %v11806
    %v11845 = vpack.c.bf16 %v11809, %v11808
    %v11846 = vpack.c.bf16 %v11811, %v11810
    %v11847 = vpack.c.bf16 %v11813, %v11812
    %v11848 = vpack.c.bf16 %v11815, %v11814
    %v11849 = vpack.c.bf16 %v11817, %v11816
    %v11850 = vld [vmem:[%s10] sm:$0xf]
    %v11851 = vld [vmem:[%s10 + $0x4] sm:$0xf]
    %v11852 = vld [vmem:[%s10 + $0x8] sm:$0xf]
    %v11853 = vld [vmem:[%s10 + $0xc] sm:$0xf]
    %v11854 = vld [vmem:[%s11] sm:$0x1]
    %v11856 = vperm.slane %v11854, 0
    %v11862 = vunpack.c.l.b16 %v11850
    %v11863 = vunpack.c.l.b16 %v11851
    %v11864 = vunpack.c.l.b16 %v11852
    %v11865 = vunpack.c.l.b16 %v11853
    %v11866 = vpack.c.b16 %v11863, %v11862
    %v11867 = vpack.c.b16 %v11865, %v11864
    %v11871 = vsel %vm145, %v11818, 0
    %v11874 = vsel %vm145, %v11819, 0
    %v11877 = vsel %vm145, %v11820, 0
    %v11880 = vsel %vm145, %v11821, 0
    %v11883 = vsel %vm145, %v11822, 0
    %v11886 = vsel %vm145, %v11823, 0
    %v11889 = vsel %vm145, %v11824, 0
    %v11892 = vsel %vm145, %v11825, 0
    %v11895 = vsel %vm145, %v11826, 0
    %v11898 = vsel %vm145, %v11827, 0
    %v11901 = vsel %vm145, %v11828, 0
    %v11904 = vsel %vm145, %v11829, 0
    %v11907 = vsel %vm145, %v11830, 0
    %v11910 = vsel %vm145, %v11831, 0
    %v11913 = vsel %vm145, %v11832, 0
    %v11916 = vsel %vm145, %v11833, 0
    %v11919 = vsel %vm145, %v11834, 0
    %v11922 = vsel %vm145, %v11835, 0
    %v11925 = vsel %vm145, %v11836, 0
    %v11928 = vsel %vm145, %v11837, 0
    %v11931 = vsel %vm145, %v11838, 0
    %v11934 = vsel %vm145, %v11839, 0
    %v11937 = vsel %vm145, %v11840, 0
    %v11940 = vsel %vm145, %v11841, 0
    %v11943 = vsel %vm145, %v11842, 0
    %v11946 = vsel %vm145, %v11843, 0
    %v11949 = vsel %vm145, %v11844, 0
    %v11952 = vsel %vm145, %v11845, 0
    %v11955 = vsel %vm145, %v11846, 0
    %v11958 = vsel %vm145, %v11847, 0
    %v11961 = vsel %vm145, %v11848, 0
    %v11964 = vsel %vm145, %v11849, 0
    %11966 = vmatpush.bf16.msra.mxu0 0
    %11967 = vmatpush.bf16.msra.mxu0 0
    %11968 = vmatpush.bf16.msra.mxu0 0
    %11969 = vmatpush.bf16.msra.mxu0 0
    %11970 = vmatpush.bf16.msra.mxu0 0
    %11971 = vmatpush.bf16.msra.mxu0 0
    %11972 = vmatpush.bf16.msra.mxu0 %v11867
    %11973 = vmatpush.bf16.msra.mxu0 %v11866
    %11974 = vmatmul.bf16.gmra.mxu0 %v11871
    %v11975 = vpop.f32.mrf.mxu0
    %v11976 = vadd.f32 %v11856, %v11975
    %v11977 = vpop.f32.mrf.mxu0
    %v11978 = vadd.f32 %v11856, %v11977
    %11979 = vmatmul.bf16.gmra.mxu0 %v11874
    %v11980 = vpop.f32.mrf.mxu0
    %v11981 = vadd.f32 %v11856, %v11980
    %v11982 = vpop.f32.mrf.mxu0
    %v11983 = vadd.f32 %v11856, %v11982
    %11984 = vmatmul.bf16.gmra.mxu0 %v11877
    %v11985 = vpop.f32.mrf.mxu0
    %v11986 = vadd.f32 %v11856, %v11985
    %v11987 = vpop.f32.mrf.mxu0
    %v11988 = vadd.f32 %v11856, %v11987
    %11989 = vmatmul.bf16.gmra.mxu0 %v11880
    %v11990 = vpop.f32.mrf.mxu0
    %v11991 = vadd.f32 %v11856, %v11990
    %v11992 = vpop.f32.mrf.mxu0
    %v11993 = vadd.f32 %v11856, %v11992
    %11994 = vmatmul.bf16.gmra.mxu0 %v11883
    %v11995 = vpop.f32.mrf.mxu0
    %v11996 = vadd.f32 %v11856, %v11995
    %v11997 = vpop.f32.mrf.mxu0
    %v11998 = vadd.f32 %v11856, %v11997
    %11999 = vmatmul.bf16.gmra.mxu0 %v11886
    %v12000 = vpop.f32.mrf.mxu0
    %v12001 = vadd.f32 %v11856, %v12000
    %v12002 = vpop.f32.mrf.mxu0
    %v12003 = vadd.f32 %v11856, %v12002
    %12004 = vmatmul.bf16.gmra.mxu0 %v11889
    %v12005 = vpop.f32.mrf.mxu0
    %v12006 = vadd.f32 %v11856, %v12005
    %v12007 = vpop.f32.mrf.mxu0
    %v12008 = vadd.f32 %v11856, %v12007
    %12009 = vmatmul.bf16.gmra.mxu0 %v11892
    %v12010 = vpop.f32.mrf.mxu0
    %v12011 = vadd.f32 %v11856, %v12010
    %v12012 = vpop.f32.mrf.mxu0
    %v12013 = vadd.f32 %v11856, %v12012
    %12014 = vmatmul.bf16.gmra.mxu0 %v11895
    %v12015 = vpop.f32.mrf.mxu0
    %v12016 = vadd.f32 %v11856, %v12015
    %v12017 = vpop.f32.mrf.mxu0
    %v12018 = vadd.f32 %v11856, %v12017
    %12019 = vmatmul.bf16.gmra.mxu0 %v11898
    %v12020 = vpop.f32.mrf.mxu0
    %v12021 = vadd.f32 %v11856, %v12020
    %v12022 = vpop.f32.mrf.mxu0
    %v12023 = vadd.f32 %v11856, %v12022
    %12024 = vmatmul.bf16.gmra.mxu0 %v11901
    %v12025 = vpop.f32.mrf.mxu0
    %v12026 = vadd.f32 %v11856, %v12025
    %v12027 = vpop.f32.mrf.mxu0
    %v12028 = vadd.f32 %v11856, %v12027
    %12029 = vmatmul.bf16.gmra.mxu0 %v11904
    %v12030 = vpop.f32.mrf.mxu0
    %v12031 = vadd.f32 %v11856, %v12030
    %v12032 = vpop.f32.mrf.mxu0
    %v12033 = vadd.f32 %v11856, %v12032
    %12034 = vmatmul.bf16.gmra.mxu0 %v11907
    %v12035 = vpop.f32.mrf.mxu0
    %v12036 = vadd.f32 %v11856, %v12035
    %v12037 = vpop.f32.mrf.mxu0
    %v12038 = vadd.f32 %v11856, %v12037
    %12039 = vmatmul.bf16.gmra.mxu0 %v11910
    %v12040 = vpop.f32.mrf.mxu0
    %v12041 = vadd.f32 %v11856, %v12040
    %v12042 = vpop.f32.mrf.mxu0
    %v12043 = vadd.f32 %v11856, %v12042
    %12044 = vmatmul.bf16.gmra.mxu0 %v11913
    %v12045 = vpop.f32.mrf.mxu0
    %v12046 = vadd.f32 %v11856, %v12045
    %v12047 = vpop.f32.mrf.mxu0
    %v12048 = vadd.f32 %v11856, %v12047
    %12049 = vmatmul.bf16.gmra.mxu0 %v11916
    %v12050 = vpop.f32.mrf.mxu0
    %v12051 = vadd.f32 %v11856, %v12050
    %v12052 = vpop.f32.mrf.mxu0
    %v12053 = vadd.f32 %v11856, %v12052
    %12054 = vmatmul.bf16.gmra.mxu0 %v11919
    %v12055 = vpop.f32.mrf.mxu0
    %v12056 = vadd.f32 %v11856, %v12055
    %v12057 = vpop.f32.mrf.mxu0
    %v12058 = vadd.f32 %v11856, %v12057
    %12059 = vmatmul.bf16.gmra.mxu0 %v11922
    %v12060 = vpop.f32.mrf.mxu0
    %v12061 = vadd.f32 %v11856, %v12060
    %v12062 = vpop.f32.mrf.mxu0
    %v12063 = vadd.f32 %v11856, %v12062
    %12064 = vmatmul.bf16.gmra.mxu0 %v11925
    %v12065 = vpop.f32.mrf.mxu0
    %v12066 = vadd.f32 %v11856, %v12065
    %v12067 = vpop.f32.mrf.mxu0
    %v12068 = vadd.f32 %v11856, %v12067
    %12069 = vmatmul.bf16.gmra.mxu0 %v11928
    %v12070 = vpop.f32.mrf.mxu0
    %v12071 = vadd.f32 %v11856, %v12070
    %v12072 = vpop.f32.mrf.mxu0
    %v12073 = vadd.f32 %v11856, %v12072
    %12074 = vmatmul.bf16.gmra.mxu0 %v11931
    %v12075 = vpop.f32.mrf.mxu0
    %v12076 = vadd.f32 %v11856, %v12075
    %v12077 = vpop.f32.mrf.mxu0
    %v12078 = vadd.f32 %v11856, %v12077
    %12079 = vmatmul.bf16.gmra.mxu0 %v11934
    %v12080 = vpop.f32.mrf.mxu0
    %v12081 = vadd.f32 %v11856, %v12080
    %v12082 = vpop.f32.mrf.mxu0
    %v12083 = vadd.f32 %v11856, %v12082
    %12084 = vmatmul.bf16.gmra.mxu0 %v11937
    %v12085 = vpop.f32.mrf.mxu0
    %v12086 = vadd.f32 %v11856, %v12085
    %v12087 = vpop.f32.mrf.mxu0
    %v12088 = vadd.f32 %v11856, %v12087
    %12089 = vmatmul.bf16.gmra.mxu0 %v11940
    %v12090 = vpop.f32.mrf.mxu0
    %v12091 = vadd.f32 %v11856, %v12090
    %v12092 = vpop.f32.mrf.mxu0
    %v12093 = vadd.f32 %v11856, %v12092
    %12094 = vmatmul.bf16.gmra.mxu0 %v11943
    %v12095 = vpop.f32.mrf.mxu0
    %v12096 = vadd.f32 %v11856, %v12095
    %v12097 = vpop.f32.mrf.mxu0
    %v12098 = vadd.f32 %v11856, %v12097
    %12099 = vmatmul.bf16.gmra.mxu0 %v11946
    %v12100 = vpop.f32.mrf.mxu0
    %v12101 = vadd.f32 %v11856, %v12100
    %v12102 = vpop.f32.mrf.mxu0
    %v12103 = vadd.f32 %v11856, %v12102
    %12104 = vmatmul.bf16.gmra.mxu0 %v11949
    %v12105 = vpop.f32.mrf.mxu0
    %v12106 = vadd.f32 %v11856, %v12105
    %v12107 = vpop.f32.mrf.mxu0
    %v12108 = vadd.f32 %v11856, %v12107
    %12109 = vmatmul.bf16.gmra.mxu0 %v11952
    %v12110 = vpop.f32.mrf.mxu0
    %v12111 = vadd.f32 %v11856, %v12110
    %v12112 = vpop.f32.mrf.mxu0
    %v12113 = vadd.f32 %v11856, %v12112
    %12114 = vmatmul.bf16.gmra.mxu0 %v11955
    %v12115 = vpop.f32.mrf.mxu0
    %v12116 = vadd.f32 %v11856, %v12115
    %v12117 = vpop.f32.mrf.mxu0
    %v12118 = vadd.f32 %v11856, %v12117
    %12119 = vmatmul.bf16.gmra.mxu0 %v11958
    %v12120 = vpop.f32.mrf.mxu0
    %v12121 = vadd.f32 %v11856, %v12120
    %v12122 = vpop.f32.mrf.mxu0
    %v12123 = vadd.f32 %v11856, %v12122
    %12124 = vmatmul.bf16.gmra.mxu0 %v11961
    %v12125 = vpop.f32.mrf.mxu0
    %v12126 = vadd.f32 %v11856, %v12125
    %v12127 = vpop.f32.mrf.mxu0
    %v12128 = vadd.f32 %v11856, %v12127
    %12129 = vmatmul.bf16.gmra.mxu0 %v11964
    %v12130 = vpop.f32.mrf.mxu0
    %v12131 = vadd.f32 %v11856, %v12130
    %v12132 = vpop.f32.mrf.mxu0
    %v12133 = vadd.f32 %v11856, %v12132
    %12134 = vdwg.mxu0
    %v12135 = vmul.f32 %v11976, 0.5
    %v12136 = vmul.f32 %v11978, 0.5
    %v12137 = vmul.f32 %v11981, 0.5
    %v12138 = vmul.f32 %v11983, 0.5
    %v12139 = vmul.f32 %v11986, 0.5
    %v12140 = vmul.f32 %v11988, 0.5
    %v12141 = vmul.f32 %v11991, 0.5
    %v12142 = vmul.f32 %v11993, 0.5
    %v12143 = vmul.f32 %v11996, 0.5
    %v12144 = vmul.f32 %v11998, 0.5
    %v12145 = vmul.f32 %v12001, 0.5
    %v12146 = vmul.f32 %v12003, 0.5
    %v12147 = vmul.f32 %v12006, 0.5
    %v12148 = vmul.f32 %v12008, 0.5
    %v12149 = vmul.f32 %v12011, 0.5
    %v12150 = vmul.f32 %v12013, 0.5
    %v12151 = vmul.f32 %v12016, 0.5
    %v12152 = vmul.f32 %v12018, 0.5
    %v12153 = vmul.f32 %v12021, 0.5
    %v12154 = vmul.f32 %v12023, 0.5
    %v12155 = vmul.f32 %v12026, 0.5
    %v12156 = vmul.f32 %v12028, 0.5
    %v12157 = vmul.f32 %v12031, 0.5
    %v12158 = vmul.f32 %v12033, 0.5
    %v12159 = vmul.f32 %v12036, 0.5
    %v12160 = vmul.f32 %v12038, 0.5
    %v12161 = vmul.f32 %v12041, 0.5
    %v12162 = vmul.f32 %v12043, 0.5
    %v12163 = vmul.f32 %v12046, 0.5
    %v12164 = vmul.f32 %v12048, 0.5
    %v12165 = vmul.f32 %v12051, 0.5
    %v12166 = vmul.f32 %v12053, 0.5
    %v12167 = vmul.f32 %v12056, 0.5
    %v12168 = vmul.f32 %v12058, 0.5
    %v12169 = vmul.f32 %v12061, 0.5
    %v12170 = vmul.f32 %v12063, 0.5
    %v12171 = vmul.f32 %v12066, 0.5
    %v12172 = vmul.f32 %v12068, 0.5
    %v12173 = vmul.f32 %v12071, 0.5
    %v12174 = vmul.f32 %v12073, 0.5
    %v12175 = vmul.f32 %v12076, 0.5
    %v12176 = vmul.f32 %v12078, 0.5
    %v12177 = vmul.f32 %v12081, 0.5
    %v12178 = vmul.f32 %v12083, 0.5
    %v12179 = vmul.f32 %v12086, 0.5
    %v12180 = vmul.f32 %v12088, 0.5
    %v12181 = vmul.f32 %v12091, 0.5
    %v12182 = vmul.f32 %v12093, 0.5
    %v12183 = vmul.f32 %v12096, 0.5
    %v12184 = vmul.f32 %v12098, 0.5
    %v12185 = vmul.f32 %v12101, 0.5
    %v12186 = vmul.f32 %v12103, 0.5
    %v12187 = vmul.f32 %v12106, 0.5
    %v12188 = vmul.f32 %v12108, 0.5
    %v12189 = vmul.f32 %v12111, 0.5
    %v12190 = vmul.f32 %v12113, 0.5
    %v12191 = vmul.f32 %v12116, 0.5
    %v12192 = vmul.f32 %v12118, 0.5
    %v12193 = vmul.f32 %v12121, 0.5
    %v12194 = vmul.f32 %v12123, 0.5
    %v12195 = vmul.f32 %v12126, 0.5
    %v12196 = vmul.f32 %v12128, 0.5
    %v12197 = vmul.f32 %v12131, 0.5
    %v12198 = vmul.f32 %v12133, 0.5
    %v12199 = vmul.f32 %v11976, 0.044715
    %v12200 = vmul.f32 %v11978, 0.044715
    %v12201 = vmul.f32 %v11981, 0.044715
    %v12202 = vmul.f32 %v11983, 0.044715
    %v12203 = vmul.f32 %v11986, 0.044715
    %v12204 = vmul.f32 %v11988, 0.044715
    %v12205 = vmul.f32 %v11991, 0.044715
    %v12206 = vmul.f32 %v11993, 0.044715
    %v12207 = vmul.f32 %v11996, 0.044715
    %v12208 = vmul.f32 %v11998, 0.044715
    %v12209 = vmul.f32 %v12001, 0.044715
    %v12210 = vmul.f32 %v12003, 0.044715
    %v12211 = vmul.f32 %v12006, 0.044715
    %v12212 = vmul.f32 %v12008, 0.044715
    %v12213 = vmul.f32 %v12011, 0.044715
    %v12214 = vmul.f32 %v12013, 0.044715
    %v12215 = vmul.f32 %v12016, 0.044715
    %v12216 = vmul.f32 %v12018, 0.044715
    %v12217 = vmul.f32 %v12021, 0.044715
    %v12218 = vmul.f32 %v12023, 0.044715
    %v12219 = vmul.f32 %v12026, 0.044715
    %v12220 = vmul.f32 %v12028, 0.044715
    %v12221 = vmul.f32 %v12031, 0.044715
    %v12222 = vmul.f32 %v12033, 0.044715
    %v12223 = vmul.f32 %v12036, 0.044715
    %v12224 = vmul.f32 %v12038, 0.044715
    %v12225 = vmul.f32 %v12041, 0.044715
    %v12226 = vmul.f32 %v12043, 0.044715
    %v12227 = vmul.f32 %v12046, 0.044715
    %v12228 = vmul.f32 %v12048, 0.044715
    %v12229 = vmul.f32 %v12051, 0.044715
    %v12230 = vmul.f32 %v12053, 0.044715
    %v12231 = vmul.f32 %v12056, 0.044715
    %v12232 = vmul.f32 %v12058, 0.044715
    %v12233 = vmul.f32 %v12061, 0.044715
    %v12234 = vmul.f32 %v12063, 0.044715
    %v12235 = vmul.f32 %v12066, 0.044715
    %v12236 = vmul.f32 %v12068, 0.044715
    %v12237 = vmul.f32 %v12071, 0.044715
    %v12238 = vmul.f32 %v12073, 0.044715
    %v12239 = vmul.f32 %v12076, 0.044715
    %v12240 = vmul.f32 %v12078, 0.044715
    %v12241 = vmul.f32 %v12081, 0.044715
    %v12242 = vmul.f32 %v12083, 0.044715
    %v12243 = vmul.f32 %v12086, 0.044715
    %v12244 = vmul.f32 %v12088, 0.044715
    %v12245 = vmul.f32 %v12091, 0.044715
    %v12246 = vmul.f32 %v12093, 0.044715
    %v12247 = vmul.f32 %v12096, 0.044715
    %v12248 = vmul.f32 %v12098, 0.044715
    %v12249 = vmul.f32 %v12101, 0.044715
    %v12250 = vmul.f32 %v12103, 0.044715
    %v12251 = vmul.f32 %v12106, 0.044715
    %v12252 = vmul.f32 %v12108, 0.044715
    %v12253 = vmul.f32 %v12111, 0.044715
    %v12254 = vmul.f32 %v12113, 0.044715
    %v12255 = vmul.f32 %v12116, 0.044715
    %v12256 = vmul.f32 %v12118, 0.044715
    %v12257 = vmul.f32 %v12121, 0.044715
    %v12258 = vmul.f32 %v12123, 0.044715
    %v12259 = vmul.f32 %v12126, 0.044715
    %v12260 = vmul.f32 %v12128, 0.044715
    %v12261 = vmul.f32 %v12131, 0.044715
    %v12262 = vmul.f32 %v12133, 0.044715
    %v12263 = vmul.f32 %v12199, %v11976
    %v12264 = vmul.f32 %v12200, %v11978
    %v12265 = vmul.f32 %v12201, %v11981
    %v12266 = vmul.f32 %v12202, %v11983
    %v12267 = vmul.f32 %v12203, %v11986
    %v12268 = vmul.f32 %v12204, %v11988
    %v12269 = vmul.f32 %v12205, %v11991
    %v12270 = vmul.f32 %v12206, %v11993
    %v12271 = vmul.f32 %v12207, %v11996
    %v12272 = vmul.f32 %v12208, %v11998
    %v12273 = vmul.f32 %v12209, %v12001
    %v12274 = vmul.f32 %v12210, %v12003
    %v12275 = vmul.f32 %v12211, %v12006
    %v12276 = vmul.f32 %v12212, %v12008
    %v12277 = vmul.f32 %v12213, %v12011
    %v12278 = vmul.f32 %v12214, %v12013
    %v12279 = vmul.f32 %v12215, %v12016
    %v12280 = vmul.f32 %v12216, %v12018
    %v12281 = vmul.f32 %v12217, %v12021
    %v12282 = vmul.f32 %v12218, %v12023
    %v12283 = vmul.f32 %v12219, %v12026
    %v12284 = vmul.f32 %v12220, %v12028
    %v12285 = vmul.f32 %v12221, %v12031
    %v12286 = vmul.f32 %v12222, %v12033
    %v12287 = vmul.f32 %v12223, %v12036
    %v12288 = vmul.f32 %v12224, %v12038
    %v12289 = vmul.f32 %v12225, %v12041
    %v12290 = vmul.f32 %v12226, %v12043
    %v12291 = vmul.f32 %v12227, %v12046
    %v12292 = vmul.f32 %v12228, %v12048
    %v12293 = vmul.f32 %v12229, %v12051
    %v12294 = vmul.f32 %v12230, %v12053
    %v12295 = vmul.f32 %v12231, %v12056
    %v12296 = vmul.f32 %v12232, %v12058
    %v12297 = vmul.f32 %v12233, %v12061
    %v12298 = vmul.f32 %v12234, %v12063
    %v12299 = vmul.f32 %v12235, %v12066
    %v12300 = vmul.f32 %v12236, %v12068
    %v12301 = vmul.f32 %v12237, %v12071
    %v12302 = vmul.f32 %v12238, %v12073
    %v12303 = vmul.f32 %v12239, %v12076
    %v12304 = vmul.f32 %v12240, %v12078
    %v12305 = vmul.f32 %v12241, %v12081
    %v12306 = vmul.f32 %v12242, %v12083
    %v12307 = vmul.f32 %v12243, %v12086
    %v12308 = vmul.f32 %v12244, %v12088
    %v12309 = vmul.f32 %v12245, %v12091
    %v12310 = vmul.f32 %v12246, %v12093
    %v12311 = vmul.f32 %v12247, %v12096
    %v12312 = vmul.f32 %v12248, %v12098
    %v12313 = vmul.f32 %v12249, %v12101
    %v12314 = vmul.f32 %v12250, %v12103
    %v12315 = vmul.f32 %v12251, %v12106
    %v12316 = vmul.f32 %v12252, %v12108
    %v12317 = vmul.f32 %v12253, %v12111
    %v12318 = vmul.f32 %v12254, %v12113
    %v12319 = vmul.f32 %v12255, %v12116
    %v12320 = vmul.f32 %v12256, %v12118
    %v12321 = vmul.f32 %v12257, %v12121
    %v12322 = vmul.f32 %v12258, %v12123
    %v12323 = vmul.f32 %v12259, %v12126
    %v12324 = vmul.f32 %v12260, %v12128
    %v12325 = vmul.f32 %v12261, %v12131
    %v12326 = vmul.f32 %v12262, %v12133
    %v12327 = vmul.f32 %v12263, %v11976
    %v12328 = vmul.f32 %v12264, %v11978
    %v12329 = vmul.f32 %v12265, %v11981
    %v12330 = vmul.f32 %v12266, %v11983
    %v12331 = vmul.f32 %v12267, %v11986
    %v12332 = vmul.f32 %v12268, %v11988
    %v12333 = vmul.f32 %v12269, %v11991
    %v12334 = vmul.f32 %v12270, %v11993
    %v12335 = vmul.f32 %v12271, %v11996
    %v12336 = vmul.f32 %v12272, %v11998
    %v12337 = vmul.f32 %v12273, %v12001
    %v12338 = vmul.f32 %v12274, %v12003
    %v12339 = vmul.f32 %v12275, %v12006
    %v12340 = vmul.f32 %v12276, %v12008
    %v12341 = vmul.f32 %v12277, %v12011
    %v12342 = vmul.f32 %v12278, %v12013
    %v12343 = vmul.f32 %v12279, %v12016
    %v12344 = vmul.f32 %v12280, %v12018
    %v12345 = vmul.f32 %v12281, %v12021
    %v12346 = vmul.f32 %v12282, %v12023
    %v12347 = vmul.f32 %v12283, %v12026
    %v12348 = vmul.f32 %v12284, %v12028
    %v12349 = vmul.f32 %v12285, %v12031
    %v12350 = vmul.f32 %v12286, %v12033
    %v12351 = vmul.f32 %v12287, %v12036
    %v12352 = vmul.f32 %v12288, %v12038
    %v12353 = vmul.f32 %v12289, %v12041
    %v12354 = vmul.f32 %v12290, %v12043
    %v12355 = vmul.f32 %v12291, %v12046
    %v12356 = vmul.f32 %v12292, %v12048
    %v12357 = vmul.f32 %v12293, %v12051
    %v12358 = vmul.f32 %v12294, %v12053
    %v12359 = vmul.f32 %v12295, %v12056
    %v12360 = vmul.f32 %v12296, %v12058
    %v12361 = vmul.f32 %v12297, %v12061
    %v12362 = vmul.f32 %v12298, %v12063
    %v12363 = vmul.f32 %v12299, %v12066
    %v12364 = vmul.f32 %v12300, %v12068
    %v12365 = vmul.f32 %v12301, %v12071
    %v12366 = vmul.f32 %v12302, %v12073
    %v12367 = vmul.f32 %v12303, %v12076
    %v12368 = vmul.f32 %v12304, %v12078
    %v12369 = vmul.f32 %v12305, %v12081
    %v12370 = vmul.f32 %v12306, %v12083
    %v12371 = vmul.f32 %v12307, %v12086
    %v12372 = vmul.f32 %v12308, %v12088
    %v12373 = vmul.f32 %v12309, %v12091
    %v12374 = vmul.f32 %v12310, %v12093
    %v12375 = vmul.f32 %v12311, %v12096
    %v12376 = vmul.f32 %v12312, %v12098
    %v12377 = vmul.f32 %v12313, %v12101
    %v12378 = vmul.f32 %v12314, %v12103
    %v12379 = vmul.f32 %v12315, %v12106
    %v12380 = vmul.f32 %v12316, %v12108
    %v12381 = vmul.f32 %v12317, %v12111
    %v12382 = vmul.f32 %v12318, %v12113
    %v12383 = vmul.f32 %v12319, %v12116
    %v12384 = vmul.f32 %v12320, %v12118
    %v12385 = vmul.f32 %v12321, %v12121
    %v12386 = vmul.f32 %v12322, %v12123
    %v12387 = vmul.f32 %v12323, %v12126
    %v12388 = vmul.f32 %v12324, %v12128
    %v12389 = vmul.f32 %v12325, %v12131
    %v12390 = vmul.f32 %v12326, %v12133
    %v12391 = vadd.f32 %v11976, %v12327
    %v12392 = vadd.f32 %v11978, %v12328
    %v12393 = vadd.f32 %v11981, %v12329
    %v12394 = vadd.f32 %v11983, %v12330
    %v12395 = vadd.f32 %v11986, %v12331
    %v12396 = vadd.f32 %v11988, %v12332
    %v12397 = vadd.f32 %v11991, %v12333
    %v12398 = vadd.f32 %v11993, %v12334
    %v12399 = vadd.f32 %v11996, %v12335
    %v12400 = vadd.f32 %v11998, %v12336
    %v12401 = vadd.f32 %v12001, %v12337
    %v12402 = vadd.f32 %v12003, %v12338
    %v12403 = vadd.f32 %v12006, %v12339
    %v12404 = vadd.f32 %v12008, %v12340
    %v12405 = vadd.f32 %v12011, %v12341
    %v12406 = vadd.f32 %v12013, %v12342
    %v12407 = vadd.f32 %v12016, %v12343
    %v12408 = vadd.f32 %v12018, %v12344
    %v12409 = vadd.f32 %v12021, %v12345
    %v12410 = vadd.f32 %v12023, %v12346
    %v12411 = vadd.f32 %v12026, %v12347
    %v12412 = vadd.f32 %v12028, %v12348
    %v12413 = vadd.f32 %v12031, %v12349
    %v12414 = vadd.f32 %v12033, %v12350
    %v12415 = vadd.f32 %v12036, %v12351
    %v12416 = vadd.f32 %v12038, %v12352
    %v12417 = vadd.f32 %v12041, %v12353
    %v12418 = vadd.f32 %v12043, %v12354
    %v12419 = vadd.f32 %v12046, %v12355
    %v12420 = vadd.f32 %v12048, %v12356
    %v12421 = vadd.f32 %v12051, %v12357
    %v12422 = vadd.f32 %v12053, %v12358
    %v12423 = vadd.f32 %v12056, %v12359
    %v12424 = vadd.f32 %v12058, %v12360
    %v12425 = vadd.f32 %v12061, %v12361
    %v12426 = vadd.f32 %v12063, %v12362
    %v12427 = vadd.f32 %v12066, %v12363
    %v12428 = vadd.f32 %v12068, %v12364
    %v12429 = vadd.f32 %v12071, %v12365
    %v12430 = vadd.f32 %v12073, %v12366
    %v12431 = vadd.f32 %v12076, %v12367
    %v12432 = vadd.f32 %v12078, %v12368
    %v12433 = vadd.f32 %v12081, %v12369
    %v12434 = vadd.f32 %v12083, %v12370
    %v12435 = vadd.f32 %v12086, %v12371
    %v12436 = vadd.f32 %v12088, %v12372
    %v12437 = vadd.f32 %v12091, %v12373
    %v12438 = vadd.f32 %v12093, %v12374
    %v12439 = vadd.f32 %v12096, %v12375
    %v12440 = vadd.f32 %v12098, %v12376
    %v12441 = vadd.f32 %v12101, %v12377
    %v12442 = vadd.f32 %v12103, %v12378
    %v12443 = vadd.f32 %v12106, %v12379
    %v12444 = vadd.f32 %v12108, %v12380
    %v12445 = vadd.f32 %v12111, %v12381
    %v12446 = vadd.f32 %v12113, %v12382
    %v12447 = vadd.f32 %v12116, %v12383
    %v12448 = vadd.f32 %v12118, %v12384
    %v12449 = vadd.f32 %v12121, %v12385
    %v12450 = vadd.f32 %v12123, %v12386
    %v12451 = vadd.f32 %v12126, %v12387
    %v12452 = vadd.f32 %v12128, %v12388
    %v12453 = vadd.f32 %v12131, %v12389
    %v12454 = vadd.f32 %v12133, %v12390
    %v12455 = vmul.f32 %v12391, 0.7978846
    %v12456 = vmul.f32 %v12392, 0.7978846
    %v12457 = vmul.f32 %v12393, 0.7978846
    %v12458 = vmul.f32 %v12394, 0.7978846
    %v12459 = vmul.f32 %v12395, 0.7978846
    %v12460 = vmul.f32 %v12396, 0.7978846
    %v12461 = vmul.f32 %v12397, 0.7978846
    %v12462 = vmul.f32 %v12398, 0.7978846
    %v12463 = vmul.f32 %v12399, 0.7978846
    %v12464 = vmul.f32 %v12400, 0.7978846
    %v12465 = vmul.f32 %v12401, 0.7978846
    %v12466 = vmul.f32 %v12402, 0.7978846
    %v12467 = vmul.f32 %v12403, 0.7978846
    %v12468 = vmul.f32 %v12404, 0.7978846
    %v12469 = vmul.f32 %v12405, 0.7978846
    %v12470 = vmul.f32 %v12406, 0.7978846
    %v12471 = vmul.f32 %v12407, 0.7978846
    %v12472 = vmul.f32 %v12408, 0.7978846
    %v12473 = vmul.f32 %v12409, 0.7978846
    %v12474 = vmul.f32 %v12410, 0.7978846
    %v12475 = vmul.f32 %v12411, 0.7978846
    %v12476 = vmul.f32 %v12412, 0.7978846
    %v12477 = vmul.f32 %v12413, 0.7978846
    %v12478 = vmul.f32 %v12414, 0.7978846
    %v12479 = vmul.f32 %v12415, 0.7978846
    %v12480 = vmul.f32 %v12416, 0.7978846
    %v12481 = vmul.f32 %v12417, 0.7978846
    %v12482 = vmul.f32 %v12418, 0.7978846
    %v12483 = vmul.f32 %v12419, 0.7978846
    %v12484 = vmul.f32 %v12420, 0.7978846
    %v12485 = vmul.f32 %v12421, 0.7978846
    %v12486 = vmul.f32 %v12422, 0.7978846
    %v12487 = vmul.f32 %v12423, 0.7978846
    %v12488 = vmul.f32 %v12424, 0.7978846
    %v12489 = vmul.f32 %v12425, 0.7978846
    %v12490 = vmul.f32 %v12426, 0.7978846
    %v12491 = vmul.f32 %v12427, 0.7978846
    %v12492 = vmul.f32 %v12428, 0.7978846
    %v12493 = vmul.f32 %v12429, 0.7978846
    %v12494 = vmul.f32 %v12430, 0.7978846
    %v12495 = vmul.f32 %v12431, 0.7978846
    %v12496 = vmul.f32 %v12432, 0.7978846
    %v12497 = vmul.f32 %v12433, 0.7978846
    %v12498 = vmul.f32 %v12434, 0.7978846
    %v12499 = vmul.f32 %v12435, 0.7978846
    %v12500 = vmul.f32 %v12436, 0.7978846
    %v12501 = vmul.f32 %v12437, 0.7978846
    %v12502 = vmul.f32 %v12438, 0.7978846
    %v12503 = vmul.f32 %v12439, 0.7978846
    %v12504 = vmul.f32 %v12440, 0.7978846
    %v12505 = vmul.f32 %v12441, 0.7978846
    %v12506 = vmul.f32 %v12442, 0.7978846
    %v12507 = vmul.f32 %v12443, 0.7978846
    %v12508 = vmul.f32 %v12444, 0.7978846
    %v12509 = vmul.f32 %v12445, 0.7978846
    %v12510 = vmul.f32 %v12446, 0.7978846
    %v12511 = vmul.f32 %v12447, 0.7978846
    %v12512 = vmul.f32 %v12448, 0.7978846
    %v12513 = vmul.f32 %v12449, 0.7978846
    %v12514 = vmul.f32 %v12450, 0.7978846
    %v12515 = vmul.f32 %v12451, 0.7978846
    %v12516 = vmul.f32 %v12452, 0.7978846
    %v12517 = vmul.f32 %v12453, 0.7978846
    %v12518 = vmul.f32 %v12454, 0.7978846
    %v12519 = vtanh.pop %v12455
    %v12520 = vtanh.pop %v12456
    %v12521 = vtanh.pop %v12457
    %v12522 = vtanh.pop %v12458
    %v12523 = vtanh.pop %v12459
    %v12524 = vtanh.pop %v12460
    %v12525 = vtanh.pop %v12461
    %v12526 = vtanh.pop %v12462
    %v12527 = vtanh.pop %v12463
    %v12528 = vtanh.pop %v12464
    %v12529 = vtanh.pop %v12465
    %v12530 = vtanh.pop %v12466
    %v12531 = vtanh.pop %v12467
    %v12532 = vtanh.pop %v12468
    %v12533 = vtanh.pop %v12469
    %v12534 = vtanh.pop %v12470
    %v12535 = vtanh.pop %v12471
    %v12536 = vtanh.pop %v12472
    %v12537 = vtanh.pop %v12473
    %v12538 = vtanh.pop %v12474
    %v12539 = vtanh.pop %v12475
    %v12540 = vtanh.pop %v12476
    %v12541 = vtanh.pop %v12477
    %v12542 = vtanh.pop %v12478
    %v12543 = vtanh.pop %v12479
    %v12544 = vtanh.pop %v12480
    %v12545 = vtanh.pop %v12481
    %v12546 = vtanh.pop %v12482
    %v12547 = vtanh.pop %v12483
    %v12548 = vtanh.pop %v12484
    %v12549 = vtanh.pop %v12485
    %v12550 = vtanh.pop %v12486
    %v12551 = vtanh.pop %v12487
    %v12552 = vtanh.pop %v12488
    %v12553 = vtanh.pop %v12489
    %v12554 = vtanh.pop %v12490
    %v12555 = vtanh.pop %v12491
    %v12556 = vtanh.pop %v12492
    %v12557 = vtanh.pop %v12493
    %v12558 = vtanh.pop %v12494
    %v12559 = vtanh.pop %v12495
    %v12560 = vtanh.pop %v12496
    %v12561 = vtanh.pop %v12497
    %v12562 = vtanh.pop %v12498
    %v12563 = vtanh.pop %v12499
    %v12564 = vtanh.pop %v12500
    %v12565 = vtanh.pop %v12501
    %v12566 = vtanh.pop %v12502
    %v12567 = vtanh.pop %v12503
    %v12568 = vtanh.pop %v12504
    %v12569 = vtanh.pop %v12505
    %v12570 = vtanh.pop %v12506
    %v12571 = vtanh.pop %v12507
    %v12572 = vtanh.pop %v12508
    %v12573 = vtanh.pop %v12509
    %v12574 = vtanh.pop %v12510
    %v12575 = vtanh.pop %v12511
    %v12576 = vtanh.pop %v12512
    %v12577 = vtanh.pop %v12513
    %v12578 = vtanh.pop %v12514
    %v12579 = vtanh.pop %v12515
    %v12580 = vtanh.pop %v12516
    %v12581 = vtanh.pop %v12517
    %v12582 = vtanh.pop %v12518
    %v12583 = vadd.f32 %v12519, 1.0
    %v12584 = vadd.f32 %v12520, 1.0
    %v12585 = vadd.f32 %v12521, 1.0
    %v12586 = vadd.f32 %v12522, 1.0
    %v12587 = vadd.f32 %v12523, 1.0
    %v12588 = vadd.f32 %v12524, 1.0
    %v12589 = vadd.f32 %v12525, 1.0
    %v12590 = vadd.f32 %v12526, 1.0
    %v12591 = vadd.f32 %v12527, 1.0
    %v12592 = vadd.f32 %v12528, 1.0
    %v12593 = vadd.f32 %v12529, 1.0
    %v12594 = vadd.f32 %v12530, 1.0
    %v12595 = vadd.f32 %v12531, 1.0
    %v12596 = vadd.f32 %v12532, 1.0
    %v12597 = vadd.f32 %v12533, 1.0
    %v12598 = vadd.f32 %v12534, 1.0
    %v12599 = vadd.f32 %v12535, 1.0
    %v12600 = vadd.f32 %v12536, 1.0
    %v12601 = vadd.f32 %v12537, 1.0
    %v12602 = vadd.f32 %v12538, 1.0
    %v12603 = vadd.f32 %v12539, 1.0
    %v12604 = vadd.f32 %v12540, 1.0
    %v12605 = vadd.f32 %v12541, 1.0
    %v12606 = vadd.f32 %v12542, 1.0
    %v12607 = vadd.f32 %v12543, 1.0
    %v12608 = vadd.f32 %v12544, 1.0
    %v12609 = vadd.f32 %v12545, 1.0
    %v12610 = vadd.f32 %v12546, 1.0
    %v12611 = vadd.f32 %v12547, 1.0
    %v12612 = vadd.f32 %v12548, 1.0
    %v12613 = vadd.f32 %v12549, 1.0
    %v12614 = vadd.f32 %v12550, 1.0
    %v12615 = vadd.f32 %v12551, 1.0
    %v12616 = vadd.f32 %v12552, 1.0
    %v12617 = vadd.f32 %v12553, 1.0
    %v12618 = vadd.f32 %v12554, 1.0
    %v12619 = vadd.f32 %v12555, 1.0
    %v12620 = vadd.f32 %v12556, 1.0
    %v12621 = vadd.f32 %v12557, 1.0
    %v12622 = vadd.f32 %v12558, 1.0
    %v12623 = vadd.f32 %v12559, 1.0
    %v12624 = vadd.f32 %v12560, 1.0
    %v12625 = vadd.f32 %v12561, 1.0
    %v12626 = vadd.f32 %v12562, 1.0
    %v12627 = vadd.f32 %v12563, 1.0
    %v12628 = vadd.f32 %v12564, 1.0
    %v12629 = vadd.f32 %v12565, 1.0
    %v12630 = vadd.f32 %v12566, 1.0
    %v12631 = vadd.f32 %v12567, 1.0
    %v12632 = vadd.f32 %v12568, 1.0
    %v12633 = vadd.f32 %v12569, 1.0
    %v12634 = vadd.f32 %v12570, 1.0
    %v12635 = vadd.f32 %v12571, 1.0
    %v12636 = vadd.f32 %v12572, 1.0
    %v12637 = vadd.f32 %v12573, 1.0
    %v12638 = vadd.f32 %v12574, 1.0
    %v12639 = vadd.f32 %v12575, 1.0
    %v12640 = vadd.f32 %v12576, 1.0
    %v12641 = vadd.f32 %v12577, 1.0
    %v12642 = vadd.f32 %v12578, 1.0
    %v12643 = vadd.f32 %v12579, 1.0
    %v12644 = vadd.f32 %v12580, 1.0
    %v12645 = vadd.f32 %v12581, 1.0
    %v12646 = vadd.f32 %v12582, 1.0
    %v12647 = vmul.f32 %v12135, %v12583
    %v12648 = vmul.f32 %v12136, %v12584
    %v12649 = vmul.f32 %v12137, %v12585
    %v12650 = vmul.f32 %v12138, %v12586
    %v12651 = vmul.f32 %v12139, %v12587
    %v12652 = vmul.f32 %v12140, %v12588
    %v12653 = vmul.f32 %v12141, %v12589
    %v12654 = vmul.f32 %v12142, %v12590
    %v12655 = vmul.f32 %v12143, %v12591
    %v12656 = vmul.f32 %v12144, %v12592
    %v12657 = vmul.f32 %v12145, %v12593
    %v12658 = vmul.f32 %v12146, %v12594
    %v12659 = vmul.f32 %v12147, %v12595
    %v12660 = vmul.f32 %v12148, %v12596
    %v12661 = vmul.f32 %v12149, %v12597
    %v12662 = vmul.f32 %v12150, %v12598
    %v12663 = vmul.f32 %v12151, %v12599
    %v12664 = vmul.f32 %v12152, %v12600
    %v12665 = vmul.f32 %v12153, %v12601
    %v12666 = vmul.f32 %v12154, %v12602
    %v12667 = vmul.f32 %v12155, %v12603
    %v12668 = vmul.f32 %v12156, %v12604
    %v12669 = vmul.f32 %v12157, %v12605
    %v12670 = vmul.f32 %v12158, %v12606
    %v12671 = vmul.f32 %v12159, %v12607
    %v12672 = vmul.f32 %v12160, %v12608
    %v12673 = vmul.f32 %v12161, %v12609
    %v12674 = vmul.f32 %v12162, %v12610
    %v12675 = vmul.f32 %v12163, %v12611
    %v12676 = vmul.f32 %v12164, %v12612
    %v12677 = vmul.f32 %v12165, %v12613
    %v12678 = vmul.f32 %v12166, %v12614
    %v12679 = vmul.f32 %v12167, %v12615
    %v12680 = vmul.f32 %v12168, %v12616
    %v12681 = vmul.f32 %v12169, %v12617
    %v12682 = vmul.f32 %v12170, %v12618
    %v12683 = vmul.f32 %v12171, %v12619
    %v12684 = vmul.f32 %v12172, %v12620
    %v12685 = vmul.f32 %v12173, %v12621
    %v12686 = vmul.f32 %v12174, %v12622
    %v12687 = vmul.f32 %v12175, %v12623
    %v12688 = vmul.f32 %v12176, %v12624
    %v12689 = vmul.f32 %v12177, %v12625
    %v12690 = vmul.f32 %v12178, %v12626
    %v12691 = vmul.f32 %v12179, %v12627
    %v12692 = vmul.f32 %v12180, %v12628
    %v12693 = vmul.f32 %v12181, %v12629
    %v12694 = vmul.f32 %v12182, %v12630
    %v12695 = vmul.f32 %v12183, %v12631
    %v12696 = vmul.f32 %v12184, %v12632
    %v12697 = vmul.f32 %v12185, %v12633
    %v12698 = vmul.f32 %v12186, %v12634
    %v12699 = vmul.f32 %v12187, %v12635
    %v12700 = vmul.f32 %v12188, %v12636
    %v12701 = vmul.f32 %v12189, %v12637
    %v12702 = vmul.f32 %v12190, %v12638
    %v12703 = vmul.f32 %v12191, %v12639
    %v12704 = vmul.f32 %v12192, %v12640
    %v12705 = vmul.f32 %v12193, %v12641
    %v12706 = vmul.f32 %v12194, %v12642
    %v12707 = vmul.f32 %v12195, %v12643
    %v12708 = vmul.f32 %v12196, %v12644
    %v12709 = vmul.f32 %v12197, %v12645
    %v12710 = vmul.f32 %v12198, %v12646
    %v12711 = vpack.c.bf16 %v12648, %v12647
    %v12712 = vpack.c.bf16 %v12650, %v12649
    %v12713 = vpack.c.bf16 %v12652, %v12651
    %v12714 = vpack.c.bf16 %v12654, %v12653
    %v12715 = vpack.c.bf16 %v12656, %v12655
    %v12716 = vpack.c.bf16 %v12658, %v12657
    %v12717 = vpack.c.bf16 %v12660, %v12659
    %v12718 = vpack.c.bf16 %v12662, %v12661
    %v12719 = vpack.c.bf16 %v12664, %v12663
    %v12720 = vpack.c.bf16 %v12666, %v12665
    %v12721 = vpack.c.bf16 %v12668, %v12667
    %v12722 = vpack.c.bf16 %v12670, %v12669
    %v12723 = vpack.c.bf16 %v12672, %v12671
    %v12724 = vpack.c.bf16 %v12674, %v12673
    %v12725 = vpack.c.bf16 %v12676, %v12675
    %v12726 = vpack.c.bf16 %v12678, %v12677
    %v12727 = vpack.c.bf16 %v12680, %v12679
    %v12728 = vpack.c.bf16 %v12682, %v12681
    %v12729 = vpack.c.bf16 %v12684, %v12683
    %v12730 = vpack.c.bf16 %v12686, %v12685
    %v12731 = vpack.c.bf16 %v12688, %v12687
    %v12732 = vpack.c.bf16 %v12690, %v12689
    %v12733 = vpack.c.bf16 %v12692, %v12691
    %v12734 = vpack.c.bf16 %v12694, %v12693
    %v12735 = vpack.c.bf16 %v12696, %v12695
    %v12736 = vpack.c.bf16 %v12698, %v12697
    %v12737 = vpack.c.bf16 %v12700, %v12699
    %v12738 = vpack.c.bf16 %v12702, %v12701
    %v12739 = vpack.c.bf16 %v12704, %v12703
    %v12740 = vpack.c.bf16 %v12706, %v12705
    %v12741 = vpack.c.bf16 %v12708, %v12707
    %v12742 = vpack.c.bf16 %v12710, %v12709
    %v12743 = vld [vmem:[%s12] sm:$0xf]
    %v12744 = vld [vmem:[%s12 + $0x4] sm:$0xf]
    %v12745 = vld [vmem:[%s12 + $0x8] sm:$0xf]
    %v12746 = vld [vmem:[%s12 + $0xc] sm:$0xf]
    %v12747 = vld [vmem:[%s12 + $0x10] sm:$0xf]
    %v12748 = vld [vmem:[%s12 + $0x14] sm:$0xf]
    %v12749 = vld [vmem:[%s12 + $0x18] sm:$0xf]
    %v12750 = vld [vmem:[%s12 + $0x1c] sm:$0xf]
    %v12751 = vld [vmem:[%s12 + $0x20] sm:$0xf]
    %v12752 = vld [vmem:[%s12 + $0x24] sm:$0xf]
    %v12753 = vld [vmem:[%s12 + $0x28] sm:$0xf]
    %v12754 = vld [vmem:[%s12 + $0x2c] sm:$0xf]
    %v12755 = vld [vmem:[%s12 + $0x30] sm:$0xf]
    %v12756 = vld [vmem:[%s12 + $0x34] sm:$0xf]
    %v12757 = vld [vmem:[%s12 + $0x38] sm:$0xf]
    %v12758 = vld [vmem:[%s12 + $0x3c] sm:$0xf]
    %v12775 = vunpack.c.l.b16 %v12743
    %v12776 = vunpack.c.l.b16 %v12744
    %v12777 = vunpack.c.l.b16 %v12745
    %v12778 = vunpack.c.l.b16 %v12746
    %v12779 = vunpack.c.l.b16 %v12747
    %v12780 = vunpack.c.l.b16 %v12748
    %v12781 = vunpack.c.l.b16 %v12749
    %v12782 = vunpack.c.l.b16 %v12750
    %v12783 = vunpack.c.l.b16 %v12751
    %v12784 = vunpack.c.l.b16 %v12752
    %v12785 = vunpack.c.l.b16 %v12753
    %v12786 = vunpack.c.l.b16 %v12754
    %v12787 = vunpack.c.l.b16 %v12755
    %v12788 = vunpack.c.l.b16 %v12756
    %v12789 = vunpack.c.l.b16 %v12757
    %v12790 = vunpack.c.l.b16 %v12758
    %v12791 = vpack.c.b16 %v12776, %v12775
    %v12792 = vpack.c.b16 %v12778, %v12777
    %v12793 = vpack.c.b16 %v12780, %v12779
    %v12794 = vpack.c.b16 %v12782, %v12781
    %v12795 = vpack.c.b16 %v12784, %v12783
    %v12796 = vpack.c.b16 %v12786, %v12785
    %v12797 = vpack.c.b16 %v12788, %v12787
    %v12798 = vpack.c.b16 %v12790, %v12789
    %12807 = vmatpush.bf16.msra.mxu0 %v12798
    %12808 = vmatpush.bf16.msra.mxu0 %v12797
    %12809 = vmatpush.bf16.msra.mxu0 %v12796
    %12810 = vmatpush.bf16.msra.mxu0 %v12795
    %12811 = vmatpush.bf16.msra.mxu0 %v12794
    %12812 = vmatpush.bf16.msra.mxu0 %v12793
    %12813 = vmatpush.bf16.msra.mxu0 %v12792
    %12814 = vmatpush.bf16.msra.mxu0 %v12791
    %12815 = vmatmul.bf16.gmra.mxu0 %v12711
    %v12816 = vpop.f32.mrf.mxu0
    %v12817 = vadd.f32 0.0, %v12816
    %v12818 = vpop.f32.mrf.mxu0
    %v12819 = vadd.f32 0.0, %v12818
    %12820 = vmatmul.bf16.gmra.mxu0 %v12712
    %v12821 = vpop.f32.mrf.mxu0
    %v12822 = vadd.f32 0.0, %v12821
    %v12823 = vpop.f32.mrf.mxu0
    %v12824 = vadd.f32 0.0, %v12823
    %12825 = vmatmul.bf16.gmra.mxu0 %v12713
    %v12826 = vpop.f32.mrf.mxu0
    %v12827 = vadd.f32 0.0, %v12826
    %v12828 = vpop.f32.mrf.mxu0
    %v12829 = vadd.f32 0.0, %v12828
    %12830 = vmatmul.bf16.gmra.mxu0 %v12714
    %v12831 = vpop.f32.mrf.mxu0
    %v12832 = vadd.f32 0.0, %v12831
    %v12833 = vpop.f32.mrf.mxu0
    %v12834 = vadd.f32 0.0, %v12833
    %12835 = vmatmul.bf16.gmra.mxu0 %v12715
    %v12836 = vpop.f32.mrf.mxu0
    %v12837 = vadd.f32 0.0, %v12836
    %v12838 = vpop.f32.mrf.mxu0
    %v12839 = vadd.f32 0.0, %v12838
    %12840 = vmatmul.bf16.gmra.mxu0 %v12716
    %v12841 = vpop.f32.mrf.mxu0
    %v12842 = vadd.f32 0.0, %v12841
    %v12843 = vpop.f32.mrf.mxu0
    %v12844 = vadd.f32 0.0, %v12843
    %12845 = vmatmul.bf16.gmra.mxu0 %v12717
    %v12846 = vpop.f32.mrf.mxu0
    %v12847 = vadd.f32 0.0, %v12846
    %v12848 = vpop.f32.mrf.mxu0
    %v12849 = vadd.f32 0.0, %v12848
    %12850 = vmatmul.bf16.gmra.mxu0 %v12718
    %v12851 = vpop.f32.mrf.mxu0
    %v12852 = vadd.f32 0.0, %v12851
    %v12853 = vpop.f32.mrf.mxu0
    %v12854 = vadd.f32 0.0, %v12853
    %12855 = vmatmul.bf16.gmra.mxu0 %v12719
    %v12856 = vpop.f32.mrf.mxu0
    %v12857 = vadd.f32 0.0, %v12856
    %v12858 = vpop.f32.mrf.mxu0
    %v12859 = vadd.f32 0.0, %v12858
    %12860 = vmatmul.bf16.gmra.mxu0 %v12720
    %v12861 = vpop.f32.mrf.mxu0
    %v12862 = vadd.f32 0.0, %v12861
    %v12863 = vpop.f32.mrf.mxu0
    %v12864 = vadd.f32 0.0, %v12863
    %12865 = vmatmul.bf16.gmra.mxu0 %v12721
    %v12866 = vpop.f32.mrf.mxu0
    %v12867 = vadd.f32 0.0, %v12866
    %v12868 = vpop.f32.mrf.mxu0
    %v12869 = vadd.f32 0.0, %v12868
    %12870 = vmatmul.bf16.gmra.mxu0 %v12722
    %v12871 = vpop.f32.mrf.mxu0
    %v12872 = vadd.f32 0.0, %v12871
    %v12873 = vpop.f32.mrf.mxu0
    %v12874 = vadd.f32 0.0, %v12873
    %12875 = vmatmul.bf16.gmra.mxu0 %v12723
    %v12876 = vpop.f32.mrf.mxu0
    %v12877 = vadd.f32 0.0, %v12876
    %v12878 = vpop.f32.mrf.mxu0
    %v12879 = vadd.f32 0.0, %v12878
    %12880 = vmatmul.bf16.gmra.mxu0 %v12724
    %v12881 = vpop.f32.mrf.mxu0
    %v12882 = vadd.f32 0.0, %v12881
    %v12883 = vpop.f32.mrf.mxu0
    %v12884 = vadd.f32 0.0, %v12883
    %12885 = vmatmul.bf16.gmra.mxu0 %v12725
    %v12886 = vpop.f32.mrf.mxu0
    %v12887 = vadd.f32 0.0, %v12886
    %v12888 = vpop.f32.mrf.mxu0
    %v12889 = vadd.f32 0.0, %v12888
    %12890 = vmatmul.bf16.gmra.mxu0 %v12726
    %v12891 = vpop.f32.mrf.mxu0
    %v12892 = vadd.f32 0.0, %v12891
    %v12893 = vpop.f32.mrf.mxu0
    %v12894 = vadd.f32 0.0, %v12893
    %12895 = vmatmul.bf16.gmra.mxu0 %v12727
    %v12896 = vpop.f32.mrf.mxu0
    %v12897 = vadd.f32 0.0, %v12896
    %v12898 = vpop.f32.mrf.mxu0
    %v12899 = vadd.f32 0.0, %v12898
    %12900 = vmatmul.bf16.gmra.mxu0 %v12728
    %v12901 = vpop.f32.mrf.mxu0
    %v12902 = vadd.f32 0.0, %v12901
    %v12903 = vpop.f32.mrf.mxu0
    %v12904 = vadd.f32 0.0, %v12903
    %12905 = vmatmul.bf16.gmra.mxu0 %v12729
    %v12906 = vpop.f32.mrf.mxu0
    %v12907 = vadd.f32 0.0, %v12906
    %v12908 = vpop.f32.mrf.mxu0
    %v12909 = vadd.f32 0.0, %v12908
    %12910 = vmatmul.bf16.gmra.mxu0 %v12730
    %v12911 = vpop.f32.mrf.mxu0
    %v12912 = vadd.f32 0.0, %v12911
    %v12913 = vpop.f32.mrf.mxu0
    %v12914 = vadd.f32 0.0, %v12913
    %12915 = vmatmul.bf16.gmra.mxu0 %v12731
    %v12916 = vpop.f32.mrf.mxu0
    %v12917 = vadd.f32 0.0, %v12916
    %v12918 = vpop.f32.mrf.mxu0
    %v12919 = vadd.f32 0.0, %v12918
    %12920 = vmatmul.bf16.gmra.mxu0 %v12732
    %v12921 = vpop.f32.mrf.mxu0
    %v12922 = vadd.f32 0.0, %v12921
    %v12923 = vpop.f32.mrf.mxu0
    %v12924 = vadd.f32 0.0, %v12923
    %12925 = vmatmul.bf16.gmra.mxu0 %v12733
    %v12926 = vpop.f32.mrf.mxu0
    %v12927 = vadd.f32 0.0, %v12926
    %v12928 = vpop.f32.mrf.mxu0
    %v12929 = vadd.f32 0.0, %v12928
    %12930 = vmatmul.bf16.gmra.mxu0 %v12734
    %v12931 = vpop.f32.mrf.mxu0
    %v12932 = vadd.f32 0.0, %v12931
    %v12933 = vpop.f32.mrf.mxu0
    %v12934 = vadd.f32 0.0, %v12933
    %12935 = vmatmul.bf16.gmra.mxu0 %v12735
    %v12936 = vpop.f32.mrf.mxu0
    %v12937 = vadd.f32 0.0, %v12936
    %v12938 = vpop.f32.mrf.mxu0
    %v12939 = vadd.f32 0.0, %v12938
    %12940 = vmatmul.bf16.gmra.mxu0 %v12736
    %v12941 = vpop.f32.mrf.mxu0
    %v12942 = vadd.f32 0.0, %v12941
    %v12943 = vpop.f32.mrf.mxu0
    %v12944 = vadd.f32 0.0, %v12943
    %12945 = vmatmul.bf16.gmra.mxu0 %v12737
    %v12946 = vpop.f32.mrf.mxu0
    %v12947 = vadd.f32 0.0, %v12946
    %v12948 = vpop.f32.mrf.mxu0
    %v12949 = vadd.f32 0.0, %v12948
    %12950 = vmatmul.bf16.gmra.mxu0 %v12738
    %v12951 = vpop.f32.mrf.mxu0
    %v12952 = vadd.f32 0.0, %v12951
    %v12953 = vpop.f32.mrf.mxu0
    %v12954 = vadd.f32 0.0, %v12953
    %12955 = vmatmul.bf16.gmra.mxu0 %v12739
    %v12956 = vpop.f32.mrf.mxu0
    %v12957 = vadd.f32 0.0, %v12956
    %v12958 = vpop.f32.mrf.mxu0
    %v12959 = vadd.f32 0.0, %v12958
    %12960 = vmatmul.bf16.gmra.mxu0 %v12740
    %v12961 = vpop.f32.mrf.mxu0
    %v12962 = vadd.f32 0.0, %v12961
    %v12963 = vpop.f32.mrf.mxu0
    %v12964 = vadd.f32 0.0, %v12963
    %12965 = vmatmul.bf16.gmra.mxu0 %v12741
    %v12966 = vpop.f32.mrf.mxu0
    %v12967 = vadd.f32 0.0, %v12966
    %v12968 = vpop.f32.mrf.mxu0
    %v12969 = vadd.f32 0.0, %v12968
    %12970 = vmatmul.bf16.gmra.mxu0 %v12742
    %v12971 = vpop.f32.mrf.mxu0
    %v12972 = vadd.f32 0.0, %v12971
    %v12973 = vpop.f32.mrf.mxu0
    %v12974 = vadd.f32 0.0, %v12973
    %12975 = vdwg.mxu0
    %v12976 = vadd.f32 %v10210, %v12817
    %v12977 = vadd.f32 %v10211, %v12819
    %v12978 = vadd.f32 %v10212, %v12822
    %v12979 = vadd.f32 %v10213, %v12824
    %v12980 = vadd.f32 %v10214, %v12827
    %v12981 = vadd.f32 %v10215, %v12829
    %v12982 = vadd.f32 %v10216, %v12832
    %v12983 = vadd.f32 %v10217, %v12834
    %v12984 = vadd.f32 %v10218, %v12837
    %v12985 = vadd.f32 %v10219, %v12839
    %v12986 = vadd.f32 %v10220, %v12842
    %v12987 = vadd.f32 %v10221, %v12844
    %v12988 = vadd.f32 %v10222, %v12847
    %v12989 = vadd.f32 %v10223, %v12849
    %v12990 = vadd.f32 %v10224, %v12852
    %v12991 = vadd.f32 %v10225, %v12854
    %v12992 = vadd.f32 %v10226, %v12857
    %v12993 = vadd.f32 %v10227, %v12859
    %v12994 = vadd.f32 %v10228, %v12862
    %v12995 = vadd.f32 %v10229, %v12864
    %v12996 = vadd.f32 %v10230, %v12867
    %v12997 = vadd.f32 %v10231, %v12869
    %v12998 = vadd.f32 %v10232, %v12872
    %v12999 = vadd.f32 %v10233, %v12874
    %v13000 = vadd.f32 %v10234, %v12877
    %v13001 = vadd.f32 %v10235, %v12879
    %v13002 = vadd.f32 %v10236, %v12882
    %v13003 = vadd.f32 %v10237, %v12884
    %v13004 = vadd.f32 %v10238, %v12887
    %v13005 = vadd.f32 %v10239, %v12889
    %v13006 = vadd.f32 %v10240, %v12892
    %v13007 = vadd.f32 %v10241, %v12894
    %v13008 = vadd.f32 %v10242, %v12897
    %v13009 = vadd.f32 %v10243, %v12899
    %v13010 = vadd.f32 %v10244, %v12902
    %v13011 = vadd.f32 %v10245, %v12904
    %v13012 = vadd.f32 %v10246, %v12907
    %v13013 = vadd.f32 %v10247, %v12909
    %v13014 = vadd.f32 %v10248, %v12912
    %v13015 = vadd.f32 %v10249, %v12914
    %v13016 = vadd.f32 %v10250, %v12917
    %v13017 = vadd.f32 %v10251, %v12919
    %v13018 = vadd.f32 %v10252, %v12922
    %v13019 = vadd.f32 %v10253, %v12924
    %v13020 = vadd.f32 %v10254, %v12927
    %v13021 = vadd.f32 %v10255, %v12929
    %v13022 = vadd.f32 %v10256, %v12932
    %v13023 = vadd.f32 %v10257, %v12934
    %v13024 = vadd.f32 %v10258, %v12937
    %v13025 = vadd.f32 %v10259, %v12939
    %v13026 = vadd.f32 %v10260, %v12942
    %v13027 = vadd.f32 %v10261, %v12944
    %v13028 = vadd.f32 %v10262, %v12947
    %v13029 = vadd.f32 %v10263, %v12949
    %v13030 = vadd.f32 %v10264, %v12952
    %v13031 = vadd.f32 %v10265, %v12954
    %v13032 = vadd.f32 %v10266, %v12957
    %v13033 = vadd.f32 %v10267, %v12959
    %v13034 = vadd.f32 %v10268, %v12962
    %v13035 = vadd.f32 %v10269, %v12964
    %v13036 = vadd.f32 %v10270, %v12967
    %v13037 = vadd.f32 %v10271, %v12969
    %v13038 = vadd.f32 %v10272, %v12972
    %v13039 = vadd.f32 %v10273, %v12974
    %v13040 = vld [vmem:[%s13] sm:$0x1]
    %v13042 = vperm.slane %v13040, 0
    %v13044 = vadd.f32 %v12976, %v13042
    %v13045 = vadd.f32 %v12977, %v13042
    %v13046 = vadd.f32 %v12978, %v13042
    %v13047 = vadd.f32 %v12979, %v13042
    %v13048 = vadd.f32 %v12980, %v13042
    %v13049 = vadd.f32 %v12981, %v13042
    %v13050 = vadd.f32 %v12982, %v13042
    %v13051 = vadd.f32 %v12983, %v13042
    %v13052 = vadd.f32 %v12984, %v13042
    %v13053 = vadd.f32 %v12985, %v13042
    %v13054 = vadd.f32 %v12986, %v13042
    %v13055 = vadd.f32 %v12987, %v13042
    %v13056 = vadd.f32 %v12988, %v13042
    %v13057 = vadd.f32 %v12989, %v13042
    %v13058 = vadd.f32 %v12990, %v13042
    %v13059 = vadd.f32 %v12991, %v13042
    %v13060 = vadd.f32 %v12992, %v13042
    %v13061 = vadd.f32 %v12993, %v13042
    %v13062 = vadd.f32 %v12994, %v13042
    %v13063 = vadd.f32 %v12995, %v13042
    %v13064 = vadd.f32 %v12996, %v13042
    %v13065 = vadd.f32 %v12997, %v13042
    %v13066 = vadd.f32 %v12998, %v13042
    %v13067 = vadd.f32 %v12999, %v13042
    %v13068 = vadd.f32 %v13000, %v13042
    %v13069 = vadd.f32 %v13001, %v13042
    %v13070 = vadd.f32 %v13002, %v13042
    %v13071 = vadd.f32 %v13003, %v13042
    %v13072 = vadd.f32 %v13004, %v13042
    %v13073 = vadd.f32 %v13005, %v13042
    %v13074 = vadd.f32 %v13006, %v13042
    %v13075 = vadd.f32 %v13007, %v13042
    %v13076 = vadd.f32 %v13008, %v13042
    %v13077 = vadd.f32 %v13009, %v13042
    %v13078 = vadd.f32 %v13010, %v13042
    %v13079 = vadd.f32 %v13011, %v13042
    %v13080 = vadd.f32 %v13012, %v13042
    %v13081 = vadd.f32 %v13013, %v13042
    %v13082 = vadd.f32 %v13014, %v13042
    %v13083 = vadd.f32 %v13015, %v13042
    %v13084 = vadd.f32 %v13016, %v13042
    %v13085 = vadd.f32 %v13017, %v13042
    %v13086 = vadd.f32 %v13018, %v13042
    %v13087 = vadd.f32 %v13019, %v13042
    %v13088 = vadd.f32 %v13020, %v13042
    %v13089 = vadd.f32 %v13021, %v13042
    %v13090 = vadd.f32 %v13022, %v13042
    %v13091 = vadd.f32 %v13023, %v13042
    %v13092 = vadd.f32 %v13024, %v13042
    %v13093 = vadd.f32 %v13025, %v13042
    %v13094 = vadd.f32 %v13026, %v13042
    %v13095 = vadd.f32 %v13027, %v13042
    %v13096 = vadd.f32 %v13028, %v13042
    %v13097 = vadd.f32 %v13029, %v13042
    %v13098 = vadd.f32 %v13030, %v13042
    %v13099 = vadd.f32 %v13031, %v13042
    %v13100 = vadd.f32 %v13032, %v13042
    %v13101 = vadd.f32 %v13033, %v13042
    %v13102 = vadd.f32 %v13034, %v13042
    %v13103 = vadd.f32 %v13035, %v13042
    %v13104 = vadd.f32 %v13036, %v13042
    %v13105 = vadd.f32 %v13037, %v13042
    %v13106 = vadd.f32 %v13038, %v13042
    %v13107 = vadd.f32 %v13039, %v13042
    %13108 = vst.msk [vmem:[#allocation8] sm:$0xff] %vm145, %v13044
    %13109 = vst.msk [vmem:[#allocation8 + $0x8] sm:$0xff] %vm145, %v13045
    %13110 = vst.msk [vmem:[#allocation8 + $0x10] sm:$0xff] %vm145, %v13046
    %13111 = vst.msk [vmem:[#allocation8 + $0x18] sm:$0xff] %vm145, %v13047
    %13112 = vst.msk [vmem:[#allocation8 + $0x20] sm:$0xff] %vm145, %v13048
    %13113 = vst.msk [vmem:[#allocation8 + $0x28] sm:$0xff] %vm145, %v13049
    %13114 = vst.msk [vmem:[#allocation8 + $0x30] sm:$0xff] %vm145, %v13050
    %13115 = vst.msk [vmem:[#allocation8 + $0x38] sm:$0xff] %vm145, %v13051
    %13116 = vst.msk [vmem:[#allocation8 + $0x40] sm:$0xff] %vm145, %v13052
    %13117 = vst.msk [vmem:[#allocation8 + $0x48] sm:$0xff] %vm145, %v13053
    %13118 = vst.msk [vmem:[#allocation8 + $0x50] sm:$0xff] %vm145, %v13054
    %13119 = vst.msk [vmem:[#allocation8 + $0x58] sm:$0xff] %vm145, %v13055
    %13120 = vst.msk [vmem:[#allocation8 + $0x60] sm:$0xff] %vm145, %v13056
    %13121 = vst.msk [vmem:[#allocation8 + $0x68] sm:$0xff] %vm145, %v13057
    %13122 = vst.msk [vmem:[#allocation8 + $0x70] sm:$0xff] %vm145, %v13058
    %13123 = vst.msk [vmem:[#allocation8 + $0x78] sm:$0xff] %vm145, %v13059
    %13124 = vst.msk [vmem:[#allocation8 + $0x80] sm:$0xff] %vm145, %v13060
    %13125 = vst.msk [vmem:[#allocation8 + $0x88] sm:$0xff] %vm145, %v13061
    %13126 = vst.msk [vmem:[#allocation8 + $0x90] sm:$0xff] %vm145, %v13062
    %13127 = vst.msk [vmem:[#allocation8 + $0x98] sm:$0xff] %vm145, %v13063
    %13128 = vst.msk [vmem:[#allocation8 + $0xa0] sm:$0xff] %vm145, %v13064
    %13129 = vst.msk [vmem:[#allocation8 + $0xa8] sm:$0xff] %vm145, %v13065
    %13130 = vst.msk [vmem:[#allocation8 + $0xb0] sm:$0xff] %vm145, %v13066
    %13131 = vst.msk [vmem:[#allocation8 + $0xb8] sm:$0xff] %vm145, %v13067
    %13132 = vst.msk [vmem:[#allocation8 + $0xc0] sm:$0xff] %vm145, %v13068
    %13133 = vst.msk [vmem:[#allocation8 + $0xc8] sm:$0xff] %vm145, %v13069
    %13134 = vst.msk [vmem:[#allocation8 + $0xd0] sm:$0xff] %vm145, %v13070
    %13135 = vst.msk [vmem:[#allocation8 + $0xd8] sm:$0xff] %vm145, %v13071
    %13136 = vst.msk [vmem:[#allocation8 + $0xe0] sm:$0xff] %vm145, %v13072
    %13137 = vst.msk [vmem:[#allocation8 + $0xe8] sm:$0xff] %vm145, %v13073
    %13138 = vst.msk [vmem:[#allocation8 + $0xf0] sm:$0xff] %vm145, %v13074
    %13139 = vst.msk [vmem:[#allocation8 + $0xf8] sm:$0xff] %vm145, %v13075
    %13140 = vst.msk [vmem:[#allocation8 + $0x100] sm:$0xff] %vm145, %v13076
    %13141 = vst.msk [vmem:[#allocation8 + $0x108] sm:$0xff] %vm145, %v13077
    %13142 = vst.msk [vmem:[#allocation8 + $0x110] sm:$0xff] %vm145, %v13078
    %13143 = vst.msk [vmem:[#allocation8 + $0x118] sm:$0xff] %vm145, %v13079
    %13144 = vst.msk [vmem:[#allocation8 + $0x120] sm:$0xff] %vm145, %v13080
    %13145 = vst.msk [vmem:[#allocation8 + $0x128] sm:$0xff] %vm145, %v13081
    %13146 = vst.msk [vmem:[#allocation8 + $0x130] sm:$0xff] %vm145, %v13082
    %13147 = vst.msk [vmem:[#allocation8 + $0x138] sm:$0xff] %vm145, %v13083
    %13148 = vst.msk [vmem:[#allocation8 + $0x140] sm:$0xff] %vm145, %v13084
    %13149 = vst.msk [vmem:[#allocation8 + $0x148] sm:$0xff] %vm145, %v13085
    %13150 = vst.msk [vmem:[#allocation8 + $0x150] sm:$0xff] %vm145, %v13086
    %13151 = vst.msk [vmem:[#allocation8 + $0x158] sm:$0xff] %vm145, %v13087
    %13152 = vst.msk [vmem:[#allocation8 + $0x160] sm:$0xff] %vm145, %v13088
    %13153 = vst.msk [vmem:[#allocation8 + $0x168] sm:$0xff] %vm145, %v13089
    %13154 = vst.msk [vmem:[#allocation8 + $0x170] sm:$0xff] %vm145, %v13090
    %13155 = vst.msk [vmem:[#allocation8 + $0x178] sm:$0xff] %vm145, %v13091
    %13156 = vst.msk [vmem:[#allocation8 + $0x180] sm:$0xff] %vm145, %v13092
    %13157 = vst.msk [vmem:[#allocation8 + $0x188] sm:$0xff] %vm145, %v13093
    %13158 = vst.msk [vmem:[#allocation8 + $0x190] sm:$0xff] %vm145, %v13094
    %13159 = vst.msk [vmem:[#allocation8 + $0x198] sm:$0xff] %vm145, %v13095
    %13160 = vst.msk [vmem:[#allocation8 + $0x1a0] sm:$0xff] %vm145, %v13096
    %13161 = vst.msk [vmem:[#allocation8 + $0x1a8] sm:$0xff] %vm145, %v13097
    %13162 = vst.msk [vmem:[#allocation8 + $0x1b0] sm:$0xff] %vm145, %v13098
    %13163 = vst.msk [vmem:[#allocation8 + $0x1b8] sm:$0xff] %vm145, %v13099
    %13164 = vst.msk [vmem:[#allocation8 + $0x1c0] sm:$0xff] %vm145, %v13100
    %13165 = vst.msk [vmem:[#allocation8 + $0x1c8] sm:$0xff] %vm145, %v13101
    %13166 = vst.msk [vmem:[#allocation8 + $0x1d0] sm:$0xff] %vm145, %v13102
    %13167 = vst.msk [vmem:[#allocation8 + $0x1d8] sm:$0xff] %vm145, %v13103
    %13168 = vst.msk [vmem:[#allocation8 + $0x1e0] sm:$0xff] %vm145, %v13104
    %13169 = vst.msk [vmem:[#allocation8 + $0x1e8] sm:$0xff] %vm145, %v13105
    %13170 = vst.msk [vmem:[#allocation8 + $0x1f0] sm:$0xff] %vm145, %v13106
    %13171 = vst.msk [vmem:[#allocation8 + $0x1f8] sm:$0xff] %vm145, %v13107
    // Predicated region
    $region66: #{tpu_custom_call.1} parent=1 // pred_check
      _
    $region67: #{tpu_custom_call.1} parent=1 // pred_check_branch
      %13173 = sbr.rel (0) target = $region69
    $region68: #{tpu_custom_call.1} parent=1 // pred_region
      %13175 = vsyncadd [#allocation5], 0
      %s13176 = sshll.u32 [#allocation8], 4
      %s13177 = int_to_ptr.vmem [resolvable:$true] %s13176
      %s13178 = sshll.u32 %s14, 4
      %s13179 = int_to_ptr.hbm [resolvable:$true] %s13178
      %13184 = dma.vmem_to_hbm [thread:$0]  %s13177, 8192, %s13179, [#allocation5], 128, 128, 8
    $region69: #{tpu_custom_call.1} parent=1 // pred_fallthru
      _
    // Predicated region
    $region70: #{tpu_custom_call.1} parent=1 // pred_check
      _
    $region71: #{tpu_custom_call.1} parent=1 // pred_check_branch
      %13186 = sbr.rel (0) target = $region73
    $region72: #{tpu_custom_call.1} parent=1 // pred_region
      %13188 = dma.done [#allocation5], 8192
    $region73: #{tpu_custom_call.1} parent=1 // pred_fallthru
      _
    %13189 = vsyncpa [#allocation4], 1
    %13190 = vsyncpa [#allocation7], 1
    %13191 = vsyncpa [#allocation5], 1

</llo_original>
